<compile_context>
chip_gen: v7x
topology: tpu7x:2x2x1
jax: 0.10.0
libtpu: 0.0.40
codegen_flags: <defaults>
</compile_context>

<pallas_src>
import functools

import jax
import jax.numpy as jnp
from jax.experimental import pallas as pl
from jax.experimental.pallas import tpu as pltpu


NEG_BIG = -9e15  # same mask value as the PyTorch reference


# ---------------------------------------------------------------------------
# helpers
# ---------------------------------------------------------------------------
def _round_up(v, m):
    return ((v + m - 1) // m) * m


def _pow2_tile(n128, pref):
    """Largest 128 * 2^k that is <= min(pref, n128) (minimum 128)."""
    t = 128
    while t * 2 <= min(pref, n128):
        t *= 2
    return t


def _pad2(m, rows, cols):
    return jnp.pad(m, ((0, rows - m.shape[0]), (0, cols - m.shape[1])))


# ---------------------------------------------------------------------------
# Pallas kernels
# ---------------------------------------------------------------------------
def _project_kernel(h_ref, w_ref, asrc_ref, adst_ref, wh_ref, f1_ref, f2_ref):
    """Wh = h @ W (MXU, f32 acc); f1 = Wh.a_src, f2 = Wh.a_dst (VPU+reduce).

    h/W are pre-cast to the compute dtype in the wrapper, so no per-step cast.
    """
    wh = jnp.dot(h_ref[...], w_ref[...], preferred_element_type=jnp.float32)
    f1_ref[...] = jnp.sum(wh * asrc_ref[...], axis=-1, keepdims=True)
    f2_ref[...] = jnp.sum(wh * adst_ref[...], axis=-1, keepdims=True)
    wh_ref[...] = wh.astype(wh_ref.dtype)


def _gat_attention_kernel(f1_ref, f2_ref, adj_ref, wh_ref, out_ref,
                          m_ref, l_ref, acc_ref, *, alpha, concat, tn,
                          exp_dtype):
    """Online-softmax GAT attention.

    grid = (row_blocks ["parallel"], col_blocks ["arbitrary"]).
    adj_ref : (tm, tn) int8 adjacency tile (masked in-kernel).
    wh_ref  : (Np, F) full VMEM-resident projected features (sliced by j).
    """
    j = pl.program_id(1)

    @pl.when(j == 0)
    def _():
        m_ref[...] = jnp.full_like(m_ref, -jnp.inf)
        l_ref[...] = jnp.zeros_like(l_ref)
        acc_ref[...] = jnp.zeros_like(acc_ref)

    e = f1_ref[...] + f2_ref[...]                  # (tm, tn) f32 broadcast
    e = jnp.maximum(e, alpha * e)                  # LeakyReLU (alpha < 1)
    e = jnp.where(adj_ref[...] != 0, e, NEG_BIG)   # adjacency mask (int8)

    m_prev = m_ref[...]
    m_new = jnp.maximum(m_prev, jnp.max(e, axis=1, keepdims=True))
    corr = jnp.exp(m_prev - m_new)
    p = jnp.exp((e - m_new).astype(exp_dtype))     # bf16 exp on v6e/v7x
    l_ref[...] = corr * l_ref[...] + jnp.sum(
        p.astype(jnp.float32), axis=1, keepdims=True)

    jj = pl.multiple_of(j * tn, tn)
    acc_ref[...] = corr * acc_ref[...] + jnp.dot(
        p.astype(wh_ref.dtype), wh_ref[pl.ds(jj, tn), :],
        preferred_element_type=jnp.float32)
    m_ref[...] = m_new

    @pl.when(j == pl.num_programs(1) - 1)
    def _():
        out = acc_ref[...] * pl.reciprocal(l_ref[...], approx=True)
        if concat:  # ELU; clamp before exp to avoid exp of large positives
            out = jnp.where(out > 0, out,
                            jnp.exp(jnp.minimum(out, 0.0)) - 1.0)
        out_ref[...] = out.astype(out_ref.dtype)


def _gat_vae_head_kernel(f1mu_ref, f2mu_ref, f1lv_ref, f2lv_ref, adj_ref,
                         whmu_ref, whlv_ref, eps_ref, wc_ref, bc_ref,
                         logits_ref, mu_ref, lv_ref,
                         m_mu, l_mu, acc_mu, m_lv, l_lv, acc_lv,
                         *, alpha, tn, exp_dtype):
    """Fused gat_mu + gat_logvar attention (shared adjacency tile) +
    reparameterize + classifier, all with online softmax."""
    j = pl.program_id(1)

    @pl.when(j == 0)
    def _():
        for m_r, l_r, a_r in ((m_mu, l_mu, acc_mu), (m_lv, l_lv, acc_lv)):
            m_r[...] = jnp.full_like(m_r, -jnp.inf)
            l_r[...] = jnp.zeros_like(l_r)
            a_r[...] = jnp.zeros_like(a_r)

    adj_nz = adj_ref[...] != 0                     # read once, used twice
    jj = pl.multiple_of(j * tn, tn)

    def branch(f1_ref, f2_ref, wh_ref, m_r, l_r, a_r):
        e = f1_ref[...] + f2_ref[...]
        e = jnp.maximum(e, alpha * e)
        e = jnp.where(adj_nz, e, NEG_BIG)
        m_prev = m_r[...]
        m_new = jnp.maximum(m_prev, jnp.max(e, axis=1, keepdims=True))
        corr = jnp.exp(m_prev - m_new)
        p = jnp.exp((e - m_new).astype(exp_dtype))
        l_r[...] = corr * l_r[...] + jnp.sum(
            p.astype(jnp.float32), axis=1, keepdims=True)
        a_r[...] = corr * a_r[...] + jnp.dot(
            p.astype(wh_ref.dtype), wh_ref[pl.ds(jj, tn), :],
            preferred_element_type=jnp.float32)
        m_r[...] = m_new

    branch(f1mu_ref, f2mu_ref, whmu_ref, m_mu, l_mu, acc_mu)
    branch(f1lv_ref, f2lv_ref, whlv_ref, m_lv, l_lv, acc_lv)

    @pl.when(j == pl.num_programs(1) - 1)
    def _():
        mu = acc_mu[...] * pl.reciprocal(l_mu[...], approx=True)
        logvar = acc_lv[...] * pl.reciprocal(l_lv[...], approx=True)
        mu_ref[...] = mu.astype(mu_ref.dtype)
        lv_ref[...] = logvar.astype(lv_ref.dtype)
        z = mu + eps_ref[...] * jnp.exp(0.5 * logvar)
        logits_ref[...] = (
            jnp.dot(z, wc_ref[...], preferred_element_type=jnp.float32)
            + bc_ref[...]).astype(logits_ref.dtype)


# ---------------------------------------------------------------------------
# pallas_call wrappers
# ---------------------------------------------------------------------------
def gat_project(h, w, a_src, a_dst, *, tm):
    """h: (Np, Fin_p) compute dtype, w: (Fin_p, Fp) compute dtype,
    a_src/a_dst: (1, Fp) f32.  Returns wh (Np, Fp) compute dtype, f1/f2 f32."""
    np_, fin = h.shape
    fout = w.shape[1]
    return pl.pallas_call(
        _project_kernel,
        grid_spec=pltpu.PrefetchScalarGridSpec(
            num_scalar_prefetch=0,
            grid=(np_ // tm,),
            in_specs=[
                pl.BlockSpec((tm, fin), lambda i: (i, 0)),
                pl.BlockSpec((fin, fout), lambda i: (0, 0)),
                pl.BlockSpec((1, fout), lambda i: (0, 0)),
                pl.BlockSpec((1, fout), lambda i: (0, 0)),
            ],
            out_specs=[
                pl.BlockSpec((tm, fout), lambda i: (i, 0)),
                pl.BlockSpec((tm, 1), lambda i: (i, 0)),
                pl.BlockSpec((tm, 1), lambda i: (i, 0)),
            ],
        ),
        out_shape=(
            jax.ShapeDtypeStruct((np_, fout), h.dtype),
            jax.ShapeDtypeStruct((np_, 1), jnp.float32),
            jax.ShapeDtypeStruct((np_, 1), jnp.float32),
        ),
        compiler_params=pltpu.CompilerParams(
            dimension_semantics=("parallel",)),
    )(h, w, a_src, a_dst)


def gat_attention(f1, f2_row, adj_i8, wh, *, tm, tn, alpha, concat,
                  out_dtype):
    """f1: (Np,1) f32, f2_row: (1,Np) f32, adj_i8: (Np,Np) int8,
    wh: (Np, F) compute dtype (kept fully VMEM-resident)."""
    np_ = adj_i8.shape[0]
    fout = wh.shape[1]
    kernel = functools.partial(_gat_attention_kernel, alpha=alpha,
                               concat=concat, tn=tn, exp_dtype=wh.dtype)
    return pl.pallas_call(
        kernel,
        grid_spec=pltpu.PrefetchScalarGridSpec(
            num_scalar_prefetch=0,
            grid=(np_ // tm, np_ // tn),
            in_specs=[
                pl.BlockSpec((tm, 1), lambda i, j: (i, 0)),
                pl.BlockSpec((1, tn), lambda i, j: (0, j)),
                pl.BlockSpec((tm, tn), lambda i, j: (i, j)),   # int8 stream
                pl.BlockSpec((np_, fout), lambda i, j: (0, 0)),  # resident wh
            ],
            out_specs=pl.BlockSpec((tm, fout), lambda i, j: (i, 0)),
            scratch_shapes=[
                pltpu.VMEM((tm, 1), jnp.float32),
                pltpu.VMEM((tm, 1), jnp.float32),
                pltpu.VMEM((tm, fout), jnp.float32),
            ],
        ),
        out_shape=jax.ShapeDtypeStruct((np_, fout), out_dtype),
        compiler_params=pltpu.CompilerParams(
            dimension_semantics=("parallel", "arbitrary")),
    )(f1, f2_row, adj_i8, wh)


def gat_vae_head(f1mu, f2mu_row, f1lv, f2lv_row, adj_i8, whmu, whlv,
                 eps, wc, bc, *, tm, tn, alpha):
    np_ = adj_i8.shape[0]
    lp = whmu.shape[1]
    cp = wc.shape[1]
    kernel = functools.partial(_gat_vae_head_kernel, alpha=alpha, tn=tn,
                               exp_dtype=whmu.dtype)
    return pl.pallas_call(
        kernel,
        grid_spec=pltpu.PrefetchScalarGridSpec(
            num_scalar_prefetch=0,
            grid=(np_ // tm, np_ // tn),
            in_specs=[
                pl.BlockSpec((tm, 1), lambda i, j: (i, 0)),
                pl.BlockSpec((1, tn), lambda i, j: (0, j)),
                pl.BlockSpec((tm, 1), lambda i, j: (i, 0)),
                pl.BlockSpec((1, tn), lambda i, j: (0, j)),
                pl.BlockSpec((tm, tn), lambda i, j: (i, j)),    # int8 stream
                pl.BlockSpec((np_, lp), lambda i, j: (0, 0)),   # resident
                pl.BlockSpec((np_, lp), lambda i, j: (0, 0)),   # resident
                pl.BlockSpec((tm, lp), lambda i, j: (i, 0)),
                pl.BlockSpec((lp, cp), lambda i, j: (0, 0)),
                pl.BlockSpec((1, cp), lambda i, j: (0, 0)),
            ],
            out_specs=[
                pl.BlockSpec((tm, cp), lambda i, j: (i, 0)),
                pl.BlockSpec((tm, lp), lambda i, j: (i, 0)),
                pl.BlockSpec((tm, lp), lambda i, j: (i, 0)),
            ],
            scratch_shapes=[
                pltpu.VMEM((tm, 1), jnp.float32),
                pltpu.VMEM((tm, 1), jnp.float32),
                pltpu.VMEM((tm, lp), jnp.float32),
                pltpu.VMEM((tm, 1), jnp.float32),
                pltpu.VMEM((tm, 1), jnp.float32),
                pltpu.VMEM((tm, lp), jnp.float32),
            ],
        ),
        out_shape=(
            jax.ShapeDtypeStruct((np_, cp), jnp.float32),
            jax.ShapeDtypeStruct((np_, lp), jnp.float32),
            jax.ShapeDtypeStruct((np_, lp), jnp.float32),
        ),
        compiler_params=pltpu.CompilerParams(
            dimension_semantics=("parallel", "arbitrary")),
    )(f1mu, f2mu_row, f1lv, f2lv_row, adj_i8, whmu, whlv, eps, wc, bc)


# ---------------------------------------------------------------------------
# parameters & full forward
# ---------------------------------------------------------------------------
def init_params(key, nfeat, nhid, nlatent, nclass):
    """Xavier-uniform init matching the PyTorch parameter shapes."""
    def xavier(key, fan_in, fan_out, shape, gain=1.0):
        lim = gain * jnp.sqrt(6.0 / (fan_in + fan_out))
        return jax.random.uniform(key, shape, jnp.float32, -lim, lim)

    ks = jax.random.split(key, 8)
    return {
        "w1_t": xavier(ks[0], nfeat, nhid, (nfeat, nhid)),
        "a1":   xavier(ks[1], 2 * nhid, 1, (2 * nhid, 1), gain=1.414),
        "wmu_t": xavier(ks[2], nhid, nlatent, (nhid, nlatent)),
        "amu":   xavier(ks[3], 2 * nlatent, 1, (2 * nlatent, 1), gain=1.414),
        "wlv_t": xavier(ks[4], nhid, nlatent, (nhid, nlatent)),
        "alv":   xavier(ks[5], 2 * nlatent, 1, (2 * nlatent, 1), gain=1.414),
        "wc_t": xavier(ks[6], nlatent, nclass, (nlatent, nclass)),
        "bc":   jax.random.uniform(
            ks[7], (1, nclass), jnp.float32,
            -1.0 / jnp.sqrt(nlatent), 1.0 / jnp.sqrt(nlatent)),
    }


def variational_gat_forward(params, x, adj, eps, *, alpha=0.2,
                            tm=256, tn=1024, compute_dtype=jnp.bfloat16):
    """Full VariationalGAT forward (eval mode: dropout is identity).

    x: (N, nfeat), adj: (N, N), eps: (N, nlatent).
    Returns (logits (N, nclass), mu (N, nlatent), logvar (N, nlatent)).
    """
    n, nfeat = x.shape
    nhid = params["w1_t"].shape[1]
    nlat = params["wmu_t"].shape[1]
    ncls = params["wc_t"].shape[1]

    # --- tile sizes & padded node count (pad N up, don't shrink tiles) --
    n128 = _round_up(n, 128)
    tm = _pow2_tile(n128, tm)
    tn = _pow2_tile(n128, tn)
    tn_head = max(128, tn // 2)   # head kernel holds two branches' temporaries
    np_ = _round_up(n, max(tm, tn))

    # --- padded feature sizes (lane-dense everywhere) --------------------
    fin_p = _round_up(nfeat, 128)
    hp = _round_up(nhid, 128)
    lp = _round_up(nlat, 128)
    cp = _round_up(ncls, 128)

    # --- pad + pre-cast once in the wrapper ------------------------------
    x_p = _pad2(x, np_, fin_p).astype(compute_dtype)
    adj_i8 = (_pad2(adj, np_, np_) > 0).astype(jnp.int8)   # 1 B/elem stream
    eps_p = _pad2(eps.astype(jnp.float32), np_, lp)

    w1 = _pad2(params["w1_t"], fin_p, hp).astype(compute_dtype)
    a1s = _pad2(params["a1"][:nhid].T, 1, hp)              # f32 (matches f32 acc)
    a1d = _pad2(params["a1"][nhid:].T, 1, hp)
    wmu = _pad2(params["wmu_t"], hp, lp).astype(compute_dtype)
    amus = _pad2(params["amu"][:nlat].T, 1, lp)
    amud = _pad2(params["amu"][nlat:].T, 1, lp)
    wlv = _pad2(params["wlv_t"], hp, lp).astype(compute_dtype)
    alvs = _pad2(params["alv"][:nlat].T, 1, lp)
    alvd = _pad2(params["alv"][nlat:].T, 1, lp)
    wc = _pad2(params["wc_t"], lp, cp)
    bc = _pad2(params["bc"], 1, cp)

    # --- layer 1: projection + tiled attention (ELU) ---------------------
    wh1, f1_1, f2_1 = gat_project(x_p, w1, a1s, a1d, tm=tm)
    h1 = gat_attention(f1_1, f2_1.reshape(1, np_), adj_i8, wh1,
                       tm=tm, tn=tn, alpha=alpha, concat=True,
                       out_dtype=compute_dtype)

    # --- mu / logvar projections ------------------------------------------
    whmu, f1mu, f2mu = gat_project(h1, wmu, amus, amud, tm=tm)
    whlv, f1lv, f2lv = gat_project(h1, wlv, alvs, alvd, tm=tm)

    # --- fused mu/logvar attention + reparameterize + classifier ----------
    logits_p, mu_p, lv_p = gat_vae_head(
        f1mu, f2mu.reshape(1, np_), f1lv, f2lv.reshape(1, np_),
        adj_i8, whmu, whlv, eps_p, wc, bc, tm=tm, tn=tn_head, alpha=alpha)

    return (logits_p[:n, :ncls], mu_p[:n, :nlat], lv_p[:n, :nlat])


# ---------------------------------------------------------------------------
# pure-JAX reference (for correctness check)
# ---------------------------------------------------------------------------
def _gat_layer_ref(h, adj, w_t, a, alpha, concat):
    wh = h @ w_t
    fout = w_t.shape[1]
    f1 = wh @ a[:fout]
    f2 = wh @ a[fout:]
    e = jax.nn.leaky_relu(f1 + f2.T, negative_slope=alpha)
    e = jnp.where(adj > 0, e, NEG_BIG)
    att = jax.nn.softmax(e, axis=1)
    hp = att @ wh
    return jax.nn.elu(hp) if concat else hp


def _forward_ref(params, x, adj, eps, alpha=0.2):
    h = _gat_layer_ref(x, adj, params["w1_t"], params["a1"], alpha, True)
    mu = _gat_layer_ref(h, adj, params["wmu_t"], params["amu"], alpha, False)
    lv = _gat_layer_ref(h, adj, params["wlv_t"], params["alv"], alpha, False)
    z = mu + eps * jnp.exp(0.5 * lv)
    logits = z @ params["wc_t"] + params["bc"]
    return logits, mu, lv


# ---------------------------------------------------------------------------
# Demo
# ---------------------------------------------------------------------------
if __name__ == "__main__":
    key = jax.random.PRNGKey(0)

    N, NFEAT, NHID, NLATENT, NCLASS = 300, 16, 32, 16, 4
    k_x, k_adj, k_eps, k_p = jax.random.split(key, 4)
    x = jax.random.normal(k_x, (N, NFEAT), jnp.float32)
    adj = (jax.random.uniform(k_adj, (N, N)) > 0.5).astype(jnp.float32)
    adj = jnp.maximum(adj, adj.T)
    adj = jnp.maximum(adj, jnp.eye(N, dtype=jnp.float32))
    eps = jax.random.normal(k_eps, (N, NLATENT), jnp.float32)
    params = init_params(k_p, NFEAT, NHID, NLATENT, NCLASS)

    # default (bf16 MXU / bf16 exp) path; N=300 -> padded to 512, multi-tile
    fwd = jax.jit(variational_gat_forward)
    logits, mu, logvar = fwd(params, x, adj, eps)
    jax.block_until_ready((logits, mu, logvar))
    assert logits.shape == (N, NCLASS)
    assert mu.shape == (N, NLATENT)
    assert logvar.shape == (N, NLATENT)
    assert bool(jnp.all(jnp.isfinite(logits)))
    assert bool(jnp.all(jnp.isfinite(mu)))
    assert bool(jnp.all(jnp.isfinite(logvar)))

    # f32 compute path (smaller tiles -> multi-block grids, j>0 resident-wh
    # slices exercised) vs pure-JAX reference
    fwd32 = jax.jit(functools.partial(variational_gat_forward,
                                      tm=128, tn=256,
                                      compute_dtype=jnp.float32))
    out32 = fwd32(params, x, adj, eps)
    jax.block_until_ready(out32)
    ref = _forward_ref(params, x, adj, eps)
    for got, want in zip(out32, ref):
        err = float(jnp.max(jnp.abs(got - want)))
        assert bool(jnp.allclose(got, want, rtol=5e-2, atol=5e-2)), (
            "max abs err %f" % err)

    print("KERNEL_OK")
</pallas_src>

<mosaic_0001>
module attributes {stable_mosaic.version = 11 : i64} {
  func.func @_project_kernel(%arg0: i32, %arg1: memref<256x128xbf16, #tpu.memory_space<vmem>>, %arg2: memref<128x128xbf16, #tpu.memory_space<vmem>>, %arg3: memref<1x128xf32, #tpu.memory_space<vmem>>, %arg4: memref<1x128xf32, #tpu.memory_space<vmem>>, %arg5: memref<256x128xbf16, #tpu.memory_space<vmem>>, %arg6: memref<256x1xf32, #tpu.memory_space<vmem>>, %arg7: memref<256x1xf32, #tpu.memory_space<vmem>>) attributes {dimension_semantics = [#tpu.dimension_semantics<parallel>], iteration_bounds = array<i64: 2>, scalar_prefetch = 0 : i64, scratch_operands = 0 : i64, tpu.core_type = #tpu.core_type<tc>, window_params = [{transform_indices = @transform_0, window_bounds = array<i64: 256, 128>}, {pipeline_mode = #tpu.pipeline_mode<synchronous>, transform_indices = @transform_1, window_bounds = array<i64: 128, 128>}, {pipeline_mode = #tpu.pipeline_mode<synchronous>, transform_indices = @transform_2, window_bounds = array<i64: 1, 128>}, {pipeline_mode = #tpu.pipeline_mode<synchronous>, transform_indices = @transform_3, window_bounds = array<i64: 1, 128>}, {transform_indices = @transform_4, window_bounds = array<i64: 256, 128>}, {transform_indices = @transform_5, window_bounds = array<i64: 256, 1>}, {transform_indices = @transform_6, window_bounds = array<i64: 256, 1>}]} {
    %c0 = arith.constant 0 : index
    %c0_0 = arith.constant 0 : index
    %0 = vector.load %arg1[%c0, %c0_0] : memref<256x128xbf16, #tpu.memory_space<vmem>>, vector<256x128xbf16>
    %c0_1 = arith.constant 0 : index
    %c0_2 = arith.constant 0 : index
    %1 = vector.load %arg2[%c0_1, %c0_2] : memref<128x128xbf16, #tpu.memory_space<vmem>>, vector<128x128xbf16>
    %cst = arith.constant dense<0.000000e+00> : vector<256x128xf32>
    %2 = tpu.matmul %0, %1, %cst {dimension_numbers = #tpu.dot_dimension_numbers<[1], [0], [0], [1], [0, 0, 1, 1], [], []>} : vector<256x128xbf16>, vector<128x128xbf16>, vector<256x128xf32> -> vector<256x128xf32>
    %c0_3 = arith.constant 0 : index
    %c0_4 = arith.constant 0 : index
    %3 = vector.load %arg3[%c0_3, %c0_4] : memref<1x128xf32, #tpu.memory_space<vmem>>, vector<1x128xf32>
    %4 = vector.broadcast %3 : vector<1x128xf32> to vector<256x128xf32>
    %5 = arith.mulf %2, %4 : vector<256x128xf32>
    %cst_5 = arith.constant dense<0.000000e+00> : vector<256xf32>
    %6 = vector.multi_reduction <add>, %5, %cst_5 [1] : vector<256x128xf32> to vector<256xf32>
    %7 = vector.shape_cast %6 : vector<256xf32> to vector<256x1xf32>
    %c0_6 = arith.constant 0 : index
    %c0_7 = arith.constant 0 : index
    %8 = vector.load %arg6[%c0_6, %c0_7] : memref<256x1xf32, #tpu.memory_space<vmem>>, vector<256x1xf32>
    tpu.vector_store %arg6[%c0_6, %c0_7], %7 {strides = array<i32>} : memref<256x1xf32, #tpu.memory_space<vmem>>, vector<256x1xf32>,
    %c0_8 = arith.constant 0 : index
    %c0_9 = arith.constant 0 : index
    %9 = vector.load %arg4[%c0_8, %c0_9] : memref<1x128xf32, #tpu.memory_space<vmem>>, vector<1x128xf32>
    %10 = vector.broadcast %9 : vector<1x128xf32> to vector<256x128xf32>
    %11 = arith.mulf %2, %10 : vector<256x128xf32>
    %cst_10 = arith.constant dense<0.000000e+00> : vector<256xf32>
    %12 = vector.multi_reduction <add>, %11, %cst_10 [1] : vector<256x128xf32> to vector<256xf32>
    %13 = vector.shape_cast %12 : vector<256xf32> to vector<256x1xf32>
    %c0_11 = arith.constant 0 : index
    %c0_12 = arith.constant 0 : index
    %14 = vector.load %arg7[%c0_11, %c0_12] : memref<256x1xf32, #tpu.memory_space<vmem>>, vector<256x1xf32>
    tpu.vector_store %arg7[%c0_11, %c0_12], %13 {strides = array<i32>} : memref<256x1xf32, #tpu.memory_space<vmem>>, vector<256x1xf32>,
    %15 = arith.truncf %2 : vector<256x128xf32> to vector<256x128xbf16>
    %c0_13 = arith.constant 0 : index
    %c0_14 = arith.constant 0 : index
    %16 = vector.load %arg5[%c0_13, %c0_14] : memref<256x128xbf16, #tpu.memory_space<vmem>>, vector<256x128xbf16>
    tpu.vector_store %arg5[%c0_13, %c0_14], %15 {strides = array<i32>} : memref<256x128xbf16, #tpu.memory_space<vmem>>, vector<256x128xbf16>,
    return
  }
  func.func @transform_0(%arg0: i32) -> (i32, i32) {
    %c0_i32 = arith.constant 0 : i32
    %c0_i32_0 = arith.constant 0 : i32
    return %arg0, %c0_i32 : i32, i32
  }
  func.func @transform_1(%arg0: i32) -> (i32, i32) {
    %c0_i32 = arith.constant 0 : i32
    %c0_i32_0 = arith.constant 0 : i32
    %c0_i32_1 = arith.constant 0 : i32
    return %c0_i32, %c0_i32_0 : i32, i32
  }
  func.func @transform_2(%arg0: i32) -> (i32, i32) {
    %c0_i32 = arith.constant 0 : i32
    %c0_i32_0 = arith.constant 0 : i32
    %c0_i32_1 = arith.constant 0 : i32
    return %c0_i32, %c0_i32_0 : i32, i32
  }
  func.func @transform_3(%arg0: i32) -> (i32, i32) {
    %c0_i32 = arith.constant 0 : i32
    %c0_i32_0 = arith.constant 0 : i32
    %c0_i32_1 = arith.constant 0 : i32
    return %c0_i32, %c0_i32_0 : i32, i32
  }
  func.func @transform_4(%arg0: i32) -> (i32, i32) {
    %c0_i32 = arith.constant 0 : i32
    %c0_i32_0 = arith.constant 0 : i32
    return %arg0, %c0_i32 : i32, i32
  }
  func.func @transform_5(%arg0: i32) -> (i32, i32) {
    %c0_i32 = arith.constant 0 : i32
    %c0_i32_0 = arith.constant 0 : i32
    return %arg0, %c0_i32 : i32, i32
  }
  func.func @transform_6(%arg0: i32) -> (i32, i32) {
    %c0_i32 = arith.constant 0 : i32
    %c0_i32_0 = arith.constant 0 : i32
    return %arg0, %c0_i32 : i32, i32
  }
}

module attributes {stable_mosaic.version = 11 : i64} {
  func.func @_gat_attention_kernel(%arg0: i32, %arg1: i32, %arg2: memref<256x1xf32, #tpu.memory_space<vmem>>, %arg3: memref<1x256xf32, #tpu.memory_space<vmem>>, %arg4: memref<256x256xi8, #tpu.memory_space<vmem>>, %arg5: memref<512x128xbf16, #tpu.memory_space<vmem>>, %arg6: memref<256x128xbf16, #tpu.memory_space<vmem>>, %arg7: memref<256x1xf32, #tpu.memory_space<vmem>>, %arg8: memref<256x1xf32, #tpu.memory_space<vmem>>, %arg9: memref<256x128xf32, #tpu.memory_space<vmem>>) attributes {dimension_semantics = [#tpu.dimension_semantics<parallel>, #tpu.dimension_semantics<arbitrary>], iteration_bounds = array<i64: 2, 2>, scalar_prefetch = 0 : i64, scratch_operands = 3 : i64, tpu.core_type = #tpu.core_type<tc>, window_params = [{transform_indices = @transform_0, window_bounds = array<i64: 256, 1>}, {transform_indices = @transform_1, window_bounds = array<i64: 1, 256>}, {transform_indices = @transform_2, window_bounds = array<i64: 256, 256>}, {pipeline_mode = #tpu.pipeline_mode<synchronous>, transform_indices = @transform_3, window_bounds = array<i64: 512, 128>}, {transform_indices = @transform_4, window_bounds = array<i64: 256, 128>}]} {
    %c0_i32 = arith.constant 0 : i32
    %0 = arith.cmpi eq, %arg1, %c0_i32 : i32
    %1 = arith.extui %0 : i1 to i32
    %c0_i32_0 = arith.constant 0 : i32
    %2 = arith.cmpi ne, %1, %c0_i32_0 : i32
    scf.if %2 {
      %cst_24 = arith.constant 0xFF800000 : f32
      %47 = vector.broadcast %cst_24 : f32 to vector<256x1xf32>
      %c0_25 = arith.constant 0 : index
      %c0_26 = arith.constant 0 : index
      %48 = vector.load %arg7[%c0_25, %c0_26] : memref<256x1xf32, #tpu.memory_space<vmem>>, vector<256x1xf32>
      tpu.vector_store %arg7[%c0_25, %c0_26], %47 {strides = array<i32>} : memref<256x1xf32, #tpu.memory_space<vmem>>, vector<256x1xf32>,
      %cst_27 = arith.constant 0.000000e+00 : f32
      %49 = vector.broadcast %cst_27 : f32 to vector<256x1xf32>
      %c0_28 = arith.constant 0 : index
      %c0_29 = arith.constant 0 : index
      %50 = vector.load %arg8[%c0_28, %c0_29] : memref<256x1xf32, #tpu.memory_space<vmem>>, vector<256x1xf32>
      tpu.vector_store %arg8[%c0_28, %c0_29], %49 {strides = array<i32>} : memref<256x1xf32, #tpu.memory_space<vmem>>, vector<256x1xf32>,
      %cst_30 = arith.constant 0.000000e+00 : f32
      %51 = vector.broadcast %cst_30 : f32 to vector<256x128xf32>
      %c0_31 = arith.constant 0 : index
      %c0_32 = arith.constant 0 : index
      %52 = vector.load %arg9[%c0_31, %c0_32] : memref<256x128xf32, #tpu.memory_space<vmem>>, vector<256x128xf32>
      tpu.vector_store %arg9[%c0_31, %c0_32], %51 {strides = array<i32>} : memref<256x128xf32, #tpu.memory_space<vmem>>, vector<256x128xf32>,
    } else {
    }
    %c0 = arith.constant 0 : index
    %c0_1 = arith.constant 0 : index
    %3 = vector.load %arg2[%c0, %c0_1] : memref<256x1xf32, #tpu.memory_space<vmem>>, vector<256x1xf32>
    %c0_2 = arith.constant 0 : index
    %c0_3 = arith.constant 0 : index
    %4 = vector.load %arg3[%c0_2, %c0_3] : memref<1x256xf32, #tpu.memory_space<vmem>>, vector<1x256xf32>
    %5 = vector.broadcast %3 : vector<256x1xf32> to vector<256x256xf32>
    %6 = vector.broadcast %4 : vector<1x256xf32> to vector<256x256xf32>
    %7 = arith.addf %5, %6 : vector<256x256xf32>
    %cst = arith.constant 2.000000e-01 : f32
    %8 = vector.broadcast %cst : f32 to vector<256x256xf32>
    %9 = arith.mulf %8, %7 : vector<256x256xf32>
    %10 = arith.maximumf %7, %9 : vector<256x256xf32>
    %c0_4 = arith.constant 0 : index
    %c0_5 = arith.constant 0 : index
    %11 = vector.load %arg4[%c0_4, %c0_5] : memref<256x256xi8, #tpu.memory_space<vmem>>, vector<256x256xi8>
    %c0_i8 = arith.constant 0 : i8
    %12 = vector.broadcast %c0_i8 : i8 to vector<256x256xi8>
    %13 = arith.cmpi ne, %11, %12 : vector<256x256xi8>
    %cst_6 = arith.constant -9.000000e+15 : f32
    %14 = vector.broadcast %cst_6 : f32 to vector<256x256xf32>
    %15 = arith.select %13, %10, %14 : vector<256x256xi1>, vector<256x256xf32>
    %c0_7 = arith.constant 0 : index
    %c0_8 = arith.constant 0 : index
    %16 = vector.load %arg7[%c0_7, %c0_8] : memref<256x1xf32, #tpu.memory_space<vmem>>, vector<256x1xf32>
    %cst_9 = arith.constant dense<0xFF800000> : vector<256xf32>
    %17 = vector.multi_reduction <maximumf>, %15, %cst_9 [1] : vector<256x256xf32> to vector<256xf32>
    %18 = vector.shape_cast %17 : vector<256xf32> to vector<256x1xf32>
    %19 = arith.maximumf %16, %18 : vector<256x1xf32>
    %20 = arith.subf %16, %19 : vector<256x1xf32>
    %21 = math.exp %20 : vector<256x1xf32>
    %22 = vector.broadcast %19 : vector<256x1xf32> to vector<256x256xf32>
    %23 = arith.subf %15, %22 : vector<256x256xf32>
    %24 = arith.truncf %23 : vector<256x256xf32> to vector<256x256xbf16>
    %25 = math.exp %24 : vector<256x256xbf16>
    %c0_10 = arith.constant 0 : index
    %c0_11 = arith.constant 0 : index
    %26 = vector.load %arg8[%c0_10, %c0_11] : memref<256x1xf32, #tpu.memory_space<vmem>>, vector<256x1xf32>
    %27 = arith.mulf %21, %26 : vector<256x1xf32>
    %28 = arith.extf %25 : vector<256x256xbf16> to vector<256x256xf32>
    %cst_12 = arith.constant dense<0.000000e+00> : vector<256xf32>
    %29 = vector.multi_reduction <add>, %28, %cst_12 [1] : vector<256x256xf32> to vector<256xf32>
    %30 = vector.shape_cast %29 : vector<256xf32> to vector<256x1xf32>
    %31 = arith.addf %27, %30 : vector<256x1xf32>
    %c0_13 = arith.constant 0 : index
    %c0_14 = arith.constant 0 : index
    %32 = vector.load %arg8[%c0_13, %c0_14] : memref<256x1xf32, #tpu.memory_space<vmem>>, vector<256x1xf32>
    tpu.vector_store %arg8[%c0_13, %c0_14], %31 {strides = array<i32>} : memref<256x1xf32, #tpu.memory_space<vmem>>, vector<256x1xf32>,
    %c256_i32 = arith.constant 256 : i32
    %33 = arith.muli %arg1, %c256_i32 : i32
    %34 = tpu.assume_multiple %33, 256 : i32
    %c0_15 = arith.constant 0 : index
    %c0_16 = arith.constant 0 : index
    %35 = vector.load %arg9[%c0_15, %c0_16] : memref<256x128xf32, #tpu.memory_space<vmem>>, vector<256x128xf32>
    %36 = vector.broadcast %21 : vector<256x1xf32> to vector<256x128xf32>
    %37 = arith.mulf %36, %35 : vector<256x128xf32>
    %38 = arith.index_cast %34 : i32 to index
    %c0_17 = arith.constant 0 : index
    %39 = vector.load %arg5[%38, %c0_17] : memref<512x128xbf16, #tpu.memory_space<vmem>>, vector<256x128xbf16>
    %cst_18 = arith.constant dense<0.000000e+00> : vector<256x128xf32>
    %40 = tpu.matmul %25, %39, %cst_18 {dimension_numbers = #tpu.dot_dimension_numbers<[1], [0], [0], [1], [0, 0, 1, 1], [], []>} : vector<256x256xbf16>, vector<256x128xbf16>, vector<256x128xf32> -> vector<256x128xf32>
    %41 = arith.addf %37, %40 : vector<256x128xf32>
    %c0_19 = arith.constant 0 : index
    %c0_20 = arith.constant 0 : index
    %42 = vector.load %arg9[%c0_19, %c0_20] : memref<256x128xf32, #tpu.memory_space<vmem>>, vector<256x128xf32>
    tpu.vector_store %arg9[%c0_19, %c0_20], %41 {strides = array<i32>} : memref<256x128xf32, #tpu.memory_space<vmem>>, vector<256x128xf32>,
    %c0_21 = arith.constant 0 : index
    %c0_22 = arith.constant 0 : index
    %43 = vector.load %arg7[%c0_21, %c0_22] : memref<256x1xf32, #tpu.memory_space<vmem>>, vector<256x1xf32>
    tpu.vector_store %arg7[%c0_21, %c0_22], %19 {strides = array<i32>} : memref<256x1xf32, #tpu.memory_space<vmem>>, vector<256x1xf32>,
    %c1_i32 = arith.constant 1 : i32
    %44 = arith.cmpi eq, %arg1, %c1_i32 : i32
    %45 = arith.extui %44 : i1 to i32
    %c0_i32_23 = arith.constant 0 : i32
    %46 = arith.cmpi ne, %45, %c0_i32_23 : i32
    scf.if %46 {
      %c0_24 = arith.constant 0 : index
      %c0_25 = arith.constant 0 : index
      %47 = vector.load %arg9[%c0_24, %c0_25] : memref<256x128xf32, #tpu.memory_space<vmem>>, vector<256x128xf32>
      %c0_26 = arith.constant 0 : index
      %c0_27 = arith.constant 0 : index
      %48 = vector.load %arg8[%c0_26, %c0_27] : memref<256x1xf32, #tpu.memory_space<vmem>>, vector<256x1xf32>
      %49 = tpu.reciprocal %48 {approx = true} : vector<256x1xf32> -> vector<256x1xf32>
      %50 = vector.broadcast %49 : vector<256x1xf32> to vector<256x128xf32>
      %51 = arith.mulf %47, %50 : vector<256x128xf32>
      %cst_28 = arith.constant 0.000000e+00 : f32
      %52 = vector.broadcast %cst_28 : f32 to vector<256x128xf32>
      %53 = arith.cmpf ogt, %51, %52 : vector<256x128xf32>
      %cst_29 = arith.constant 0.000000e+00 : f32
      %54 = vector.broadcast %cst_29 : f32 to vector<256x128xf32>
      %55 = arith.minimumf %51, %54 : vector<256x128xf32>
      %56 = math.exp %55 : vector<256x128xf32>
      %cst_30 = arith.constant 1.000000e+00 : f32
      %57 = vector.broadcast %cst_30 : f32 to vector<256x128xf32>
      %58 = arith.subf %56, %57 : vector<256x128xf32>
      %59 = arith.select %53, %51, %58 : vector<256x128xi1>, vector<256x128xf32>
      %60 = arith.truncf %59 : vector<256x128xf32> to vector<256x128xbf16>
      %c0_31 = arith.constant 0 : index
      %c0_32 = arith.constant 0 : index
      %61 = vector.load %arg6[%c0_31, %c0_32] : memref<256x128xbf16, #tpu.memory_space<vmem>>, vector<256x128xbf16>
      tpu.vector_store %arg6[%c0_31, %c0_32], %60 {strides = array<i32>} : memref<256x128xbf16, #tpu.memory_space<vmem>>, vector<256x128xbf16>,
    } else {
    }
    return
  }
  func.func @transform_0(%arg0: i32, %arg1: i32) -> (i32, i32) {
    %c0_i32 = arith.constant 0 : i32
    %c0_i32_0 = arith.constant 0 : i32
    return %arg0, %c0_i32 : i32, i32
  }
  func.func @transform_1(%arg0: i32, %arg1: i32) -> (i32, i32) {
    %c0_i32 = arith.constant 0 : i32
    %c0_i32_0 = arith.constant 0 : i32
    return %c0_i32, %arg1 : i32, i32
  }
  func.func @transform_2(%arg0: i32, %arg1: i32) -> (i32, i32) {
    %c0_i32 = arith.constant 0 : i32
    return %arg0, %arg1 : i32, i32
  }
  func.func @transform_3(%arg0: i32, %arg1: i32) -> (i32, i32) {
    %c0_i32 = arith.constant 0 : i32
    %c0_i32_0 = arith.constant 0 : i32
    %c0_i32_1 = arith.constant 0 : i32
    return %c0_i32, %c0_i32_0 : i32, i32
  }
  func.func @transform_4(%arg0: i32, %arg1: i32) -> (i32, i32) {
    %c0_i32 = arith.constant 0 : i32
    %c0_i32_0 = arith.constant 0 : i32
    return %arg0, %c0_i32 : i32, i32
  }
}

module attributes {stable_mosaic.version = 11 : i64} {
  func.func @_gat_vae_head_kernel(%arg0: i32, %arg1: i32, %arg2: memref<256x1xf32, #tpu.memory_space<vmem>>, %arg3: memref<1x128xf32, #tpu.memory_space<vmem>>, %arg4: memref<256x1xf32, #tpu.memory_space<vmem>>, %arg5: memref<1x128xf32, #tpu.memory_space<vmem>>, %arg6: memref<256x128xi8, #tpu.memory_space<vmem>>, %arg7: memref<512x128xbf16, #tpu.memory_space<vmem>>, %arg8: memref<512x128xbf16, #tpu.memory_space<vmem>>, %arg9: memref<256x128xf32, #tpu.memory_space<vmem>>, %arg10: memref<128x128xf32, #tpu.memory_space<vmem>>, %arg11: memref<1x128xf32, #tpu.memory_space<vmem>>, %arg12: memref<256x128xf32, #tpu.memory_space<vmem>>, %arg13: memref<256x128xf32, #tpu.memory_space<vmem>>, %arg14: memref<256x128xf32, #tpu.memory_space<vmem>>, %arg15: memref<256x1xf32, #tpu.memory_space<vmem>>, %arg16: memref<256x1xf32, #tpu.memory_space<vmem>>, %arg17: memref<256x128xf32, #tpu.memory_space<vmem>>, %arg18: memref<256x1xf32, #tpu.memory_space<vmem>>, %arg19: memref<256x1xf32, #tpu.memory_space<vmem>>, %arg20: memref<256x128xf32, #tpu.memory_space<vmem>>) attributes {dimension_semantics = [#tpu.dimension_semantics<parallel>, #tpu.dimension_semantics<arbitrary>], iteration_bounds = array<i64: 2, 4>, scalar_prefetch = 0 : i64, scratch_operands = 6 : i64, tpu.core_type = #tpu.core_type<tc>, window_params = [{transform_indices = @transform_0, window_bounds = array<i64: 256, 1>}, {transform_indices = @transform_1, window_bounds = array<i64: 1, 128>}, {transform_indices = @transform_2, window_bounds = array<i64: 256, 1>}, {transform_indices = @transform_3, window_bounds = array<i64: 1, 128>}, {transform_indices = @transform_4, window_bounds = array<i64: 256, 128>}, {pipeline_mode = #tpu.pipeline_mode<synchronous>, transform_indices = @transform_5, window_bounds = array<i64: 512, 128>}, {pipeline_mode = #tpu.pipeline_mode<synchronous>, transform_indices = @transform_6, window_bounds = array<i64: 512, 128>}, {transform_indices = @transform_7, window_bounds = array<i64: 256, 128>}, {pipeline_mode = #tpu.pipeline_mode<synchronous>, transform_indices = @transform_8, window_bounds = array<i64: 128, 128>}, {pipeline_mode = #tpu.pipeline_mode<synchronous>, transform_indices = @transform_9, window_bounds = array<i64: 1, 128>}, {transform_indices = @transform_10, window_bounds = array<i64: 256, 128>}, {transform_indices = @transform_11, window_bounds = array<i64: 256, 128>}, {transform_indices = @transform_12, window_bounds = array<i64: 256, 128>}]} {
    %c0_i32 = arith.constant 0 : i32
    %0 = arith.cmpi eq, %arg1, %c0_i32 : i32
    %1 = arith.extui %0 : i1 to i32
    %c0_i32_0 = arith.constant 0 : i32
    %2 = arith.cmpi ne, %1, %c0_i32_0 : i32
    scf.if %2 {
      %cst_46 = arith.constant 0xFF800000 : f32
      %83 = vector.broadcast %cst_46 : f32 to vector<256x1xf32>
      %c0_47 = arith.constant 0 : index
      %c0_48 = arith.constant 0 : index
      %84 = vector.load %arg15[%c0_47, %c0_48] : memref<256x1xf32, #tpu.memory_space<vmem>>, vector<256x1xf32>
      tpu.vector_store %arg15[%c0_47, %c0_48], %83 {strides = array<i32>} : memref<256x1xf32, #tpu.memory_space<vmem>>, vector<256x1xf32>,
      %cst_49 = arith.constant 0.000000e+00 : f32
      %85 = vector.broadcast %cst_49 : f32 to vector<256x1xf32>
      %c0_50 = arith.constant 0 : index
      %c0_51 = arith.constant 0 : index
      %86 = vector.load %arg16[%c0_50, %c0_51] : memref<256x1xf32, #tpu.memory_space<vmem>>, vector<256x1xf32>
      tpu.vector_store %arg16[%c0_50, %c0_51], %85 {strides = array<i32>} : memref<256x1xf32, #tpu.memory_space<vmem>>, vector<256x1xf32>,
      %cst_52 = arith.constant 0.000000e+00 : f32
      %87 = vector.broadcast %cst_52 : f32 to vector<256x128xf32>
      %c0_53 = arith.constant 0 : index
      %c0_54 = arith.constant 0 : index
      %88 = vector.load %arg17[%c0_53, %c0_54] : memref<256x128xf32, #tpu.memory_space<vmem>>, vector<256x128xf32>
      tpu.vector_store %arg17[%c0_53, %c0_54], %87 {strides = array<i32>} : memref<256x128xf32, #tpu.memory_space<vmem>>, vector<256x128xf32>,
      %cst_55 = arith.constant 0xFF800000 : f32
      %89 = vector.broadcast %cst_55 : f32 to vector<256x1xf32>
      %c0_56 = arith.constant 0 : index
      %c0_57 = arith.constant 0 : index
      %90 = vector.load %arg18[%c0_56, %c0_57] : memref<256x1xf32, #tpu.memory_space<vmem>>, vector<256x1xf32>
      tpu.vector_store %arg18[%c0_56, %c0_57], %89 {strides = array<i32>} : memref<256x1xf32, #tpu.memory_space<vmem>>, vector<256x1xf32>,
      %cst_58 = arith.constant 0.000000e+00 : f32
      %91 = vector.broadcast %cst_58 : f32 to vector<256x1xf32>
      %c0_59 = arith.constant 0 : index
      %c0_60 = arith.constant 0 : index
      %92 = vector.load %arg19[%c0_59, %c0_60] : memref<256x1xf32, #tpu.memory_space<vmem>>, vector<256x1xf32>
      tpu.vector_store %arg19[%c0_59, %c0_60], %91 {strides = array<i32>} : memref<256x1xf32, #tpu.memory_space<vmem>>, vector<256x1xf32>,
      %cst_61 = arith.constant 0.000000e+00 : f32
      %93 = vector.broadcast %cst_61 : f32 to vector<256x128xf32>
      %c0_62 = arith.constant 0 : index
      %c0_63 = arith.constant 0 : index
      %94 = vector.load %arg20[%c0_62, %c0_63] : memref<256x128xf32, #tpu.memory_space<vmem>>, vector<256x128xf32>
      tpu.vector_store %arg20[%c0_62, %c0_63], %93 {strides = array<i32>} : memref<256x128xf32, #tpu.memory_space<vmem>>, vector<256x128xf32>,
    } else {
    }
    %c0 = arith.constant 0 : index
    %c0_1 = arith.constant 0 : index
    %3 = vector.load %arg6[%c0, %c0_1] : memref<256x128xi8, #tpu.memory_space<vmem>>, vector<256x128xi8>
    %c0_i8 = arith.constant 0 : i8
    %4 = vector.broadcast %c0_i8 : i8 to vector<256x128xi8>
    %5 = arith.cmpi ne, %3, %4 : vector<256x128xi8>
    %c128_i32 = arith.constant 128 : i32
    %6 = arith.muli %arg1, %c128_i32 : i32
    %7 = tpu.assume_multiple %6, 128 : i32
    %c0_2 = arith.constant 0 : index
    %c0_3 = arith.constant 0 : index
    %8 = vector.load %arg2[%c0_2, %c0_3] : memref<256x1xf32, #tpu.memory_space<vmem>>, vector<256x1xf32>
    %c0_4 = arith.constant 0 : index
    %c0_5 = arith.constant 0 : index
    %9 = vector.load %arg3[%c0_4, %c0_5] : memref<1x128xf32, #tpu.memory_space<vmem>>, vector<1x128xf32>
    %10 = vector.broadcast %8 : vector<256x1xf32> to vector<256x128xf32>
    %11 = vector.broadcast %9 : vector<1x128xf32> to vector<256x128xf32>
    %12 = arith.addf %10, %11 : vector<256x128xf32>
    %cst = arith.constant 2.000000e-01 : f32
    %13 = vector.broadcast %cst : f32 to vector<256x128xf32>
    %14 = arith.mulf %13, %12 : vector<256x128xf32>
    %15 = arith.maximumf %12, %14 : vector<256x128xf32>
    %cst_6 = arith.constant -9.000000e+15 : f32
    %16 = vector.broadcast %cst_6 : f32 to vector<256x128xf32>
    %17 = arith.select %5, %15, %16 : vector<256x128xi1>, vector<256x128xf32>
    %c0_7 = arith.constant 0 : index
    %c0_8 = arith.constant 0 : index
    %18 = vector.load %arg15[%c0_7, %c0_8] : memref<256x1xf32, #tpu.memory_space<vmem>>, vector<256x1xf32>
    %cst_9 = arith.constant dense<0xFF800000> : vector<256xf32>
    %19 = vector.multi_reduction <maximumf>, %17, %cst_9 [1] : vector<256x128xf32> to vector<256xf32>
    %20 = vector.shape_cast %19 : vector<256xf32> to vector<256x1xf32>
    %21 = arith.maximumf %18, %20 : vector<256x1xf32>
    %22 = arith.subf %18, %21 : vector<256x1xf32>
    %23 = math.exp %22 : vector<256x1xf32>
    %24 = vector.broadcast %21 : vector<256x1xf32> to vector<256x128xf32>
    %25 = arith.subf %17, %24 : vector<256x128xf32>
    %26 = arith.truncf %25 : vector<256x128xf32> to vector<256x128xbf16>
    %27 = math.exp %26 : vector<256x128xbf16>
    %c0_10 = arith.constant 0 : index
    %c0_11 = arith.constant 0 : index
    %28 = vector.load %arg16[%c0_10, %c0_11] : memref<256x1xf32, #tpu.memory_space<vmem>>, vector<256x1xf32>
    %29 = arith.mulf %23, %28 : vector<256x1xf32>
    %30 = arith.extf %27 : vector<256x128xbf16> to vector<256x128xf32>
    %cst_12 = arith.constant dense<0.000000e+00> : vector<256xf32>
    %31 = vector.multi_reduction <add>, %30, %cst_12 [1] : vector<256x128xf32> to vector<256xf32>
    %32 = vector.shape_cast %31 : vector<256xf32> to vector<256x1xf32>
    %33 = arith.addf %29, %32 : vector<256x1xf32>
    %c0_13 = arith.constant 0 : index
    %c0_14 = arith.constant 0 : index
    %34 = vector.load %arg16[%c0_13, %c0_14] : memref<256x1xf32, #tpu.memory_space<vmem>>, vector<256x1xf32>
    tpu.vector_store %arg16[%c0_13, %c0_14], %33 {strides = array<i32>} : memref<256x1xf32, #tpu.memory_space<vmem>>, vector<256x1xf32>,
    %c0_15 = arith.constant 0 : index
    %c0_16 = arith.constant 0 : index
    %35 = vector.load %arg17[%c0_15, %c0_16] : memref<256x128xf32, #tpu.memory_space<vmem>>, vector<256x128xf32>
    %36 = vector.broadcast %23 : vector<256x1xf32> to vector<256x128xf32>
    %37 = arith.mulf %36, %35 : vector<256x128xf32>
    %38 = arith.index_cast %7 : i32 to index
    %c0_17 = arith.constant 0 : index
    %39 = vector.load %arg7[%38, %c0_17] : memref<512x128xbf16, #tpu.memory_space<vmem>>, vector<128x128xbf16>
    %cst_18 = arith.constant dense<0.000000e+00> : vector<256x128xf32>
    %40 = tpu.matmul %27, %39, %cst_18 {dimension_numbers = #tpu.dot_dimension_numbers<[1], [0], [0], [1], [0, 0, 1, 1], [], []>} : vector<256x128xbf16>, vector<128x128xbf16>, vector<256x128xf32> -> vector<256x128xf32>
    %41 = arith.addf %37, %40 : vector<256x128xf32>
    %c0_19 = arith.constant 0 : index
    %c0_20 = arith.constant 0 : index
    %42 = vector.load %arg17[%c0_19, %c0_20] : memref<256x128xf32, #tpu.memory_space<vmem>>, vector<256x128xf32>
    tpu.vector_store %arg17[%c0_19, %c0_20], %41 {strides = array<i32>} : memref<256x128xf32, #tpu.memory_space<vmem>>, vector<256x128xf32>,
    %c0_21 = arith.constant 0 : index
    %c0_22 = arith.constant 0 : index
    %43 = vector.load %arg15[%c0_21, %c0_22] : memref<256x1xf32, #tpu.memory_space<vmem>>, vector<256x1xf32>
    tpu.vector_store %arg15[%c0_21, %c0_22], %21 {strides = array<i32>} : memref<256x1xf32, #tpu.memory_space<vmem>>, vector<256x1xf32>,
    %c0_23 = arith.constant 0 : index
    %c0_24 = arith.constant 0 : index
    %44 = vector.load %arg4[%c0_23, %c0_24] : memref<256x1xf32, #tpu.memory_space<vmem>>, vector<256x1xf32>
    %c0_25 = arith.constant 0 : index
    %c0_26 = arith.constant 0 : index
    %45 = vector.load %arg5[%c0_25, %c0_26] : memref<1x128xf32, #tpu.memory_space<vmem>>, vector<1x128xf32>
    %46 = vector.broadcast %44 : vector<256x1xf32> to vector<256x128xf32>
    %47 = vector.broadcast %45 : vector<1x128xf32> to vector<256x128xf32>
    %48 = arith.addf %46, %47 : vector<256x128xf32>
    %cst_27 = arith.constant 2.000000e-01 : f32
    %49 = vector.broadcast %cst_27 : f32 to vector<256x128xf32>
    %50 = arith.mulf %49, %48 : vector<256x128xf32>
    %51 = arith.maximumf %48, %50 : vector<256x128xf32>
    %cst_28 = arith.constant -9.000000e+15 : f32
    %52 = vector.broadcast %cst_28 : f32 to vector<256x128xf32>
    %53 = arith.select %5, %51, %52 : vector<256x128xi1>, vector<256x128xf32>
    %c0_29 = arith.constant 0 : index
    %c0_30 = arith.constant 0 : index
    %54 = vector.load %arg18[%c0_29, %c0_30] : memref<256x1xf32, #tpu.memory_space<vmem>>, vector<256x1xf32>
    %cst_31 = arith.constant dense<0xFF800000> : vector<256xf32>
    %55 = vector.multi_reduction <maximumf>, %53, %cst_31 [1] : vector<256x128xf32> to vector<256xf32>
    %56 = vector.shape_cast %55 : vector<256xf32> to vector<256x1xf32>
    %57 = arith.maximumf %54, %56 : vector<256x1xf32>
    %58 = arith.subf %54, %57 : vector<256x1xf32>
    %59 = math.exp %58 : vector<256x1xf32>
    %60 = vector.broadcast %57 : vector<256x1xf32> to vector<256x128xf32>
    %61 = arith.subf %53, %60 : vector<256x128xf32>
    %62 = arith.truncf %61 : vector<256x128xf32> to vector<256x128xbf16>
    %63 = math.exp %62 : vector<256x128xbf16>
    %c0_32 = arith.constant 0 : index
    %c0_33 = arith.constant 0 : index
    %64 = vector.load %arg19[%c0_32, %c0_33] : memref<256x1xf32, #tpu.memory_space<vmem>>, vector<256x1xf32>
    %65 = arith.mulf %59, %64 : vector<256x1xf32>
    %66 = arith.extf %63 : vector<256x128xbf16> to vector<256x128xf32>
    %cst_34 = arith.constant dense<0.000000e+00> : vector<256xf32>
    %67 = vector.multi_reduction <add>, %66, %cst_34 [1] : vector<256x128xf32> to vector<256xf32>
    %68 = vector.shape_cast %67 : vector<256xf32> to vector<256x1xf32>
    %69 = arith.addf %65, %68 : vector<256x1xf32>
    %c0_35 = arith.constant 0 : index
    %c0_36 = arith.constant 0 : index
    %70 = vector.load %arg19[%c0_35, %c0_36] : memref<256x1xf32, #tpu.memory_space<vmem>>, vector<256x1xf32>
    tpu.vector_store %arg19[%c0_35, %c0_36], %69 {strides = array<i32>} : memref<256x1xf32, #tpu.memory_space<vmem>>, vector<256x1xf32>,
    %c0_37 = arith.constant 0 : index
    %c0_38 = arith.constant 0 : index
    %71 = vector.load %arg20[%c0_37, %c0_38] : memref<256x128xf32, #tpu.memory_space<vmem>>, vector<256x128xf32>
    %72 = vector.broadcast %59 : vector<256x1xf32> to vector<256x128xf32>
    %73 = arith.mulf %72, %71 : vector<256x128xf32>
    %74 = arith.index_cast %7 : i32 to index
    %c0_39 = arith.constant 0 : index
    %75 = vector.load %arg8[%74, %c0_39] : memref<512x128xbf16, #tpu.memory_space<vmem>>, vector<128x128xbf16>
    %cst_40 = arith.constant dense<0.000000e+00> : vector<256x128xf32>
    %76 = tpu.matmul %63, %75, %cst_40 {dimension_numbers = #tpu.dot_dimension_numbers<[1], [0], [0], [1], [0, 0, 1, 1], [], []>} : vector<256x128xbf16>, vector<128x128xbf16>, vector<256x128xf32> -> vector<256x128xf32>
    %77 = arith.addf %73, %76 : vector<256x128xf32>
    %c0_41 = arith.constant 0 : index
    %c0_42 = arith.constant 0 : index
    %78 = vector.load %arg20[%c0_41, %c0_42] : memref<256x128xf32, #tpu.memory_space<vmem>>, vector<256x128xf32>
    tpu.vector_store %arg20[%c0_41, %c0_42], %77 {strides = array<i32>} : memref<256x128xf32, #tpu.memory_space<vmem>>, vector<256x128xf32>,
    %c0_43 = arith.constant 0 : index
    %c0_44 = arith.constant 0 : index
    %79 = vector.load %arg18[%c0_43, %c0_44] : memref<256x1xf32, #tpu.memory_space<vmem>>, vector<256x1xf32>
    tpu.vector_store %arg18[%c0_43, %c0_44], %57 {strides = array<i32>} : memref<256x1xf32, #tpu.memory_space<vmem>>, vector<256x1xf32>,
    %c3_i32 = arith.constant 3 : i32
    %80 = arith.cmpi eq, %arg1, %c3_i32 : i32
    %81 = arith.extui %80 : i1 to i32
    %c0_i32_45 = arith.constant 0 : i32
    %82 = arith.cmpi ne, %81, %c0_i32_45 : i32
    scf.if %82 {
      %c0_46 = arith.constant 0 : index
      %c0_47 = arith.constant 0 : index
      %83 = vector.load %arg17[%c0_46, %c0_47] : memref<256x128xf32, #tpu.memory_space<vmem>>, vector<256x128xf32>
      %c0_48 = arith.constant 0 : index
      %c0_49 = arith.constant 0 : index
      %84 = vector.load %arg16[%c0_48, %c0_49] : memref<256x1xf32, #tpu.memory_space<vmem>>, vector<256x1xf32>
      %85 = tpu.reciprocal %84 {approx = true} : vector<256x1xf32> -> vector<256x1xf32>
      %86 = vector.broadcast %85 : vector<256x1xf32> to vector<256x128xf32>
      %87 = arith.mulf %83, %86 : vector<256x128xf32>
      %c0_50 = arith.constant 0 : index
      %c0_51 = arith.constant 0 : index
      %88 = vector.load %arg20[%c0_50, %c0_51] : memref<256x128xf32, #tpu.memory_space<vmem>>, vector<256x128xf32>
      %c0_52 = arith.constant 0 : index
      %c0_53 = arith.constant 0 : index
      %89 = vector.load %arg19[%c0_52, %c0_53] : memref<256x1xf32, #tpu.memory_space<vmem>>, vector<256x1xf32>
      %90 = tpu.reciprocal %89 {approx = true} : vector<256x1xf32> -> vector<256x1xf32>
      %91 = vector.broadcast %90 : vector<256x1xf32> to vector<256x128xf32>
      %92 = arith.mulf %88, %91 : vector<256x128xf32>
      %c0_54 = arith.constant 0 : index
      %c0_55 = arith.constant 0 : index
      %93 = vector.load %arg13[%c0_54, %c0_55] : memref<256x128xf32, #tpu.memory_space<vmem>>, vector<256x128xf32>
      tpu.vector_store %arg13[%c0_54, %c0_55], %87 {strides = array<i32>} : memref<256x128xf32, #tpu.memory_space<vmem>>, vector<256x128xf32>,
      %c0_56 = arith.constant 0 : index
      %c0_57 = arith.constant 0 : index
      %94 = vector.load %arg14[%c0_56, %c0_57] : memref<256x128xf32, #tpu.memory_space<vmem>>, vector<256x128xf32>
      tpu.vector_store %arg14[%c0_56, %c0_57], %92 {strides = array<i32>} : memref<256x128xf32, #tpu.memory_space<vmem>>, vector<256x128xf32>,
      %c0_58 = arith.constant 0 : index
      %c0_59 = arith.constant 0 : index
      %95 = vector.load %arg9[%c0_58, %c0_59] : memref<256x128xf32, #tpu.memory_space<vmem>>, vector<256x128xf32>
      %cst_60 = arith.constant 5.000000e-01 : f32
      %96 = vector.broadcast %cst_60 : f32 to vector<256x128xf32>
      %97 = arith.mulf %96, %92 : vector<256x128xf32>
      %98 = math.exp %97 : vector<256x128xf32>
      %99 = arith.mulf %95, %98 : vector<256x128xf32>
      %100 = arith.addf %87, %99 : vector<256x128xf32>
      %c0_61 = arith.constant 0 : index
      %c0_62 = arith.constant 0 : index
      %101 = vector.load %arg10[%c0_61, %c0_62] : memref<128x128xf32, #tpu.memory_space<vmem>>, vector<128x128xf32>
      %cst_63 = arith.constant dense<0.000000e+00> : vector<256x128xf32>
      %102 = tpu.matmul %100, %101, %cst_63 {dimension_numbers = #tpu.dot_dimension_numbers<[1], [0], [0], [1], [0, 0, 1, 1], [], []>} : vector<256x128xf32>, vector<128x128xf32>, vector<256x128xf32> -> vector<256x128xf32>
      %c0_64 = arith.constant 0 : index
      %c0_65 = arith.constant 0 : index
      %103 = vector.load %arg11[%c0_64, %c0_65] : memref<1x128xf32, #tpu.memory_space<vmem>>, vector<1x128xf32>
      %104 = vector.broadcast %103 : vector<1x128xf32> to vector<256x128xf32>
      %105 = arith.addf %102, %104 : vector<256x128xf32>
      %c0_66 = arith.constant 0 : index
      %c0_67 = arith.constant 0 : index
      %106 = vector.load %arg12[%c0_66, %c0_67] : memref<256x128xf32, #tpu.memory_space<vmem>>, vector<256x128xf32>
      tpu.vector_store %arg12[%c0_66, %c0_67], %105 {strides = array<i32>} : memref<256x128xf32, #tpu.memory_space<vmem>>, vector<256x128xf32>,
    } else {
    }
    return
  }
  func.func @transform_0(%arg0: i32, %arg1: i32) -> (i32, i32) {
    %c0_i32 = arith.constant 0 : i32
    %c0_i32_0 = arith.constant 0 : i32
    return %arg0, %c0_i32 : i32, i32
  }
  func.func @transform_1(%arg0: i32, %arg1: i32) -> (i32, i32) {
    %c0_i32 = arith.constant 0 : i32
    %c0_i32_0 = arith.constant 0 : i32
    return %c0_i32, %arg1 : i32, i32
  }
  func.func @transform_2(%arg0: i32, %arg1: i32) -> (i32, i32) {
    %c0_i32 = arith.constant 0 : i32
    %c0_i32_0 = arith.constant 0 : i32
    return %arg0, %c0_i32 : i32, i32
  }
  func.func @transform_3(%arg0: i32, %arg1: i32) -> (i32, i32) {
    %c0_i32 = arith.constant 0 : i32
    %c0_i32_0 = arith.constant 0 : i32
    return %c0_i32, %arg1 : i32, i32
  }
  func.func @transform_4(%arg0: i32, %arg1: i32) -> (i32, i32) {
    %c0_i32 = arith.constant 0 : i32
    return %arg0, %arg1 : i32, i32
  }
  func.func @transform_5(%arg0: i32, %arg1: i32) -> (i32, i32) {
    %c0_i32 = arith.constant 0 : i32
    %c0_i32_0 = arith.constant 0 : i32
    %c0_i32_1 = arith.constant 0 : i32
    return %c0_i32, %c0_i32_0 : i32, i32
  }
  func.func @transform_6(%arg0: i32, %arg1: i32) -> (i32, i32) {
    %c0_i32 = arith.constant 0 : i32
    %c0_i32_0 = arith.constant 0 : i32
    %c0_i32_1 = arith.constant 0 : i32
    return %c0_i32, %c0_i32_0 : i32, i32
  }
  func.func @transform_7(%arg0: i32, %arg1: i32) -> (i32, i32) {
    %c0_i32 = arith.constant 0 : i32
    %c0_i32_0 = arith.constant 0 : i32
    return %arg0, %c0_i32 : i32, i32
  }
  func.func @transform_8(%arg0: i32, %arg1: i32) -> (i32, i32) {
    %c0_i32 = arith.constant 0 : i32
    %c0_i32_0 = arith.constant 0 : i32
    %c0_i32_1 = arith.constant 0 : i32
    return %c0_i32, %c0_i32_0 : i32, i32
  }
  func.func @transform_9(%arg0: i32, %arg1: i32) -> (i32, i32) {
    %c0_i32 = arith.constant 0 : i32
    %c0_i32_0 = arith.constant 0 : i32
    %c0_i32_1 = arith.constant 0 : i32
    return %c0_i32, %c0_i32_0 : i32, i32
  }
  func.func @transform_10(%arg0: i32, %arg1: i32) -> (i32, i32) {
    %c0_i32 = arith.constant 0 : i32
    %c0_i32_0 = arith.constant 0 : i32
    return %arg0, %c0_i32 : i32, i32
  }
  func.func @transform_11(%arg0: i32, %arg1: i32) -> (i32, i32) {
    %c0_i32 = arith.constant 0 : i32
    %c0_i32_0 = arith.constant 0 : i32
    return %arg0, %c0_i32 : i32, i32
  }
  func.func @transform_12(%arg0: i32, %arg1: i32) -> (i32, i32) {
    %c0_i32 = arith.constant 0 : i32
    %c0_i32_0 = arith.constant 0 : i32
    return %arg0, %c0_i32 : i32, i32
  }
}

</mosaic_0001>

<llo_original>
// kernel: variational_gat_forward.5
$region0: #{variational_gat_forward.5}
  #allocation0 [shape = 'u32[]', space=smem, size = 0x4, offset = 0x4, fixed_abs, tag = 'smem constant byte address 0x4 - core index']
  #allocation1 [shape = 'u32[144,128]{1,0:T(1,128)}', space=vmem, size = 0x12000, scoped, tag = 'internal scratch']
  %s0 = inlined_call_operand.vmem [shape: bf16[512,128], index: 0, kind: input, shape index: {}]
  %s1 = inlined_call_operand.vmem [shape: bf16[128,128], index: 1, kind: input, shape index: {}]
  %s2 = inlined_call_operand.vmem [shape: f32[1,128], index: 2, kind: input, shape index: {}]
  %s3 = inlined_call_operand.vmem [shape: f32[1,128], index: 3, kind: input, shape index: {}]
  %s4 = inlined_call_operand.vmem [shape: bf16[512,128], index: 4, kind: output, shape index: {0}]
  %s5 = inlined_call_operand.vmem [shape: f32[512,1], index: 5, kind: output, shape index: {1}]
  %s6 = inlined_call_operand.vmem [shape: f32[512,1], index: 6, kind: output, shape index: {2}]
  %7 = xla_tuple %s4, %s5, %s6
  %s8 = sld [smem:[#allocation0]]
  $region65: #{variational_gat_forward.5} parent=0
    _
  %s10 = ssub.s32 1, %s8
  %s11 = scalar_select 0, %s10, %s8
  loop: start=0, step=1, limit=4
  $region2: #{variational_gat_forward.5} parent=0 // loop_pre_header
    _
  $region3: #{variational_gat_forward.5} parent=0 // loop_header
    %s13 = sphi 0, %s17
    %p14 = scmp.ge.s32.totalorder %s13, 4
    %s23 = sphi 0, %s25
    %s26 = sphi 0, %s23
    %s27 = sphi 0, %s26
    %s43 = sphi 0, %s27
    %s47 = sphi 0, %s47
    %s49 = sphi 0, %s47
    %s50 = sphi 0, %s49
    %s64 = sphi 0, %s50
    %s68 = sphi 0, %s68
    %s70 = sphi 0, %s68
    %s71 = sphi 0, %s70
    %s85 = sphi 0, %s71
    %s89 = sphi 0, %s89
    %s91 = sphi 0, %s89
    %s92 = sphi 0, %s91
    %s106 = sphi 0, %s92
    %s112 = sphi 0, %s114
    %s115 = sphi 0, %s112
    %s116 = sphi 0, %s115
    %s132 = sphi 0, %s116
    %s138 = sphi 0, %s140
    %s141 = sphi 0, %s138
    %s142 = sphi 0, %s141
    %s158 = sphi 0, %s142
    %s164 = sphi 0, %s166
    %s167 = sphi 0, %s164
    %s168 = sphi 0, %s167
    %s184 = sphi 0, %s168
  $region4: #{variational_gat_forward.5} parent=0 // loop_header_branch
    %16 = sbr.rel (%p14) target = $region8
  $region5: #{variational_gat_forward.5} parent=0 // loop_body
    %s18 = ssub.s32 %s13, 1
    %s19 = ssub.s32 %s13, 2
    %s20 = sadd.s32 %s13, 1
    %s21 = ssub.s32 %s13, %s20
    %p22 = scmp.eq.s32.totalorder %s21, 0
    %s24 = sadd.s32 %s23, 1
    %s25 = scalar_select %p22, %s23, %s24
    %p28 = pneg %p22
    %p29 = scmp.eq.s32.totalorder %s13, 1
    %p30 = por %p28, %p29
    %p31 = scmp.ne.s32.totalorder %s23, %s26
    %p32 = scmp.eq.s32.totalorder %s13, 0
    %p33 = por %p31, %p32
    %p34 = scmp.ne.s32.totalorder %s23, %s26
    %p35 = scmp.eq.s32.totalorder %s18, 1
    %p36 = por %p34, %p35
    %p37 = scmp.ne.s32.totalorder %s26, %s27
    %p38 = scmp.eq.s32.totalorder %s18, 0
    %p39 = por %p37, %p38
    %p40 = scmp.ne.s32.totalorder %s26, %s27
    %p41 = scmp.eq.s32.totalorder %s19, 1
    %p42 = por %p40, %p41
    %p44 = scmp.ne.s32.totalorder %s27, %s43
    %p45 = scmp.eq.s32.totalorder %s19, 0
    %p46 = por %p44, %p45
    %s48 = sadd.s32 %s47, 1
    %p51 = scmp.eq.s32.totalorder %s13, 1
    %p52 = scmp.ne.s32.totalorder %s47, %s49
    %p53 = scmp.eq.s32.totalorder %s13, 0
    %p54 = por %p52, %p53
    %p55 = scmp.ne.s32.totalorder %s47, %s49
    %p56 = scmp.eq.s32.totalorder %s18, 1
    %p57 = por %p55, %p56
    %p58 = scmp.ne.s32.totalorder %s49, %s50
    %p59 = scmp.eq.s32.totalorder %s18, 0
    %p60 = por %p58, %p59
    %p61 = scmp.ne.s32.totalorder %s49, %s50
    %p62 = scmp.eq.s32.totalorder %s19, 1
    %p63 = por %p61, %p62
    %p65 = scmp.ne.s32.totalorder %s50, %s64
    %p66 = scmp.eq.s32.totalorder %s19, 0
    %p67 = por %p65, %p66
    %s69 = sadd.s32 %s68, 1
    %p72 = scmp.eq.s32.totalorder %s13, 1
    %p73 = scmp.ne.s32.totalorder %s68, %s70
    %p74 = scmp.eq.s32.totalorder %s13, 0
    %p75 = por %p73, %p74
    %p76 = scmp.ne.s32.totalorder %s68, %s70
    %p77 = scmp.eq.s32.totalorder %s18, 1
    %p78 = por %p76, %p77
    %p79 = scmp.ne.s32.totalorder %s70, %s71
    %p80 = scmp.eq.s32.totalorder %s18, 0
    %p81 = por %p79, %p80
    %p82 = scmp.ne.s32.totalorder %s70, %s71
    %p83 = scmp.eq.s32.totalorder %s19, 1
    %p84 = por %p82, %p83
    %p86 = scmp.ne.s32.totalorder %s71, %s85
    %p87 = scmp.eq.s32.totalorder %s19, 0
    %p88 = por %p86, %p87
    %s90 = sadd.s32 %s89, 1
    %p93 = scmp.eq.s32.totalorder %s13, 1
    %p94 = scmp.ne.s32.totalorder %s89, %s91
    %p95 = scmp.eq.s32.totalorder %s13, 0
    %p96 = por %p94, %p95
    %p97 = scmp.ne.s32.totalorder %s89, %s91
    %p98 = scmp.eq.s32.totalorder %s18, 1
    %p99 = por %p97, %p98
    %p100 = scmp.ne.s32.totalorder %s91, %s92
    %p101 = scmp.eq.s32.totalorder %s18, 0
    %p102 = por %p100, %p101
    %p103 = scmp.ne.s32.totalorder %s91, %s92
    %p104 = scmp.eq.s32.totalorder %s19, 1
    %p105 = por %p103, %p104
    %p107 = scmp.ne.s32.totalorder %s92, %s106
    %p108 = scmp.eq.s32.totalorder %s19, 0
    %p109 = por %p107, %p108
    %s110 = ssub.s32 %s13, %s20
    %p111 = scmp.eq.s32.totalorder %s110, 0
    %s113 = sadd.s32 %s112, 1
    %s114 = scalar_select %p111, %s112, %s113
    %p117 = pneg %p111
    %p118 = scmp.eq.s32.totalorder %s13, 1
    %p119 = por %p117, %p118
    %p120 = scmp.ne.s32.totalorder %s112, %s115
    %p121 = scmp.eq.s32.totalorder %s13, 0
    %p122 = por %p120, %p121
    %p123 = scmp.ne.s32.totalorder %s112, %s115
    %p124 = scmp.eq.s32.totalorder %s18, 1
    %p125 = por %p123, %p124
    %p126 = scmp.ne.s32.totalorder %s115, %s116
    %p127 = scmp.eq.s32.totalorder %s18, 0
    %p128 = por %p126, %p127
    %p129 = scmp.ne.s32.totalorder %s115, %s116
    %p130 = scmp.eq.s32.totalorder %s19, 1
    %p131 = por %p129, %p130
    %p133 = scmp.ne.s32.totalorder %s116, %s132
    %p134 = scmp.eq.s32.totalorder %s19, 0
    %p135 = por %p133, %p134
    %s136 = ssub.s32 %s13, %s20
    %p137 = scmp.eq.s32.totalorder %s136, 0
    %s139 = sadd.s32 %s138, 1
    %s140 = scalar_select %p137, %s138, %s139
    %p143 = pneg %p137
    %p144 = scmp.eq.s32.totalorder %s13, 1
    %p145 = por %p143, %p144
    %p146 = scmp.ne.s32.totalorder %s138, %s141
    %p147 = scmp.eq.s32.totalorder %s13, 0
    %p148 = por %p146, %p147
    %p149 = scmp.ne.s32.totalorder %s138, %s141
    %p150 = scmp.eq.s32.totalorder %s18, 1
    %p151 = por %p149, %p150
    %p152 = scmp.ne.s32.totalorder %s141, %s142
    %p153 = scmp.eq.s32.totalorder %s18, 0
    %p154 = por %p152, %p153
    %p155 = scmp.ne.s32.totalorder %s141, %s142
    %p156 = scmp.eq.s32.totalorder %s19, 1
    %p157 = por %p155, %p156
    %p159 = scmp.ne.s32.totalorder %s142, %s158
    %p160 = scmp.eq.s32.totalorder %s19, 0
    %p161 = por %p159, %p160
    %s162 = ssub.s32 %s13, %s20
    %p163 = scmp.eq.s32.totalorder %s162, 0
    %s165 = sadd.s32 %s164, 1
    %s166 = scalar_select %p163, %s164, %s165
    %p169 = pneg %p163
    %p170 = scmp.eq.s32.totalorder %s13, 1
    %p171 = por %p169, %p170
    %p172 = scmp.ne.s32.totalorder %s164, %s167
    %p173 = scmp.eq.s32.totalorder %s13, 0
    %p174 = por %p172, %p173
    %p175 = scmp.ne.s32.totalorder %s164, %s167
    %p176 = scmp.eq.s32.totalorder %s18, 1
    %p177 = por %p175, %p176
    %p178 = scmp.ne.s32.totalorder %s167, %s168
    %p179 = scmp.eq.s32.totalorder %s18, 0
    %p180 = por %p178, %p179
    %p181 = scmp.ne.s32.totalorder %s167, %s168
    %p182 = scmp.eq.s32.totalorder %s19, 1
    %p183 = por %p181, %p182
    %p185 = scmp.ne.s32.totalorder %s168, %s184
    %p186 = scmp.eq.s32.totalorder %s19, 0
    %p187 = por %p185, %p186
    %p188 = scmp.le.s32.totalorder 1, %s13
    %p189 = scmp.lt.s32.totalorder %s13, 3
    %p190 = pnand %p188, %p189
    %p191 = pneg %p190
    // Predicated region
    $region9: #{variational_gat_forward.5} parent=5 // pred_check
      _
    $region10: #{variational_gat_forward.5} parent=5 // pred_check_branch
      %193 = sbr.rel (%p190) target = $region12
    $region11: #{variational_gat_forward.5} parent=5 // pred_region
      %s194 = ssub.s32 %s13, 1
      // Predicated region
      $region13: #{variational_gat_forward.5} parent=11 // pred_check
        %p195 = pneg %p60
      $region14: #{variational_gat_forward.5} parent=11 // pred_check_branch
        %197 = sbr.rel (%p195) target = $region16
      $region15: #{variational_gat_forward.5} parent=11 // pred_region
        _
      $region16: #{variational_gat_forward.5} parent=11 // pred_fallthru
        _
      // Predicated region
      $region17: #{variational_gat_forward.5} parent=11 // pred_check
        %p198 = pneg %p81
      $region18: #{variational_gat_forward.5} parent=11 // pred_check_branch
        %200 = sbr.rel (%p198) target = $region20
      $region19: #{variational_gat_forward.5} parent=11 // pred_region
        _
      $region20: #{variational_gat_forward.5} parent=11 // pred_fallthru
        _
      // Predicated region
      $region21: #{variational_gat_forward.5} parent=11 // pred_check
        %p201 = pneg %p102
      $region22: #{variational_gat_forward.5} parent=11 // pred_check_branch
        %203 = sbr.rel (%p201) target = $region24
      $region23: #{variational_gat_forward.5} parent=11 // pred_region
        _
      $region24: #{variational_gat_forward.5} parent=11 // pred_fallthru
        _
    $region12: #{variational_gat_forward.5} parent=5 // pred_fallthru
      _
    %p204 = scmp.lt.s32.totalorder %s13, 2
    // Predicated region
    $region25: #{variational_gat_forward.5} parent=5 // pred_check
      %p205 = pneg %p204
    $region26: #{variational_gat_forward.5} parent=5 // pred_check_branch
      %207 = sbr.rel (%p205) target = $region28
    $region27: #{variational_gat_forward.5} parent=5 // pred_region
      // Predicated region
      $region29: #{variational_gat_forward.5} parent=27 // pred_check
        %p208 = pneg %p33
      $region30: #{variational_gat_forward.5} parent=27 // pred_check_branch
        %210 = sbr.rel (%p208) target = $region32
      $region31: #{variational_gat_forward.5} parent=27 // pred_region
        %s211 = smul.u32 32, %s13
        %p212 = scmp.lt.s32.totalorder %s211, 63
        %s213 = scalar_select %p212, %s211, 63
        %s214 = smul.addr %s213, 4
        %s215 = scalar_lea.vmem %s0, %s214
        %s216 = smul.u32 32, %s13
      $region32: #{variational_gat_forward.5} parent=27 // pred_fallthru
        _
    $region28: #{variational_gat_forward.5} parent=5 // pred_fallthru
      _
    %p217 = scmp.le.s32.totalorder 1, %s13
    %p218 = scmp.lt.s32.totalorder %s13, 3
    %p219 = pnand %p217, %p218
    %p220 = pneg %p219
    // Predicated region
    $region33: #{variational_gat_forward.5} parent=5 // pred_check
      _
    $region34: #{variational_gat_forward.5} parent=5 // pred_check_branch
      %222 = sbr.rel (%p219) target = $region36
    $region35: #{variational_gat_forward.5} parent=5 // pred_region
      %s223 = ssub.s32 %s13, 1
      %s224 = smul.u32 32, %s18
      %p225 = scmp.lt.s32.totalorder %s224, 63
      %s226 = scalar_select %p225, %s224, 63
      %s227 = smul.addr %s226, 4
      %s228 = scalar_lea.vmem %s0, %s227
      %p229 = pneg %p39
      %p230 = pneg %p36
      %p231 = pneg %p60
      %p232 = pneg %p57
      %p233 = pneg %p81
      %p234 = pneg %p78
      %p235 = pneg %p102
      %p236 = pneg %p99
      %p237 = pneg %p128
      %p238 = pneg %p125
      %s239 = smul.u32 32, %s18
      %p240 = scmp.lt.s32.totalorder %s239, 63
      %s241 = scalar_select %p240, %s239, 63
      %s242 = smul.addr %s241, 4
      %s243 = scalar_lea.vmem %s4, %s242
      %p244 = pneg %p154
      %p245 = pneg %p151
      %s246 = smul.u32 32, %s18
      %p247 = scmp.lt.s32.totalorder %s246, 63
      %s248 = scalar_select %p247, %s246, 63
      %s249 = smul.addr %s248, 8
      %s250 = scalar_lea.vmem %s5, %s249
      %p251 = pneg %p180
      %p252 = pneg %p177
      %s253 = smul.u32 32, %s18
      %p254 = scmp.lt.s32.totalorder %s253, 63
      %s255 = scalar_select %p254, %s253, 63
      %s256 = smul.addr %s255, 8
      %s257 = scalar_lea.vmem %s6, %s256
      %s258 = smul.u32 32, %s18
      %p259 = scmp.lt.s32.totalorder %s258, 63
      %s260 = scalar_select %p259, %s258, 63
      %s261 = smul.addr %s260, 4
      %s262 = scalar_lea.vmem %s0, %s261
      %s263 = smul.u32 32, %s18
      %s264 = smul.u32 32, %s18
      %p265 = scmp.lt.s32.totalorder %s264, 63
      %s266 = scalar_select %p265, %s264, 63
      %s267 = smul.addr %s266, 4
      %s268 = scalar_lea.vmem %s4, %s267
      %s269 = smul.u32 32, %s18
      %s270 = smul.u32 32, %s18
      %p271 = scmp.lt.s32.totalorder %s270, 63
      %s272 = scalar_select %p271, %s270, 63
      %s273 = smul.addr %s272, 8
      %s274 = scalar_lea.vmem %s5, %s273
      %s275 = smul.u32 32, %s18
      %s276 = smul.u32 32, %s18
      %p277 = scmp.lt.s32.totalorder %s276, 63
      %s278 = scalar_select %p277, %s276, 63
      %s279 = smul.addr %s278, 8
      %s280 = scalar_lea.vmem %s6, %s279
      %s281 = smul.u32 32, %s18
      %v283 = vld [vmem:[%s262] sm:$0xf]
      %v284 = vld [vmem:[%s262 + $0x4] sm:$0xf]
      %v285 = vld [vmem:[%s262 + $0x8] sm:$0xf]
      %v286 = vld [vmem:[%s262 + $0xc] sm:$0xf]
      %v287 = vld [vmem:[%s262 + $0x10] sm:$0xf]
      %v288 = vld [vmem:[%s262 + $0x14] sm:$0xf]
      %v289 = vld [vmem:[%s262 + $0x18] sm:$0xf]
      %v290 = vld [vmem:[%s262 + $0x1c] sm:$0xf]
      %v291 = vld [vmem:[%s262 + $0x20] sm:$0xf]
      %v292 = vld [vmem:[%s262 + $0x24] sm:$0xf]
      %v293 = vld [vmem:[%s262 + $0x28] sm:$0xf]
      %v294 = vld [vmem:[%s262 + $0x2c] sm:$0xf]
      %v295 = vld [vmem:[%s262 + $0x30] sm:$0xf]
      %v296 = vld [vmem:[%s262 + $0x34] sm:$0xf]
      %v297 = vld [vmem:[%s262 + $0x38] sm:$0xf]
      %v298 = vld [vmem:[%s262 + $0x3c] sm:$0xf]
      %v299 = vld [vmem:[%s262 + $0x40] sm:$0xf]
      %v300 = vld [vmem:[%s262 + $0x44] sm:$0xf]
      %v301 = vld [vmem:[%s262 + $0x48] sm:$0xf]
      %v302 = vld [vmem:[%s262 + $0x4c] sm:$0xf]
      %v303 = vld [vmem:[%s262 + $0x50] sm:$0xf]
      %v304 = vld [vmem:[%s262 + $0x54] sm:$0xf]
      %v305 = vld [vmem:[%s262 + $0x58] sm:$0xf]
      %v306 = vld [vmem:[%s262 + $0x5c] sm:$0xf]
      %v307 = vld [vmem:[%s262 + $0x60] sm:$0xf]
      %v308 = vld [vmem:[%s262 + $0x64] sm:$0xf]
      %v309 = vld [vmem:[%s262 + $0x68] sm:$0xf]
      %v310 = vld [vmem:[%s262 + $0x6c] sm:$0xf]
      %v311 = vld [vmem:[%s262 + $0x70] sm:$0xf]
      %v312 = vld [vmem:[%s262 + $0x74] sm:$0xf]
      %v313 = vld [vmem:[%s262 + $0x78] sm:$0xf]
      %v314 = vld [vmem:[%s262 + $0x7c] sm:$0xf]
      %v315 = vld [vmem:[%s1] sm:$0xf]
      %v316 = vld [vmem:[%s1 + $0x4] sm:$0xf]
      %v317 = vld [vmem:[%s1 + $0x8] sm:$0xf]
      %v318 = vld [vmem:[%s1 + $0xc] sm:$0xf]
      %v319 = vld [vmem:[%s1 + $0x10] sm:$0xf]
      %v320 = vld [vmem:[%s1 + $0x14] sm:$0xf]
      %v321 = vld [vmem:[%s1 + $0x18] sm:$0xf]
      %v322 = vld [vmem:[%s1 + $0x1c] sm:$0xf]
      %v323 = vld [vmem:[%s1 + $0x20] sm:$0xf]
      %v324 = vld [vmem:[%s1 + $0x24] sm:$0xf]
      %v325 = vld [vmem:[%s1 + $0x28] sm:$0xf]
      %v326 = vld [vmem:[%s1 + $0x2c] sm:$0xf]
      %v327 = vld [vmem:[%s1 + $0x30] sm:$0xf]
      %v328 = vld [vmem:[%s1 + $0x34] sm:$0xf]
      %v329 = vld [vmem:[%s1 + $0x38] sm:$0xf]
      %v330 = vld [vmem:[%s1 + $0x3c] sm:$0xf]
      %v363 = vunpack.c.l.b16 %v283
      %v364 = vunpack.c.l.b16 %v284
      %v365 = vunpack.c.l.b16 %v285
      %v366 = vunpack.c.l.b16 %v286
      %v367 = vunpack.c.l.b16 %v287
      %v368 = vunpack.c.l.b16 %v288
      %v369 = vunpack.c.l.b16 %v289
      %v370 = vunpack.c.l.b16 %v290
      %v371 = vunpack.c.l.b16 %v291
      %v372 = vunpack.c.l.b16 %v292
      %v373 = vunpack.c.l.b16 %v293
      %v374 = vunpack.c.l.b16 %v294
      %v375 = vunpack.c.l.b16 %v295
      %v376 = vunpack.c.l.b16 %v296
      %v377 = vunpack.c.l.b16 %v297
      %v378 = vunpack.c.l.b16 %v298
      %v379 = vunpack.c.l.b16 %v299
      %v380 = vunpack.c.l.b16 %v300
      %v381 = vunpack.c.l.b16 %v301
      %v382 = vunpack.c.l.b16 %v302
      %v383 = vunpack.c.l.b16 %v303
      %v384 = vunpack.c.l.b16 %v304
      %v385 = vunpack.c.l.b16 %v305
      %v386 = vunpack.c.l.b16 %v306
      %v387 = vunpack.c.l.b16 %v307
      %v388 = vunpack.c.l.b16 %v308
      %v389 = vunpack.c.l.b16 %v309
      %v390 = vunpack.c.l.b16 %v310
      %v391 = vunpack.c.l.b16 %v311
      %v392 = vunpack.c.l.b16 %v312
      %v393 = vunpack.c.l.b16 %v313
      %v394 = vunpack.c.l.b16 %v314
      %v395 = vpack.c.b16 %v364, %v363
      %v396 = vpack.c.b16 %v366, %v365
      %v397 = vpack.c.b16 %v368, %v367
      %v398 = vpack.c.b16 %v370, %v369
      %v399 = vpack.c.b16 %v372, %v371
      %v400 = vpack.c.b16 %v374, %v373
      %v401 = vpack.c.b16 %v376, %v375
      %v402 = vpack.c.b16 %v378, %v377
      %v403 = vpack.c.b16 %v380, %v379
      %v404 = vpack.c.b16 %v382, %v381
      %v405 = vpack.c.b16 %v384, %v383
      %v406 = vpack.c.b16 %v386, %v385
      %v407 = vpack.c.b16 %v388, %v387
      %v408 = vpack.c.b16 %v390, %v389
      %v409 = vpack.c.b16 %v392, %v391
      %v410 = vpack.c.b16 %v394, %v393
      %v443 = vunpack.c.l.b16 %v315
      %v444 = vunpack.c.l.b16 %v316
      %v445 = vunpack.c.l.b16 %v317
      %v446 = vunpack.c.l.b16 %v318
      %v447 = vunpack.c.l.b16 %v319
      %v448 = vunpack.c.l.b16 %v320
      %v449 = vunpack.c.l.b16 %v321
      %v450 = vunpack.c.l.b16 %v322
      %v451 = vunpack.c.l.b16 %v323
      %v452 = vunpack.c.l.b16 %v324
      %v453 = vunpack.c.l.b16 %v325
      %v454 = vunpack.c.l.b16 %v326
      %v455 = vunpack.c.l.b16 %v327
      %v456 = vunpack.c.l.b16 %v328
      %v457 = vunpack.c.l.b16 %v329
      %v458 = vunpack.c.l.b16 %v330
      %v459 = vpack.c.b16 %v444, %v443
      %v460 = vpack.c.b16 %v446, %v445
      %v461 = vpack.c.b16 %v448, %v447
      %v462 = vpack.c.b16 %v450, %v449
      %v463 = vpack.c.b16 %v452, %v451
      %v464 = vpack.c.b16 %v454, %v453
      %v465 = vpack.c.b16 %v456, %v455
      %v466 = vpack.c.b16 %v458, %v457
      %475 = vmatprep.subr.bf16.mxu0 0
      %476 = vmatpush1.bf16.msra.mxu0 %v459
      %477 = vmatprep.subr.bf16.mxu0 0
      %478 = vmatpush1.bf16.msra.mxu0 %v460
      %479 = vmatprep.subr.bf16.mxu0 0
      %480 = vmatpush1.bf16.msra.mxu0 %v461
      %481 = vmatprep.subr.bf16.mxu0 0
      %482 = vmatpush1.bf16.msra.mxu0 %v462
      %483 = vmatprep.subr.bf16.mxu0 0
      %484 = vmatpush1.bf16.msra.mxu0 %v463
      %485 = vmatprep.subr.bf16.mxu0 0
      %486 = vmatpush1.bf16.msra.mxu0 %v464
      %487 = vmatprep.subr.bf16.mxu0 0
      %488 = vmatpush1.bf16.msra.mxu0 %v465
      %489 = vmatprep.subr.bf16.mxu0 0
      %490 = vmatpush1.bf16.msra.mxu0 %v466
      %491 = vmatprep.subr.bf16.mxu0 0
      %492 = vmatpush1.bf16.msra.mxu0 0
      %493 = vmatprep.subr.bf16.mxu0 0
      %494 = vmatpush1.bf16.msra.mxu0 0
      %495 = vmatprep.subr.bf16.mxu0 0
      %496 = vmatpush1.bf16.msra.mxu0 0
      %497 = vmatprep.subr.bf16.mxu0 0
      %498 = vmatpush1.bf16.msra.mxu0 0
      %499 = vmatprep.subr.bf16.mxu0 0
      %500 = vmatpush1.bf16.msra.mxu0 0
      %501 = vmatprep.subr.bf16.mxu0 0
      %502 = vmatpush1.bf16.msra.mxu0 0
      %503 = vmatprep.subr.bf16.mxu0 0
      %504 = vmatpush1.bf16.msra.mxu0 0
      %505 = vmatprep.subr.bf16.mxu0 0
      %506 = vmatpush1.bf16.msra.mxu0 0
      %507 = vmatprep.mubr.bf16.mxu0 0
      %508 = vmatmul.mubr.bf16.gmra.mrb[0].mxu0 %v395
      %v509 = vpop.f32.mrb[0].mxu0
      %v510 = vadd.f32 0.0, %v509
      %v511 = vpop.f32.mrb[0].mxu0
      %v512 = vpop.f32.mrb[0].mxu0
      %v513 = vadd.f32 0.0, %v512
      %v514 = vpop.f32.mrb[0].mxu0
      %515 = vmatprep.mubr.bf16.mxu0 0
      %516 = vmatmul.mubr.bf16.gmra.mrb[0].mxu0 %v396
      %v517 = vpop.f32.mrb[0].mxu0
      %v518 = vadd.f32 0.0, %v517
      %v519 = vpop.f32.mrb[0].mxu0
      %v520 = vpop.f32.mrb[0].mxu0
      %v521 = vadd.f32 0.0, %v520
      %v522 = vpop.f32.mrb[0].mxu0
      %523 = vmatprep.mubr.bf16.mxu0 0
      %524 = vmatmul.mubr.bf16.gmra.mrb[0].mxu0 %v397
      %v525 = vpop.f32.mrb[0].mxu0
      %v526 = vadd.f32 0.0, %v525
      %v527 = vpop.f32.mrb[0].mxu0
      %v528 = vpop.f32.mrb[0].mxu0
      %v529 = vadd.f32 0.0, %v528
      %v530 = vpop.f32.mrb[0].mxu0
      %531 = vmatprep.mubr.bf16.mxu0 0
      %532 = vmatmul.mubr.bf16.gmra.mrb[0].mxu0 %v398
      %v533 = vpop.f32.mrb[0].mxu0
      %v534 = vadd.f32 0.0, %v533
      %v535 = vpop.f32.mrb[0].mxu0
      %v536 = vpop.f32.mrb[0].mxu0
      %v537 = vadd.f32 0.0, %v536
      %v538 = vpop.f32.mrb[0].mxu0
      %539 = vmatprep.mubr.bf16.mxu0 0
      %540 = vmatmul.mubr.bf16.gmra.mrb[0].mxu0 %v399
      %v541 = vpop.f32.mrb[0].mxu0
      %v542 = vadd.f32 0.0, %v541
      %v543 = vpop.f32.mrb[0].mxu0
      %v544 = vpop.f32.mrb[0].mxu0
      %v545 = vadd.f32 0.0, %v544
      %v546 = vpop.f32.mrb[0].mxu0
      %547 = vmatprep.mubr.bf16.mxu0 0
      %548 = vmatmul.mubr.bf16.gmra.mrb[0].mxu0 %v400
      %v549 = vpop.f32.mrb[0].mxu0
      %v550 = vadd.f32 0.0, %v549
      %v551 = vpop.f32.mrb[0].mxu0
      %v552 = vpop.f32.mrb[0].mxu0
      %v553 = vadd.f32 0.0, %v552
      %v554 = vpop.f32.mrb[0].mxu0
      %555 = vmatprep.mubr.bf16.mxu0 0
      %556 = vmatmul.mubr.bf16.gmra.mrb[0].mxu0 %v401
      %v557 = vpop.f32.mrb[0].mxu0
      %v558 = vadd.f32 0.0, %v557
      %v559 = vpop.f32.mrb[0].mxu0
      %v560 = vpop.f32.mrb[0].mxu0
      %v561 = vadd.f32 0.0, %v560
      %v562 = vpop.f32.mrb[0].mxu0
      %563 = vmatprep.mubr.bf16.mxu0 0
      %564 = vmatmul.mubr.bf16.gmra.mrb[0].mxu0 %v402
      %v565 = vpop.f32.mrb[0].mxu0
      %v566 = vadd.f32 0.0, %v565
      %v567 = vpop.f32.mrb[0].mxu0
      %v568 = vpop.f32.mrb[0].mxu0
      %v569 = vadd.f32 0.0, %v568
      %v570 = vpop.f32.mrb[0].mxu0
      %571 = vmatprep.mubr.bf16.mxu0 0
      %572 = vmatmul.mubr.bf16.gmra.mrb[0].mxu0 %v403
      %v573 = vpop.f32.mrb[0].mxu0
      %v574 = vadd.f32 0.0, %v573
      %v575 = vpop.f32.mrb[0].mxu0
      %v576 = vpop.f32.mrb[0].mxu0
      %v577 = vadd.f32 0.0, %v576
      %v578 = vpop.f32.mrb[0].mxu0
      %579 = vmatprep.mubr.bf16.mxu0 0
      %580 = vmatmul.mubr.bf16.gmra.mrb[0].mxu0 %v404
      %v581 = vpop.f32.mrb[0].mxu0
      %v582 = vadd.f32 0.0, %v581
      %v583 = vpop.f32.mrb[0].mxu0
      %v584 = vpop.f32.mrb[0].mxu0
      %v585 = vadd.f32 0.0, %v584
      %v586 = vpop.f32.mrb[0].mxu0
      %587 = vmatprep.mubr.bf16.mxu0 0
      %588 = vmatmul.mubr.bf16.gmra.mrb[0].mxu0 %v405
      %v589 = vpop.f32.mrb[0].mxu0
      %v590 = vadd.f32 0.0, %v589
      %v591 = vpop.f32.mrb[0].mxu0
      %v592 = vpop.f32.mrb[0].mxu0
      %v593 = vadd.f32 0.0, %v592
      %v594 = vpop.f32.mrb[0].mxu0
      %595 = vmatprep.mubr.bf16.mxu0 0
      %596 = vmatmul.mubr.bf16.gmra.mrb[0].mxu0 %v406
      %v597 = vpop.f32.mrb[0].mxu0
      %v598 = vadd.f32 0.0, %v597
      %v599 = vpop.f32.mrb[0].mxu0
      %v600 = vpop.f32.mrb[0].mxu0
      %v601 = vadd.f32 0.0, %v600
      %v602 = vpop.f32.mrb[0].mxu0
      %603 = vmatprep.mubr.bf16.mxu0 0
      %604 = vmatmul.mubr.bf16.gmra.mrb[0].mxu0 %v407
      %v605 = vpop.f32.mrb[0].mxu0
      %v606 = vadd.f32 0.0, %v605
      %v607 = vpop.f32.mrb[0].mxu0
      %v608 = vpop.f32.mrb[0].mxu0
      %v609 = vadd.f32 0.0, %v608
      %v610 = vpop.f32.mrb[0].mxu0
      %611 = vmatprep.mubr.bf16.mxu0 0
      %612 = vmatmul.mubr.bf16.gmra.mrb[0].mxu0 %v408
      %v613 = vpop.f32.mrb[0].mxu0
      %v614 = vadd.f32 0.0, %v613
      %v615 = vpop.f32.mrb[0].mxu0
      %v616 = vpop.f32.mrb[0].mxu0
      %v617 = vadd.f32 0.0, %v616
      %v618 = vpop.f32.mrb[0].mxu0
      %619 = vmatprep.mubr.bf16.mxu0 0
      %620 = vmatmul.mubr.bf16.gmra.mrb[0].mxu0 %v409
      %v621 = vpop.f32.mrb[0].mxu0
      %v622 = vadd.f32 0.0, %v621
      %v623 = vpop.f32.mrb[0].mxu0
      %v624 = vpop.f32.mrb[0].mxu0
      %v625 = vadd.f32 0.0, %v624
      %v626 = vpop.f32.mrb[0].mxu0
      %627 = vmatprep.mubr.bf16.mxu0 0
      %628 = vmatmul.mubr.bf16.gmra.mrb[0].mxu0 %v410
      %v629 = vpop.f32.mrb[0].mxu0
      %v630 = vadd.f32 0.0, %v629
      %v631 = vpop.f32.mrb[0].mxu0
      %v632 = vpop.f32.mrb[0].mxu0
      %v633 = vadd.f32 0.0, %v632
      %v634 = vpop.f32.mrb[0].mxu0
      %635 = vdwg.mxu0
      %v636 = vld [vmem:[%s2] sm:$0x1]
      %v638 = vlaneseq
      %v639 = vshrl.u32 %v638, 7
      %v640 = vsub.s32 0, %v639
      %v641 = vrot.slane %v636, %v640
      %v643 = vmul.f32 %v510, %v641
      %v644 = vmul.f32 %v513, %v641
      %v645 = vmul.f32 %v518, %v641
      %v646 = vmul.f32 %v521, %v641
      %v647 = vmul.f32 %v526, %v641
      %v648 = vmul.f32 %v529, %v641
      %v649 = vmul.f32 %v534, %v641
      %v650 = vmul.f32 %v537, %v641
      %v651 = vmul.f32 %v542, %v641
      %v652 = vmul.f32 %v545, %v641
      %v653 = vmul.f32 %v550, %v641
      %v654 = vmul.f32 %v553, %v641
      %v655 = vmul.f32 %v558, %v641
      %v656 = vmul.f32 %v561, %v641
      %v657 = vmul.f32 %v566, %v641
      %v658 = vmul.f32 %v569, %v641
      %v659 = vmul.f32 %v574, %v641
      %v660 = vmul.f32 %v577, %v641
      %v661 = vmul.f32 %v582, %v641
      %v662 = vmul.f32 %v585, %v641
      %v663 = vmul.f32 %v590, %v641
      %v664 = vmul.f32 %v593, %v641
      %v665 = vmul.f32 %v598, %v641
      %v666 = vmul.f32 %v601, %v641
      %v667 = vmul.f32 %v606, %v641
      %v668 = vmul.f32 %v609, %v641
      %v669 = vmul.f32 %v614, %v641
      %v670 = vmul.f32 %v617, %v641
      %v671 = vmul.f32 %v622, %v641
      %v672 = vmul.f32 %v625, %v641
      %v673 = vmul.f32 %v630, %v641
      %v674 = vmul.f32 %v633, %v641
      %675 = vadd.xlane.f32.xlu0 %v643
      %v676 = vpop.xlane.xlu0 %675
      %677 = vadd.xlane.f32.xlu0 %v644
      %v678 = vpop.xlane.xlu0 %677
      %679 = vadd.xlane.f32.xlu0 %v645
      %v680 = vpop.xlane.xlu0 %679
      %681 = vadd.xlane.f32.xlu0 %v646
      %v682 = vpop.xlane.xlu0 %681
      %683 = vadd.xlane.f32.xlu0 %v647
      %v684 = vpop.xlane.xlu0 %683
      %685 = vadd.xlane.f32.xlu0 %v648
      %v686 = vpop.xlane.xlu0 %685
      %687 = vadd.xlane.f32.xlu0 %v649
      %v688 = vpop.xlane.xlu0 %687
      %689 = vadd.xlane.f32.xlu0 %v650
      %v690 = vpop.xlane.xlu0 %689
      %691 = vadd.xlane.f32.xlu0 %v651
      %v692 = vpop.xlane.xlu0 %691
      %693 = vadd.xlane.f32.xlu0 %v652
      %v694 = vpop.xlane.xlu0 %693
      %695 = vadd.xlane.f32.xlu0 %v653
      %v696 = vpop.xlane.xlu0 %695
      %697 = vadd.xlane.f32.xlu0 %v654
      %v698 = vpop.xlane.xlu0 %697
      %699 = vadd.xlane.f32.xlu0 %v655
      %v700 = vpop.xlane.xlu0 %699
      %701 = vadd.xlane.f32.xlu0 %v656
      %v702 = vpop.xlane.xlu0 %701
      %703 = vadd.xlane.f32.xlu0 %v657
      %v704 = vpop.xlane.xlu0 %703
      %705 = vadd.xlane.f32.xlu0 %v658
      %v706 = vpop.xlane.xlu0 %705
      %707 = vadd.xlane.f32.xlu0 %v659
      %v708 = vpop.xlane.xlu0 %707
      %709 = vadd.xlane.f32.xlu0 %v660
      %v710 = vpop.xlane.xlu0 %709
      %711 = vadd.xlane.f32.xlu0 %v661
      %v712 = vpop.xlane.xlu0 %711
      %713 = vadd.xlane.f32.xlu0 %v662
      %v714 = vpop.xlane.xlu0 %713
      %715 = vadd.xlane.f32.xlu0 %v663
      %v716 = vpop.xlane.xlu0 %715
      %717 = vadd.xlane.f32.xlu0 %v664
      %v718 = vpop.xlane.xlu0 %717
      %719 = vadd.xlane.f32.xlu0 %v665
      %v720 = vpop.xlane.xlu0 %719
      %721 = vadd.xlane.f32.xlu0 %v666
      %v722 = vpop.xlane.xlu0 %721
      %723 = vadd.xlane.f32.xlu0 %v667
      %v724 = vpop.xlane.xlu0 %723
      %725 = vadd.xlane.f32.xlu0 %v668
      %v726 = vpop.xlane.xlu0 %725
      %727 = vadd.xlane.f32.xlu0 %v669
      %v728 = vpop.xlane.xlu0 %727
      %729 = vadd.xlane.f32.xlu0 %v670
      %v730 = vpop.xlane.xlu0 %729
      %731 = vadd.xlane.f32.xlu0 %v671
      %v732 = vpop.xlane.xlu0 %731
      %733 = vadd.xlane.f32.xlu0 %v672
      %v734 = vpop.xlane.xlu0 %733
      %735 = vadd.xlane.f32.xlu0 %v673
      %v736 = vpop.xlane.xlu0 %735
      %737 = vadd.xlane.f32.xlu0 %v674
      %v738 = vpop.xlane.xlu0 %737
      %vm739 = vcmask 7168
      %740 = vst.msk [vmem:[%s274] sm:$0xff] %vm739, %v676
      %741 = vst.msk [vmem:[%s274 + $0x8] sm:$0xff] %vm739, %v678
      %742 = vst.msk [vmem:[%s274 + $0x10] sm:$0xff] %vm739, %v680
      %743 = vst.msk [vmem:[%s274 + $0x18] sm:$0xff] %vm739, %v682
      %744 = vst.msk [vmem:[%s274 + $0x20] sm:$0xff] %vm739, %v684
      %745 = vst.msk [vmem:[%s274 + $0x28] sm:$0xff] %vm739, %v686
      %746 = vst.msk [vmem:[%s274 + $0x30] sm:$0xff] %vm739, %v688
      %747 = vst.msk [vmem:[%s274 + $0x38] sm:$0xff] %vm739, %v690
      %748 = vst.msk [vmem:[%s274 + $0x40] sm:$0xff] %vm739, %v692
      %749 = vst.msk [vmem:[%s274 + $0x48] sm:$0xff] %vm739, %v694
      %750 = vst.msk [vmem:[%s274 + $0x50] sm:$0xff] %vm739, %v696
      %751 = vst.msk [vmem:[%s274 + $0x58] sm:$0xff] %vm739, %v698
      %752 = vst.msk [vmem:[%s274 + $0x60] sm:$0xff] %vm739, %v700
      %753 = vst.msk [vmem:[%s274 + $0x68] sm:$0xff] %vm739, %v702
      %754 = vst.msk [vmem:[%s274 + $0x70] sm:$0xff] %vm739, %v704
      %755 = vst.msk [vmem:[%s274 + $0x78] sm:$0xff] %vm739, %v706
      %756 = vst.msk [vmem:[%s274 + $0x80] sm:$0xff] %vm739, %v708
      %757 = vst.msk [vmem:[%s274 + $0x88] sm:$0xff] %vm739, %v710
      %758 = vst.msk [vmem:[%s274 + $0x90] sm:$0xff] %vm739, %v712
      %759 = vst.msk [vmem:[%s274 + $0x98] sm:$0xff] %vm739, %v714
      %760 = vst.msk [vmem:[%s274 + $0xa0] sm:$0xff] %vm739, %v716
      %761 = vst.msk [vmem:[%s274 + $0xa8] sm:$0xff] %vm739, %v718
      %762 = vst.msk [vmem:[%s274 + $0xb0] sm:$0xff] %vm739, %v720
      %763 = vst.msk [vmem:[%s274 + $0xb8] sm:$0xff] %vm739, %v722
      %764 = vst.msk [vmem:[%s274 + $0xc0] sm:$0xff] %vm739, %v724
      %765 = vst.msk [vmem:[%s274 + $0xc8] sm:$0xff] %vm739, %v726
      %766 = vst.msk [vmem:[%s274 + $0xd0] sm:$0xff] %vm739, %v728
      %767 = vst.msk [vmem:[%s274 + $0xd8] sm:$0xff] %vm739, %v730
      %768 = vst.msk [vmem:[%s274 + $0xe0] sm:$0xff] %vm739, %v732
      %769 = vst.msk [vmem:[%s274 + $0xe8] sm:$0xff] %vm739, %v734
      %770 = vst.msk [vmem:[%s274 + $0xf0] sm:$0xff] %vm739, %v736
      %771 = vst.msk [vmem:[%s274 + $0xf8] sm:$0xff] %vm739, %v738
      %v772 = vld [vmem:[%s3] sm:$0x1]
      %v774 = vlaneseq
      %v775 = vshrl.u32 %v774, 7
      %v776 = vsub.s32 0, %v775
      %v777 = vrot.slane %v772, %v776
      %v779 = vmul.f32 %v510, %v777
      %v780 = vmul.f32 %v513, %v777
      %v781 = vmul.f32 %v518, %v777
      %v782 = vmul.f32 %v521, %v777
      %v783 = vmul.f32 %v526, %v777
      %v784 = vmul.f32 %v529, %v777
      %v785 = vmul.f32 %v534, %v777
      %v786 = vmul.f32 %v537, %v777
      %v787 = vmul.f32 %v542, %v777
      %v788 = vmul.f32 %v545, %v777
      %v789 = vmul.f32 %v550, %v777
      %v790 = vmul.f32 %v553, %v777
      %v791 = vmul.f32 %v558, %v777
      %v792 = vmul.f32 %v561, %v777
      %v793 = vmul.f32 %v566, %v777
      %v794 = vmul.f32 %v569, %v777
      %v795 = vmul.f32 %v574, %v777
      %v796 = vmul.f32 %v577, %v777
      %v797 = vmul.f32 %v582, %v777
      %v798 = vmul.f32 %v585, %v777
      %v799 = vmul.f32 %v590, %v777
      %v800 = vmul.f32 %v593, %v777
      %v801 = vmul.f32 %v598, %v777
      %v802 = vmul.f32 %v601, %v777
      %v803 = vmul.f32 %v606, %v777
      %v804 = vmul.f32 %v609, %v777
      %v805 = vmul.f32 %v614, %v777
      %v806 = vmul.f32 %v617, %v777
      %v807 = vmul.f32 %v622, %v777
      %v808 = vmul.f32 %v625, %v777
      %v809 = vmul.f32 %v630, %v777
      %v810 = vmul.f32 %v633, %v777
      %811 = vadd.xlane.f32.xlu0 %v779
      %v812 = vpop.xlane.xlu0 %811
      %813 = vadd.xlane.f32.xlu0 %v780
      %v814 = vpop.xlane.xlu0 %813
      %815 = vadd.xlane.f32.xlu0 %v781
      %v816 = vpop.xlane.xlu0 %815
      %817 = vadd.xlane.f32.xlu0 %v782
      %v818 = vpop.xlane.xlu0 %817
      %819 = vadd.xlane.f32.xlu0 %v783
      %v820 = vpop.xlane.xlu0 %819
      %821 = vadd.xlane.f32.xlu0 %v784
      %v822 = vpop.xlane.xlu0 %821
      %823 = vadd.xlane.f32.xlu0 %v785
      %v824 = vpop.xlane.xlu0 %823
      %825 = vadd.xlane.f32.xlu0 %v786
      %v826 = vpop.xlane.xlu0 %825
      %827 = vadd.xlane.f32.xlu0 %v787
      %v828 = vpop.xlane.xlu0 %827
      %829 = vadd.xlane.f32.xlu0 %v788
      %v830 = vpop.xlane.xlu0 %829
      %831 = vadd.xlane.f32.xlu0 %v789
      %v832 = vpop.xlane.xlu0 %831
      %833 = vadd.xlane.f32.xlu0 %v790
      %v834 = vpop.xlane.xlu0 %833
      %835 = vadd.xlane.f32.xlu0 %v791
      %v836 = vpop.xlane.xlu0 %835
      %837 = vadd.xlane.f32.xlu0 %v792
      %v838 = vpop.xlane.xlu0 %837
      %839 = vadd.xlane.f32.xlu0 %v793
      %v840 = vpop.xlane.xlu0 %839
      %841 = vadd.xlane.f32.xlu0 %v794
      %v842 = vpop.xlane.xlu0 %841
      %843 = vadd.xlane.f32.xlu0 %v795
      %v844 = vpop.xlane.xlu0 %843
      %845 = vadd.xlane.f32.xlu0 %v796
      %v846 = vpop.xlane.xlu0 %845
      %847 = vadd.xlane.f32.xlu0 %v797
      %v848 = vpop.xlane.xlu0 %847
      %849 = vadd.xlane.f32.xlu0 %v798
      %v850 = vpop.xlane.xlu0 %849
      %851 = vadd.xlane.f32.xlu0 %v799
      %v852 = vpop.xlane.xlu0 %851
      %853 = vadd.xlane.f32.xlu0 %v800
      %v854 = vpop.xlane.xlu0 %853
      %855 = vadd.xlane.f32.xlu0 %v801
      %v856 = vpop.xlane.xlu0 %855
      %857 = vadd.xlane.f32.xlu0 %v802
      %v858 = vpop.xlane.xlu0 %857
      %859 = vadd.xlane.f32.xlu0 %v803
      %v860 = vpop.xlane.xlu0 %859
      %861 = vadd.xlane.f32.xlu0 %v804
      %v862 = vpop.xlane.xlu0 %861
      %863 = vadd.xlane.f32.xlu0 %v805
      %v864 = vpop.xlane.xlu0 %863
      %865 = vadd.xlane.f32.xlu0 %v806
      %v866 = vpop.xlane.xlu0 %865
      %867 = vadd.xlane.f32.xlu0 %v807
      %v868 = vpop.xlane.xlu0 %867
      %869 = vadd.xlane.f32.xlu0 %v808
      %v870 = vpop.xlane.xlu0 %869
      %871 = vadd.xlane.f32.xlu0 %v809
      %v872 = vpop.xlane.xlu0 %871
      %873 = vadd.xlane.f32.xlu0 %v810
      %v874 = vpop.xlane.xlu0 %873
      %875 = vst.msk [vmem:[%s280] sm:$0xff] %vm739, %v812
      %876 = vst.msk [vmem:[%s280 + $0x8] sm:$0xff] %vm739, %v814
      %877 = vst.msk [vmem:[%s280 + $0x10] sm:$0xff] %vm739, %v816
      %878 = vst.msk [vmem:[%s280 + $0x18] sm:$0xff] %vm739, %v818
      %879 = vst.msk [vmem:[%s280 + $0x20] sm:$0xff] %vm739, %v820
      %880 = vst.msk [vmem:[%s280 + $0x28] sm:$0xff] %vm739, %v822
      %881 = vst.msk [vmem:[%s280 + $0x30] sm:$0xff] %vm739, %v824
      %882 = vst.msk [vmem:[%s280 + $0x38] sm:$0xff] %vm739, %v826
      %883 = vst.msk [vmem:[%s280 + $0x40] sm:$0xff] %vm739, %v828
      %884 = vst.msk [vmem:[%s280 + $0x48] sm:$0xff] %vm739, %v830
      %885 = vst.msk [vmem:[%s280 + $0x50] sm:$0xff] %vm739, %v832
      %886 = vst.msk [vmem:[%s280 + $0x58] sm:$0xff] %vm739, %v834
      %887 = vst.msk [vmem:[%s280 + $0x60] sm:$0xff] %vm739, %v836
      %888 = vst.msk [vmem:[%s280 + $0x68] sm:$0xff] %vm739, %v838
      %889 = vst.msk [vmem:[%s280 + $0x70] sm:$0xff] %vm739, %v840
      %890 = vst.msk [vmem:[%s280 + $0x78] sm:$0xff] %vm739, %v842
      %891 = vst.msk [vmem:[%s280 + $0x80] sm:$0xff] %vm739, %v844
      %892 = vst.msk [vmem:[%s280 + $0x88] sm:$0xff] %vm739, %v846
      %893 = vst.msk [vmem:[%s280 + $0x90] sm:$0xff] %vm739, %v848
      %894 = vst.msk [vmem:[%s280 + $0x98] sm:$0xff] %vm739, %v850
      %895 = vst.msk [vmem:[%s280 + $0xa0] sm:$0xff] %vm739, %v852
      %896 = vst.msk [vmem:[%s280 + $0xa8] sm:$0xff] %vm739, %v854
      %897 = vst.msk [vmem:[%s280 + $0xb0] sm:$0xff] %vm739, %v856
      %898 = vst.msk [vmem:[%s280 + $0xb8] sm:$0xff] %vm739, %v858
      %899 = vst.msk [vmem:[%s280 + $0xc0] sm:$0xff] %vm739, %v860
      %900 = vst.msk [vmem:[%s280 + $0xc8] sm:$0xff] %vm739, %v862
      %901 = vst.msk [vmem:[%s280 + $0xd0] sm:$0xff] %vm739, %v864
      %902 = vst.msk [vmem:[%s280 + $0xd8] sm:$0xff] %vm739, %v866
      %903 = vst.msk [vmem:[%s280 + $0xe0] sm:$0xff] %vm739, %v868
      %904 = vst.msk [vmem:[%s280 + $0xe8] sm:$0xff] %vm739, %v870
      %905 = vst.msk [vmem:[%s280 + $0xf0] sm:$0xff] %vm739, %v872
      %906 = vst.msk [vmem:[%s280 + $0xf8] sm:$0xff] %vm739, %v874
      %v907 = vpack.c.bf16 %v513, %v510
      %v908 = vpack.c.bf16 %v521, %v518
      %v909 = vpack.c.bf16 %v529, %v526
      %v910 = vpack.c.bf16 %v537, %v534
      %v911 = vpack.c.bf16 %v545, %v542
      %v912 = vpack.c.bf16 %v553, %v550
      %v913 = vpack.c.bf16 %v561, %v558
      %v914 = vpack.c.bf16 %v569, %v566
      %v915 = vpack.c.bf16 %v577, %v574
      %v916 = vpack.c.bf16 %v585, %v582
      %v917 = vpack.c.bf16 %v593, %v590
      %v918 = vpack.c.bf16 %v601, %v598
      %v919 = vpack.c.bf16 %v609, %v606
      %v920 = vpack.c.bf16 %v617, %v614
      %v921 = vpack.c.bf16 %v625, %v622
      %v922 = vpack.c.bf16 %v633, %v630
      %v939 = vunpack.c.l.b16 %v907
      %v940 = vunpack.c.h.b16 %v907
      %v941 = vunpack.c.l.b16 %v908
      %v942 = vunpack.c.h.b16 %v908
      %v943 = vunpack.c.l.b16 %v909
      %v944 = vunpack.c.h.b16 %v909
      %v945 = vunpack.c.l.b16 %v910
      %v946 = vunpack.c.h.b16 %v910
      %v947 = vunpack.c.l.b16 %v911
      %v948 = vunpack.c.h.b16 %v911
      %v949 = vunpack.c.l.b16 %v912
      %v950 = vunpack.c.h.b16 %v912
      %v951 = vunpack.c.l.b16 %v913
      %v952 = vunpack.c.h.b16 %v913
      %v953 = vunpack.c.l.b16 %v914
      %v954 = vunpack.c.h.b16 %v914
      %v955 = vunpack.c.l.b16 %v915
      %v956 = vunpack.c.h.b16 %v915
      %v957 = vunpack.c.l.b16 %v916
      %v958 = vunpack.c.h.b16 %v916
      %v959 = vunpack.c.l.b16 %v917
      %v960 = vunpack.c.h.b16 %v917
      %v961 = vunpack.c.l.b16 %v918
      %v962 = vunpack.c.h.b16 %v918
      %v963 = vunpack.c.l.b16 %v919
      %v964 = vunpack.c.h.b16 %v919
      %v965 = vunpack.c.l.b16 %v920
      %v966 = vunpack.c.h.b16 %v920
      %v967 = vunpack.c.l.b16 %v921
      %v968 = vunpack.c.h.b16 %v921
      %v969 = vunpack.c.l.b16 %v922
      %v970 = vunpack.c.h.b16 %v922
      %v971 = vpack.c.b16 %v939, %v939
      %v972 = vpack.c.b16 %v940, %v940
      %v973 = vpack.c.b16 %v941, %v941
      %v974 = vpack.c.b16 %v942, %v942
      %v975 = vpack.c.b16 %v943, %v943
      %v976 = vpack.c.b16 %v944, %v944
      %v977 = vpack.c.b16 %v945, %v945
      %v978 = vpack.c.b16 %v946, %v946
      %v979 = vpack.c.b16 %v947, %v947
      %v980 = vpack.c.b16 %v948, %v948
      %v981 = vpack.c.b16 %v949, %v949
      %v982 = vpack.c.b16 %v950, %v950
      %v983 = vpack.c.b16 %v951, %v951
      %v984 = vpack.c.b16 %v952, %v952
      %v985 = vpack.c.b16 %v953, %v953
      %v986 = vpack.c.b16 %v954, %v954
      %v987 = vpack.c.b16 %v955, %v955
      %v988 = vpack.c.b16 %v956, %v956
      %v989 = vpack.c.b16 %v957, %v957
      %v990 = vpack.c.b16 %v958, %v958
      %v991 = vpack.c.b16 %v959, %v959
      %v992 = vpack.c.b16 %v960, %v960
      %v993 = vpack.c.b16 %v961, %v961
      %v994 = vpack.c.b16 %v962, %v962
      %v995 = vpack.c.b16 %v963, %v963
      %v996 = vpack.c.b16 %v964, %v964
      %v997 = vpack.c.b16 %v965, %v965
      %v998 = vpack.c.b16 %v966, %v966
      %v999 = vpack.c.b16 %v967, %v967
      %v1000 = vpack.c.b16 %v968, %v968
      %v1001 = vpack.c.b16 %v969, %v969
      %v1002 = vpack.c.b16 %v970, %v970
      %1035 = vst [vmem:[%s268] sm:$0xf] %v971
      %1036 = vst [vmem:[%s268 + $0x4] sm:$0xf] %v972
      %1037 = vst [vmem:[%s268 + $0x8] sm:$0xf] %v973
      %1038 = vst [vmem:[%s268 + $0xc] sm:$0xf] %v974
      %1039 = vst [vmem:[%s268 + $0x10] sm:$0xf] %v975
      %1040 = vst [vmem:[%s268 + $0x14] sm:$0xf] %v976
      %1041 = vst [vmem:[%s268 + $0x18] sm:$0xf] %v977
      %1042 = vst [vmem:[%s268 + $0x1c] sm:$0xf] %v978
      %1043 = vst [vmem:[%s268 + $0x20] sm:$0xf] %v979
      %1044 = vst [vmem:[%s268 + $0x24] sm:$0xf] %v980
      %1045 = vst [vmem:[%s268 + $0x28] sm:$0xf] %v981
      %1046 = vst [vmem:[%s268 + $0x2c] sm:$0xf] %v982
      %1047 = vst [vmem:[%s268 + $0x30] sm:$0xf] %v983
      %1048 = vst [vmem:[%s268 + $0x34] sm:$0xf] %v984
      %1049 = vst [vmem:[%s268 + $0x38] sm:$0xf] %v985
      %1050 = vst [vmem:[%s268 + $0x3c] sm:$0xf] %v986
      %1051 = vst [vmem:[%s268 + $0x40] sm:$0xf] %v987
      %1052 = vst [vmem:[%s268 + $0x44] sm:$0xf] %v988
      %1053 = vst [vmem:[%s268 + $0x48] sm:$0xf] %v989
      %1054 = vst [vmem:[%s268 + $0x4c] sm:$0xf] %v990
      %1055 = vst [vmem:[%s268 + $0x50] sm:$0xf] %v991
      %1056 = vst [vmem:[%s268 + $0x54] sm:$0xf] %v992
      %1057 = vst [vmem:[%s268 + $0x58] sm:$0xf] %v993
      %1058 = vst [vmem:[%s268 + $0x5c] sm:$0xf] %v994
      %1059 = vst [vmem:[%s268 + $0x60] sm:$0xf] %v995
      %1060 = vst [vmem:[%s268 + $0x64] sm:$0xf] %v996
      %1061 = vst [vmem:[%s268 + $0x68] sm:$0xf] %v997
      %1062 = vst [vmem:[%s268 + $0x6c] sm:$0xf] %v998
      %1063 = vst [vmem:[%s268 + $0x70] sm:$0xf] %v999
      %1064 = vst [vmem:[%s268 + $0x74] sm:$0xf] %v1000
      %1065 = vst [vmem:[%s268 + $0x78] sm:$0xf] %v1001
      %1066 = vst [vmem:[%s268 + $0x7c] sm:$0xf] %v1002
      %s1067 = smul.u32 32, %s18
      %p1068 = scmp.lt.s32.totalorder %s1067, 63
      %s1069 = scalar_select %p1068, %s1067, 63
      %s1070 = smul.addr %s1069, 4
      %s1071 = scalar_lea.vmem %s4, %s1070
      %s1072 = smul.u32 32, %s18
      %p1073 = scmp.lt.s32.totalorder %s1072, 63
      %s1074 = scalar_select %p1073, %s1072, 63
      %s1075 = smul.addr %s1074, 8
      %s1076 = scalar_lea.vmem %s5, %s1075
      %s1077 = smul.u32 32, %s18
      %p1078 = scmp.lt.s32.totalorder %s1077, 63
      %s1079 = scalar_select %p1078, %s1077, 63
      %s1080 = smul.addr %s1079, 8
      %s1081 = scalar_lea.vmem %s6, %s1080
      // Predicated region
      $region37: #{variational_gat_forward.5} parent=35 // pred_check
        %p1082 = pneg %p125
      $region38: #{variational_gat_forward.5} parent=35 // pred_check_branch
        %1084 = sbr.rel (%p1082) target = $region40
      $region39: #{variational_gat_forward.5} parent=35 // pred_region
        %s1085 = smul.u32 32, %s18
      $region40: #{variational_gat_forward.5} parent=35 // pred_fallthru
        _
      // Predicated region
      $region41: #{variational_gat_forward.5} parent=35 // pred_check
        %p1086 = pneg %p151
      $region42: #{variational_gat_forward.5} parent=35 // pred_check_branch
        %1088 = sbr.rel (%p1086) target = $region44
      $region43: #{variational_gat_forward.5} parent=35 // pred_region
        %s1089 = smul.u32 32, %s18
      $region44: #{variational_gat_forward.5} parent=35 // pred_fallthru
        _
      // Predicated region
      $region45: #{variational_gat_forward.5} parent=35 // pred_check
        %p1090 = pneg %p177
      $region46: #{variational_gat_forward.5} parent=35 // pred_check_branch
        %1092 = sbr.rel (%p1090) target = $region48
      $region47: #{variational_gat_forward.5} parent=35 // pred_region
        %s1093 = smul.u32 32, %s18
      $region48: #{variational_gat_forward.5} parent=35 // pred_fallthru
        _
    $region36: #{variational_gat_forward.5} parent=5 // pred_fallthru
      _
    %p1094 = scmp.le.s32.totalorder 2, %s13
    // Predicated region
    $region49: #{variational_gat_forward.5} parent=5 // pred_check
      %p1095 = pneg %p1094
    $region50: #{variational_gat_forward.5} parent=5 // pred_check_branch
      %1097 = sbr.rel (%p1095) target = $region52
    $region51: #{variational_gat_forward.5} parent=5 // pred_region
      %s1098 = ssub.s32 %s13, 2
      // Predicated region
      $region53: #{variational_gat_forward.5} parent=51 // pred_check
        %p1099 = pneg %p131
      $region54: #{variational_gat_forward.5} parent=51 // pred_check_branch
        %1101 = sbr.rel (%p1099) target = $region56
      $region55: #{variational_gat_forward.5} parent=51 // pred_region
        %s1102 = smul.u32 32, %s19
        %p1103 = scmp.lt.s32.totalorder %s1102, 63
        %s1104 = scalar_select %p1103, %s1102, 63
        %s1105 = smul.addr %s1104, 4
        %s1106 = scalar_lea.vmem %s4, %s1105
      $region56: #{variational_gat_forward.5} parent=51 // pred_fallthru
        _
      // Predicated region
      $region57: #{variational_gat_forward.5} parent=51 // pred_check
        %p1107 = pneg %p157
      $region58: #{variational_gat_forward.5} parent=51 // pred_check_branch
        %1109 = sbr.rel (%p1107) target = $region60
      $region59: #{variational_gat_forward.5} parent=51 // pred_region
        %s1110 = smul.u32 32, %s19
        %p1111 = scmp.lt.s32.totalorder %s1110, 63
        %s1112 = scalar_select %p1111, %s1110, 63
        %s1113 = smul.addr %s1112, 8
        %s1114 = scalar_lea.vmem %s5, %s1113
      $region60: #{variational_gat_forward.5} parent=51 // pred_fallthru
        _
      // Predicated region
      $region61: #{variational_gat_forward.5} parent=51 // pred_check
        %p1115 = pneg %p183
      $region62: #{variational_gat_forward.5} parent=51 // pred_check_branch
        %1117 = sbr.rel (%p1115) target = $region64
      $region63: #{variational_gat_forward.5} parent=51 // pred_region
        %s1118 = smul.u32 32, %s19
        %p1119 = scmp.lt.s32.totalorder %s1118, 63
        %s1120 = scalar_select %p1119, %s1118, 63
        %s1121 = smul.addr %s1120, 8
        %s1122 = scalar_lea.vmem %s6, %s1121
      $region64: #{variational_gat_forward.5} parent=51 // pred_fallthru
        _
    $region52: #{variational_gat_forward.5} parent=5 // pred_fallthru
      _
  $region6: #{variational_gat_forward.5} parent=0 // loop_footer
    %s17 = sadd.s32 1, %s13
  $region7: #{variational_gat_forward.5} parent=0 // loop_footer_branch
    %12 = sbr.rel target = $region3
  $region8: #{variational_gat_forward.5} parent=0 // loop_exit
    _

// kernel: variational_gat_forward.6
$region0: #{variational_gat_forward.6}
  #allocation0 [shape = 'u32[]', space=smem, size = 0x4, offset = 0x4, fixed_abs, tag = 'smem constant byte address 0x4 - core index']
  #allocation1 [shape = 'u32[144,128]{1,0:T(1,128)}', space=vmem, size = 0x12000, scoped, tag = 'internal scratch']
  #allocation2 [shape = 'f32[256,1]{1,0:T(8,128)}', space=vmem, size = 0x20000, scoped, tag = 'scratch operand']
  #allocation3 [shape = 'f32[256,1]{1,0:T(8,128)}', space=vmem, size = 0x20000, scoped, tag = 'scratch operand']
  #allocation4 [shape = 'f32[256,128]{1,0:T(8,128)}', space=vmem, size = 0x20000, scoped, tag = 'scratch operand']
  %s0 = inlined_call_operand.vmem [shape: f32[512,1], index: 0, kind: input, shape index: {}]
  %s1 = inlined_call_operand.vmem [shape: f32[1,512], index: 1, kind: input, shape index: {}]
  %s2 = inlined_call_operand.vmem [shape: s8[512,512], index: 2, kind: input, shape index: {}]
  %s3 = inlined_call_operand.vmem [shape: bf16[512,128], index: 3, kind: input, shape index: {}]
  %s4 = inlined_call_operand.vmem [shape: bf16[512,128], index: 4, kind: output, shape index: {}]
  %s5 = sld [smem:[#allocation0]]
  $region80: #{variational_gat_forward.6} parent=0
    _
  %s7 = ssub.s32 1, %s5
  %s8 = scalar_select 0, %s7, %s5
  $region1: #{variational_gat_forward.6} parent=0
    #allocation5 [shape = 'u8[131072]{0}', space=vmem, size = 0x20000, scoped, tag = 'input window, operand 2']
    loop: start=0, step=1, limit=6
    $region2: #{variational_gat_forward.6} parent=1 // loop_pre_header
      _
    $region3: #{variational_gat_forward.6} parent=1 // loop_header
      %s10 = sphi 0, %s14
      %p11 = scmp.ge.s32.totalorder %s10, 6
      %s17 = sphi 0, %s29
      %s18 = sphi 0, %s25
      %s19 = sphi 0, %s17
      %s20 = sphi 0, %s18
      %s21 = sphi 0, %s19
      %s22 = sphi 0, %s20
      %s32 = sphi 0, %s34
      %s35 = sphi 0, %s32
      %s36 = sphi 0, %s35
      %s52 = sphi 0, %s36
      %s58 = sphi 0, %s60
      %s61 = sphi 0, %s58
      %s62 = sphi 0, %s61
      %s78 = sphi 0, %s62
      %s86 = sphi 0, %s88
      %s89 = sphi 0, %s86
      %s90 = sphi 0, %s89
      %s106 = sphi 0, %s90
      %s110 = sphi 0, %s110
      %s112 = sphi 0, %s110
      %s113 = sphi 0, %s112
      %s127 = sphi 0, %s113
      %s133 = sphi 0, %s135
      %s136 = sphi 0, %s133
      %s137 = sphi 0, %s136
      %s153 = sphi 0, %s137
    $region4: #{variational_gat_forward.6} parent=1 // loop_header_branch
      %13 = sbr.rel (%p11) target = $region8
    $region5: #{variational_gat_forward.6} parent=1 // loop_body
      %s15 = ssub.s32 %s10, 1
      %s16 = ssub.s32 %s10, 2
      %s23 = sadd.s32 1, %s18
      %p24 = scmp.ge.s32.totalorder %s23, 2
      %s25 = scalar_select %p24, 0, %s23
      %s26 = sadd.s32 1, %s17
      %s27 = scalar_select %p24, %s26, %s17
      %p28 = scmp.ge.s32.totalorder %s27, 2
      %s29 = scalar_select %p28, 0, %s27
      %s30 = ssub.s32 %s17, %s29
      %p31 = scmp.eq.s32.totalorder %s30, 0
      %s33 = sadd.s32 %s32, 1
      %s34 = scalar_select %p31, %s32, %s33
      %p37 = pneg %p31
      %p38 = scmp.eq.s32.totalorder %s10, 3
      %p39 = por %p37, %p38
      %p40 = scmp.ne.s32.totalorder %s32, %s35
      %p41 = scmp.eq.s32.totalorder %s10, 0
      %p42 = por %p40, %p41
      %p43 = scmp.ne.s32.totalorder %s32, %s35
      %p44 = scmp.eq.s32.totalorder %s15, 3
      %p45 = por %p43, %p44
      %p46 = scmp.ne.s32.totalorder %s35, %s36
      %p47 = scmp.eq.s32.totalorder %s15, 0
      %p48 = por %p46, %p47
      %p49 = scmp.ne.s32.totalorder %s35, %s36
      %p50 = scmp.eq.s32.totalorder %s16, 3
      %p51 = por %p49, %p50
      %p53 = scmp.ne.s32.totalorder %s36, %s52
      %p54 = scmp.eq.s32.totalorder %s16, 0
      %p55 = por %p53, %p54
      %s56 = ssub.s32 %s18, %s25
      %p57 = scmp.eq.s32.totalorder %s56, 0
      %s59 = sadd.s32 %s58, 1
      %s60 = scalar_select %p57, %s58, %s59
      %p63 = pneg %p57
      %p64 = scmp.eq.s32.totalorder %s10, 3
      %p65 = por %p63, %p64
      %p66 = scmp.ne.s32.totalorder %s58, %s61
      %p67 = scmp.eq.s32.totalorder %s10, 0
      %p68 = por %p66, %p67
      %p69 = scmp.ne.s32.totalorder %s58, %s61
      %p70 = scmp.eq.s32.totalorder %s15, 3
      %p71 = por %p69, %p70
      %p72 = scmp.ne.s32.totalorder %s61, %s62
      %p73 = scmp.eq.s32.totalorder %s15, 0
      %p74 = por %p72, %p73
      %p75 = scmp.ne.s32.totalorder %s61, %s62
      %p76 = scmp.eq.s32.totalorder %s16, 3
      %p77 = por %p75, %p76
      %p79 = scmp.ne.s32.totalorder %s62, %s78
      %p80 = scmp.eq.s32.totalorder %s16, 0
      %p81 = por %p79, %p80
      %s82 = ssub.s32 %s17, %s29
      %s83 = ssub.s32 %s18, %s25
      %s84 = sor.u32 %s82, %s83
      %p85 = scmp.eq.s32.totalorder %s84, 0
      %s87 = sadd.s32 %s86, 1
      %s88 = scalar_select %p85, %s86, %s87
      %p91 = pneg %p85
      %p92 = scmp.eq.s32.totalorder %s10, 3
      %p93 = por %p91, %p92
      %p94 = scmp.ne.s32.totalorder %s86, %s89
      %p95 = scmp.eq.s32.totalorder %s10, 0
      %p96 = por %p94, %p95
      %p97 = scmp.ne.s32.totalorder %s86, %s89
      %p98 = scmp.eq.s32.totalorder %s15, 3
      %p99 = por %p97, %p98
      %p100 = scmp.ne.s32.totalorder %s89, %s90
      %p101 = scmp.eq.s32.totalorder %s15, 0
      %p102 = por %p100, %p101
      %p103 = scmp.ne.s32.totalorder %s89, %s90
      %p104 = scmp.eq.s32.totalorder %s16, 3
      %p105 = por %p103, %p104
      %p107 = scmp.ne.s32.totalorder %s90, %s106
      %p108 = scmp.eq.s32.totalorder %s16, 0
      %p109 = por %p107, %p108
      %s111 = sadd.s32 %s110, 1
      %p114 = scmp.eq.s32.totalorder %s10, 3
      %p115 = scmp.ne.s32.totalorder %s110, %s112
      %p116 = scmp.eq.s32.totalorder %s10, 0
      %p117 = por %p115, %p116
      %p118 = scmp.ne.s32.totalorder %s110, %s112
      %p119 = scmp.eq.s32.totalorder %s15, 3
      %p120 = por %p118, %p119
      %p121 = scmp.ne.s32.totalorder %s112, %s113
      %p122 = scmp.eq.s32.totalorder %s15, 0
      %p123 = por %p121, %p122
      %p124 = scmp.ne.s32.totalorder %s112, %s113
      %p125 = scmp.eq.s32.totalorder %s16, 3
      %p126 = por %p124, %p125
      %p128 = scmp.ne.s32.totalorder %s113, %s127
      %p129 = scmp.eq.s32.totalorder %s16, 0
      %p130 = por %p128, %p129
      %s131 = ssub.s32 %s17, %s29
      %p132 = scmp.eq.s32.totalorder %s131, 0
      %s134 = sadd.s32 %s133, 1
      %s135 = scalar_select %p132, %s133, %s134
      %p138 = pneg %p132
      %p139 = scmp.eq.s32.totalorder %s10, 3
      %p140 = por %p138, %p139
      %p141 = scmp.ne.s32.totalorder %s133, %s136
      %p142 = scmp.eq.s32.totalorder %s10, 0
      %p143 = por %p141, %p142
      %p144 = scmp.ne.s32.totalorder %s133, %s136
      %p145 = scmp.eq.s32.totalorder %s15, 3
      %p146 = por %p144, %p145
      %p147 = scmp.ne.s32.totalorder %s136, %s137
      %p148 = scmp.eq.s32.totalorder %s15, 0
      %p149 = por %p147, %p148
      %p150 = scmp.ne.s32.totalorder %s136, %s137
      %p151 = scmp.eq.s32.totalorder %s16, 3
      %p152 = por %p150, %p151
      %p154 = scmp.ne.s32.totalorder %s137, %s153
      %p155 = scmp.eq.s32.totalorder %s16, 0
      %p156 = por %p154, %p155
      %p157 = scmp.le.s32.totalorder 1, %s10
      %p158 = scmp.lt.s32.totalorder %s10, 5
      %p159 = pnand %p157, %p158
      %p160 = pneg %p159
      // Predicated region
      $region9: #{variational_gat_forward.6} parent=5 // pred_check
        _
      $region10: #{variational_gat_forward.6} parent=5 // pred_check_branch
        %162 = sbr.rel (%p159) target = $region12
      $region11: #{variational_gat_forward.6} parent=5 // pred_region
        %s163 = ssub.s32 %s10, 1
        // Predicated region
        $region13: #{variational_gat_forward.6} parent=11 // pred_check
          %p164 = pneg %p123
        $region14: #{variational_gat_forward.6} parent=11 // pred_check_branch
          %166 = sbr.rel (%p164) target = $region16
        $region15: #{variational_gat_forward.6} parent=11 // pred_region
          _
        $region16: #{variational_gat_forward.6} parent=11 // pred_fallthru
          _
      $region12: #{variational_gat_forward.6} parent=5 // pred_fallthru
        _
      %p167 = scmp.lt.s32.totalorder %s10, 4
      // Predicated region
      $region17: #{variational_gat_forward.6} parent=5 // pred_check
        %p168 = pneg %p167
      $region18: #{variational_gat_forward.6} parent=5 // pred_check_branch
        %170 = sbr.rel (%p168) target = $region20
      $region19: #{variational_gat_forward.6} parent=5 // pred_region
        // Predicated region
        $region21: #{variational_gat_forward.6} parent=19 // pred_check
          %p171 = pneg %p42
        $region22: #{variational_gat_forward.6} parent=19 // pred_check_branch
          %173 = sbr.rel (%p171) target = $region24
        $region23: #{variational_gat_forward.6} parent=19 // pred_region
          %s174 = smul.u32 32, %s17
          %p175 = scmp.lt.s32.totalorder %s174, 63
          %s176 = scalar_select %p175, %s174, 63
          %s177 = smul.addr %s176, 8
          %s178 = scalar_lea.vmem %s0, %s177
          %s179 = smul.u32 32, %s17
        $region24: #{variational_gat_forward.6} parent=19 // pred_fallthru
          _
        // Predicated region
        $region25: #{variational_gat_forward.6} parent=19 // pred_check
          %p180 = pneg %p68
        $region26: #{variational_gat_forward.6} parent=19 // pred_check_branch
          %182 = sbr.rel (%p180) target = $region28
        $region27: #{variational_gat_forward.6} parent=19 // pred_region
          %s183 = smul.u32 2, %s18
          %p184 = scmp.lt.s32.totalorder %s183, 3
          %s185 = scalar_select %p184, %s183, 3
          %s186 = scalar_lea.vmem %s1, %s185
          %s187 = smul.u32 2, %s18
        $region28: #{variational_gat_forward.6} parent=19 // pred_fallthru
          _
        // Predicated region
        $region29: #{variational_gat_forward.6} parent=19 // pred_check
          %p188 = pneg %p96
        $region30: #{variational_gat_forward.6} parent=19 // pred_check_branch
          %190 = sbr.rel (%p188) target = $region32
        $region31: #{variational_gat_forward.6} parent=19 // pred_region
          %s191 = sand.u32 %s86, 1
          %s192 = sand.u32 %s86, 1
          %s193 = smul.addr %s192, 128
          %s194 = scalar_lea.vmem [#allocation5], %s193
          %s195 = smul.u32 8, %s17
          %s196 = smul.u32 2, %s18
          %s197 = smul.addr %s195, 4
          %s198 = sadd.s32 %s196, %s197
          %s199 = smul.addr %s198, 8
          %s200 = scalar_lea.vmem %s2, %s199
          // Predicated region
          $region33: #{variational_gat_forward.6} parent=31 // pred_check
            _
          $region34: #{variational_gat_forward.6} parent=31 // pred_check_branch
            %202 = sbr.rel (0) target = $region36
          $region35: #{variational_gat_forward.6} parent=31 // pred_region
            // Predicated region
            $region37: #{variational_gat_forward.6} parent=35 // pred_check
              _
            $region38: #{variational_gat_forward.6} parent=35 // pred_check_branch
              %204 = sbr.rel (0) target = $region40
            $region39: #{variational_gat_forward.6} parent=35 // pred_region
              loop: start=0, step=1, limit=1
              $region41: #{variational_gat_forward.6} parent=39 // loop_pre_header
                _
              $region42: #{variational_gat_forward.6} parent=39 // loop_header
                %s206 = sphi 0, %s210
                %p207 = scmp.ge.s32.totalorder %s206, 1
                %s211 = sphi %s200, %s200
                %s212 = sphi %s194, %s194
              $region43: #{variational_gat_forward.6} parent=39 // loop_header_branch
                %209 = sbr.rel (%p207) target = $region47
              $region44: #{variational_gat_forward.6} parent=39 // loop_body
                %v213 = vld [vmem:[%s211] sm:$0xff]
                %214 = vst [vmem:[%s212] sm:$0xff] %v213
                %v215 = vld [vmem:[%s211 + $0x8] sm:$0xff]
                %216 = vst [vmem:[%s212 + $0x8] sm:$0xff] %v215
                %v217 = vld [vmem:[%s211 + $0x20] sm:$0xff]
                %218 = vst [vmem:[%s212 + $0x10] sm:$0xff] %v217
                %v219 = vld [vmem:[%s211 + $0x28] sm:$0xff]
                %220 = vst [vmem:[%s212 + $0x18] sm:$0xff] %v219
                %v221 = vld [vmem:[%s211 + $0x40] sm:$0xff]
                %222 = vst [vmem:[%s212 + $0x20] sm:$0xff] %v221
                %v223 = vld [vmem:[%s211 + $0x48] sm:$0xff]
                %224 = vst [vmem:[%s212 + $0x28] sm:$0xff] %v223
                %v225 = vld [vmem:[%s211 + $0x60] sm:$0xff]
                %226 = vst [vmem:[%s212 + $0x30] sm:$0xff] %v225
                %v227 = vld [vmem:[%s211 + $0x68] sm:$0xff]
                %228 = vst [vmem:[%s212 + $0x38] sm:$0xff] %v227
                %v229 = vld [vmem:[%s211 + $0x80] sm:$0xff]
                %230 = vst [vmem:[%s212 + $0x40] sm:$0xff] %v229
                %v231 = vld [vmem:[%s211 + $0x88] sm:$0xff]
                %232 = vst [vmem:[%s212 + $0x48] sm:$0xff] %v231
                %v233 = vld [vmem:[%s211 + $0xa0] sm:$0xff]
                %234 = vst [vmem:[%s212 + $0x50] sm:$0xff] %v233
                %v235 = vld [vmem:[%s211 + $0xa8] sm:$0xff]
                %236 = vst [vmem:[%s212 + $0x58] sm:$0xff] %v235
                %v237 = vld [vmem:[%s211 + $0xc0] sm:$0xff]
                %238 = vst [vmem:[%s212 + $0x60] sm:$0xff] %v237
                %v239 = vld [vmem:[%s211 + $0xc8] sm:$0xff]
                %240 = vst [vmem:[%s212 + $0x68] sm:$0xff] %v239
                %v241 = vld [vmem:[%s211 + $0xe0] sm:$0xff]
                %242 = vst [vmem:[%s212 + $0x70] sm:$0xff] %v241
                %v243 = vld [vmem:[%s211 + $0xe8] sm:$0xff]
                %244 = vst [vmem:[%s212 + $0x78] sm:$0xff] %v243
              $region45: #{variational_gat_forward.6} parent=39 // loop_footer
                %s210 = sadd.s32 1, %s206
              $region46: #{variational_gat_forward.6} parent=39 // loop_footer_branch
                %205 = sbr.rel target = $region42
              $region47: #{variational_gat_forward.6} parent=39 // loop_exit
                _
            $region40: #{variational_gat_forward.6} parent=35 // pred_fallthru
              _
            // Predicated region
            $region48: #{variational_gat_forward.6} parent=35 // pred_check
              _
            $region49: #{variational_gat_forward.6} parent=35 // pred_check_branch
              %246 = sbr.rel target = $region51
            $region50: #{variational_gat_forward.6} parent=35 // pred_region
              _
            $region51: #{variational_gat_forward.6} parent=35 // pred_fallthru
              _
          $region36: #{variational_gat_forward.6} parent=31 // pred_fallthru
            _
          %247 = vnop
        $region32: #{variational_gat_forward.6} parent=19 // pred_fallthru
          _
      $region20: #{variational_gat_forward.6} parent=5 // pred_fallthru
        _
      %p248 = scmp.le.s32.totalorder 1, %s10
      %p249 = scmp.lt.s32.totalorder %s10, 5
      %p250 = pnand %p248, %p249
      %p251 = pneg %p250
      // Predicated region
      $region52: #{variational_gat_forward.6} parent=5 // pred_check
        _
      $region53: #{variational_gat_forward.6} parent=5 // pred_check_branch
        %253 = sbr.rel (%p250) target = $region55
      $region54: #{variational_gat_forward.6} parent=5 // pred_region
        %s254 = ssub.s32 %s10, 1
        %s255 = sand.u32 %s89, 1
        %s256 = sand.u32 %s89, 1
        %s257 = smul.addr %s256, 128
        %s258 = scalar_lea.vmem [#allocation5], %s257
        // Predicated region
        $region56: #{variational_gat_forward.6} parent=54 // pred_check
          %p259 = pneg %p102
        $region57: #{variational_gat_forward.6} parent=54 // pred_check_branch
          %261 = sbr.rel (%p259) target = $region59
        $region58: #{variational_gat_forward.6} parent=54 // pred_region
          _
        $region59: #{variational_gat_forward.6} parent=54 // pred_fallthru
          _
        %s262 = smul.u32 32, %s19
        %p263 = scmp.lt.s32.totalorder %s262, 63
        %s264 = scalar_select %p263, %s262, 63
        %s265 = smul.addr %s264, 8
        %s266 = scalar_lea.vmem %s0, %s265
        %p267 = pneg %p48
        %p268 = pneg %p45
        %s269 = smul.u32 2, %s20
        %p270 = scmp.lt.s32.totalorder %s269, 3
        %s271 = scalar_select %p270, %s269, 3
        %s272 = scalar_lea.vmem %s1, %s271
        %p273 = pneg %p74
        %p274 = pneg %p71
        %s275 = sand.u32 %s89, 1
        %s276 = sand.u32 %s89, 1
        %s277 = smul.addr %s276, 128
        %s278 = scalar_lea.vmem [#allocation5], %s277
        %p279 = pneg %p102
        %p280 = pneg %p99
        %p281 = pneg %p123
        %p282 = pneg %p120
        %p283 = pneg %p149
        %p284 = pneg %p146
        %s285 = smul.u32 32, %s19
        %p286 = scmp.lt.s32.totalorder %s285, 63
        %s287 = scalar_select %p286, %s285, 63
        %s288 = smul.addr %s287, 4
        %s289 = scalar_lea.vmem %s4, %s288
        %s290 = smul.u32 32, %s19
        %p291 = scmp.lt.s32.totalorder %s290, 63
        %s292 = scalar_select %p291, %s290, 63
        %s293 = smul.addr %s292, 8
        %s294 = scalar_lea.vmem %s0, %s293
        %s295 = smul.u32 32, %s19
        %s296 = smul.u32 2, %s20
        %p297 = scmp.lt.s32.totalorder %s296, 3
        %s298 = scalar_select %p297, %s296, 3
        %s299 = scalar_lea.vmem %s1, %s298
        %s300 = smul.u32 2, %s20
        %s301 = smul.u32 8, %s19
        %s302 = smul.u32 2, %s20
        %s303 = smul.u32 32, %s19
        %p304 = scmp.lt.s32.totalorder %s303, 63
        %s305 = scalar_select %p304, %s303, 63
        %s306 = smul.addr %s305, 4
        %s307 = scalar_lea.vmem %s4, %s306
        %s308 = smul.u32 32, %s19
        %p312 = scmp.eq.s32.totalorder %s20, 0
        // Predicated region
        $region60: #{variational_gat_forward.6} parent=54 // pred_check
          %p313 = pneg %p312
        $region61: #{variational_gat_forward.6} parent=54 // pred_check_branch
          %315 = sbr.rel (%p313) target = $region63
        $region62: #{variational_gat_forward.6} parent=54 // pred_region
          %vm316 = vcmask 7168
          %317 = vst.msk [vmem:[#allocation2] sm:$0xff] %vm316, -inf
          %318 = vst.msk [vmem:[#allocation2 + $0x8] sm:$0xff] %vm316, -inf
          %319 = vst.msk [vmem:[#allocation2 + $0x10] sm:$0xff] %vm316, -inf
          %320 = vst.msk [vmem:[#allocation2 + $0x18] sm:$0xff] %vm316, -inf
          %321 = vst.msk [vmem:[#allocation2 + $0x20] sm:$0xff] %vm316, -inf
          %322 = vst.msk [vmem:[#allocation2 + $0x28] sm:$0xff] %vm316, -inf
          %323 = vst.msk [vmem:[#allocation2 + $0x30] sm:$0xff] %vm316, -inf
          %324 = vst.msk [vmem:[#allocation2 + $0x38] sm:$0xff] %vm316, -inf
          %325 = vst.msk [vmem:[#allocation2 + $0x40] sm:$0xff] %vm316, -inf
          %326 = vst.msk [vmem:[#allocation2 + $0x48] sm:$0xff] %vm316, -inf
          %327 = vst.msk [vmem:[#allocation2 + $0x50] sm:$0xff] %vm316, -inf
          %328 = vst.msk [vmem:[#allocation2 + $0x58] sm:$0xff] %vm316, -inf
          %329 = vst.msk [vmem:[#allocation2 + $0x60] sm:$0xff] %vm316, -inf
          %330 = vst.msk [vmem:[#allocation2 + $0x68] sm:$0xff] %vm316, -inf
          %331 = vst.msk [vmem:[#allocation2 + $0x70] sm:$0xff] %vm316, -inf
          %332 = vst.msk [vmem:[#allocation2 + $0x78] sm:$0xff] %vm316, -inf
          %333 = vst.msk [vmem:[#allocation2 + $0x80] sm:$0xff] %vm316, -inf
          %334 = vst.msk [vmem:[#allocation2 + $0x88] sm:$0xff] %vm316, -inf
          %335 = vst.msk [vmem:[#allocation2 + $0x90] sm:$0xff] %vm316, -inf
          %336 = vst.msk [vmem:[#allocation2 + $0x98] sm:$0xff] %vm316, -inf
          %337 = vst.msk [vmem:[#allocation2 + $0xa0] sm:$0xff] %vm316, -inf
          %338 = vst.msk [vmem:[#allocation2 + $0xa8] sm:$0xff] %vm316, -inf
          %339 = vst.msk [vmem:[#allocation2 + $0xb0] sm:$0xff] %vm316, -inf
          %340 = vst.msk [vmem:[#allocation2 + $0xb8] sm:$0xff] %vm316, -inf
          %341 = vst.msk [vmem:[#allocation2 + $0xc0] sm:$0xff] %vm316, -inf
          %342 = vst.msk [vmem:[#allocation2 + $0xc8] sm:$0xff] %vm316, -inf
          %343 = vst.msk [vmem:[#allocation2 + $0xd0] sm:$0xff] %vm316, -inf
          %344 = vst.msk [vmem:[#allocation2 + $0xd8] sm:$0xff] %vm316, -inf
          %345 = vst.msk [vmem:[#allocation2 + $0xe0] sm:$0xff] %vm316, -inf
          %346 = vst.msk [vmem:[#allocation2 + $0xe8] sm:$0xff] %vm316, -inf
          %347 = vst.msk [vmem:[#allocation2 + $0xf0] sm:$0xff] %vm316, -inf
          %348 = vst.msk [vmem:[#allocation2 + $0xf8] sm:$0xff] %vm316, -inf
          %349 = vst.msk [vmem:[#allocation3] sm:$0xff] %vm316, 0.0
          %350 = vst.msk [vmem:[#allocation3 + $0x8] sm:$0xff] %vm316, 0.0
          %351 = vst.msk [vmem:[#allocation3 + $0x10] sm:$0xff] %vm316, 0.0
          %352 = vst.msk [vmem:[#allocation3 + $0x18] sm:$0xff] %vm316, 0.0
          %353 = vst.msk [vmem:[#allocation3 + $0x20] sm:$0xff] %vm316, 0.0
          %354 = vst.msk [vmem:[#allocation3 + $0x28] sm:$0xff] %vm316, 0.0
          %355 = vst.msk [vmem:[#allocation3 + $0x30] sm:$0xff] %vm316, 0.0
          %356 = vst.msk [vmem:[#allocation3 + $0x38] sm:$0xff] %vm316, 0.0
          %357 = vst.msk [vmem:[#allocation3 + $0x40] sm:$0xff] %vm316, 0.0
          %358 = vst.msk [vmem:[#allocation3 + $0x48] sm:$0xff] %vm316, 0.0
          %359 = vst.msk [vmem:[#allocation3 + $0x50] sm:$0xff] %vm316, 0.0
          %360 = vst.msk [vmem:[#allocation3 + $0x58] sm:$0xff] %vm316, 0.0
          %361 = vst.msk [vmem:[#allocation3 + $0x60] sm:$0xff] %vm316, 0.0
          %362 = vst.msk [vmem:[#allocation3 + $0x68] sm:$0xff] %vm316, 0.0
          %363 = vst.msk [vmem:[#allocation3 + $0x70] sm:$0xff] %vm316, 0.0
          %364 = vst.msk [vmem:[#allocation3 + $0x78] sm:$0xff] %vm316, 0.0
          %365 = vst.msk [vmem:[#allocation3 + $0x80] sm:$0xff] %vm316, 0.0
          %366 = vst.msk [vmem:[#allocation3 + $0x88] sm:$0xff] %vm316, 0.0
          %367 = vst.msk [vmem:[#allocation3 + $0x90] sm:$0xff] %vm316, 0.0
          %368 = vst.msk [vmem:[#allocation3 + $0x98] sm:$0xff] %vm316, 0.0
          %369 = vst.msk [vmem:[#allocation3 + $0xa0] sm:$0xff] %vm316, 0.0
          %370 = vst.msk [vmem:[#allocation3 + $0xa8] sm:$0xff] %vm316, 0.0
          %371 = vst.msk [vmem:[#allocation3 + $0xb0] sm:$0xff] %vm316, 0.0
          %372 = vst.msk [vmem:[#allocation3 + $0xb8] sm:$0xff] %vm316, 0.0
          %373 = vst.msk [vmem:[#allocation3 + $0xc0] sm:$0xff] %vm316, 0.0
          %374 = vst.msk [vmem:[#allocation3 + $0xc8] sm:$0xff] %vm316, 0.0
          %375 = vst.msk [vmem:[#allocation3 + $0xd0] sm:$0xff] %vm316, 0.0
          %376 = vst.msk [vmem:[#allocation3 + $0xd8] sm:$0xff] %vm316, 0.0
          %377 = vst.msk [vmem:[#allocation3 + $0xe0] sm:$0xff] %vm316, 0.0
          %378 = vst.msk [vmem:[#allocation3 + $0xe8] sm:$0xff] %vm316, 0.0
          %379 = vst.msk [vmem:[#allocation3 + $0xf0] sm:$0xff] %vm316, 0.0
          %380 = vst.msk [vmem:[#allocation3 + $0xf8] sm:$0xff] %vm316, 0.0
          %381 = vst [vmem:[#allocation4] sm:$0xff] 0.0
          %382 = vst [vmem:[#allocation4 + $0x8] sm:$0xff] 0.0
          %383 = vst [vmem:[#allocation4 + $0x10] sm:$0xff] 0.0
          %384 = vst [vmem:[#allocation4 + $0x18] sm:$0xff] 0.0
          %385 = vst [vmem:[#allocation4 + $0x20] sm:$0xff] 0.0
          %386 = vst [vmem:[#allocation4 + $0x28] sm:$0xff] 0.0
          %387 = vst [vmem:[#allocation4 + $0x30] sm:$0xff] 0.0
          %388 = vst [vmem:[#allocation4 + $0x38] sm:$0xff] 0.0
          %389 = vst [vmem:[#allocation4 + $0x40] sm:$0xff] 0.0
          %390 = vst [vmem:[#allocation4 + $0x48] sm:$0xff] 0.0
          %391 = vst [vmem:[#allocation4 + $0x50] sm:$0xff] 0.0
          %392 = vst [vmem:[#allocation4 + $0x58] sm:$0xff] 0.0
          %393 = vst [vmem:[#allocation4 + $0x60] sm:$0xff] 0.0
          %394 = vst [vmem:[#allocation4 + $0x68] sm:$0xff] 0.0
          %395 = vst [vmem:[#allocation4 + $0x70] sm:$0xff] 0.0
          %396 = vst [vmem:[#allocation4 + $0x78] sm:$0xff] 0.0
          %397 = vst [vmem:[#allocation4 + $0x80] sm:$0xff] 0.0
          %398 = vst [vmem:[#allocation4 + $0x88] sm:$0xff] 0.0
          %399 = vst [vmem:[#allocation4 + $0x90] sm:$0xff] 0.0
          %400 = vst [vmem:[#allocation4 + $0x98] sm:$0xff] 0.0
          %401 = vst [vmem:[#allocation4 + $0xa0] sm:$0xff] 0.0
          %402 = vst [vmem:[#allocation4 + $0xa8] sm:$0xff] 0.0
          %403 = vst [vmem:[#allocation4 + $0xb0] sm:$0xff] 0.0
          %404 = vst [vmem:[#allocation4 + $0xb8] sm:$0xff] 0.0
          %405 = vst [vmem:[#allocation4 + $0xc0] sm:$0xff] 0.0
          %406 = vst [vmem:[#allocation4 + $0xc8] sm:$0xff] 0.0
          %407 = vst [vmem:[#allocation4 + $0xd0] sm:$0xff] 0.0
          %408 = vst [vmem:[#allocation4 + $0xd8] sm:$0xff] 0.0
          %409 = vst [vmem:[#allocation4 + $0xe0] sm:$0xff] 0.0
          %410 = vst [vmem:[#allocation4 + $0xe8] sm:$0xff] 0.0
          %411 = vst [vmem:[#allocation4 + $0xf0] sm:$0xff] 0.0
          %412 = vst [vmem:[#allocation4 + $0xf8] sm:$0xff] 0.0
        $region63: #{variational_gat_forward.6} parent=54 // pred_fallthru
          _
        %v413 = vld [vmem:[%s294] sm:$0xff]
        %v414 = vld [vmem:[%s294 + $0x8] sm:$0xff]
        %v415 = vld [vmem:[%s294 + $0x10] sm:$0xff]
        %v416 = vld [vmem:[%s294 + $0x18] sm:$0xff]
        %v417 = vld [vmem:[%s294 + $0x20] sm:$0xff]
        %v418 = vld [vmem:[%s294 + $0x28] sm:$0xff]
        %v419 = vld [vmem:[%s294 + $0x30] sm:$0xff]
        %v420 = vld [vmem:[%s294 + $0x38] sm:$0xff]
        %v421 = vld [vmem:[%s294 + $0x40] sm:$0xff]
        %v422 = vld [vmem:[%s294 + $0x48] sm:$0xff]
        %v423 = vld [vmem:[%s294 + $0x50] sm:$0xff]
        %v424 = vld [vmem:[%s294 + $0x58] sm:$0xff]
        %v425 = vld [vmem:[%s294 + $0x60] sm:$0xff]
        %v426 = vld [vmem:[%s294 + $0x68] sm:$0xff]
        %v427 = vld [vmem:[%s294 + $0x70] sm:$0xff]
        %v428 = vld [vmem:[%s294 + $0x78] sm:$0xff]
        %v429 = vld [vmem:[%s294 + $0x80] sm:$0xff]
        %v430 = vld [vmem:[%s294 + $0x88] sm:$0xff]
        %v431 = vld [vmem:[%s294 + $0x90] sm:$0xff]
        %v432 = vld [vmem:[%s294 + $0x98] sm:$0xff]
        %v433 = vld [vmem:[%s294 + $0xa0] sm:$0xff]
        %v434 = vld [vmem:[%s294 + $0xa8] sm:$0xff]
        %v435 = vld [vmem:[%s294 + $0xb0] sm:$0xff]
        %v436 = vld [vmem:[%s294 + $0xb8] sm:$0xff]
        %v437 = vld [vmem:[%s294 + $0xc0] sm:$0xff]
        %v438 = vld [vmem:[%s294 + $0xc8] sm:$0xff]
        %v439 = vld [vmem:[%s294 + $0xd0] sm:$0xff]
        %v440 = vld [vmem:[%s294 + $0xd8] sm:$0xff]
        %v441 = vld [vmem:[%s294 + $0xe0] sm:$0xff]
        %v442 = vld [vmem:[%s294 + $0xe8] sm:$0xff]
        %v443 = vld [vmem:[%s294 + $0xf0] sm:$0xff]
        %v444 = vld [vmem:[%s294 + $0xf8] sm:$0xff]
        %v445 = vld [vmem:[%s299] sm:$0x3]
        %447 = vset.pattern.permute.xlu0 0
        %448 = vperm.xlu0 %447, %v413
        %v449 = vpop.permute.xlu0 %448
        %452 = vset.pattern.permute.xlu0 0
        %453 = vperm.xlu0 %452, %v414
        %v454 = vpop.permute.xlu0 %453
        %457 = vset.pattern.permute.xlu0 0
        %458 = vperm.xlu0 %457, %v415
        %v459 = vpop.permute.xlu0 %458
        %462 = vset.pattern.permute.xlu0 0
        %463 = vperm.xlu0 %462, %v416
        %v464 = vpop.permute.xlu0 %463
        %467 = vset.pattern.permute.xlu0 0
        %468 = vperm.xlu0 %467, %v417
        %v469 = vpop.permute.xlu0 %468
        %472 = vset.pattern.permute.xlu0 0
        %473 = vperm.xlu0 %472, %v418
        %v474 = vpop.permute.xlu0 %473
        %477 = vset.pattern.permute.xlu0 0
        %478 = vperm.xlu0 %477, %v419
        %v479 = vpop.permute.xlu0 %478
        %482 = vset.pattern.permute.xlu0 0
        %483 = vperm.xlu0 %482, %v420
        %v484 = vpop.permute.xlu0 %483
        %487 = vset.pattern.permute.xlu0 0
        %488 = vperm.xlu0 %487, %v421
        %v489 = vpop.permute.xlu0 %488
        %492 = vset.pattern.permute.xlu0 0
        %493 = vperm.xlu0 %492, %v422
        %v494 = vpop.permute.xlu0 %493
        %497 = vset.pattern.permute.xlu0 0
        %498 = vperm.xlu0 %497, %v423
        %v499 = vpop.permute.xlu0 %498
        %502 = vset.pattern.permute.xlu0 0
        %503 = vperm.xlu0 %502, %v424
        %v504 = vpop.permute.xlu0 %503
        %507 = vset.pattern.permute.xlu0 0
        %508 = vperm.xlu0 %507, %v425
        %v509 = vpop.permute.xlu0 %508
        %512 = vset.pattern.permute.xlu0 0
        %513 = vperm.xlu0 %512, %v426
        %v514 = vpop.permute.xlu0 %513
        %517 = vset.pattern.permute.xlu0 0
        %518 = vperm.xlu0 %517, %v427
        %v519 = vpop.permute.xlu0 %518
        %522 = vset.pattern.permute.xlu0 0
        %523 = vperm.xlu0 %522, %v428
        %v524 = vpop.permute.xlu0 %523
        %527 = vset.pattern.permute.xlu0 0
        %528 = vperm.xlu0 %527, %v429
        %v529 = vpop.permute.xlu0 %528
        %532 = vset.pattern.permute.xlu0 0
        %533 = vperm.xlu0 %532, %v430
        %v534 = vpop.permute.xlu0 %533
        %537 = vset.pattern.permute.xlu0 0
        %538 = vperm.xlu0 %537, %v431
        %v539 = vpop.permute.xlu0 %538
        %542 = vset.pattern.permute.xlu0 0
        %543 = vperm.xlu0 %542, %v432
        %v544 = vpop.permute.xlu0 %543
        %547 = vset.pattern.permute.xlu0 0
        %548 = vperm.xlu0 %547, %v433
        %v549 = vpop.permute.xlu0 %548
        %552 = vset.pattern.permute.xlu0 0
        %553 = vperm.xlu0 %552, %v434
        %v554 = vpop.permute.xlu0 %553
        %557 = vset.pattern.permute.xlu0 0
        %558 = vperm.xlu0 %557, %v435
        %v559 = vpop.permute.xlu0 %558
        %562 = vset.pattern.permute.xlu0 0
        %563 = vperm.xlu0 %562, %v436
        %v564 = vpop.permute.xlu0 %563
        %567 = vset.pattern.permute.xlu0 0
        %568 = vperm.xlu0 %567, %v437
        %v569 = vpop.permute.xlu0 %568
        %572 = vset.pattern.permute.xlu0 0
        %573 = vperm.xlu0 %572, %v438
        %v574 = vpop.permute.xlu0 %573
        %577 = vset.pattern.permute.xlu0 0
        %578 = vperm.xlu0 %577, %v439
        %v579 = vpop.permute.xlu0 %578
        %582 = vset.pattern.permute.xlu0 0
        %583 = vperm.xlu0 %582, %v440
        %v584 = vpop.permute.xlu0 %583
        %587 = vset.pattern.permute.xlu0 0
        %588 = vperm.xlu0 %587, %v441
        %v589 = vpop.permute.xlu0 %588
        %592 = vset.pattern.permute.xlu0 0
        %593 = vperm.xlu0 %592, %v442
        %v594 = vpop.permute.xlu0 %593
        %597 = vset.pattern.permute.xlu0 0
        %598 = vperm.xlu0 %597, %v443
        %v599 = vpop.permute.xlu0 %598
        %602 = vset.pattern.permute.xlu0 0
        %603 = vperm.xlu0 %602, %v444
        %v604 = vpop.permute.xlu0 %603
        %v607 = vlaneseq
        %v608 = vshrl.u32 %v607, 7
        %v609 = vsub.s32 0, %v608
        %v610 = vrot.slane %v445, %v609
        %v611 = vlaneseq
        %v612 = vshrl.u32 %v611, 7
        %v613 = vsub.s32 1, %v612
        %v614 = vrot.slane %v445, %v613
        %v617 = vadd.f32 %v449, %v610
        %v618 = vadd.f32 %v449, %v614
        %v619 = vadd.f32 %v454, %v610
        %v620 = vadd.f32 %v454, %v614
        %v621 = vadd.f32 %v459, %v610
        %v622 = vadd.f32 %v459, %v614
        %v623 = vadd.f32 %v464, %v610
        %v624 = vadd.f32 %v464, %v614
        %v625 = vadd.f32 %v469, %v610
        %v626 = vadd.f32 %v469, %v614
        %v627 = vadd.f32 %v474, %v610
        %v628 = vadd.f32 %v474, %v614
        %v629 = vadd.f32 %v479, %v610
        %v630 = vadd.f32 %v479, %v614
        %v631 = vadd.f32 %v484, %v610
        %v632 = vadd.f32 %v484, %v614
        %v633 = vadd.f32 %v489, %v610
        %v634 = vadd.f32 %v489, %v614
        %v635 = vadd.f32 %v494, %v610
        %v636 = vadd.f32 %v494, %v614
        %v637 = vadd.f32 %v499, %v610
        %v638 = vadd.f32 %v499, %v614
        %v639 = vadd.f32 %v504, %v610
        %v640 = vadd.f32 %v504, %v614
        %v641 = vadd.f32 %v509, %v610
        %v642 = vadd.f32 %v509, %v614
        %v643 = vadd.f32 %v514, %v610
        %v644 = vadd.f32 %v514, %v614
        %v645 = vadd.f32 %v519, %v610
        %v646 = vadd.f32 %v519, %v614
        %v647 = vadd.f32 %v524, %v610
        %v648 = vadd.f32 %v524, %v614
        %v649 = vadd.f32 %v529, %v610
        %v650 = vadd.f32 %v529, %v614
        %v651 = vadd.f32 %v534, %v610
        %v652 = vadd.f32 %v534, %v614
        %v653 = vadd.f32 %v539, %v610
        %v654 = vadd.f32 %v539, %v614
        %v655 = vadd.f32 %v544, %v610
        %v656 = vadd.f32 %v544, %v614
        %v657 = vadd.f32 %v549, %v610
        %v658 = vadd.f32 %v549, %v614
        %v659 = vadd.f32 %v554, %v610
        %v660 = vadd.f32 %v554, %v614
        %v661 = vadd.f32 %v559, %v610
        %v662 = vadd.f32 %v559, %v614
        %v663 = vadd.f32 %v564, %v610
        %v664 = vadd.f32 %v564, %v614
        %v665 = vadd.f32 %v569, %v610
        %v666 = vadd.f32 %v569, %v614
        %v667 = vadd.f32 %v574, %v610
        %v668 = vadd.f32 %v574, %v614
        %v669 = vadd.f32 %v579, %v610
        %v670 = vadd.f32 %v579, %v614
        %v671 = vadd.f32 %v584, %v610
        %v672 = vadd.f32 %v584, %v614
        %v673 = vadd.f32 %v589, %v610
        %v674 = vadd.f32 %v589, %v614
        %v675 = vadd.f32 %v594, %v610
        %v676 = vadd.f32 %v594, %v614
        %v677 = vadd.f32 %v599, %v610
        %v678 = vadd.f32 %v599, %v614
        %v679 = vadd.f32 %v604, %v610
        %v680 = vadd.f32 %v604, %v614
        %v681 = vmul.f32 %v617, 0.2
        %v682 = vmul.f32 %v618, 0.2
        %v683 = vmul.f32 %v619, 0.2
        %v684 = vmul.f32 %v620, 0.2
        %v685 = vmul.f32 %v621, 0.2
        %v686 = vmul.f32 %v622, 0.2
        %v687 = vmul.f32 %v623, 0.2
        %v688 = vmul.f32 %v624, 0.2
        %v689 = vmul.f32 %v625, 0.2
        %v690 = vmul.f32 %v626, 0.2
        %v691 = vmul.f32 %v627, 0.2
        %v692 = vmul.f32 %v628, 0.2
        %v693 = vmul.f32 %v629, 0.2
        %v694 = vmul.f32 %v630, 0.2
        %v695 = vmul.f32 %v631, 0.2
        %v696 = vmul.f32 %v632, 0.2
        %v697 = vmul.f32 %v633, 0.2
        %v698 = vmul.f32 %v634, 0.2
        %v699 = vmul.f32 %v635, 0.2
        %v700 = vmul.f32 %v636, 0.2
        %v701 = vmul.f32 %v637, 0.2
        %v702 = vmul.f32 %v638, 0.2
        %v703 = vmul.f32 %v639, 0.2
        %v704 = vmul.f32 %v640, 0.2
        %v705 = vmul.f32 %v641, 0.2
        %v706 = vmul.f32 %v642, 0.2
        %v707 = vmul.f32 %v643, 0.2
        %v708 = vmul.f32 %v644, 0.2
        %v709 = vmul.f32 %v645, 0.2
        %v710 = vmul.f32 %v646, 0.2
        %v711 = vmul.f32 %v647, 0.2
        %v712 = vmul.f32 %v648, 0.2
        %v713 = vmul.f32 %v649, 0.2
        %v714 = vmul.f32 %v650, 0.2
        %v715 = vmul.f32 %v651, 0.2
        %v716 = vmul.f32 %v652, 0.2
        %v717 = vmul.f32 %v653, 0.2
        %v718 = vmul.f32 %v654, 0.2
        %v719 = vmul.f32 %v655, 0.2
        %v720 = vmul.f32 %v656, 0.2
        %v721 = vmul.f32 %v657, 0.2
        %v722 = vmul.f32 %v658, 0.2
        %v723 = vmul.f32 %v659, 0.2
        %v724 = vmul.f32 %v660, 0.2
        %v725 = vmul.f32 %v661, 0.2
        %v726 = vmul.f32 %v662, 0.2
        %v727 = vmul.f32 %v663, 0.2
        %v728 = vmul.f32 %v664, 0.2
        %v729 = vmul.f32 %v665, 0.2
        %v730 = vmul.f32 %v666, 0.2
        %v731 = vmul.f32 %v667, 0.2
        %v732 = vmul.f32 %v668, 0.2
        %v733 = vmul.f32 %v669, 0.2
        %v734 = vmul.f32 %v670, 0.2
        %v735 = vmul.f32 %v671, 0.2
        %v736 = vmul.f32 %v672, 0.2
        %v737 = vmul.f32 %v673, 0.2
        %v738 = vmul.f32 %v674, 0.2
        %v739 = vmul.f32 %v675, 0.2
        %v740 = vmul.f32 %v676, 0.2
        %v741 = vmul.f32 %v677, 0.2
        %v742 = vmul.f32 %v678, 0.2
        %v743 = vmul.f32 %v679, 0.2
        %v744 = vmul.f32 %v680, 0.2
        %v745 = vmax.f32 %v617, %v681
        %v746 = vmax.f32 %v618, %v682
        %v747 = vmax.f32 %v619, %v683
        %v748 = vmax.f32 %v620, %v684
        %v749 = vmax.f32 %v621, %v685
        %v750 = vmax.f32 %v622, %v686
        %v751 = vmax.f32 %v623, %v687
        %v752 = vmax.f32 %v624, %v688
        %v753 = vmax.f32 %v625, %v689
        %v754 = vmax.f32 %v626, %v690
        %v755 = vmax.f32 %v627, %v691
        %v756 = vmax.f32 %v628, %v692
        %v757 = vmax.f32 %v629, %v693
        %v758 = vmax.f32 %v630, %v694
        %v759 = vmax.f32 %v631, %v695
        %v760 = vmax.f32 %v632, %v696
        %v761 = vmax.f32 %v633, %v697
        %v762 = vmax.f32 %v634, %v698
        %v763 = vmax.f32 %v635, %v699
        %v764 = vmax.f32 %v636, %v700
        %v765 = vmax.f32 %v637, %v701
        %v766 = vmax.f32 %v638, %v702
        %v767 = vmax.f32 %v639, %v703
        %v768 = vmax.f32 %v640, %v704
        %v769 = vmax.f32 %v641, %v705
        %v770 = vmax.f32 %v642, %v706
        %v771 = vmax.f32 %v643, %v707
        %v772 = vmax.f32 %v644, %v708
        %v773 = vmax.f32 %v645, %v709
        %v774 = vmax.f32 %v646, %v710
        %v775 = vmax.f32 %v647, %v711
        %v776 = vmax.f32 %v648, %v712
        %v777 = vmax.f32 %v649, %v713
        %v778 = vmax.f32 %v650, %v714
        %v779 = vmax.f32 %v651, %v715
        %v780 = vmax.f32 %v652, %v716
        %v781 = vmax.f32 %v653, %v717
        %v782 = vmax.f32 %v654, %v718
        %v783 = vmax.f32 %v655, %v719
        %v784 = vmax.f32 %v656, %v720
        %v785 = vmax.f32 %v657, %v721
        %v786 = vmax.f32 %v658, %v722
        %v787 = vmax.f32 %v659, %v723
        %v788 = vmax.f32 %v660, %v724
        %v789 = vmax.f32 %v661, %v725
        %v790 = vmax.f32 %v662, %v726
        %v791 = vmax.f32 %v663, %v727
        %v792 = vmax.f32 %v664, %v728
        %v793 = vmax.f32 %v665, %v729
        %v794 = vmax.f32 %v666, %v730
        %v795 = vmax.f32 %v667, %v731
        %v796 = vmax.f32 %v668, %v732
        %v797 = vmax.f32 %v669, %v733
        %v798 = vmax.f32 %v670, %v734
        %v799 = vmax.f32 %v671, %v735
        %v800 = vmax.f32 %v672, %v736
        %v801 = vmax.f32 %v673, %v737
        %v802 = vmax.f32 %v674, %v738
        %v803 = vmax.f32 %v675, %v739
        %v804 = vmax.f32 %v676, %v740
        %v805 = vmax.f32 %v677, %v741
        %v806 = vmax.f32 %v678, %v742
        %v807 = vmax.f32 %v679, %v743
        %v808 = vmax.f32 %v680, %v744
        %v809 = vld [vmem:[%s258] sm:$0xff]
        %v810 = vld [vmem:[%s258 + $0x8] sm:$0xff]
        %v811 = vld [vmem:[%s258 + $0x10] sm:$0xff]
        %v812 = vld [vmem:[%s258 + $0x18] sm:$0xff]
        %v813 = vld [vmem:[%s258 + $0x20] sm:$0xff]
        %v814 = vld [vmem:[%s258 + $0x28] sm:$0xff]
        %v815 = vld [vmem:[%s258 + $0x30] sm:$0xff]
        %v816 = vld [vmem:[%s258 + $0x38] sm:$0xff]
        %v817 = vld [vmem:[%s258 + $0x40] sm:$0xff]
        %v818 = vld [vmem:[%s258 + $0x48] sm:$0xff]
        %v819 = vld [vmem:[%s258 + $0x50] sm:$0xff]
        %v820 = vld [vmem:[%s258 + $0x58] sm:$0xff]
        %v821 = vld [vmem:[%s258 + $0x60] sm:$0xff]
        %v822 = vld [vmem:[%s258 + $0x68] sm:$0xff]
        %v823 = vld [vmem:[%s258 + $0x70] sm:$0xff]
        %v824 = vld [vmem:[%s258 + $0x78] sm:$0xff]
        %vm825 = vnez %v809
        %vm826 = vnez %v810
        %vm827 = vnez %v811
        %vm828 = vnez %v812
        %vm829 = vnez %v813
        %vm830 = vnez %v814
        %vm831 = vnez %v815
        %vm832 = vnez %v816
        %vm833 = vnez %v817
        %vm834 = vnez %v818
        %vm835 = vnez %v819
        %vm836 = vnez %v820
        %vm837 = vnez %v821
        %vm838 = vnez %v822
        %vm839 = vnez %v823
        %vm840 = vnez %v824
        %v841 = vsel %vm825, 16843009, 0
        %v842 = vsel %vm826, 16843009, 0
        %v843 = vsel %vm827, 16843009, 0
        %v844 = vsel %vm828, 16843009, 0
        %v845 = vsel %vm829, 16843009, 0
        %v846 = vsel %vm830, 16843009, 0
        %v847 = vsel %vm831, 16843009, 0
        %v848 = vsel %vm832, 16843009, 0
        %v849 = vsel %vm833, 16843009, 0
        %v850 = vsel %vm834, 16843009, 0
        %v851 = vsel %vm835, 16843009, 0
        %v852 = vsel %vm836, 16843009, 0
        %v853 = vsel %vm837, 16843009, 0
        %v854 = vsel %vm838, 16843009, 0
        %v855 = vsel %vm839, 16843009, 0
        %v856 = vsel %vm840, 16843009, 0
        %v857 = vunpack.c.0.s8 %v841
        %v858 = vunpack.c.0.s8 %v842
        %v859 = vunpack.c.1.s8 %v841
        %v860 = vunpack.c.1.s8 %v842
        %v861 = vunpack.c.2.s8 %v841
        %v862 = vunpack.c.2.s8 %v842
        %v863 = vunpack.c.3.s8 %v841
        %v864 = vunpack.c.3.s8 %v842
        %v865 = vunpack.c.0.s8 %v843
        %v866 = vunpack.c.0.s8 %v844
        %v867 = vunpack.c.1.s8 %v843
        %v868 = vunpack.c.1.s8 %v844
        %v869 = vunpack.c.2.s8 %v843
        %v870 = vunpack.c.2.s8 %v844
        %v871 = vunpack.c.3.s8 %v843
        %v872 = vunpack.c.3.s8 %v844
        %v873 = vunpack.c.0.s8 %v845
        %v874 = vunpack.c.0.s8 %v846
        %v875 = vunpack.c.1.s8 %v845
        %v876 = vunpack.c.1.s8 %v846
        %v877 = vunpack.c.2.s8 %v845
        %v878 = vunpack.c.2.s8 %v846
        %v879 = vunpack.c.3.s8 %v845
        %v880 = vunpack.c.3.s8 %v846
        %v881 = vunpack.c.0.s8 %v847
        %v882 = vunpack.c.0.s8 %v848
        %v883 = vunpack.c.1.s8 %v847
        %v884 = vunpack.c.1.s8 %v848
        %v885 = vunpack.c.2.s8 %v847
        %v886 = vunpack.c.2.s8 %v848
        %v887 = vunpack.c.3.s8 %v847
        %v888 = vunpack.c.3.s8 %v848
        %v889 = vunpack.c.0.s8 %v849
        %v890 = vunpack.c.0.s8 %v850
        %v891 = vunpack.c.1.s8 %v849
        %v892 = vunpack.c.1.s8 %v850
        %v893 = vunpack.c.2.s8 %v849
        %v894 = vunpack.c.2.s8 %v850
        %v895 = vunpack.c.3.s8 %v849
        %v896 = vunpack.c.3.s8 %v850
        %v897 = vunpack.c.0.s8 %v851
        %v898 = vunpack.c.0.s8 %v852
        %v899 = vunpack.c.1.s8 %v851
        %v900 = vunpack.c.1.s8 %v852
        %v901 = vunpack.c.2.s8 %v851
        %v902 = vunpack.c.2.s8 %v852
        %v903 = vunpack.c.3.s8 %v851
        %v904 = vunpack.c.3.s8 %v852
        %v905 = vunpack.c.0.s8 %v853
        %v906 = vunpack.c.0.s8 %v854
        %v907 = vunpack.c.1.s8 %v853
        %v908 = vunpack.c.1.s8 %v854
        %v909 = vunpack.c.2.s8 %v853
        %v910 = vunpack.c.2.s8 %v854
        %v911 = vunpack.c.3.s8 %v853
        %v912 = vunpack.c.3.s8 %v854
        %v913 = vunpack.c.0.s8 %v855
        %v914 = vunpack.c.0.s8 %v856
        %v915 = vunpack.c.1.s8 %v855
        %v916 = vunpack.c.1.s8 %v856
        %v917 = vunpack.c.2.s8 %v855
        %v918 = vunpack.c.2.s8 %v856
        %v919 = vunpack.c.3.s8 %v855
        %v920 = vunpack.c.3.s8 %v856
        %v921 = vpack.c.b16 %v858, %v857
        %v922 = vpack.c.b8 %v921, %v921
        %v923 = vpack.c.b16 %v860, %v859
        %v924 = vpack.c.b8 %v923, %v923
        %v925 = vpack.c.b16 %v862, %v861
        %v926 = vpack.c.b8 %v925, %v925
        %v927 = vpack.c.b16 %v864, %v863
        %v928 = vpack.c.b8 %v927, %v927
        %v929 = vpack.c.b16 %v866, %v865
        %v930 = vpack.c.b8 %v929, %v929
        %v931 = vpack.c.b16 %v868, %v867
        %v932 = vpack.c.b8 %v931, %v931
        %v933 = vpack.c.b16 %v870, %v869
        %v934 = vpack.c.b8 %v933, %v933
        %v935 = vpack.c.b16 %v872, %v871
        %v936 = vpack.c.b8 %v935, %v935
        %v937 = vpack.c.b16 %v874, %v873
        %v938 = vpack.c.b8 %v937, %v937
        %v939 = vpack.c.b16 %v876, %v875
        %v940 = vpack.c.b8 %v939, %v939
        %v941 = vpack.c.b16 %v878, %v877
        %v942 = vpack.c.b8 %v941, %v941
        %v943 = vpack.c.b16 %v880, %v879
        %v944 = vpack.c.b8 %v943, %v943
        %v945 = vpack.c.b16 %v882, %v881
        %v946 = vpack.c.b8 %v945, %v945
        %v947 = vpack.c.b16 %v884, %v883
        %v948 = vpack.c.b8 %v947, %v947
        %v949 = vpack.c.b16 %v886, %v885
        %v950 = vpack.c.b8 %v949, %v949
        %v951 = vpack.c.b16 %v888, %v887
        %v952 = vpack.c.b8 %v951, %v951
        %v953 = vpack.c.b16 %v890, %v889
        %v954 = vpack.c.b8 %v953, %v953
        %v955 = vpack.c.b16 %v892, %v891
        %v956 = vpack.c.b8 %v955, %v955
        %v957 = vpack.c.b16 %v894, %v893
        %v958 = vpack.c.b8 %v957, %v957
        %v959 = vpack.c.b16 %v896, %v895
        %v960 = vpack.c.b8 %v959, %v959
        %v961 = vpack.c.b16 %v898, %v897
        %v962 = vpack.c.b8 %v961, %v961
        %v963 = vpack.c.b16 %v900, %v899
        %v964 = vpack.c.b8 %v963, %v963
        %v965 = vpack.c.b16 %v902, %v901
        %v966 = vpack.c.b8 %v965, %v965
        %v967 = vpack.c.b16 %v904, %v903
        %v968 = vpack.c.b8 %v967, %v967
        %v969 = vpack.c.b16 %v906, %v905
        %v970 = vpack.c.b8 %v969, %v969
        %v971 = vpack.c.b16 %v908, %v907
        %v972 = vpack.c.b8 %v971, %v971
        %v973 = vpack.c.b16 %v910, %v909
        %v974 = vpack.c.b8 %v973, %v973
        %v975 = vpack.c.b16 %v912, %v911
        %v976 = vpack.c.b8 %v975, %v975
        %v977 = vpack.c.b16 %v914, %v913
        %v978 = vpack.c.b8 %v977, %v977
        %v979 = vpack.c.b16 %v916, %v915
        %v980 = vpack.c.b8 %v979, %v979
        %v981 = vpack.c.b16 %v918, %v917
        %v982 = vpack.c.b8 %v981, %v981
        %v983 = vpack.c.b16 %v920, %v919
        %v984 = vpack.c.b8 %v983, %v983
        %vm985 = vnez %v922
        %vm986 = vnez %v924
        %vm987 = vnez %v926
        %vm988 = vnez %v928
        %vm989 = vnez %v930
        %vm990 = vnez %v932
        %vm991 = vnez %v934
        %vm992 = vnez %v936
        %vm993 = vnez %v938
        %vm994 = vnez %v940
        %vm995 = vnez %v942
        %vm996 = vnez %v944
        %vm997 = vnez %v946
        %vm998 = vnez %v948
        %vm999 = vnez %v950
        %vm1000 = vnez %v952
        %vm1001 = vnez %v954
        %vm1002 = vnez %v956
        %vm1003 = vnez %v958
        %vm1004 = vnez %v960
        %vm1005 = vnez %v962
        %vm1006 = vnez %v964
        %vm1007 = vnez %v966
        %vm1008 = vnez %v968
        %vm1009 = vnez %v970
        %vm1010 = vnez %v972
        %vm1011 = vnez %v974
        %vm1012 = vnez %v976
        %vm1013 = vnez %v978
        %vm1014 = vnez %v980
        %vm1015 = vnez %v982
        %vm1016 = vnez %v984
        %v1017 = vsel %vm985, 16843009, 0
        %v1018 = vsel %vm986, 16843009, 0
        %v1019 = vsel %vm987, 16843009, 0
        %v1020 = vsel %vm988, 16843009, 0
        %v1021 = vsel %vm989, 16843009, 0
        %v1022 = vsel %vm990, 16843009, 0
        %v1023 = vsel %vm991, 16843009, 0
        %v1024 = vsel %vm992, 16843009, 0
        %v1025 = vsel %vm993, 16843009, 0
        %v1026 = vsel %vm994, 16843009, 0
        %v1027 = vsel %vm995, 16843009, 0
        %v1028 = vsel %vm996, 16843009, 0
        %v1029 = vsel %vm997, 16843009, 0
        %v1030 = vsel %vm998, 16843009, 0
        %v1031 = vsel %vm999, 16843009, 0
        %v1032 = vsel %vm1000, 16843009, 0
        %v1033 = vsel %vm1001, 16843009, 0
        %v1034 = vsel %vm1002, 16843009, 0
        %v1035 = vsel %vm1003, 16843009, 0
        %v1036 = vsel %vm1004, 16843009, 0
        %v1037 = vsel %vm1005, 16843009, 0
        %v1038 = vsel %vm1006, 16843009, 0
        %v1039 = vsel %vm1007, 16843009, 0
        %v1040 = vsel %vm1008, 16843009, 0
        %v1041 = vsel %vm1009, 16843009, 0
        %v1042 = vsel %vm1010, 16843009, 0
        %v1043 = vsel %vm1011, 16843009, 0
        %v1044 = vsel %vm1012, 16843009, 0
        %v1045 = vsel %vm1013, 16843009, 0
        %v1046 = vsel %vm1014, 16843009, 0
        %v1047 = vsel %vm1015, 16843009, 0
        %v1048 = vsel %vm1016, 16843009, 0
        %v1049 = vunpack.c.0.s8 %v1017
        %v1050 = vunpack.c.1.s8 %v1017
        %v1051 = vunpack.c.0.s8 %v1018
        %v1052 = vunpack.c.1.s8 %v1018
        %v1053 = vunpack.c.0.s8 %v1019
        %v1054 = vunpack.c.1.s8 %v1019
        %v1055 = vunpack.c.0.s8 %v1020
        %v1056 = vunpack.c.1.s8 %v1020
        %v1057 = vunpack.c.0.s8 %v1021
        %v1058 = vunpack.c.1.s8 %v1021
        %v1059 = vunpack.c.0.s8 %v1022
        %v1060 = vunpack.c.1.s8 %v1022
        %v1061 = vunpack.c.0.s8 %v1023
        %v1062 = vunpack.c.1.s8 %v1023
        %v1063 = vunpack.c.0.s8 %v1024
        %v1064 = vunpack.c.1.s8 %v1024
        %v1065 = vunpack.c.0.s8 %v1025
        %v1066 = vunpack.c.1.s8 %v1025
        %v1067 = vunpack.c.0.s8 %v1026
        %v1068 = vunpack.c.1.s8 %v1026
        %v1069 = vunpack.c.0.s8 %v1027
        %v1070 = vunpack.c.1.s8 %v1027
        %v1071 = vunpack.c.0.s8 %v1028
        %v1072 = vunpack.c.1.s8 %v1028
        %v1073 = vunpack.c.0.s8 %v1029
        %v1074 = vunpack.c.1.s8 %v1029
        %v1075 = vunpack.c.0.s8 %v1030
        %v1076 = vunpack.c.1.s8 %v1030
        %v1077 = vunpack.c.0.s8 %v1031
        %v1078 = vunpack.c.1.s8 %v1031
        %v1079 = vunpack.c.0.s8 %v1032
        %v1080 = vunpack.c.1.s8 %v1032
        %v1081 = vunpack.c.0.s8 %v1033
        %v1082 = vunpack.c.1.s8 %v1033
        %v1083 = vunpack.c.0.s8 %v1034
        %v1084 = vunpack.c.1.s8 %v1034
        %v1085 = vunpack.c.0.s8 %v1035
        %v1086 = vunpack.c.1.s8 %v1035
        %v1087 = vunpack.c.0.s8 %v1036
        %v1088 = vunpack.c.1.s8 %v1036
        %v1089 = vunpack.c.0.s8 %v1037
        %v1090 = vunpack.c.1.s8 %v1037
        %v1091 = vunpack.c.0.s8 %v1038
        %v1092 = vunpack.c.1.s8 %v1038
        %v1093 = vunpack.c.0.s8 %v1039
        %v1094 = vunpack.c.1.s8 %v1039
        %v1095 = vunpack.c.0.s8 %v1040
        %v1096 = vunpack.c.1.s8 %v1040
        %v1097 = vunpack.c.0.s8 %v1041
        %v1098 = vunpack.c.1.s8 %v1041
        %v1099 = vunpack.c.0.s8 %v1042
        %v1100 = vunpack.c.1.s8 %v1042
        %v1101 = vunpack.c.0.s8 %v1043
        %v1102 = vunpack.c.1.s8 %v1043
        %v1103 = vunpack.c.0.s8 %v1044
        %v1104 = vunpack.c.1.s8 %v1044
        %v1105 = vunpack.c.0.s8 %v1045
        %v1106 = vunpack.c.1.s8 %v1045
        %v1107 = vunpack.c.0.s8 %v1046
        %v1108 = vunpack.c.1.s8 %v1046
        %v1109 = vunpack.c.0.s8 %v1047
        %v1110 = vunpack.c.1.s8 %v1047
        %v1111 = vunpack.c.0.s8 %v1048
        %v1112 = vunpack.c.1.s8 %v1048
        %vm1113 = vcmp.ne.s32.totalorder %v1049, 0
        %vm1114 = vcmp.ne.s32.totalorder %v1050, 0
        %vm1115 = vcmp.ne.s32.totalorder %v1051, 0
        %vm1116 = vcmp.ne.s32.totalorder %v1052, 0
        %vm1117 = vcmp.ne.s32.totalorder %v1053, 0
        %vm1118 = vcmp.ne.s32.totalorder %v1054, 0
        %vm1119 = vcmp.ne.s32.totalorder %v1055, 0
        %vm1120 = vcmp.ne.s32.totalorder %v1056, 0
        %vm1121 = vcmp.ne.s32.totalorder %v1057, 0
        %vm1122 = vcmp.ne.s32.totalorder %v1058, 0
        %vm1123 = vcmp.ne.s32.totalorder %v1059, 0
        %vm1124 = vcmp.ne.s32.totalorder %v1060, 0
        %vm1125 = vcmp.ne.s32.totalorder %v1061, 0
        %vm1126 = vcmp.ne.s32.totalorder %v1062, 0
        %vm1127 = vcmp.ne.s32.totalorder %v1063, 0
        %vm1128 = vcmp.ne.s32.totalorder %v1064, 0
        %vm1129 = vcmp.ne.s32.totalorder %v1065, 0
        %vm1130 = vcmp.ne.s32.totalorder %v1066, 0
        %vm1131 = vcmp.ne.s32.totalorder %v1067, 0
        %vm1132 = vcmp.ne.s32.totalorder %v1068, 0
        %vm1133 = vcmp.ne.s32.totalorder %v1069, 0
        %vm1134 = vcmp.ne.s32.totalorder %v1070, 0
        %vm1135 = vcmp.ne.s32.totalorder %v1071, 0
        %vm1136 = vcmp.ne.s32.totalorder %v1072, 0
        %vm1137 = vcmp.ne.s32.totalorder %v1073, 0
        %vm1138 = vcmp.ne.s32.totalorder %v1074, 0
        %vm1139 = vcmp.ne.s32.totalorder %v1075, 0
        %vm1140 = vcmp.ne.s32.totalorder %v1076, 0
        %vm1141 = vcmp.ne.s32.totalorder %v1077, 0
        %vm1142 = vcmp.ne.s32.totalorder %v1078, 0
        %vm1143 = vcmp.ne.s32.totalorder %v1079, 0
        %vm1144 = vcmp.ne.s32.totalorder %v1080, 0
        %vm1145 = vcmp.ne.s32.totalorder %v1081, 0
        %vm1146 = vcmp.ne.s32.totalorder %v1082, 0
        %vm1147 = vcmp.ne.s32.totalorder %v1083, 0
        %vm1148 = vcmp.ne.s32.totalorder %v1084, 0
        %vm1149 = vcmp.ne.s32.totalorder %v1085, 0
        %vm1150 = vcmp.ne.s32.totalorder %v1086, 0
        %vm1151 = vcmp.ne.s32.totalorder %v1087, 0
        %vm1152 = vcmp.ne.s32.totalorder %v1088, 0
        %vm1153 = vcmp.ne.s32.totalorder %v1089, 0
        %vm1154 = vcmp.ne.s32.totalorder %v1090, 0
        %vm1155 = vcmp.ne.s32.totalorder %v1091, 0
        %vm1156 = vcmp.ne.s32.totalorder %v1092, 0
        %vm1157 = vcmp.ne.s32.totalorder %v1093, 0
        %vm1158 = vcmp.ne.s32.totalorder %v1094, 0
        %vm1159 = vcmp.ne.s32.totalorder %v1095, 0
        %vm1160 = vcmp.ne.s32.totalorder %v1096, 0
        %vm1161 = vcmp.ne.s32.totalorder %v1097, 0
        %vm1162 = vcmp.ne.s32.totalorder %v1098, 0
        %vm1163 = vcmp.ne.s32.totalorder %v1099, 0
        %vm1164 = vcmp.ne.s32.totalorder %v1100, 0
        %vm1165 = vcmp.ne.s32.totalorder %v1101, 0
        %vm1166 = vcmp.ne.s32.totalorder %v1102, 0
        %vm1167 = vcmp.ne.s32.totalorder %v1103, 0
        %vm1168 = vcmp.ne.s32.totalorder %v1104, 0
        %vm1169 = vcmp.ne.s32.totalorder %v1105, 0
        %vm1170 = vcmp.ne.s32.totalorder %v1106, 0
        %vm1171 = vcmp.ne.s32.totalorder %v1107, 0
        %vm1172 = vcmp.ne.s32.totalorder %v1108, 0
        %vm1173 = vcmp.ne.s32.totalorder %v1109, 0
        %vm1174 = vcmp.ne.s32.totalorder %v1110, 0
        %vm1175 = vcmp.ne.s32.totalorder %v1111, 0
        %vm1176 = vcmp.ne.s32.totalorder %v1112, 0
        %v1177 = vsel %vm1113, %v745, -9e+15
        %v1178 = vsel %vm1114, %v746, -9e+15
        %v1179 = vsel %vm1115, %v747, -9e+15
        %v1180 = vsel %vm1116, %v748, -9e+15
        %v1181 = vsel %vm1117, %v749, -9e+15
        %v1182 = vsel %vm1118, %v750, -9e+15
        %v1183 = vsel %vm1119, %v751, -9e+15
        %v1184 = vsel %vm1120, %v752, -9e+15
        %v1185 = vsel %vm1121, %v753, -9e+15
        %v1186 = vsel %vm1122, %v754, -9e+15
        %v1187 = vsel %vm1123, %v755, -9e+15
        %v1188 = vsel %vm1124, %v756, -9e+15
        %v1189 = vsel %vm1125, %v757, -9e+15
        %v1190 = vsel %vm1126, %v758, -9e+15
        %v1191 = vsel %vm1127, %v759, -9e+15
        %v1192 = vsel %vm1128, %v760, -9e+15
        %v1193 = vsel %vm1129, %v761, -9e+15
        %v1194 = vsel %vm1130, %v762, -9e+15
        %v1195 = vsel %vm1131, %v763, -9e+15
        %v1196 = vsel %vm1132, %v764, -9e+15
        %v1197 = vsel %vm1133, %v765, -9e+15
        %v1198 = vsel %vm1134, %v766, -9e+15
        %v1199 = vsel %vm1135, %v767, -9e+15
        %v1200 = vsel %vm1136, %v768, -9e+15
        %v1201 = vsel %vm1137, %v769, -9e+15
        %v1202 = vsel %vm1138, %v770, -9e+15
        %v1203 = vsel %vm1139, %v771, -9e+15
        %v1204 = vsel %vm1140, %v772, -9e+15
        %v1205 = vsel %vm1141, %v773, -9e+15
        %v1206 = vsel %vm1142, %v774, -9e+15
        %v1207 = vsel %vm1143, %v775, -9e+15
        %v1208 = vsel %vm1144, %v776, -9e+15
        %v1209 = vsel %vm1145, %v777, -9e+15
        %v1210 = vsel %vm1146, %v778, -9e+15
        %v1211 = vsel %vm1147, %v779, -9e+15
        %v1212 = vsel %vm1148, %v780, -9e+15
        %v1213 = vsel %vm1149, %v781, -9e+15
        %v1214 = vsel %vm1150, %v782, -9e+15
        %v1215 = vsel %vm1151, %v783, -9e+15
        %v1216 = vsel %vm1152, %v784, -9e+15
        %v1217 = vsel %vm1153, %v785, -9e+15
        %v1218 = vsel %vm1154, %v786, -9e+15
        %v1219 = vsel %vm1155, %v787, -9e+15
        %v1220 = vsel %vm1156, %v788, -9e+15
        %v1221 = vsel %vm1157, %v789, -9e+15
        %v1222 = vsel %vm1158, %v790, -9e+15
        %v1223 = vsel %vm1159, %v791, -9e+15
        %v1224 = vsel %vm1160, %v792, -9e+15
        %v1225 = vsel %vm1161, %v793, -9e+15
        %v1226 = vsel %vm1162, %v794, -9e+15
        %v1227 = vsel %vm1163, %v795, -9e+15
        %v1228 = vsel %vm1164, %v796, -9e+15
        %v1229 = vsel %vm1165, %v797, -9e+15
        %v1230 = vsel %vm1166, %v798, -9e+15
        %v1231 = vsel %vm1167, %v799, -9e+15
        %v1232 = vsel %vm1168, %v800, -9e+15
        %v1233 = vsel %vm1169, %v801, -9e+15
        %v1234 = vsel %vm1170, %v802, -9e+15
        %v1235 = vsel %vm1171, %v803, -9e+15
        %v1236 = vsel %vm1172, %v804, -9e+15
        %v1237 = vsel %vm1173, %v805, -9e+15
        %v1238 = vsel %vm1174, %v806, -9e+15
        %v1239 = vsel %vm1175, %v807, -9e+15
        %v1240 = vsel %vm1176, %v808, -9e+15
        %v1241 = vld [vmem:[#allocation2] sm:$0xff]
        %v1242 = vld [vmem:[#allocation2 + $0x8] sm:$0xff]
        %v1243 = vld [vmem:[#allocation2 + $0x10] sm:$0xff]
        %v1244 = vld [vmem:[#allocation2 + $0x18] sm:$0xff]
        %v1245 = vld [vmem:[#allocation2 + $0x20] sm:$0xff]
        %v1246 = vld [vmem:[#allocation2 + $0x28] sm:$0xff]
        %v1247 = vld [vmem:[#allocation2 + $0x30] sm:$0xff]
        %v1248 = vld [vmem:[#allocation2 + $0x38] sm:$0xff]
        %v1249 = vld [vmem:[#allocation2 + $0x40] sm:$0xff]
        %v1250 = vld [vmem:[#allocation2 + $0x48] sm:$0xff]
        %v1251 = vld [vmem:[#allocation2 + $0x50] sm:$0xff]
        %v1252 = vld [vmem:[#allocation2 + $0x58] sm:$0xff]
        %v1253 = vld [vmem:[#allocation2 + $0x60] sm:$0xff]
        %v1254 = vld [vmem:[#allocation2 + $0x68] sm:$0xff]
        %v1255 = vld [vmem:[#allocation2 + $0x70] sm:$0xff]
        %v1256 = vld [vmem:[#allocation2 + $0x78] sm:$0xff]
        %v1257 = vld [vmem:[#allocation2 + $0x80] sm:$0xff]
        %v1258 = vld [vmem:[#allocation2 + $0x88] sm:$0xff]
        %v1259 = vld [vmem:[#allocation2 + $0x90] sm:$0xff]
        %v1260 = vld [vmem:[#allocation2 + $0x98] sm:$0xff]
        %v1261 = vld [vmem:[#allocation2 + $0xa0] sm:$0xff]
        %v1262 = vld [vmem:[#allocation2 + $0xa8] sm:$0xff]
        %v1263 = vld [vmem:[#allocation2 + $0xb0] sm:$0xff]
        %v1264 = vld [vmem:[#allocation2 + $0xb8] sm:$0xff]
        %v1265 = vld [vmem:[#allocation2 + $0xc0] sm:$0xff]
        %v1266 = vld [vmem:[#allocation2 + $0xc8] sm:$0xff]
        %v1267 = vld [vmem:[#allocation2 + $0xd0] sm:$0xff]
        %v1268 = vld [vmem:[#allocation2 + $0xd8] sm:$0xff]
        %v1269 = vld [vmem:[#allocation2 + $0xe0] sm:$0xff]
        %v1270 = vld [vmem:[#allocation2 + $0xe8] sm:$0xff]
        %v1271 = vld [vmem:[#allocation2 + $0xf0] sm:$0xff]
        %v1272 = vld [vmem:[#allocation2 + $0xf8] sm:$0xff]
        %v1273 = vmax.f32 %v1177, %v1178
        %1274 = vmax.xlane.f32.xlu0 %v1273
        %v1275 = vpop.xlane.xlu0 %1274
        %v1276 = vmax.f32 %v1179, %v1180
        %1277 = vmax.xlane.f32.xlu0 %v1276
        %v1278 = vpop.xlane.xlu0 %1277
        %v1279 = vmax.f32 %v1181, %v1182
        %1280 = vmax.xlane.f32.xlu0 %v1279
        %v1281 = vpop.xlane.xlu0 %1280
        %v1282 = vmax.f32 %v1183, %v1184
        %1283 = vmax.xlane.f32.xlu0 %v1282
        %v1284 = vpop.xlane.xlu0 %1283
        %v1285 = vmax.f32 %v1185, %v1186
        %1286 = vmax.xlane.f32.xlu0 %v1285
        %v1287 = vpop.xlane.xlu0 %1286
        %v1288 = vmax.f32 %v1187, %v1188
        %1289 = vmax.xlane.f32.xlu0 %v1288
        %v1290 = vpop.xlane.xlu0 %1289
        %v1291 = vmax.f32 %v1189, %v1190
        %1292 = vmax.xlane.f32.xlu0 %v1291
        %v1293 = vpop.xlane.xlu0 %1292
        %v1294 = vmax.f32 %v1191, %v1192
        %1295 = vmax.xlane.f32.xlu0 %v1294
        %v1296 = vpop.xlane.xlu0 %1295
        %v1297 = vmax.f32 %v1193, %v1194
        %1298 = vmax.xlane.f32.xlu0 %v1297
        %v1299 = vpop.xlane.xlu0 %1298
        %v1300 = vmax.f32 %v1195, %v1196
        %1301 = vmax.xlane.f32.xlu0 %v1300
        %v1302 = vpop.xlane.xlu0 %1301
        %v1303 = vmax.f32 %v1197, %v1198
        %1304 = vmax.xlane.f32.xlu0 %v1303
        %v1305 = vpop.xlane.xlu0 %1304
        %v1306 = vmax.f32 %v1199, %v1200
        %1307 = vmax.xlane.f32.xlu0 %v1306
        %v1308 = vpop.xlane.xlu0 %1307
        %v1309 = vmax.f32 %v1201, %v1202
        %1310 = vmax.xlane.f32.xlu0 %v1309
        %v1311 = vpop.xlane.xlu0 %1310
        %v1312 = vmax.f32 %v1203, %v1204
        %1313 = vmax.xlane.f32.xlu0 %v1312
        %v1314 = vpop.xlane.xlu0 %1313
        %v1315 = vmax.f32 %v1205, %v1206
        %1316 = vmax.xlane.f32.xlu0 %v1315
        %v1317 = vpop.xlane.xlu0 %1316
        %v1318 = vmax.f32 %v1207, %v1208
        %1319 = vmax.xlane.f32.xlu0 %v1318
        %v1320 = vpop.xlane.xlu0 %1319
        %v1321 = vmax.f32 %v1209, %v1210
        %1322 = vmax.xlane.f32.xlu0 %v1321
        %v1323 = vpop.xlane.xlu0 %1322
        %v1324 = vmax.f32 %v1211, %v1212
        %1325 = vmax.xlane.f32.xlu0 %v1324
        %v1326 = vpop.xlane.xlu0 %1325
        %v1327 = vmax.f32 %v1213, %v1214
        %1328 = vmax.xlane.f32.xlu0 %v1327
        %v1329 = vpop.xlane.xlu0 %1328
        %v1330 = vmax.f32 %v1215, %v1216
        %1331 = vmax.xlane.f32.xlu0 %v1330
        %v1332 = vpop.xlane.xlu0 %1331
        %v1333 = vmax.f32 %v1217, %v1218
        %1334 = vmax.xlane.f32.xlu0 %v1333
        %v1335 = vpop.xlane.xlu0 %1334
        %v1336 = vmax.f32 %v1219, %v1220
        %1337 = vmax.xlane.f32.xlu0 %v1336
        %v1338 = vpop.xlane.xlu0 %1337
        %v1339 = vmax.f32 %v1221, %v1222
        %1340 = vmax.xlane.f32.xlu0 %v1339
        %v1341 = vpop.xlane.xlu0 %1340
        %v1342 = vmax.f32 %v1223, %v1224
        %1343 = vmax.xlane.f32.xlu0 %v1342
        %v1344 = vpop.xlane.xlu0 %1343
        %v1345 = vmax.f32 %v1225, %v1226
        %1346 = vmax.xlane.f32.xlu0 %v1345
        %v1347 = vpop.xlane.xlu0 %1346
        %v1348 = vmax.f32 %v1227, %v1228
        %1349 = vmax.xlane.f32.xlu0 %v1348
        %v1350 = vpop.xlane.xlu0 %1349
        %v1351 = vmax.f32 %v1229, %v1230
        %1352 = vmax.xlane.f32.xlu0 %v1351
        %v1353 = vpop.xlane.xlu0 %1352
        %v1354 = vmax.f32 %v1231, %v1232
        %1355 = vmax.xlane.f32.xlu0 %v1354
        %v1356 = vpop.xlane.xlu0 %1355
        %v1357 = vmax.f32 %v1233, %v1234
        %1358 = vmax.xlane.f32.xlu0 %v1357
        %v1359 = vpop.xlane.xlu0 %1358
        %v1360 = vmax.f32 %v1235, %v1236
        %1361 = vmax.xlane.f32.xlu0 %v1360
        %v1362 = vpop.xlane.xlu0 %1361
        %v1363 = vmax.f32 %v1237, %v1238
        %1364 = vmax.xlane.f32.xlu0 %v1363
        %v1365 = vpop.xlane.xlu0 %1364
        %v1366 = vmax.f32 %v1239, %v1240
        %1367 = vmax.xlane.f32.xlu0 %v1366
        %v1368 = vpop.xlane.xlu0 %1367
        %v1369 = vmax.f32 %v1241, %v1275
        %v1370 = vmax.f32 %v1242, %v1278
        %v1371 = vmax.f32 %v1243, %v1281
        %v1372 = vmax.f32 %v1244, %v1284
        %v1373 = vmax.f32 %v1245, %v1287
        %v1374 = vmax.f32 %v1246, %v1290
        %v1375 = vmax.f32 %v1247, %v1293
        %v1376 = vmax.f32 %v1248, %v1296
        %v1377 = vmax.f32 %v1249, %v1299
        %v1378 = vmax.f32 %v1250, %v1302
        %v1379 = vmax.f32 %v1251, %v1305
        %v1380 = vmax.f32 %v1252, %v1308
        %v1381 = vmax.f32 %v1253, %v1311
        %v1382 = vmax.f32 %v1254, %v1314
        %v1383 = vmax.f32 %v1255, %v1317
        %v1384 = vmax.f32 %v1256, %v1320
        %v1385 = vmax.f32 %v1257, %v1323
        %v1386 = vmax.f32 %v1258, %v1326
        %v1387 = vmax.f32 %v1259, %v1329
        %v1388 = vmax.f32 %v1260, %v1332
        %v1389 = vmax.f32 %v1261, %v1335
        %v1390 = vmax.f32 %v1262, %v1338
        %v1391 = vmax.f32 %v1263, %v1341
        %v1392 = vmax.f32 %v1264, %v1344
        %v1393 = vmax.f32 %v1265, %v1347
        %v1394 = vmax.f32 %v1266, %v1350
        %v1395 = vmax.f32 %v1267, %v1353
        %v1396 = vmax.f32 %v1268, %v1356
        %v1397 = vmax.f32 %v1269, %v1359
        %v1398 = vmax.f32 %v1270, %v1362
        %v1399 = vmax.f32 %v1271, %v1365
        %v1400 = vmax.f32 %v1272, %v1368
        %v1401 = vsub.f32 %v1241, %v1369
        %v1402 = vsub.f32 %v1242, %v1370
        %v1403 = vsub.f32 %v1243, %v1371
        %v1404 = vsub.f32 %v1244, %v1372
        %v1405 = vsub.f32 %v1245, %v1373
        %v1406 = vsub.f32 %v1246, %v1374
        %v1407 = vsub.f32 %v1247, %v1375
        %v1408 = vsub.f32 %v1248, %v1376
        %v1409 = vsub.f32 %v1249, %v1377
        %v1410 = vsub.f32 %v1250, %v1378
        %v1411 = vsub.f32 %v1251, %v1379
        %v1412 = vsub.f32 %v1252, %v1380
        %v1413 = vsub.f32 %v1253, %v1381
        %v1414 = vsub.f32 %v1254, %v1382
        %v1415 = vsub.f32 %v1255, %v1383
        %v1416 = vsub.f32 %v1256, %v1384
        %v1417 = vsub.f32 %v1257, %v1385
        %v1418 = vsub.f32 %v1258, %v1386
        %v1419 = vsub.f32 %v1259, %v1387
        %v1420 = vsub.f32 %v1260, %v1388
        %v1421 = vsub.f32 %v1261, %v1389
        %v1422 = vsub.f32 %v1262, %v1390
        %v1423 = vsub.f32 %v1263, %v1391
        %v1424 = vsub.f32 %v1264, %v1392
        %v1425 = vsub.f32 %v1265, %v1393
        %v1426 = vsub.f32 %v1266, %v1394
        %v1427 = vsub.f32 %v1267, %v1395
        %v1428 = vsub.f32 %v1268, %v1396
        %v1429 = vsub.f32 %v1269, %v1397
        %v1430 = vsub.f32 %v1270, %v1398
        %v1431 = vsub.f32 %v1271, %v1399
        %v1432 = vsub.f32 %v1272, %v1400
        %v1433 = vmul.f32 %v1401, 1.442695
        %v1434 = vpow.pop %v1433
        %v1435 = vmul.f32 %v1402, 1.442695
        %v1436 = vpow.pop %v1435
        %v1437 = vmul.f32 %v1403, 1.442695
        %v1438 = vpow.pop %v1437
        %v1439 = vmul.f32 %v1404, 1.442695
        %v1440 = vpow.pop %v1439
        %v1441 = vmul.f32 %v1405, 1.442695
        %v1442 = vpow.pop %v1441
        %v1443 = vmul.f32 %v1406, 1.442695
        %v1444 = vpow.pop %v1443
        %v1445 = vmul.f32 %v1407, 1.442695
        %v1446 = vpow.pop %v1445
        %v1447 = vmul.f32 %v1408, 1.442695
        %v1448 = vpow.pop %v1447
        %v1449 = vmul.f32 %v1409, 1.442695
        %v1450 = vpow.pop %v1449
        %v1451 = vmul.f32 %v1410, 1.442695
        %v1452 = vpow.pop %v1451
        %v1453 = vmul.f32 %v1411, 1.442695
        %v1454 = vpow.pop %v1453
        %v1455 = vmul.f32 %v1412, 1.442695
        %v1456 = vpow.pop %v1455
        %v1457 = vmul.f32 %v1413, 1.442695
        %v1458 = vpow.pop %v1457
        %v1459 = vmul.f32 %v1414, 1.442695
        %v1460 = vpow.pop %v1459
        %v1461 = vmul.f32 %v1415, 1.442695
        %v1462 = vpow.pop %v1461
        %v1463 = vmul.f32 %v1416, 1.442695
        %v1464 = vpow.pop %v1463
        %v1465 = vmul.f32 %v1417, 1.442695
        %v1466 = vpow.pop %v1465
        %v1467 = vmul.f32 %v1418, 1.442695
        %v1468 = vpow.pop %v1467
        %v1469 = vmul.f32 %v1419, 1.442695
        %v1470 = vpow.pop %v1469
        %v1471 = vmul.f32 %v1420, 1.442695
        %v1472 = vpow.pop %v1471
        %v1473 = vmul.f32 %v1421, 1.442695
        %v1474 = vpow.pop %v1473
        %v1475 = vmul.f32 %v1422, 1.442695
        %v1476 = vpow.pop %v1475
        %v1477 = vmul.f32 %v1423, 1.442695
        %v1478 = vpow.pop %v1477
        %v1479 = vmul.f32 %v1424, 1.442695
        %v1480 = vpow.pop %v1479
        %v1481 = vmul.f32 %v1425, 1.442695
        %v1482 = vpow.pop %v1481
        %v1483 = vmul.f32 %v1426, 1.442695
        %v1484 = vpow.pop %v1483
        %v1485 = vmul.f32 %v1427, 1.442695
        %v1486 = vpow.pop %v1485
        %v1487 = vmul.f32 %v1428, 1.442695
        %v1488 = vpow.pop %v1487
        %v1489 = vmul.f32 %v1429, 1.442695
        %v1490 = vpow.pop %v1489
        %v1491 = vmul.f32 %v1430, 1.442695
        %v1492 = vpow.pop %v1491
        %v1493 = vmul.f32 %v1431, 1.442695
        %v1494 = vpow.pop %v1493
        %v1495 = vmul.f32 %v1432, 1.442695
        %v1496 = vpow.pop %v1495
        %1498 = vset.pattern.permute.xlu0 0
        %1499 = vperm.xlu0 %1498, %v1369
        %v1500 = vpop.permute.xlu0 %1499
        %1503 = vset.pattern.permute.xlu0 0
        %1504 = vperm.xlu0 %1503, %v1370
        %v1505 = vpop.permute.xlu0 %1504
        %1508 = vset.pattern.permute.xlu0 0
        %1509 = vperm.xlu0 %1508, %v1371
        %v1510 = vpop.permute.xlu0 %1509
        %1513 = vset.pattern.permute.xlu0 0
        %1514 = vperm.xlu0 %1513, %v1372
        %v1515 = vpop.permute.xlu0 %1514
        %1518 = vset.pattern.permute.xlu0 0
        %1519 = vperm.xlu0 %1518, %v1373
        %v1520 = vpop.permute.xlu0 %1519
        %1523 = vset.pattern.permute.xlu0 0
        %1524 = vperm.xlu0 %1523, %v1374
        %v1525 = vpop.permute.xlu0 %1524
        %1528 = vset.pattern.permute.xlu0 0
        %1529 = vperm.xlu0 %1528, %v1375
        %v1530 = vpop.permute.xlu0 %1529
        %1533 = vset.pattern.permute.xlu0 0
        %1534 = vperm.xlu0 %1533, %v1376
        %v1535 = vpop.permute.xlu0 %1534
        %1538 = vset.pattern.permute.xlu0 0
        %1539 = vperm.xlu0 %1538, %v1377
        %v1540 = vpop.permute.xlu0 %1539
        %1543 = vset.pattern.permute.xlu0 0
        %1544 = vperm.xlu0 %1543, %v1378
        %v1545 = vpop.permute.xlu0 %1544
        %1548 = vset.pattern.permute.xlu0 0
        %1549 = vperm.xlu0 %1548, %v1379
        %v1550 = vpop.permute.xlu0 %1549
        %1553 = vset.pattern.permute.xlu0 0
        %1554 = vperm.xlu0 %1553, %v1380
        %v1555 = vpop.permute.xlu0 %1554
        %1558 = vset.pattern.permute.xlu0 0
        %1559 = vperm.xlu0 %1558, %v1381
        %v1560 = vpop.permute.xlu0 %1559
        %1563 = vset.pattern.permute.xlu0 0
        %1564 = vperm.xlu0 %1563, %v1382
        %v1565 = vpop.permute.xlu0 %1564
        %1568 = vset.pattern.permute.xlu0 0
        %1569 = vperm.xlu0 %1568, %v1383
        %v1570 = vpop.permute.xlu0 %1569
        %1573 = vset.pattern.permute.xlu0 0
        %1574 = vperm.xlu0 %1573, %v1384
        %v1575 = vpop.permute.xlu0 %1574
        %1578 = vset.pattern.permute.xlu0 0
        %1579 = vperm.xlu0 %1578, %v1385
        %v1580 = vpop.permute.xlu0 %1579
        %1583 = vset.pattern.permute.xlu0 0
        %1584 = vperm.xlu0 %1583, %v1386
        %v1585 = vpop.permute.xlu0 %1584
        %1588 = vset.pattern.permute.xlu0 0
        %1589 = vperm.xlu0 %1588, %v1387
        %v1590 = vpop.permute.xlu0 %1589
        %1593 = vset.pattern.permute.xlu0 0
        %1594 = vperm.xlu0 %1593, %v1388
        %v1595 = vpop.permute.xlu0 %1594
        %1598 = vset.pattern.permute.xlu0 0
        %1599 = vperm.xlu0 %1598, %v1389
        %v1600 = vpop.permute.xlu0 %1599
        %1603 = vset.pattern.permute.xlu0 0
        %1604 = vperm.xlu0 %1603, %v1390
        %v1605 = vpop.permute.xlu0 %1604
        %1608 = vset.pattern.permute.xlu0 0
        %1609 = vperm.xlu0 %1608, %v1391
        %v1610 = vpop.permute.xlu0 %1609
        %1613 = vset.pattern.permute.xlu0 0
        %1614 = vperm.xlu0 %1613, %v1392
        %v1615 = vpop.permute.xlu0 %1614
        %1618 = vset.pattern.permute.xlu0 0
        %1619 = vperm.xlu0 %1618, %v1393
        %v1620 = vpop.permute.xlu0 %1619
        %1623 = vset.pattern.permute.xlu0 0
        %1624 = vperm.xlu0 %1623, %v1394
        %v1625 = vpop.permute.xlu0 %1624
        %1628 = vset.pattern.permute.xlu0 0
        %1629 = vperm.xlu0 %1628, %v1395
        %v1630 = vpop.permute.xlu0 %1629
        %1633 = vset.pattern.permute.xlu0 0
        %1634 = vperm.xlu0 %1633, %v1396
        %v1635 = vpop.permute.xlu0 %1634
        %1638 = vset.pattern.permute.xlu0 0
        %1639 = vperm.xlu0 %1638, %v1397
        %v1640 = vpop.permute.xlu0 %1639
        %1643 = vset.pattern.permute.xlu0 0
        %1644 = vperm.xlu0 %1643, %v1398
        %v1645 = vpop.permute.xlu0 %1644
        %1648 = vset.pattern.permute.xlu0 0
        %1649 = vperm.xlu0 %1648, %v1399
        %v1650 = vpop.permute.xlu0 %1649
        %1653 = vset.pattern.permute.xlu0 0
        %1654 = vperm.xlu0 %1653, %v1400
        %v1655 = vpop.permute.xlu0 %1654
        %v1657 = vsub.f32 %v1177, %v1500
        %v1658 = vsub.f32 %v1178, %v1500
        %v1659 = vsub.f32 %v1179, %v1505
        %v1660 = vsub.f32 %v1180, %v1505
        %v1661 = vsub.f32 %v1181, %v1510
        %v1662 = vsub.f32 %v1182, %v1510
        %v1663 = vsub.f32 %v1183, %v1515
        %v1664 = vsub.f32 %v1184, %v1515
        %v1665 = vsub.f32 %v1185, %v1520
        %v1666 = vsub.f32 %v1186, %v1520
        %v1667 = vsub.f32 %v1187, %v1525
        %v1668 = vsub.f32 %v1188, %v1525
        %v1669 = vsub.f32 %v1189, %v1530
        %v1670 = vsub.f32 %v1190, %v1530
        %v1671 = vsub.f32 %v1191, %v1535
        %v1672 = vsub.f32 %v1192, %v1535
        %v1673 = vsub.f32 %v1193, %v1540
        %v1674 = vsub.f32 %v1194, %v1540
        %v1675 = vsub.f32 %v1195, %v1545
        %v1676 = vsub.f32 %v1196, %v1545
        %v1677 = vsub.f32 %v1197, %v1550
        %v1678 = vsub.f32 %v1198, %v1550
        %v1679 = vsub.f32 %v1199, %v1555
        %v1680 = vsub.f32 %v1200, %v1555
        %v1681 = vsub.f32 %v1201, %v1560
        %v1682 = vsub.f32 %v1202, %v1560
        %v1683 = vsub.f32 %v1203, %v1565
        %v1684 = vsub.f32 %v1204, %v1565
        %v1685 = vsub.f32 %v1205, %v1570
        %v1686 = vsub.f32 %v1206, %v1570
        %v1687 = vsub.f32 %v1207, %v1575
        %v1688 = vsub.f32 %v1208, %v1575
        %v1689 = vsub.f32 %v1209, %v1580
        %v1690 = vsub.f32 %v1210, %v1580
        %v1691 = vsub.f32 %v1211, %v1585
        %v1692 = vsub.f32 %v1212, %v1585
        %v1693 = vsub.f32 %v1213, %v1590
        %v1694 = vsub.f32 %v1214, %v1590
        %v1695 = vsub.f32 %v1215, %v1595
        %v1696 = vsub.f32 %v1216, %v1595
        %v1697 = vsub.f32 %v1217, %v1600
        %v1698 = vsub.f32 %v1218, %v1600
        %v1699 = vsub.f32 %v1219, %v1605
        %v1700 = vsub.f32 %v1220, %v1605
        %v1701 = vsub.f32 %v1221, %v1610
        %v1702 = vsub.f32 %v1222, %v1610
        %v1703 = vsub.f32 %v1223, %v1615
        %v1704 = vsub.f32 %v1224, %v1615
        %v1705 = vsub.f32 %v1225, %v1620
        %v1706 = vsub.f32 %v1226, %v1620
        %v1707 = vsub.f32 %v1227, %v1625
        %v1708 = vsub.f32 %v1228, %v1625
        %v1709 = vsub.f32 %v1229, %v1630
        %v1710 = vsub.f32 %v1230, %v1630
        %v1711 = vsub.f32 %v1231, %v1635
        %v1712 = vsub.f32 %v1232, %v1635
        %v1713 = vsub.f32 %v1233, %v1640
        %v1714 = vsub.f32 %v1234, %v1640
        %v1715 = vsub.f32 %v1235, %v1645
        %v1716 = vsub.f32 %v1236, %v1645
        %v1717 = vsub.f32 %v1237, %v1650
        %v1718 = vsub.f32 %v1238, %v1650
        %v1719 = vsub.f32 %v1239, %v1655
        %v1720 = vsub.f32 %v1240, %v1655
        %v1721 = vpack.c.bf16 %v1659, %v1657
        %v1722 = vpack.c.bf16 %v1660, %v1658
        %v1723 = vpack.c.bf16 %v1663, %v1661
        %v1724 = vpack.c.bf16 %v1664, %v1662
        %v1725 = vpack.c.bf16 %v1667, %v1665
        %v1726 = vpack.c.bf16 %v1668, %v1666
        %v1727 = vpack.c.bf16 %v1671, %v1669
        %v1728 = vpack.c.bf16 %v1672, %v1670
        %v1729 = vpack.c.bf16 %v1675, %v1673
        %v1730 = vpack.c.bf16 %v1676, %v1674
        %v1731 = vpack.c.bf16 %v1679, %v1677
        %v1732 = vpack.c.bf16 %v1680, %v1678
        %v1733 = vpack.c.bf16 %v1683, %v1681
        %v1734 = vpack.c.bf16 %v1684, %v1682
        %v1735 = vpack.c.bf16 %v1687, %v1685
        %v1736 = vpack.c.bf16 %v1688, %v1686
        %v1737 = vpack.c.bf16 %v1691, %v1689
        %v1738 = vpack.c.bf16 %v1692, %v1690
        %v1739 = vpack.c.bf16 %v1695, %v1693
        %v1740 = vpack.c.bf16 %v1696, %v1694
        %v1741 = vpack.c.bf16 %v1699, %v1697
        %v1742 = vpack.c.bf16 %v1700, %v1698
        %v1743 = vpack.c.bf16 %v1703, %v1701
        %v1744 = vpack.c.bf16 %v1704, %v1702
        %v1745 = vpack.c.bf16 %v1707, %v1705
        %v1746 = vpack.c.bf16 %v1708, %v1706
        %v1747 = vpack.c.bf16 %v1711, %v1709
        %v1748 = vpack.c.bf16 %v1712, %v1710
        %v1749 = vpack.c.bf16 %v1715, %v1713
        %v1750 = vpack.c.bf16 %v1716, %v1714
        %v1751 = vpack.c.bf16 %v1719, %v1717
        %v1752 = vpack.c.bf16 %v1720, %v1718
        %v1754 = vmul.bf16 %v1721, 1069105081
        %v1755 = vpow.bf16.pop %v1754
        %v1757 = vmul.bf16 %v1722, 1069105081
        %v1758 = vpow.bf16.pop %v1757
        %v1760 = vmul.bf16 %v1723, 1069105081
        %v1761 = vpow.bf16.pop %v1760
        %v1763 = vmul.bf16 %v1724, 1069105081
        %v1764 = vpow.bf16.pop %v1763
        %v1766 = vmul.bf16 %v1725, 1069105081
        %v1767 = vpow.bf16.pop %v1766
        %v1769 = vmul.bf16 %v1726, 1069105081
        %v1770 = vpow.bf16.pop %v1769
        %v1772 = vmul.bf16 %v1727, 1069105081
        %v1773 = vpow.bf16.pop %v1772
        %v1775 = vmul.bf16 %v1728, 1069105081
        %v1776 = vpow.bf16.pop %v1775
        %v1778 = vmul.bf16 %v1729, 1069105081
        %v1779 = vpow.bf16.pop %v1778
        %v1781 = vmul.bf16 %v1730, 1069105081
        %v1782 = vpow.bf16.pop %v1781
        %v1784 = vmul.bf16 %v1731, 1069105081
        %v1785 = vpow.bf16.pop %v1784
        %v1787 = vmul.bf16 %v1732, 1069105081
        %v1788 = vpow.bf16.pop %v1787
        %v1790 = vmul.bf16 %v1733, 1069105081
        %v1791 = vpow.bf16.pop %v1790
        %v1793 = vmul.bf16 %v1734, 1069105081
        %v1794 = vpow.bf16.pop %v1793
        %v1796 = vmul.bf16 %v1735, 1069105081
        %v1797 = vpow.bf16.pop %v1796
        %v1799 = vmul.bf16 %v1736, 1069105081
        %v1800 = vpow.bf16.pop %v1799
        %v1802 = vmul.bf16 %v1737, 1069105081
        %v1803 = vpow.bf16.pop %v1802
        %v1805 = vmul.bf16 %v1738, 1069105081
        %v1806 = vpow.bf16.pop %v1805
        %v1808 = vmul.bf16 %v1739, 1069105081
        %v1809 = vpow.bf16.pop %v1808
        %v1811 = vmul.bf16 %v1740, 1069105081
        %v1812 = vpow.bf16.pop %v1811
        %v1814 = vmul.bf16 %v1741, 1069105081
        %v1815 = vpow.bf16.pop %v1814
        %v1817 = vmul.bf16 %v1742, 1069105081
        %v1818 = vpow.bf16.pop %v1817
        %v1820 = vmul.bf16 %v1743, 1069105081
        %v1821 = vpow.bf16.pop %v1820
        %v1823 = vmul.bf16 %v1744, 1069105081
        %v1824 = vpow.bf16.pop %v1823
        %v1826 = vmul.bf16 %v1745, 1069105081
        %v1827 = vpow.bf16.pop %v1826
        %v1829 = vmul.bf16 %v1746, 1069105081
        %v1830 = vpow.bf16.pop %v1829
        %v1832 = vmul.bf16 %v1747, 1069105081
        %v1833 = vpow.bf16.pop %v1832
        %v1835 = vmul.bf16 %v1748, 1069105081
        %v1836 = vpow.bf16.pop %v1835
        %v1838 = vmul.bf16 %v1749, 1069105081
        %v1839 = vpow.bf16.pop %v1838
        %v1841 = vmul.bf16 %v1750, 1069105081
        %v1842 = vpow.bf16.pop %v1841
        %v1844 = vmul.bf16 %v1751, 1069105081
        %v1845 = vpow.bf16.pop %v1844
        %v1847 = vmul.bf16 %v1752, 1069105081
        %v1848 = vpow.bf16.pop %v1847
        %v1849 = vld [vmem:[#allocation3] sm:$0xff]
        %v1850 = vld [vmem:[#allocation3 + $0x8] sm:$0xff]
        %v1851 = vld [vmem:[#allocation3 + $0x10] sm:$0xff]
        %v1852 = vld [vmem:[#allocation3 + $0x18] sm:$0xff]
        %v1853 = vld [vmem:[#allocation3 + $0x20] sm:$0xff]
        %v1854 = vld [vmem:[#allocation3 + $0x28] sm:$0xff]
        %v1855 = vld [vmem:[#allocation3 + $0x30] sm:$0xff]
        %v1856 = vld [vmem:[#allocation3 + $0x38] sm:$0xff]
        %v1857 = vld [vmem:[#allocation3 + $0x40] sm:$0xff]
        %v1858 = vld [vmem:[#allocation3 + $0x48] sm:$0xff]
        %v1859 = vld [vmem:[#allocation3 + $0x50] sm:$0xff]
        %v1860 = vld [vmem:[#allocation3 + $0x58] sm:$0xff]
        %v1861 = vld [vmem:[#allocation3 + $0x60] sm:$0xff]
        %v1862 = vld [vmem:[#allocation3 + $0x68] sm:$0xff]
        %v1863 = vld [vmem:[#allocation3 + $0x70] sm:$0xff]
        %v1864 = vld [vmem:[#allocation3 + $0x78] sm:$0xff]
        %v1865 = vld [vmem:[#allocation3 + $0x80] sm:$0xff]
        %v1866 = vld [vmem:[#allocation3 + $0x88] sm:$0xff]
        %v1867 = vld [vmem:[#allocation3 + $0x90] sm:$0xff]
        %v1868 = vld [vmem:[#allocation3 + $0x98] sm:$0xff]
        %v1869 = vld [vmem:[#allocation3 + $0xa0] sm:$0xff]
        %v1870 = vld [vmem:[#allocation3 + $0xa8] sm:$0xff]
        %v1871 = vld [vmem:[#allocation3 + $0xb0] sm:$0xff]
        %v1872 = vld [vmem:[#allocation3 + $0xb8] sm:$0xff]
        %v1873 = vld [vmem:[#allocation3 + $0xc0] sm:$0xff]
        %v1874 = vld [vmem:[#allocation3 + $0xc8] sm:$0xff]
        %v1875 = vld [vmem:[#allocation3 + $0xd0] sm:$0xff]
        %v1876 = vld [vmem:[#allocation3 + $0xd8] sm:$0xff]
        %v1877 = vld [vmem:[#allocation3 + $0xe0] sm:$0xff]
        %v1878 = vld [vmem:[#allocation3 + $0xe8] sm:$0xff]
        %v1879 = vld [vmem:[#allocation3 + $0xf0] sm:$0xff]
        %v1880 = vld [vmem:[#allocation3 + $0xf8] sm:$0xff]
        %v1881 = vmul.f32 %v1434, %v1849
        %v1882 = vmul.f32 %v1436, %v1850
        %v1883 = vmul.f32 %v1438, %v1851
        %v1884 = vmul.f32 %v1440, %v1852
        %v1885 = vmul.f32 %v1442, %v1853
        %v1886 = vmul.f32 %v1444, %v1854
        %v1887 = vmul.f32 %v1446, %v1855
        %v1888 = vmul.f32 %v1448, %v1856
        %v1889 = vmul.f32 %v1450, %v1857
        %v1890 = vmul.f32 %v1452, %v1858
        %v1891 = vmul.f32 %v1454, %v1859
        %v1892 = vmul.f32 %v1456, %v1860
        %v1893 = vmul.f32 %v1458, %v1861
        %v1894 = vmul.f32 %v1460, %v1862
        %v1895 = vmul.f32 %v1462, %v1863
        %v1896 = vmul.f32 %v1464, %v1864
        %v1897 = vmul.f32 %v1466, %v1865
        %v1898 = vmul.f32 %v1468, %v1866
        %v1899 = vmul.f32 %v1470, %v1867
        %v1900 = vmul.f32 %v1472, %v1868
        %v1901 = vmul.f32 %v1474, %v1869
        %v1902 = vmul.f32 %v1476, %v1870
        %v1903 = vmul.f32 %v1478, %v1871
        %v1904 = vmul.f32 %v1480, %v1872
        %v1905 = vmul.f32 %v1482, %v1873
        %v1906 = vmul.f32 %v1484, %v1874
        %v1907 = vmul.f32 %v1486, %v1875
        %v1908 = vmul.f32 %v1488, %v1876
        %v1909 = vmul.f32 %v1490, %v1877
        %v1910 = vmul.f32 %v1492, %v1878
        %v1911 = vmul.f32 %v1494, %v1879
        %v1912 = vmul.f32 %v1496, %v1880
        %v1913 = vunpack.c.l.bf16 %v1755
        %v1914 = vunpack.c.l.bf16 %v1758
        %v1915 = vunpack.c.h.bf16 %v1755
        %v1916 = vunpack.c.h.bf16 %v1758
        %v1917 = vunpack.c.l.bf16 %v1761
        %v1918 = vunpack.c.l.bf16 %v1764
        %v1919 = vunpack.c.h.bf16 %v1761
        %v1920 = vunpack.c.h.bf16 %v1764
        %v1921 = vunpack.c.l.bf16 %v1767
        %v1922 = vunpack.c.l.bf16 %v1770
        %v1923 = vunpack.c.h.bf16 %v1767
        %v1924 = vunpack.c.h.bf16 %v1770
        %v1925 = vunpack.c.l.bf16 %v1773
        %v1926 = vunpack.c.l.bf16 %v1776
        %v1927 = vunpack.c.h.bf16 %v1773
        %v1928 = vunpack.c.h.bf16 %v1776
        %v1929 = vunpack.c.l.bf16 %v1779
        %v1930 = vunpack.c.l.bf16 %v1782
        %v1931 = vunpack.c.h.bf16 %v1779
        %v1932 = vunpack.c.h.bf16 %v1782
        %v1933 = vunpack.c.l.bf16 %v1785
        %v1934 = vunpack.c.l.bf16 %v1788
        %v1935 = vunpack.c.h.bf16 %v1785
        %v1936 = vunpack.c.h.bf16 %v1788
        %v1937 = vunpack.c.l.bf16 %v1791
        %v1938 = vunpack.c.l.bf16 %v1794
        %v1939 = vunpack.c.h.bf16 %v1791
        %v1940 = vunpack.c.h.bf16 %v1794
        %v1941 = vunpack.c.l.bf16 %v1797
        %v1942 = vunpack.c.l.bf16 %v1800
        %v1943 = vunpack.c.h.bf16 %v1797
        %v1944 = vunpack.c.h.bf16 %v1800
        %v1945 = vunpack.c.l.bf16 %v1803
        %v1946 = vunpack.c.l.bf16 %v1806
        %v1947 = vunpack.c.h.bf16 %v1803
        %v1948 = vunpack.c.h.bf16 %v1806
        %v1949 = vunpack.c.l.bf16 %v1809
        %v1950 = vunpack.c.l.bf16 %v1812
        %v1951 = vunpack.c.h.bf16 %v1809
        %v1952 = vunpack.c.h.bf16 %v1812
        %v1953 = vunpack.c.l.bf16 %v1815
        %v1954 = vunpack.c.l.bf16 %v1818
        %v1955 = vunpack.c.h.bf16 %v1815
        %v1956 = vunpack.c.h.bf16 %v1818
        %v1957 = vunpack.c.l.bf16 %v1821
        %v1958 = vunpack.c.l.bf16 %v1824
        %v1959 = vunpack.c.h.bf16 %v1821
        %v1960 = vunpack.c.h.bf16 %v1824
        %v1961 = vunpack.c.l.bf16 %v1827
        %v1962 = vunpack.c.l.bf16 %v1830
        %v1963 = vunpack.c.h.bf16 %v1827
        %v1964 = vunpack.c.h.bf16 %v1830
        %v1965 = vunpack.c.l.bf16 %v1833
        %v1966 = vunpack.c.l.bf16 %v1836
        %v1967 = vunpack.c.h.bf16 %v1833
        %v1968 = vunpack.c.h.bf16 %v1836
        %v1969 = vunpack.c.l.bf16 %v1839
        %v1970 = vunpack.c.l.bf16 %v1842
        %v1971 = vunpack.c.h.bf16 %v1839
        %v1972 = vunpack.c.h.bf16 %v1842
        %v1973 = vunpack.c.l.bf16 %v1845
        %v1974 = vunpack.c.l.bf16 %v1848
        %v1975 = vunpack.c.h.bf16 %v1845
        %v1976 = vunpack.c.h.bf16 %v1848
        %v1977 = vadd.f32 %v1913, %v1914
        %1978 = vadd.xlane.f32.xlu0 %v1977
        %v1979 = vpop.xlane.xlu0 %1978
        %v1980 = vadd.f32 %v1915, %v1916
        %1981 = vadd.xlane.f32.xlu0 %v1980
        %v1982 = vpop.xlane.xlu0 %1981
        %v1983 = vadd.f32 %v1917, %v1918
        %1984 = vadd.xlane.f32.xlu0 %v1983
        %v1985 = vpop.xlane.xlu0 %1984
        %v1986 = vadd.f32 %v1919, %v1920
        %1987 = vadd.xlane.f32.xlu0 %v1986
        %v1988 = vpop.xlane.xlu0 %1987
        %v1989 = vadd.f32 %v1921, %v1922
        %1990 = vadd.xlane.f32.xlu0 %v1989
        %v1991 = vpop.xlane.xlu0 %1990
        %v1992 = vadd.f32 %v1923, %v1924
        %1993 = vadd.xlane.f32.xlu0 %v1992
        %v1994 = vpop.xlane.xlu0 %1993
        %v1995 = vadd.f32 %v1925, %v1926
        %1996 = vadd.xlane.f32.xlu0 %v1995
        %v1997 = vpop.xlane.xlu0 %1996
        %v1998 = vadd.f32 %v1927, %v1928
        %1999 = vadd.xlane.f32.xlu0 %v1998
        %v2000 = vpop.xlane.xlu0 %1999
        %v2001 = vadd.f32 %v1929, %v1930
        %2002 = vadd.xlane.f32.xlu0 %v2001
        %v2003 = vpop.xlane.xlu0 %2002
        %v2004 = vadd.f32 %v1931, %v1932
        %2005 = vadd.xlane.f32.xlu0 %v2004
        %v2006 = vpop.xlane.xlu0 %2005
        %v2007 = vadd.f32 %v1933, %v1934
        %2008 = vadd.xlane.f32.xlu0 %v2007
        %v2009 = vpop.xlane.xlu0 %2008
        %v2010 = vadd.f32 %v1935, %v1936
        %2011 = vadd.xlane.f32.xlu0 %v2010
        %v2012 = vpop.xlane.xlu0 %2011
        %v2013 = vadd.f32 %v1937, %v1938
        %2014 = vadd.xlane.f32.xlu0 %v2013
        %v2015 = vpop.xlane.xlu0 %2014
        %v2016 = vadd.f32 %v1939, %v1940
        %2017 = vadd.xlane.f32.xlu0 %v2016
        %v2018 = vpop.xlane.xlu0 %2017
        %v2019 = vadd.f32 %v1941, %v1942
        %2020 = vadd.xlane.f32.xlu0 %v2019
        %v2021 = vpop.xlane.xlu0 %2020
        %v2022 = vadd.f32 %v1943, %v1944
        %2023 = vadd.xlane.f32.xlu0 %v2022
        %v2024 = vpop.xlane.xlu0 %2023
        %v2025 = vadd.f32 %v1945, %v1946
        %2026 = vadd.xlane.f32.xlu0 %v2025
        %v2027 = vpop.xlane.xlu0 %2026
        %v2028 = vadd.f32 %v1947, %v1948
        %2029 = vadd.xlane.f32.xlu0 %v2028
        %v2030 = vpop.xlane.xlu0 %2029
        %v2031 = vadd.f32 %v1949, %v1950
        %2032 = vadd.xlane.f32.xlu0 %v2031
        %v2033 = vpop.xlane.xlu0 %2032
        %v2034 = vadd.f32 %v1951, %v1952
        %2035 = vadd.xlane.f32.xlu0 %v2034
        %v2036 = vpop.xlane.xlu0 %2035
        %v2037 = vadd.f32 %v1953, %v1954
        %2038 = vadd.xlane.f32.xlu0 %v2037
        %v2039 = vpop.xlane.xlu0 %2038
        %v2040 = vadd.f32 %v1955, %v1956
        %2041 = vadd.xlane.f32.xlu0 %v2040
        %v2042 = vpop.xlane.xlu0 %2041
        %v2043 = vadd.f32 %v1957, %v1958
        %2044 = vadd.xlane.f32.xlu0 %v2043
        %v2045 = vpop.xlane.xlu0 %2044
        %v2046 = vadd.f32 %v1959, %v1960
        %2047 = vadd.xlane.f32.xlu0 %v2046
        %v2048 = vpop.xlane.xlu0 %2047
        %v2049 = vadd.f32 %v1961, %v1962
        %2050 = vadd.xlane.f32.xlu0 %v2049
        %v2051 = vpop.xlane.xlu0 %2050
        %v2052 = vadd.f32 %v1963, %v1964
        %2053 = vadd.xlane.f32.xlu0 %v2052
        %v2054 = vpop.xlane.xlu0 %2053
        %v2055 = vadd.f32 %v1965, %v1966
        %2056 = vadd.xlane.f32.xlu0 %v2055
        %v2057 = vpop.xlane.xlu0 %2056
        %v2058 = vadd.f32 %v1967, %v1968
        %2059 = vadd.xlane.f32.xlu0 %v2058
        %v2060 = vpop.xlane.xlu0 %2059
        %v2061 = vadd.f32 %v1969, %v1970
        %2062 = vadd.xlane.f32.xlu0 %v2061
        %v2063 = vpop.xlane.xlu0 %2062
        %v2064 = vadd.f32 %v1971, %v1972
        %2065 = vadd.xlane.f32.xlu0 %v2064
        %v2066 = vpop.xlane.xlu0 %2065
        %v2067 = vadd.f32 %v1973, %v1974
        %2068 = vadd.xlane.f32.xlu0 %v2067
        %v2069 = vpop.xlane.xlu0 %2068
        %v2070 = vadd.f32 %v1975, %v1976
        %2071 = vadd.xlane.f32.xlu0 %v2070
        %v2072 = vpop.xlane.xlu0 %2071
        %v2073 = vadd.f32 %v1881, %v1979
        %v2074 = vadd.f32 %v1882, %v1982
        %v2075 = vadd.f32 %v1883, %v1985
        %v2076 = vadd.f32 %v1884, %v1988
        %v2077 = vadd.f32 %v1885, %v1991
        %v2078 = vadd.f32 %v1886, %v1994
        %v2079 = vadd.f32 %v1887, %v1997
        %v2080 = vadd.f32 %v1888, %v2000
        %v2081 = vadd.f32 %v1889, %v2003
        %v2082 = vadd.f32 %v1890, %v2006
        %v2083 = vadd.f32 %v1891, %v2009
        %v2084 = vadd.f32 %v1892, %v2012
        %v2085 = vadd.f32 %v1893, %v2015
        %v2086 = vadd.f32 %v1894, %v2018
        %v2087 = vadd.f32 %v1895, %v2021
        %v2088 = vadd.f32 %v1896, %v2024
        %v2089 = vadd.f32 %v1897, %v2027
        %v2090 = vadd.f32 %v1898, %v2030
        %v2091 = vadd.f32 %v1899, %v2033
        %v2092 = vadd.f32 %v1900, %v2036
        %v2093 = vadd.f32 %v1901, %v2039
        %v2094 = vadd.f32 %v1902, %v2042
        %v2095 = vadd.f32 %v1903, %v2045
        %v2096 = vadd.f32 %v1904, %v2048
        %v2097 = vadd.f32 %v1905, %v2051
        %v2098 = vadd.f32 %v1906, %v2054
        %v2099 = vadd.f32 %v1907, %v2057
        %v2100 = vadd.f32 %v1908, %v2060
        %v2101 = vadd.f32 %v1909, %v2063
        %v2102 = vadd.f32 %v1910, %v2066
        %v2103 = vadd.f32 %v1911, %v2069
        %v2104 = vadd.f32 %v1912, %v2072
        %vm2105 = vcmask 7168
        %2106 = vst.msk [vmem:[#allocation3] sm:$0xff] %vm2105, %v2073
        %2107 = vst.msk [vmem:[#allocation3 + $0x8] sm:$0xff] %vm2105, %v2074
        %2108 = vst.msk [vmem:[#allocation3 + $0x10] sm:$0xff] %vm2105, %v2075
        %2109 = vst.msk [vmem:[#allocation3 + $0x18] sm:$0xff] %vm2105, %v2076
        %2110 = vst.msk [vmem:[#allocation3 + $0x20] sm:$0xff] %vm2105, %v2077
        %2111 = vst.msk [vmem:[#allocation3 + $0x28] sm:$0xff] %vm2105, %v2078
        %2112 = vst.msk [vmem:[#allocation3 + $0x30] sm:$0xff] %vm2105, %v2079
        %2113 = vst.msk [vmem:[#allocation3 + $0x38] sm:$0xff] %vm2105, %v2080
        %2114 = vst.msk [vmem:[#allocation3 + $0x40] sm:$0xff] %vm2105, %v2081
        %2115 = vst.msk [vmem:[#allocation3 + $0x48] sm:$0xff] %vm2105, %v2082
        %2116 = vst.msk [vmem:[#allocation3 + $0x50] sm:$0xff] %vm2105, %v2083
        %2117 = vst.msk [vmem:[#allocation3 + $0x58] sm:$0xff] %vm2105, %v2084
        %2118 = vst.msk [vmem:[#allocation3 + $0x60] sm:$0xff] %vm2105, %v2085
        %2119 = vst.msk [vmem:[#allocation3 + $0x68] sm:$0xff] %vm2105, %v2086
        %2120 = vst.msk [vmem:[#allocation3 + $0x70] sm:$0xff] %vm2105, %v2087
        %2121 = vst.msk [vmem:[#allocation3 + $0x78] sm:$0xff] %vm2105, %v2088
        %2122 = vst.msk [vmem:[#allocation3 + $0x80] sm:$0xff] %vm2105, %v2089
        %2123 = vst.msk [vmem:[#allocation3 + $0x88] sm:$0xff] %vm2105, %v2090
        %2124 = vst.msk [vmem:[#allocation3 + $0x90] sm:$0xff] %vm2105, %v2091
        %2125 = vst.msk [vmem:[#allocation3 + $0x98] sm:$0xff] %vm2105, %v2092
        %2126 = vst.msk [vmem:[#allocation3 + $0xa0] sm:$0xff] %vm2105, %v2093
        %2127 = vst.msk [vmem:[#allocation3 + $0xa8] sm:$0xff] %vm2105, %v2094
        %2128 = vst.msk [vmem:[#allocation3 + $0xb0] sm:$0xff] %vm2105, %v2095
        %2129 = vst.msk [vmem:[#allocation3 + $0xb8] sm:$0xff] %vm2105, %v2096
        %2130 = vst.msk [vmem:[#allocation3 + $0xc0] sm:$0xff] %vm2105, %v2097
        %2131 = vst.msk [vmem:[#allocation3 + $0xc8] sm:$0xff] %vm2105, %v2098
        %2132 = vst.msk [vmem:[#allocation3 + $0xd0] sm:$0xff] %vm2105, %v2099
        %2133 = vst.msk [vmem:[#allocation3 + $0xd8] sm:$0xff] %vm2105, %v2100
        %2134 = vst.msk [vmem:[#allocation3 + $0xe0] sm:$0xff] %vm2105, %v2101
        %2135 = vst.msk [vmem:[#allocation3 + $0xe8] sm:$0xff] %vm2105, %v2102
        %2136 = vst.msk [vmem:[#allocation3 + $0xf0] sm:$0xff] %vm2105, %v2103
        %2137 = vst.msk [vmem:[#allocation3 + $0xf8] sm:$0xff] %vm2105, %v2104
        %s2138 = smul.u32 %s20, 256
        %v2139 = vld [vmem:[#allocation4] sm:$0xff]
        %v2140 = vld [vmem:[#allocation4 + $0x8] sm:$0xff]
        %v2141 = vld [vmem:[#allocation4 + $0x10] sm:$0xff]
        %v2142 = vld [vmem:[#allocation4 + $0x18] sm:$0xff]
        %v2143 = vld [vmem:[#allocation4 + $0x20] sm:$0xff]
        %v2144 = vld [vmem:[#allocation4 + $0x28] sm:$0xff]
        %v2145 = vld [vmem:[#allocation4 + $0x30] sm:$0xff]
        %v2146 = vld [vmem:[#allocation4 + $0x38] sm:$0xff]
        %v2147 = vld [vmem:[#allocation4 + $0x40] sm:$0xff]
        %v2148 = vld [vmem:[#allocation4 + $0x48] sm:$0xff]
        %v2149 = vld [vmem:[#allocation4 + $0x50] sm:$0xff]
        %v2150 = vld [vmem:[#allocation4 + $0x58] sm:$0xff]
        %v2151 = vld [vmem:[#allocation4 + $0x60] sm:$0xff]
        %v2152 = vld [vmem:[#allocation4 + $0x68] sm:$0xff]
        %v2153 = vld [vmem:[#allocation4 + $0x70] sm:$0xff]
        %v2154 = vld [vmem:[#allocation4 + $0x78] sm:$0xff]
        %v2155 = vld [vmem:[#allocation4 + $0x80] sm:$0xff]
        %v2156 = vld [vmem:[#allocation4 + $0x88] sm:$0xff]
        %v2157 = vld [vmem:[#allocation4 + $0x90] sm:$0xff]
        %v2158 = vld [vmem:[#allocation4 + $0x98] sm:$0xff]
        %v2159 = vld [vmem:[#allocation4 + $0xa0] sm:$0xff]
        %v2160 = vld [vmem:[#allocation4 + $0xa8] sm:$0xff]
        %v2161 = vld [vmem:[#allocation4 + $0xb0] sm:$0xff]
        %v2162 = vld [vmem:[#allocation4 + $0xb8] sm:$0xff]
        %v2163 = vld [vmem:[#allocation4 + $0xc0] sm:$0xff]
        %v2164 = vld [vmem:[#allocation4 + $0xc8] sm:$0xff]
        %v2165 = vld [vmem:[#allocation4 + $0xd0] sm:$0xff]
        %v2166 = vld [vmem:[#allocation4 + $0xd8] sm:$0xff]
        %v2167 = vld [vmem:[#allocation4 + $0xe0] sm:$0xff]
        %v2168 = vld [vmem:[#allocation4 + $0xe8] sm:$0xff]
        %v2169 = vld [vmem:[#allocation4 + $0xf0] sm:$0xff]
        %v2170 = vld [vmem:[#allocation4 + $0xf8] sm:$0xff]
        %2172 = vset.pattern.permute.xlu0 0
        %2173 = vperm.xlu0 %2172, %v1434
        %v2174 = vpop.permute.xlu0 %2173
        %2177 = vset.pattern.permute.xlu0 0
        %2178 = vperm.xlu0 %2177, %v1436
        %v2179 = vpop.permute.xlu0 %2178
        %2182 = vset.pattern.permute.xlu0 0
        %2183 = vperm.xlu0 %2182, %v1438
        %v2184 = vpop.permute.xlu0 %2183
        %2187 = vset.pattern.permute.xlu0 0
        %2188 = vperm.xlu0 %2187, %v1440
        %v2189 = vpop.permute.xlu0 %2188
        %2192 = vset.pattern.permute.xlu0 0
        %2193 = vperm.xlu0 %2192, %v1442
        %v2194 = vpop.permute.xlu0 %2193
        %2197 = vset.pattern.permute.xlu0 0
        %2198 = vperm.xlu0 %2197, %v1444
        %v2199 = vpop.permute.xlu0 %2198
        %2202 = vset.pattern.permute.xlu0 0
        %2203 = vperm.xlu0 %2202, %v1446
        %v2204 = vpop.permute.xlu0 %2203
        %2207 = vset.pattern.permute.xlu0 0
        %2208 = vperm.xlu0 %2207, %v1448
        %v2209 = vpop.permute.xlu0 %2208
        %2212 = vset.pattern.permute.xlu0 0
        %2213 = vperm.xlu0 %2212, %v1450
        %v2214 = vpop.permute.xlu0 %2213
        %2217 = vset.pattern.permute.xlu0 0
        %2218 = vperm.xlu0 %2217, %v1452
        %v2219 = vpop.permute.xlu0 %2218
        %2222 = vset.pattern.permute.xlu0 0
        %2223 = vperm.xlu0 %2222, %v1454
        %v2224 = vpop.permute.xlu0 %2223
        %2227 = vset.pattern.permute.xlu0 0
        %2228 = vperm.xlu0 %2227, %v1456
        %v2229 = vpop.permute.xlu0 %2228
        %2232 = vset.pattern.permute.xlu0 0
        %2233 = vperm.xlu0 %2232, %v1458
        %v2234 = vpop.permute.xlu0 %2233
        %2237 = vset.pattern.permute.xlu0 0
        %2238 = vperm.xlu0 %2237, %v1460
        %v2239 = vpop.permute.xlu0 %2238
        %2242 = vset.pattern.permute.xlu0 0
        %2243 = vperm.xlu0 %2242, %v1462
        %v2244 = vpop.permute.xlu0 %2243
        %2247 = vset.pattern.permute.xlu0 0
        %2248 = vperm.xlu0 %2247, %v1464
        %v2249 = vpop.permute.xlu0 %2248
        %2252 = vset.pattern.permute.xlu0 0
        %2253 = vperm.xlu0 %2252, %v1466
        %v2254 = vpop.permute.xlu0 %2253
        %2257 = vset.pattern.permute.xlu0 0
        %2258 = vperm.xlu0 %2257, %v1468
        %v2259 = vpop.permute.xlu0 %2258
        %2262 = vset.pattern.permute.xlu0 0
        %2263 = vperm.xlu0 %2262, %v1470
        %v2264 = vpop.permute.xlu0 %2263
        %2267 = vset.pattern.permute.xlu0 0
        %2268 = vperm.xlu0 %2267, %v1472
        %v2269 = vpop.permute.xlu0 %2268
        %2272 = vset.pattern.permute.xlu0 0
        %2273 = vperm.xlu0 %2272, %v1474
        %v2274 = vpop.permute.xlu0 %2273
        %2277 = vset.pattern.permute.xlu0 0
        %2278 = vperm.xlu0 %2277, %v1476
        %v2279 = vpop.permute.xlu0 %2278
        %2282 = vset.pattern.permute.xlu0 0
        %2283 = vperm.xlu0 %2282, %v1478
        %v2284 = vpop.permute.xlu0 %2283
        %2287 = vset.pattern.permute.xlu0 0
        %2288 = vperm.xlu0 %2287, %v1480
        %v2289 = vpop.permute.xlu0 %2288
        %2292 = vset.pattern.permute.xlu0 0
        %2293 = vperm.xlu0 %2292, %v1482
        %v2294 = vpop.permute.xlu0 %2293
        %2297 = vset.pattern.permute.xlu0 0
        %2298 = vperm.xlu0 %2297, %v1484
        %v2299 = vpop.permute.xlu0 %2298
        %2302 = vset.pattern.permute.xlu0 0
        %2303 = vperm.xlu0 %2302, %v1486
        %v2304 = vpop.permute.xlu0 %2303
        %2307 = vset.pattern.permute.xlu0 0
        %2308 = vperm.xlu0 %2307, %v1488
        %v2309 = vpop.permute.xlu0 %2308
        %2312 = vset.pattern.permute.xlu0 0
        %2313 = vperm.xlu0 %2312, %v1490
        %v2314 = vpop.permute.xlu0 %2313
        %2317 = vset.pattern.permute.xlu0 0
        %2318 = vperm.xlu0 %2317, %v1492
        %v2319 = vpop.permute.xlu0 %2318
        %2322 = vset.pattern.permute.xlu0 0
        %2323 = vperm.xlu0 %2322, %v1494
        %v2324 = vpop.permute.xlu0 %2323
        %2327 = vset.pattern.permute.xlu0 0
        %2328 = vperm.xlu0 %2327, %v1496
        %v2329 = vpop.permute.xlu0 %2328
        %v2331 = vmul.f32 %v2174, %v2139
        %v2332 = vmul.f32 %v2179, %v2140
        %v2333 = vmul.f32 %v2184, %v2141
        %v2334 = vmul.f32 %v2189, %v2142
        %v2335 = vmul.f32 %v2194, %v2143
        %v2336 = vmul.f32 %v2199, %v2144
        %v2337 = vmul.f32 %v2204, %v2145
        %v2338 = vmul.f32 %v2209, %v2146
        %v2339 = vmul.f32 %v2214, %v2147
        %v2340 = vmul.f32 %v2219, %v2148
        %v2341 = vmul.f32 %v2224, %v2149
        %v2342 = vmul.f32 %v2229, %v2150
        %v2343 = vmul.f32 %v2234, %v2151
        %v2344 = vmul.f32 %v2239, %v2152
        %v2345 = vmul.f32 %v2244, %v2153
        %v2346 = vmul.f32 %v2249, %v2154
        %v2347 = vmul.f32 %v2254, %v2155
        %v2348 = vmul.f32 %v2259, %v2156
        %v2349 = vmul.f32 %v2264, %v2157
        %v2350 = vmul.f32 %v2269, %v2158
        %v2351 = vmul.f32 %v2274, %v2159
        %v2352 = vmul.f32 %v2279, %v2160
        %v2353 = vmul.f32 %v2284, %v2161
        %v2354 = vmul.f32 %v2289, %v2162
        %v2355 = vmul.f32 %v2294, %v2163
        %v2356 = vmul.f32 %v2299, %v2164
        %v2357 = vmul.f32 %v2304, %v2165
        %v2358 = vmul.f32 %v2309, %v2166
        %v2359 = vmul.f32 %v2314, %v2167
        %v2360 = vmul.f32 %v2319, %v2168
        %v2361 = vmul.f32 %v2324, %v2169
        %v2362 = vmul.f32 %v2329, %v2170
        %s2363 = sshra.s32 %s2138, 3
        %s2364 = sand.u32 %s2138, 7
        %s2365 = smul.addr %s2363, 4
        %s2366 = scalar_lea.vmem %s3, %s2365
        %v2367 = vld [vmem:[%s2366] sm:$0xf]
        %v2368 = vld [vmem:[%s2366 + $0x4] sm:$0xf]
        %v2369 = vld [vmem:[%s2366 + $0x8] sm:$0xf]
        %v2370 = vld [vmem:[%s2366 + $0xc] sm:$0xf]
        %v2371 = vld [vmem:[%s2366 + $0x10] sm:$0xf]
        %v2372 = vld [vmem:[%s2366 + $0x14] sm:$0xf]
        %v2373 = vld [vmem:[%s2366 + $0x18] sm:$0xf]
        %v2374 = vld [vmem:[%s2366 + $0x1c] sm:$0xf]
        %v2375 = vld [vmem:[%s2366 + $0x20] sm:$0xf]
        %v2376 = vld [vmem:[%s2366 + $0x24] sm:$0xf]
        %v2377 = vld [vmem:[%s2366 + $0x28] sm:$0xf]
        %v2378 = vld [vmem:[%s2366 + $0x2c] sm:$0xf]
        %v2379 = vld [vmem:[%s2366 + $0x30] sm:$0xf]
        %v2380 = vld [vmem:[%s2366 + $0x34] sm:$0xf]
        %v2381 = vld [vmem:[%s2366 + $0x38] sm:$0xf]
        %v2382 = vld [vmem:[%s2366 + $0x3c] sm:$0xf]
        %v2383 = vld [vmem:[%s2366 + $0x40] sm:$0xf]
        %v2384 = vld [vmem:[%s2366 + $0x44] sm:$0xf]
        %v2385 = vld [vmem:[%s2366 + $0x48] sm:$0xf]
        %v2386 = vld [vmem:[%s2366 + $0x4c] sm:$0xf]
        %v2387 = vld [vmem:[%s2366 + $0x50] sm:$0xf]
        %v2388 = vld [vmem:[%s2366 + $0x54] sm:$0xf]
        %v2389 = vld [vmem:[%s2366 + $0x58] sm:$0xf]
        %v2390 = vld [vmem:[%s2366 + $0x5c] sm:$0xf]
        %v2391 = vld [vmem:[%s2366 + $0x60] sm:$0xf]
        %v2392 = vld [vmem:[%s2366 + $0x64] sm:$0xf]
        %v2393 = vld [vmem:[%s2366 + $0x68] sm:$0xf]
        %v2394 = vld [vmem:[%s2366 + $0x6c] sm:$0xf]
        %v2395 = vld [vmem:[%s2366 + $0x70] sm:$0xf]
        %v2396 = vld [vmem:[%s2366 + $0x74] sm:$0xf]
        %v2397 = vld [vmem:[%s2366 + $0x78] sm:$0xf]
        %v2398 = vld [vmem:[%s2366 + $0x7c] sm:$0xf]
        %v2431 = vunpack.c.l.b16 %v2367
        %v2432 = vunpack.c.l.b16 %v2368
        %v2433 = vunpack.c.l.b16 %v2369
        %v2434 = vunpack.c.l.b16 %v2370
        %v2435 = vunpack.c.l.b16 %v2371
        %v2436 = vunpack.c.l.b16 %v2372
        %v2437 = vunpack.c.l.b16 %v2373
        %v2438 = vunpack.c.l.b16 %v2374
        %v2439 = vunpack.c.l.b16 %v2375
        %v2440 = vunpack.c.l.b16 %v2376
        %v2441 = vunpack.c.l.b16 %v2377
        %v2442 = vunpack.c.l.b16 %v2378
        %v2443 = vunpack.c.l.b16 %v2379
        %v2444 = vunpack.c.l.b16 %v2380
        %v2445 = vunpack.c.l.b16 %v2381
        %v2446 = vunpack.c.l.b16 %v2382
        %v2447 = vunpack.c.l.b16 %v2383
        %v2448 = vunpack.c.l.b16 %v2384
        %v2449 = vunpack.c.l.b16 %v2385
        %v2450 = vunpack.c.l.b16 %v2386
        %v2451 = vunpack.c.l.b16 %v2387
        %v2452 = vunpack.c.l.b16 %v2388
        %v2453 = vunpack.c.l.b16 %v2389
        %v2454 = vunpack.c.l.b16 %v2390
        %v2455 = vunpack.c.l.b16 %v2391
        %v2456 = vunpack.c.l.b16 %v2392
        %v2457 = vunpack.c.l.b16 %v2393
        %v2458 = vunpack.c.l.b16 %v2394
        %v2459 = vunpack.c.l.b16 %v2395
        %v2460 = vunpack.c.l.b16 %v2396
        %v2461 = vunpack.c.l.b16 %v2397
        %v2462 = vunpack.c.l.b16 %v2398
        %v2463 = vpack.c.b16 %v2432, %v2431
        %v2464 = vpack.c.b16 %v2434, %v2433
        %v2465 = vpack.c.b16 %v2436, %v2435
        %v2466 = vpack.c.b16 %v2438, %v2437
        %v2467 = vpack.c.b16 %v2440, %v2439
        %v2468 = vpack.c.b16 %v2442, %v2441
        %v2469 = vpack.c.b16 %v2444, %v2443
        %v2470 = vpack.c.b16 %v2446, %v2445
        %v2471 = vpack.c.b16 %v2448, %v2447
        %v2472 = vpack.c.b16 %v2450, %v2449
        %v2473 = vpack.c.b16 %v2452, %v2451
        %v2474 = vpack.c.b16 %v2454, %v2453
        %v2475 = vpack.c.b16 %v2456, %v2455
        %v2476 = vpack.c.b16 %v2458, %v2457
        %v2477 = vpack.c.b16 %v2460, %v2459
        %v2478 = vpack.c.b16 %v2462, %v2461
        %2495 = vmatprep.subr.bf16.mxu0 0
        %2496 = vmatpush1.bf16.msra.mxu0 %v2463
        %2497 = vmatprep.subr.bf16.mxu0 0
        %2498 = vmatpush1.bf16.msra.mxu0 %v2464
        %2499 = vmatprep.subr.bf16.mxu0 0
        %2500 = vmatpush1.bf16.msra.mxu0 %v2465
        %2501 = vmatprep.subr.bf16.mxu0 0
        %2502 = vmatpush1.bf16.msra.mxu0 %v2466
        %2503 = vmatprep.subr.bf16.mxu0 0
        %2504 = vmatpush1.bf16.msra.mxu0 %v2467
        %2505 = vmatprep.subr.bf16.mxu0 0
        %2506 = vmatpush1.bf16.msra.mxu0 %v2468
        %2507 = vmatprep.subr.bf16.mxu0 0
        %2508 = vmatpush1.bf16.msra.mxu0 %v2469
        %2509 = vmatprep.subr.bf16.mxu0 0
        %2510 = vmatpush1.bf16.msra.mxu0 %v2470
        %2511 = vmatprep.subr.bf16.mxu0 0
        %2512 = vmatpush1.bf16.msra.mxu0 %v2471
        %2513 = vmatprep.subr.bf16.mxu0 0
        %2514 = vmatpush1.bf16.msra.mxu0 %v2472
        %2515 = vmatprep.subr.bf16.mxu0 0
        %2516 = vmatpush1.bf16.msra.mxu0 %v2473
        %2517 = vmatprep.subr.bf16.mxu0 0
        %2518 = vmatpush1.bf16.msra.mxu0 %v2474
        %2519 = vmatprep.subr.bf16.mxu0 0
        %2520 = vmatpush1.bf16.msra.mxu0 %v2475
        %2521 = vmatprep.subr.bf16.mxu0 0
        %2522 = vmatpush1.bf16.msra.mxu0 %v2476
        %2523 = vmatprep.subr.bf16.mxu0 0
        %2524 = vmatpush1.bf16.msra.mxu0 %v2477
        %2525 = vmatprep.subr.bf16.mxu0 0
        %2526 = vmatpush1.bf16.msra.mxu0 %v2478
        %2527 = vmatprep.mubr.bf16.mxu0 %v1758
        %2528 = vmatmul.mubr.bf16.gmra.mrb[0].mxu0 %v1755
        %v2529 = vpop.f32.mrb[0].mxu0
        %v2530 = vadd.f32 0.0, %v2529
        %v2531 = vpop.f32.mrb[0].mxu0
        %v2532 = vpop.f32.mrb[0].mxu0
        %v2533 = vadd.f32 0.0, %v2532
        %v2534 = vpop.f32.mrb[0].mxu0
        %2535 = vmatprep.mubr.bf16.mxu0 %v1764
        %2536 = vmatmul.mubr.bf16.gmra.mrb[0].mxu0 %v1761
        %v2537 = vpop.f32.mrb[0].mxu0
        %v2538 = vadd.f32 0.0, %v2537
        %v2539 = vpop.f32.mrb[0].mxu0
        %v2540 = vpop.f32.mrb[0].mxu0
        %v2541 = vadd.f32 0.0, %v2540
        %v2542 = vpop.f32.mrb[0].mxu0
        %2543 = vmatprep.mubr.bf16.mxu0 %v1770
        %2544 = vmatmul.mubr.bf16.gmra.mrb[0].mxu0 %v1767
        %v2545 = vpop.f32.mrb[0].mxu0
        %v2546 = vadd.f32 0.0, %v2545
        %v2547 = vpop.f32.mrb[0].mxu0
        %v2548 = vpop.f32.mrb[0].mxu0
        %v2549 = vadd.f32 0.0, %v2548
        %v2550 = vpop.f32.mrb[0].mxu0
        %2551 = vmatprep.mubr.bf16.mxu0 %v1776
        %2552 = vmatmul.mubr.bf16.gmra.mrb[0].mxu0 %v1773
        %v2553 = vpop.f32.mrb[0].mxu0
        %v2554 = vadd.f32 0.0, %v2553
        %v2555 = vpop.f32.mrb[0].mxu0
        %v2556 = vpop.f32.mrb[0].mxu0
        %v2557 = vadd.f32 0.0, %v2556
        %v2558 = vpop.f32.mrb[0].mxu0
        %2559 = vmatprep.mubr.bf16.mxu0 %v1782
        %2560 = vmatmul.mubr.bf16.gmra.mrb[0].mxu0 %v1779
        %v2561 = vpop.f32.mrb[0].mxu0
        %v2562 = vadd.f32 0.0, %v2561
        %v2563 = vpop.f32.mrb[0].mxu0
        %v2564 = vpop.f32.mrb[0].mxu0
        %v2565 = vadd.f32 0.0, %v2564
        %v2566 = vpop.f32.mrb[0].mxu0
        %2567 = vmatprep.mubr.bf16.mxu0 %v1788
        %2568 = vmatmul.mubr.bf16.gmra.mrb[0].mxu0 %v1785
        %v2569 = vpop.f32.mrb[0].mxu0
        %v2570 = vadd.f32 0.0, %v2569
        %v2571 = vpop.f32.mrb[0].mxu0
        %v2572 = vpop.f32.mrb[0].mxu0
        %v2573 = vadd.f32 0.0, %v2572
        %v2574 = vpop.f32.mrb[0].mxu0
        %2575 = vmatprep.mubr.bf16.mxu0 %v1794
        %2576 = vmatmul.mubr.bf16.gmra.mrb[0].mxu0 %v1791
        %v2577 = vpop.f32.mrb[0].mxu0
        %v2578 = vadd.f32 0.0, %v2577
        %v2579 = vpop.f32.mrb[0].mxu0
        %v2580 = vpop.f32.mrb[0].mxu0
        %v2581 = vadd.f32 0.0, %v2580
        %v2582 = vpop.f32.mrb[0].mxu0
        %2583 = vmatprep.mubr.bf16.mxu0 %v1800
        %2584 = vmatmul.mubr.bf16.gmra.mrb[0].mxu0 %v1797
        %v2585 = vpop.f32.mrb[0].mxu0
        %v2586 = vadd.f32 0.0, %v2585
        %v2587 = vpop.f32.mrb[0].mxu0
        %v2588 = vpop.f32.mrb[0].mxu0
        %v2589 = vadd.f32 0.0, %v2588
        %v2590 = vpop.f32.mrb[0].mxu0
        %2591 = vmatprep.mubr.bf16.mxu0 %v1806
        %2592 = vmatmul.mubr.bf16.gmra.mrb[0].mxu0 %v1803
        %v2593 = vpop.f32.mrb[0].mxu0
        %v2594 = vadd.f32 0.0, %v2593
        %v2595 = vpop.f32.mrb[0].mxu0
        %v2596 = vpop.f32.mrb[0].mxu0
        %v2597 = vadd.f32 0.0, %v2596
        %v2598 = vpop.f32.mrb[0].mxu0
        %2599 = vmatprep.mubr.bf16.mxu0 %v1812
        %2600 = vmatmul.mubr.bf16.gmra.mrb[0].mxu0 %v1809
        %v2601 = vpop.f32.mrb[0].mxu0
        %v2602 = vadd.f32 0.0, %v2601
        %v2603 = vpop.f32.mrb[0].mxu0
        %v2604 = vpop.f32.mrb[0].mxu0
        %v2605 = vadd.f32 0.0, %v2604
        %v2606 = vpop.f32.mrb[0].mxu0
        %2607 = vmatprep.mubr.bf16.mxu0 %v1818
        %2608 = vmatmul.mubr.bf16.gmra.mrb[0].mxu0 %v1815
        %v2609 = vpop.f32.mrb[0].mxu0
        %v2610 = vadd.f32 0.0, %v2609
        %v2611 = vpop.f32.mrb[0].mxu0
        %v2612 = vpop.f32.mrb[0].mxu0
        %v2613 = vadd.f32 0.0, %v2612
        %v2614 = vpop.f32.mrb[0].mxu0
        %2615 = vmatprep.mubr.bf16.mxu0 %v1824
        %2616 = vmatmul.mubr.bf16.gmra.mrb[0].mxu0 %v1821
        %v2617 = vpop.f32.mrb[0].mxu0
        %v2618 = vadd.f32 0.0, %v2617
        %v2619 = vpop.f32.mrb[0].mxu0
        %v2620 = vpop.f32.mrb[0].mxu0
        %v2621 = vadd.f32 0.0, %v2620
        %v2622 = vpop.f32.mrb[0].mxu0
        %2623 = vmatprep.mubr.bf16.mxu0 %v1830
        %2624 = vmatmul.mubr.bf16.gmra.mrb[0].mxu0 %v1827
        %v2625 = vpop.f32.mrb[0].mxu0
        %v2626 = vadd.f32 0.0, %v2625
        %v2627 = vpop.f32.mrb[0].mxu0
        %v2628 = vpop.f32.mrb[0].mxu0
        %v2629 = vadd.f32 0.0, %v2628
        %v2630 = vpop.f32.mrb[0].mxu0
        %2631 = vmatprep.mubr.bf16.mxu0 %v1836
        %2632 = vmatmul.mubr.bf16.gmra.mrb[0].mxu0 %v1833
        %v2633 = vpop.f32.mrb[0].mxu0
        %v2634 = vadd.f32 0.0, %v2633
        %v2635 = vpop.f32.mrb[0].mxu0
        %v2636 = vpop.f32.mrb[0].mxu0
        %v2637 = vadd.f32 0.0, %v2636
        %v2638 = vpop.f32.mrb[0].mxu0
        %2639 = vmatprep.mubr.bf16.mxu0 %v1842
        %2640 = vmatmul.mubr.bf16.gmra.mrb[0].mxu0 %v1839
        %v2641 = vpop.f32.mrb[0].mxu0
        %v2642 = vadd.f32 0.0, %v2641
        %v2643 = vpop.f32.mrb[0].mxu0
        %v2644 = vpop.f32.mrb[0].mxu0
        %v2645 = vadd.f32 0.0, %v2644
        %v2646 = vpop.f32.mrb[0].mxu0
        %2647 = vmatprep.mubr.bf16.mxu0 %v1848
        %2648 = vmatmul.mubr.bf16.gmra.mrb[0].mxu0 %v1845
        %v2649 = vpop.f32.mrb[0].mxu0
        %v2650 = vadd.f32 0.0, %v2649
        %v2651 = vpop.f32.mrb[0].mxu0
        %v2652 = vpop.f32.mrb[0].mxu0
        %v2653 = vadd.f32 0.0, %v2652
        %v2654 = vpop.f32.mrb[0].mxu0
        %2655 = vdwg.mxu0
        %v2656 = vadd.f32 %v2331, %v2530
        %v2657 = vadd.f32 %v2332, %v2533
        %v2658 = vadd.f32 %v2333, %v2538
        %v2659 = vadd.f32 %v2334, %v2541
        %v2660 = vadd.f32 %v2335, %v2546
        %v2661 = vadd.f32 %v2336, %v2549
        %v2662 = vadd.f32 %v2337, %v2554
        %v2663 = vadd.f32 %v2338, %v2557
        %v2664 = vadd.f32 %v2339, %v2562
        %v2665 = vadd.f32 %v2340, %v2565
        %v2666 = vadd.f32 %v2341, %v2570
        %v2667 = vadd.f32 %v2342, %v2573
        %v2668 = vadd.f32 %v2343, %v2578
        %v2669 = vadd.f32 %v2344, %v2581
        %v2670 = vadd.f32 %v2345, %v2586
        %v2671 = vadd.f32 %v2346, %v2589
        %v2672 = vadd.f32 %v2347, %v2594
        %v2673 = vadd.f32 %v2348, %v2597
        %v2674 = vadd.f32 %v2349, %v2602
        %v2675 = vadd.f32 %v2350, %v2605
        %v2676 = vadd.f32 %v2351, %v2610
        %v2677 = vadd.f32 %v2352, %v2613
        %v2678 = vadd.f32 %v2353, %v2618
        %v2679 = vadd.f32 %v2354, %v2621
        %v2680 = vadd.f32 %v2355, %v2626
        %v2681 = vadd.f32 %v2356, %v2629
        %v2682 = vadd.f32 %v2357, %v2634
        %v2683 = vadd.f32 %v2358, %v2637
        %v2684 = vadd.f32 %v2359, %v2642
        %v2685 = vadd.f32 %v2360, %v2645
        %v2686 = vadd.f32 %v2361, %v2650
        %v2687 = vadd.f32 %v2362, %v2653
        %2688 = vst [vmem:[#allocation4] sm:$0xff] %v2656
        %2689 = vst [vmem:[#allocation4 + $0x8] sm:$0xff] %v2657
        %2690 = vst [vmem:[#allocation4 + $0x10] sm:$0xff] %v2658
        %2691 = vst [vmem:[#allocation4 + $0x18] sm:$0xff] %v2659
        %2692 = vst [vmem:[#allocation4 + $0x20] sm:$0xff] %v2660
        %2693 = vst [vmem:[#allocation4 + $0x28] sm:$0xff] %v2661
        %2694 = vst [vmem:[#allocation4 + $0x30] sm:$0xff] %v2662
        %2695 = vst [vmem:[#allocation4 + $0x38] sm:$0xff] %v2663
        %2696 = vst [vmem:[#allocation4 + $0x40] sm:$0xff] %v2664
        %2697 = vst [vmem:[#allocation4 + $0x48] sm:$0xff] %v2665
        %2698 = vst [vmem:[#allocation4 + $0x50] sm:$0xff] %v2666
        %2699 = vst [vmem:[#allocation4 + $0x58] sm:$0xff] %v2667
        %2700 = vst [vmem:[#allocation4 + $0x60] sm:$0xff] %v2668
        %2701 = vst [vmem:[#allocation4 + $0x68] sm:$0xff] %v2669
        %2702 = vst [vmem:[#allocation4 + $0x70] sm:$0xff] %v2670
        %2703 = vst [vmem:[#allocation4 + $0x78] sm:$0xff] %v2671
        %2704 = vst [vmem:[#allocation4 + $0x80] sm:$0xff] %v2672
        %2705 = vst [vmem:[#allocation4 + $0x88] sm:$0xff] %v2673
        %2706 = vst [vmem:[#allocation4 + $0x90] sm:$0xff] %v2674
        %2707 = vst [vmem:[#allocation4 + $0x98] sm:$0xff] %v2675
        %2708 = vst [vmem:[#allocation4 + $0xa0] sm:$0xff] %v2676
        %2709 = vst [vmem:[#allocation4 + $0xa8] sm:$0xff] %v2677
        %2710 = vst [vmem:[#allocation4 + $0xb0] sm:$0xff] %v2678
        %2711 = vst [vmem:[#allocation4 + $0xb8] sm:$0xff] %v2679
        %2712 = vst [vmem:[#allocation4 + $0xc0] sm:$0xff] %v2680
        %2713 = vst [vmem:[#allocation4 + $0xc8] sm:$0xff] %v2681
        %2714 = vst [vmem:[#allocation4 + $0xd0] sm:$0xff] %v2682
        %2715 = vst [vmem:[#allocation4 + $0xd8] sm:$0xff] %v2683
        %2716 = vst [vmem:[#allocation4 + $0xe0] sm:$0xff] %v2684
        %2717 = vst [vmem:[#allocation4 + $0xe8] sm:$0xff] %v2685
        %2718 = vst [vmem:[#allocation4 + $0xf0] sm:$0xff] %v2686
        %2719 = vst [vmem:[#allocation4 + $0xf8] sm:$0xff] %v2687
        %2720 = vst.msk [vmem:[#allocation2] sm:$0xff] %vm2105, %v1369
        %2721 = vst.msk [vmem:[#allocation2 + $0x8] sm:$0xff] %vm2105, %v1370
        %2722 = vst.msk [vmem:[#allocation2 + $0x10] sm:$0xff] %vm2105, %v1371
        %2723 = vst.msk [vmem:[#allocation2 + $0x18] sm:$0xff] %vm2105, %v1372
        %2724 = vst.msk [vmem:[#allocation2 + $0x20] sm:$0xff] %vm2105, %v1373
        %2725 = vst.msk [vmem:[#allocation2 + $0x28] sm:$0xff] %vm2105, %v1374
        %2726 = vst.msk [vmem:[#allocation2 + $0x30] sm:$0xff] %vm2105, %v1375
        %2727 = vst.msk [vmem:[#allocation2 + $0x38] sm:$0xff] %vm2105, %v1376
        %2728 = vst.msk [vmem:[#allocation2 + $0x40] sm:$0xff] %vm2105, %v1377
        %2729 = vst.msk [vmem:[#allocation2 + $0x48] sm:$0xff] %vm2105, %v1378
        %2730 = vst.msk [vmem:[#allocation2 + $0x50] sm:$0xff] %vm2105, %v1379
        %2731 = vst.msk [vmem:[#allocation2 + $0x58] sm:$0xff] %vm2105, %v1380
        %2732 = vst.msk [vmem:[#allocation2 + $0x60] sm:$0xff] %vm2105, %v1381
        %2733 = vst.msk [vmem:[#allocation2 + $0x68] sm:$0xff] %vm2105, %v1382
        %2734 = vst.msk [vmem:[#allocation2 + $0x70] sm:$0xff] %vm2105, %v1383
        %2735 = vst.msk [vmem:[#allocation2 + $0x78] sm:$0xff] %vm2105, %v1384
        %2736 = vst.msk [vmem:[#allocation2 + $0x80] sm:$0xff] %vm2105, %v1385
        %2737 = vst.msk [vmem:[#allocation2 + $0x88] sm:$0xff] %vm2105, %v1386
        %2738 = vst.msk [vmem:[#allocation2 + $0x90] sm:$0xff] %vm2105, %v1387
        %2739 = vst.msk [vmem:[#allocation2 + $0x98] sm:$0xff] %vm2105, %v1388
        %2740 = vst.msk [vmem:[#allocation2 + $0xa0] sm:$0xff] %vm2105, %v1389
        %2741 = vst.msk [vmem:[#allocation2 + $0xa8] sm:$0xff] %vm2105, %v1390
        %2742 = vst.msk [vmem:[#allocation2 + $0xb0] sm:$0xff] %vm2105, %v1391
        %2743 = vst.msk [vmem:[#allocation2 + $0xb8] sm:$0xff] %vm2105, %v1392
        %2744 = vst.msk [vmem:[#allocation2 + $0xc0] sm:$0xff] %vm2105, %v1393
        %2745 = vst.msk [vmem:[#allocation2 + $0xc8] sm:$0xff] %vm2105, %v1394
        %2746 = vst.msk [vmem:[#allocation2 + $0xd0] sm:$0xff] %vm2105, %v1395
        %2747 = vst.msk [vmem:[#allocation2 + $0xd8] sm:$0xff] %vm2105, %v1396
        %2748 = vst.msk [vmem:[#allocation2 + $0xe0] sm:$0xff] %vm2105, %v1397
        %2749 = vst.msk [vmem:[#allocation2 + $0xe8] sm:$0xff] %vm2105, %v1398
        %2750 = vst.msk [vmem:[#allocation2 + $0xf0] sm:$0xff] %vm2105, %v1399
        %2751 = vst.msk [vmem:[#allocation2 + $0xf8] sm:$0xff] %vm2105, %v1400
        %p2752 = scmp.eq.s32.totalorder %s20, 1
        // Predicated region
        $region64: #{variational_gat_forward.6} parent=54 // pred_check
          %p2753 = pneg %p2752
        $region65: #{variational_gat_forward.6} parent=54 // pred_check_branch
          %2755 = sbr.rel (%p2753) target = $region67
        $region66: #{variational_gat_forward.6} parent=54 // pred_region
          %v2756 = vld [vmem:[#allocation4] sm:$0xff]
          %v2757 = vld [vmem:[#allocation4 + $0x8] sm:$0xff]
          %v2758 = vld [vmem:[#allocation4 + $0x10] sm:$0xff]
          %v2759 = vld [vmem:[#allocation4 + $0x18] sm:$0xff]
          %v2760 = vld [vmem:[#allocation4 + $0x20] sm:$0xff]
          %v2761 = vld [vmem:[#allocation4 + $0x28] sm:$0xff]
          %v2762 = vld [vmem:[#allocation4 + $0x30] sm:$0xff]
          %v2763 = vld [vmem:[#allocation4 + $0x38] sm:$0xff]
          %v2764 = vld [vmem:[#allocation4 + $0x40] sm:$0xff]
          %v2765 = vld [vmem:[#allocation4 + $0x48] sm:$0xff]
          %v2766 = vld [vmem:[#allocation4 + $0x50] sm:$0xff]
          %v2767 = vld [vmem:[#allocation4 + $0x58] sm:$0xff]
          %v2768 = vld [vmem:[#allocation4 + $0x60] sm:$0xff]
          %v2769 = vld [vmem:[#allocation4 + $0x68] sm:$0xff]
          %v2770 = vld [vmem:[#allocation4 + $0x70] sm:$0xff]
          %v2771 = vld [vmem:[#allocation4 + $0x78] sm:$0xff]
          %v2772 = vld [vmem:[#allocation4 + $0x80] sm:$0xff]
          %v2773 = vld [vmem:[#allocation4 + $0x88] sm:$0xff]
          %v2774 = vld [vmem:[#allocation4 + $0x90] sm:$0xff]
          %v2775 = vld [vmem:[#allocation4 + $0x98] sm:$0xff]
          %v2776 = vld [vmem:[#allocation4 + $0xa0] sm:$0xff]
          %v2777 = vld [vmem:[#allocation4 + $0xa8] sm:$0xff]
          %v2778 = vld [vmem:[#allocation4 + $0xb0] sm:$0xff]
          %v2779 = vld [vmem:[#allocation4 + $0xb8] sm:$0xff]
          %v2780 = vld [vmem:[#allocation4 + $0xc0] sm:$0xff]
          %v2781 = vld [vmem:[#allocation4 + $0xc8] sm:$0xff]
          %v2782 = vld [vmem:[#allocation4 + $0xd0] sm:$0xff]
          %v2783 = vld [vmem:[#allocation4 + $0xd8] sm:$0xff]
          %v2784 = vld [vmem:[#allocation4 + $0xe0] sm:$0xff]
          %v2785 = vld [vmem:[#allocation4 + $0xe8] sm:$0xff]
          %v2786 = vld [vmem:[#allocation4 + $0xf0] sm:$0xff]
          %v2787 = vld [vmem:[#allocation4 + $0xf8] sm:$0xff]
          %v2788 = vld [vmem:[#allocation3] sm:$0xff]
          %v2789 = vld [vmem:[#allocation3 + $0x8] sm:$0xff]
          %v2790 = vld [vmem:[#allocation3 + $0x10] sm:$0xff]
          %v2791 = vld [vmem:[#allocation3 + $0x18] sm:$0xff]
          %v2792 = vld [vmem:[#allocation3 + $0x20] sm:$0xff]
          %v2793 = vld [vmem:[#allocation3 + $0x28] sm:$0xff]
          %v2794 = vld [vmem:[#allocation3 + $0x30] sm:$0xff]
          %v2795 = vld [vmem:[#allocation3 + $0x38] sm:$0xff]
          %v2796 = vld [vmem:[#allocation3 + $0x40] sm:$0xff]
          %v2797 = vld [vmem:[#allocation3 + $0x48] sm:$0xff]
          %v2798 = vld [vmem:[#allocation3 + $0x50] sm:$0xff]
          %v2799 = vld [vmem:[#allocation3 + $0x58] sm:$0xff]
          %v2800 = vld [vmem:[#allocation3 + $0x60] sm:$0xff]
          %v2801 = vld [vmem:[#allocation3 + $0x68] sm:$0xff]
          %v2802 = vld [vmem:[#allocation3 + $0x70] sm:$0xff]
          %v2803 = vld [vmem:[#allocation3 + $0x78] sm:$0xff]
          %v2804 = vld [vmem:[#allocation3 + $0x80] sm:$0xff]
          %v2805 = vld [vmem:[#allocation3 + $0x88] sm:$0xff]
          %v2806 = vld [vmem:[#allocation3 + $0x90] sm:$0xff]
          %v2807 = vld [vmem:[#allocation3 + $0x98] sm:$0xff]
          %v2808 = vld [vmem:[#allocation3 + $0xa0] sm:$0xff]
          %v2809 = vld [vmem:[#allocation3 + $0xa8] sm:$0xff]
          %v2810 = vld [vmem:[#allocation3 + $0xb0] sm:$0xff]
          %v2811 = vld [vmem:[#allocation3 + $0xb8] sm:$0xff]
          %v2812 = vld [vmem:[#allocation3 + $0xc0] sm:$0xff]
          %v2813 = vld [vmem:[#allocation3 + $0xc8] sm:$0xff]
          %v2814 = vld [vmem:[#allocation3 + $0xd0] sm:$0xff]
          %v2815 = vld [vmem:[#allocation3 + $0xd8] sm:$0xff]
          %v2816 = vld [vmem:[#allocation3 + $0xe0] sm:$0xff]
          %v2817 = vld [vmem:[#allocation3 + $0xe8] sm:$0xff]
          %v2818 = vld [vmem:[#allocation3 + $0xf0] sm:$0xff]
          %v2819 = vld [vmem:[#allocation3 + $0xf8] sm:$0xff]
          %v2820 = vrcp.pop %v2788
          %v2821 = vrcp.pop %v2789
          %v2822 = vrcp.pop %v2790
          %v2823 = vrcp.pop %v2791
          %v2824 = vrcp.pop %v2792
          %v2825 = vrcp.pop %v2793
          %v2826 = vrcp.pop %v2794
          %v2827 = vrcp.pop %v2795
          %v2828 = vrcp.pop %v2796
          %v2829 = vrcp.pop %v2797
          %v2830 = vrcp.pop %v2798
          %v2831 = vrcp.pop %v2799
          %v2832 = vrcp.pop %v2800
          %v2833 = vrcp.pop %v2801
          %v2834 = vrcp.pop %v2802
          %v2835 = vrcp.pop %v2803
          %v2836 = vrcp.pop %v2804
          %v2837 = vrcp.pop %v2805
          %v2838 = vrcp.pop %v2806
          %v2839 = vrcp.pop %v2807
          %v2840 = vrcp.pop %v2808
          %v2841 = vrcp.pop %v2809
          %v2842 = vrcp.pop %v2810
          %v2843 = vrcp.pop %v2811
          %v2844 = vrcp.pop %v2812
          %v2845 = vrcp.pop %v2813
          %v2846 = vrcp.pop %v2814
          %v2847 = vrcp.pop %v2815
          %v2848 = vrcp.pop %v2816
          %v2849 = vrcp.pop %v2817
          %v2850 = vrcp.pop %v2818
          %v2851 = vrcp.pop %v2819
          %2853 = vset.pattern.permute.xlu0 0
          %2854 = vperm.xlu0 %2853, %v2820
          %v2855 = vpop.permute.xlu0 %2854
          %2858 = vset.pattern.permute.xlu0 0
          %2859 = vperm.xlu0 %2858, %v2821
          %v2860 = vpop.permute.xlu0 %2859
          %2863 = vset.pattern.permute.xlu0 0
          %2864 = vperm.xlu0 %2863, %v2822
          %v2865 = vpop.permute.xlu0 %2864
          %2868 = vset.pattern.permute.xlu0 0
          %2869 = vperm.xlu0 %2868, %v2823
          %v2870 = vpop.permute.xlu0 %2869
          %2873 = vset.pattern.permute.xlu0 0
          %2874 = vperm.xlu0 %2873, %v2824
          %v2875 = vpop.permute.xlu0 %2874
          %2878 = vset.pattern.permute.xlu0 0
          %2879 = vperm.xlu0 %2878, %v2825
          %v2880 = vpop.permute.xlu0 %2879
          %2883 = vset.pattern.permute.xlu0 0
          %2884 = vperm.xlu0 %2883, %v2826
          %v2885 = vpop.permute.xlu0 %2884
          %2888 = vset.pattern.permute.xlu0 0
          %2889 = vperm.xlu0 %2888, %v2827
          %v2890 = vpop.permute.xlu0 %2889
          %2893 = vset.pattern.permute.xlu0 0
          %2894 = vperm.xlu0 %2893, %v2828
          %v2895 = vpop.permute.xlu0 %2894
          %2898 = vset.pattern.permute.xlu0 0
          %2899 = vperm.xlu0 %2898, %v2829
          %v2900 = vpop.permute.xlu0 %2899
          %2903 = vset.pattern.permute.xlu0 0
          %2904 = vperm.xlu0 %2903, %v2830
          %v2905 = vpop.permute.xlu0 %2904
          %2908 = vset.pattern.permute.xlu0 0
          %2909 = vperm.xlu0 %2908, %v2831
          %v2910 = vpop.permute.xlu0 %2909
          %2913 = vset.pattern.permute.xlu0 0
          %2914 = vperm.xlu0 %2913, %v2832
          %v2915 = vpop.permute.xlu0 %2914
          %2918 = vset.pattern.permute.xlu0 0
          %2919 = vperm.xlu0 %2918, %v2833
          %v2920 = vpop.permute.xlu0 %2919
          %2923 = vset.pattern.permute.xlu0 0
          %2924 = vperm.xlu0 %2923, %v2834
          %v2925 = vpop.permute.xlu0 %2924
          %2928 = vset.pattern.permute.xlu0 0
          %2929 = vperm.xlu0 %2928, %v2835
          %v2930 = vpop.permute.xlu0 %2929
          %2933 = vset.pattern.permute.xlu0 0
          %2934 = vperm.xlu0 %2933, %v2836
          %v2935 = vpop.permute.xlu0 %2934
          %2938 = vset.pattern.permute.xlu0 0
          %2939 = vperm.xlu0 %2938, %v2837
          %v2940 = vpop.permute.xlu0 %2939
          %2943 = vset.pattern.permute.xlu0 0
          %2944 = vperm.xlu0 %2943, %v2838
          %v2945 = vpop.permute.xlu0 %2944
          %2948 = vset.pattern.permute.xlu0 0
          %2949 = vperm.xlu0 %2948, %v2839
          %v2950 = vpop.permute.xlu0 %2949
          %2953 = vset.pattern.permute.xlu0 0
          %2954 = vperm.xlu0 %2953, %v2840
          %v2955 = vpop.permute.xlu0 %2954
          %2958 = vset.pattern.permute.xlu0 0
          %2959 = vperm.xlu0 %2958, %v2841
          %v2960 = vpop.permute.xlu0 %2959
          %2963 = vset.pattern.permute.xlu0 0
          %2964 = vperm.xlu0 %2963, %v2842
          %v2965 = vpop.permute.xlu0 %2964
          %2968 = vset.pattern.permute.xlu0 0
          %2969 = vperm.xlu0 %2968, %v2843
          %v2970 = vpop.permute.xlu0 %2969
          %2973 = vset.pattern.permute.xlu0 0
          %2974 = vperm.xlu0 %2973, %v2844
          %v2975 = vpop.permute.xlu0 %2974
          %2978 = vset.pattern.permute.xlu0 0
          %2979 = vperm.xlu0 %2978, %v2845
          %v2980 = vpop.permute.xlu0 %2979
          %2983 = vset.pattern.permute.xlu0 0
          %2984 = vperm.xlu0 %2983, %v2846
          %v2985 = vpop.permute.xlu0 %2984
          %2988 = vset.pattern.permute.xlu0 0
          %2989 = vperm.xlu0 %2988, %v2847
          %v2990 = vpop.permute.xlu0 %2989
          %2993 = vset.pattern.permute.xlu0 0
          %2994 = vperm.xlu0 %2993, %v2848
          %v2995 = vpop.permute.xlu0 %2994
          %2998 = vset.pattern.permute.xlu0 0
          %2999 = vperm.xlu0 %2998, %v2849
          %v3000 = vpop.permute.xlu0 %2999
          %3003 = vset.pattern.permute.xlu0 0
          %3004 = vperm.xlu0 %3003, %v2850
          %v3005 = vpop.permute.xlu0 %3004
          %3008 = vset.pattern.permute.xlu0 0
          %3009 = vperm.xlu0 %3008, %v2851
          %v3010 = vpop.permute.xlu0 %3009
          %v3012 = vmul.f32 %v2756, %v2855
          %v3013 = vmul.f32 %v2757, %v2860
          %v3014 = vmul.f32 %v2758, %v2865
          %v3015 = vmul.f32 %v2759, %v2870
          %v3016 = vmul.f32 %v2760, %v2875
          %v3017 = vmul.f32 %v2761, %v2880
          %v3018 = vmul.f32 %v2762, %v2885
          %v3019 = vmul.f32 %v2763, %v2890
          %v3020 = vmul.f32 %v2764, %v2895
          %v3021 = vmul.f32 %v2765, %v2900
          %v3022 = vmul.f32 %v2766, %v2905
          %v3023 = vmul.f32 %v2767, %v2910
          %v3024 = vmul.f32 %v2768, %v2915
          %v3025 = vmul.f32 %v2769, %v2920
          %v3026 = vmul.f32 %v2770, %v2925
          %v3027 = vmul.f32 %v2771, %v2930
          %v3028 = vmul.f32 %v2772, %v2935
          %v3029 = vmul.f32 %v2773, %v2940
          %v3030 = vmul.f32 %v2774, %v2945
          %v3031 = vmul.f32 %v2775, %v2950
          %v3032 = vmul.f32 %v2776, %v2955
          %v3033 = vmul.f32 %v2777, %v2960
          %v3034 = vmul.f32 %v2778, %v2965
          %v3035 = vmul.f32 %v2779, %v2970
          %v3036 = vmul.f32 %v2780, %v2975
          %v3037 = vmul.f32 %v2781, %v2980
          %v3038 = vmul.f32 %v2782, %v2985
          %v3039 = vmul.f32 %v2783, %v2990
          %v3040 = vmul.f32 %v2784, %v2995
          %v3041 = vmul.f32 %v2785, %v3000
          %v3042 = vmul.f32 %v2786, %v3005
          %v3043 = vmul.f32 %v2787, %v3010
          %vm3044 = vcmp.gt.f32.partialorder %v3012, 0.0
          %vm3045 = vcmp.gt.f32.partialorder %v3013, 0.0
          %vm3046 = vcmp.gt.f32.partialorder %v3014, 0.0
          %vm3047 = vcmp.gt.f32.partialorder %v3015, 0.0
          %vm3048 = vcmp.gt.f32.partialorder %v3016, 0.0
          %vm3049 = vcmp.gt.f32.partialorder %v3017, 0.0
          %vm3050 = vcmp.gt.f32.partialorder %v3018, 0.0
          %vm3051 = vcmp.gt.f32.partialorder %v3019, 0.0
          %vm3052 = vcmp.gt.f32.partialorder %v3020, 0.0
          %vm3053 = vcmp.gt.f32.partialorder %v3021, 0.0
          %vm3054 = vcmp.gt.f32.partialorder %v3022, 0.0
          %vm3055 = vcmp.gt.f32.partialorder %v3023, 0.0
          %vm3056 = vcmp.gt.f32.partialorder %v3024, 0.0
          %vm3057 = vcmp.gt.f32.partialorder %v3025, 0.0
          %vm3058 = vcmp.gt.f32.partialorder %v3026, 0.0
          %vm3059 = vcmp.gt.f32.partialorder %v3027, 0.0
          %vm3060 = vcmp.gt.f32.partialorder %v3028, 0.0
          %vm3061 = vcmp.gt.f32.partialorder %v3029, 0.0
          %vm3062 = vcmp.gt.f32.partialorder %v3030, 0.0
          %vm3063 = vcmp.gt.f32.partialorder %v3031, 0.0
          %vm3064 = vcmp.gt.f32.partialorder %v3032, 0.0
          %vm3065 = vcmp.gt.f32.partialorder %v3033, 0.0
          %vm3066 = vcmp.gt.f32.partialorder %v3034, 0.0
          %vm3067 = vcmp.gt.f32.partialorder %v3035, 0.0
          %vm3068 = vcmp.gt.f32.partialorder %v3036, 0.0
          %vm3069 = vcmp.gt.f32.partialorder %v3037, 0.0
          %vm3070 = vcmp.gt.f32.partialorder %v3038, 0.0
          %vm3071 = vcmp.gt.f32.partialorder %v3039, 0.0
          %vm3072 = vcmp.gt.f32.partialorder %v3040, 0.0
          %vm3073 = vcmp.gt.f32.partialorder %v3041, 0.0
          %vm3074 = vcmp.gt.f32.partialorder %v3042, 0.0
          %vm3075 = vcmp.gt.f32.partialorder %v3043, 0.0
          %v3076 = vmin.f32 %v3012, 0.0
          %v3077 = vmin.f32 %v3013, 0.0
          %v3078 = vmin.f32 %v3014, 0.0
          %v3079 = vmin.f32 %v3015, 0.0
          %v3080 = vmin.f32 %v3016, 0.0
          %v3081 = vmin.f32 %v3017, 0.0
          %v3082 = vmin.f32 %v3018, 0.0
          %v3083 = vmin.f32 %v3019, 0.0
          %v3084 = vmin.f32 %v3020, 0.0
          %v3085 = vmin.f32 %v3021, 0.0
          %v3086 = vmin.f32 %v3022, 0.0
          %v3087 = vmin.f32 %v3023, 0.0
          %v3088 = vmin.f32 %v3024, 0.0
          %v3089 = vmin.f32 %v3025, 0.0
          %v3090 = vmin.f32 %v3026, 0.0
          %v3091 = vmin.f32 %v3027, 0.0
          %v3092 = vmin.f32 %v3028, 0.0
          %v3093 = vmin.f32 %v3029, 0.0
          %v3094 = vmin.f32 %v3030, 0.0
          %v3095 = vmin.f32 %v3031, 0.0
          %v3096 = vmin.f32 %v3032, 0.0
          %v3097 = vmin.f32 %v3033, 0.0
          %v3098 = vmin.f32 %v3034, 0.0
          %v3099 = vmin.f32 %v3035, 0.0
          %v3100 = vmin.f32 %v3036, 0.0
          %v3101 = vmin.f32 %v3037, 0.0
          %v3102 = vmin.f32 %v3038, 0.0
          %v3103 = vmin.f32 %v3039, 0.0
          %v3104 = vmin.f32 %v3040, 0.0
          %v3105 = vmin.f32 %v3041, 0.0
          %v3106 = vmin.f32 %v3042, 0.0
          %v3107 = vmin.f32 %v3043, 0.0
          %v3108 = vmul.f32 %v3076, 1.442695
          %v3109 = vpow.pop %v3108
          %v3110 = vmul.f32 %v3077, 1.442695
          %v3111 = vpow.pop %v3110
          %v3112 = vmul.f32 %v3078, 1.442695
          %v3113 = vpow.pop %v3112
          %v3114 = vmul.f32 %v3079, 1.442695
          %v3115 = vpow.pop %v3114
          %v3116 = vmul.f32 %v3080, 1.442695
          %v3117 = vpow.pop %v3116
          %v3118 = vmul.f32 %v3081, 1.442695
          %v3119 = vpow.pop %v3118
          %v3120 = vmul.f32 %v3082, 1.442695
          %v3121 = vpow.pop %v3120
          %v3122 = vmul.f32 %v3083, 1.442695
          %v3123 = vpow.pop %v3122
          %v3124 = vmul.f32 %v3084, 1.442695
          %v3125 = vpow.pop %v3124
          %v3126 = vmul.f32 %v3085, 1.442695
          %v3127 = vpow.pop %v3126
          %v3128 = vmul.f32 %v3086, 1.442695
          %v3129 = vpow.pop %v3128
          %v3130 = vmul.f32 %v3087, 1.442695
          %v3131 = vpow.pop %v3130
          %v3132 = vmul.f32 %v3088, 1.442695
          %v3133 = vpow.pop %v3132
          %v3134 = vmul.f32 %v3089, 1.442695
          %v3135 = vpow.pop %v3134
          %v3136 = vmul.f32 %v3090, 1.442695
          %v3137 = vpow.pop %v3136
          %v3138 = vmul.f32 %v3091, 1.442695
          %v3139 = vpow.pop %v3138
          %v3140 = vmul.f32 %v3092, 1.442695
          %v3141 = vpow.pop %v3140
          %v3142 = vmul.f32 %v3093, 1.442695
          %v3143 = vpow.pop %v3142
          %v3144 = vmul.f32 %v3094, 1.442695
          %v3145 = vpow.pop %v3144
          %v3146 = vmul.f32 %v3095, 1.442695
          %v3147 = vpow.pop %v3146
          %v3148 = vmul.f32 %v3096, 1.442695
          %v3149 = vpow.pop %v3148
          %v3150 = vmul.f32 %v3097, 1.442695
          %v3151 = vpow.pop %v3150
          %v3152 = vmul.f32 %v3098, 1.442695
          %v3153 = vpow.pop %v3152
          %v3154 = vmul.f32 %v3099, 1.442695
          %v3155 = vpow.pop %v3154
          %v3156 = vmul.f32 %v3100, 1.442695
          %v3157 = vpow.pop %v3156
          %v3158 = vmul.f32 %v3101, 1.442695
          %v3159 = vpow.pop %v3158
          %v3160 = vmul.f32 %v3102, 1.442695
          %v3161 = vpow.pop %v3160
          %v3162 = vmul.f32 %v3103, 1.442695
          %v3163 = vpow.pop %v3162
          %v3164 = vmul.f32 %v3104, 1.442695
          %v3165 = vpow.pop %v3164
          %v3166 = vmul.f32 %v3105, 1.442695
          %v3167 = vpow.pop %v3166
          %v3168 = vmul.f32 %v3106, 1.442695
          %v3169 = vpow.pop %v3168
          %v3170 = vmul.f32 %v3107, 1.442695
          %v3171 = vpow.pop %v3170
          %v3172 = vsub.f32 %v3109, 1.0
          %v3173 = vsub.f32 %v3111, 1.0
          %v3174 = vsub.f32 %v3113, 1.0
          %v3175 = vsub.f32 %v3115, 1.0
          %v3176 = vsub.f32 %v3117, 1.0
          %v3177 = vsub.f32 %v3119, 1.0
          %v3178 = vsub.f32 %v3121, 1.0
          %v3179 = vsub.f32 %v3123, 1.0
          %v3180 = vsub.f32 %v3125, 1.0
          %v3181 = vsub.f32 %v3127, 1.0
          %v3182 = vsub.f32 %v3129, 1.0
          %v3183 = vsub.f32 %v3131, 1.0
          %v3184 = vsub.f32 %v3133, 1.0
          %v3185 = vsub.f32 %v3135, 1.0
          %v3186 = vsub.f32 %v3137, 1.0
          %v3187 = vsub.f32 %v3139, 1.0
          %v3188 = vsub.f32 %v3141, 1.0
          %v3189 = vsub.f32 %v3143, 1.0
          %v3190 = vsub.f32 %v3145, 1.0
          %v3191 = vsub.f32 %v3147, 1.0
          %v3192 = vsub.f32 %v3149, 1.0
          %v3193 = vsub.f32 %v3151, 1.0
          %v3194 = vsub.f32 %v3153, 1.0
          %v3195 = vsub.f32 %v3155, 1.0
          %v3196 = vsub.f32 %v3157, 1.0
          %v3197 = vsub.f32 %v3159, 1.0
          %v3198 = vsub.f32 %v3161, 1.0
          %v3199 = vsub.f32 %v3163, 1.0
          %v3200 = vsub.f32 %v3165, 1.0
          %v3201 = vsub.f32 %v3167, 1.0
          %v3202 = vsub.f32 %v3169, 1.0
          %v3203 = vsub.f32 %v3171, 1.0
          %v3204 = vsel %vm3044, %v3012, %v3172
          %v3205 = vsel %vm3045, %v3013, %v3173
          %v3206 = vsel %vm3046, %v3014, %v3174
          %v3207 = vsel %vm3047, %v3015, %v3175
          %v3208 = vsel %vm3048, %v3016, %v3176
          %v3209 = vsel %vm3049, %v3017, %v3177
          %v3210 = vsel %vm3050, %v3018, %v3178
          %v3211 = vsel %vm3051, %v3019, %v3179
          %v3212 = vsel %vm3052, %v3020, %v3180
          %v3213 = vsel %vm3053, %v3021, %v3181
          %v3214 = vsel %vm3054, %v3022, %v3182
          %v3215 = vsel %vm3055, %v3023, %v3183
          %v3216 = vsel %vm3056, %v3024, %v3184
          %v3217 = vsel %vm3057, %v3025, %v3185
          %v3218 = vsel %vm3058, %v3026, %v3186
          %v3219 = vsel %vm3059, %v3027, %v3187
          %v3220 = vsel %vm3060, %v3028, %v3188
          %v3221 = vsel %vm3061, %v3029, %v3189
          %v3222 = vsel %vm3062, %v3030, %v3190
          %v3223 = vsel %vm3063, %v3031, %v3191
          %v3224 = vsel %vm3064, %v3032, %v3192
          %v3225 = vsel %vm3065, %v3033, %v3193
          %v3226 = vsel %vm3066, %v3034, %v3194
          %v3227 = vsel %vm3067, %v3035, %v3195
          %v3228 = vsel %vm3068, %v3036, %v3196
          %v3229 = vsel %vm3069, %v3037, %v3197
          %v3230 = vsel %vm3070, %v3038, %v3198
          %v3231 = vsel %vm3071, %v3039, %v3199
          %v3232 = vsel %vm3072, %v3040, %v3200
          %v3233 = vsel %vm3073, %v3041, %v3201
          %v3234 = vsel %vm3074, %v3042, %v3202
          %v3235 = vsel %vm3075, %v3043, %v3203
          %v3236 = vpack.c.bf16 %v3205, %v3204
          %v3237 = vpack.c.bf16 %v3207, %v3206
          %v3238 = vpack.c.bf16 %v3209, %v3208
          %v3239 = vpack.c.bf16 %v3211, %v3210
          %v3240 = vpack.c.bf16 %v3213, %v3212
          %v3241 = vpack.c.bf16 %v3215, %v3214
          %v3242 = vpack.c.bf16 %v3217, %v3216
          %v3243 = vpack.c.bf16 %v3219, %v3218
          %v3244 = vpack.c.bf16 %v3221, %v3220
          %v3245 = vpack.c.bf16 %v3223, %v3222
          %v3246 = vpack.c.bf16 %v3225, %v3224
          %v3247 = vpack.c.bf16 %v3227, %v3226
          %v3248 = vpack.c.bf16 %v3229, %v3228
          %v3249 = vpack.c.bf16 %v3231, %v3230
          %v3250 = vpack.c.bf16 %v3233, %v3232
          %v3251 = vpack.c.bf16 %v3235, %v3234
          %v3268 = vunpack.c.l.b16 %v3236
          %v3269 = vunpack.c.h.b16 %v3236
          %v3270 = vunpack.c.l.b16 %v3237
          %v3271 = vunpack.c.h.b16 %v3237
          %v3272 = vunpack.c.l.b16 %v3238
          %v3273 = vunpack.c.h.b16 %v3238
          %v3274 = vunpack.c.l.b16 %v3239
          %v3275 = vunpack.c.h.b16 %v3239
          %v3276 = vunpack.c.l.b16 %v3240
          %v3277 = vunpack.c.h.b16 %v3240
          %v3278 = vunpack.c.l.b16 %v3241
          %v3279 = vunpack.c.h.b16 %v3241
          %v3280 = vunpack.c.l.b16 %v3242
          %v3281 = vunpack.c.h.b16 %v3242
          %v3282 = vunpack.c.l.b16 %v3243
          %v3283 = vunpack.c.h.b16 %v3243
          %v3284 = vunpack.c.l.b16 %v3244
          %v3285 = vunpack.c.h.b16 %v3244
          %v3286 = vunpack.c.l.b16 %v3245
          %v3287 = vunpack.c.h.b16 %v3245
          %v3288 = vunpack.c.l.b16 %v3246
          %v3289 = vunpack.c.h.b16 %v3246
          %v3290 = vunpack.c.l.b16 %v3247
          %v3291 = vunpack.c.h.b16 %v3247
          %v3292 = vunpack.c.l.b16 %v3248
          %v3293 = vunpack.c.h.b16 %v3248
          %v3294 = vunpack.c.l.b16 %v3249
          %v3295 = vunpack.c.h.b16 %v3249
          %v3296 = vunpack.c.l.b16 %v3250
          %v3297 = vunpack.c.h.b16 %v3250
          %v3298 = vunpack.c.l.b16 %v3251
          %v3299 = vunpack.c.h.b16 %v3251
          %v3300 = vpack.c.b16 %v3268, %v3268
          %v3301 = vpack.c.b16 %v3269, %v3269
          %v3302 = vpack.c.b16 %v3270, %v3270
          %v3303 = vpack.c.b16 %v3271, %v3271
          %v3304 = vpack.c.b16 %v3272, %v3272
          %v3305 = vpack.c.b16 %v3273, %v3273
          %v3306 = vpack.c.b16 %v3274, %v3274
          %v3307 = vpack.c.b16 %v3275, %v3275
          %v3308 = vpack.c.b16 %v3276, %v3276
          %v3309 = vpack.c.b16 %v3277, %v3277
          %v3310 = vpack.c.b16 %v3278, %v3278
          %v3311 = vpack.c.b16 %v3279, %v3279
          %v3312 = vpack.c.b16 %v3280, %v3280
          %v3313 = vpack.c.b16 %v3281, %v3281
          %v3314 = vpack.c.b16 %v3282, %v3282
          %v3315 = vpack.c.b16 %v3283, %v3283
          %v3316 = vpack.c.b16 %v3284, %v3284
          %v3317 = vpack.c.b16 %v3285, %v3285
          %v3318 = vpack.c.b16 %v3286, %v3286
          %v3319 = vpack.c.b16 %v3287, %v3287
          %v3320 = vpack.c.b16 %v3288, %v3288
          %v3321 = vpack.c.b16 %v3289, %v3289
          %v3322 = vpack.c.b16 %v3290, %v3290
          %v3323 = vpack.c.b16 %v3291, %v3291
          %v3324 = vpack.c.b16 %v3292, %v3292
          %v3325 = vpack.c.b16 %v3293, %v3293
          %v3326 = vpack.c.b16 %v3294, %v3294
          %v3327 = vpack.c.b16 %v3295, %v3295
          %v3328 = vpack.c.b16 %v3296, %v3296
          %v3329 = vpack.c.b16 %v3297, %v3297
          %v3330 = vpack.c.b16 %v3298, %v3298
          %v3331 = vpack.c.b16 %v3299, %v3299
          %3364 = vst [vmem:[%s307] sm:$0xf] %v3300
          %3365 = vst [vmem:[%s307 + $0x4] sm:$0xf] %v3301
          %3366 = vst [vmem:[%s307 + $0x8] sm:$0xf] %v3302
          %3367 = vst [vmem:[%s307 + $0xc] sm:$0xf] %v3303
          %3368 = vst [vmem:[%s307 + $0x10] sm:$0xf] %v3304
          %3369 = vst [vmem:[%s307 + $0x14] sm:$0xf] %v3305
          %3370 = vst [vmem:[%s307 + $0x18] sm:$0xf] %v3306
          %3371 = vst [vmem:[%s307 + $0x1c] sm:$0xf] %v3307
          %3372 = vst [vmem:[%s307 + $0x20] sm:$0xf] %v3308
          %3373 = vst [vmem:[%s307 + $0x24] sm:$0xf] %v3309
          %3374 = vst [vmem:[%s307 + $0x28] sm:$0xf] %v3310
          %3375 = vst [vmem:[%s307 + $0x2c] sm:$0xf] %v3311
          %3376 = vst [vmem:[%s307 + $0x30] sm:$0xf] %v3312
          %3377 = vst [vmem:[%s307 + $0x34] sm:$0xf] %v3313
          %3378 = vst [vmem:[%s307 + $0x38] sm:$0xf] %v3314
          %3379 = vst [vmem:[%s307 + $0x3c] sm:$0xf] %v3315
          %3380 = vst [vmem:[%s307 + $0x40] sm:$0xf] %v3316
          %3381 = vst [vmem:[%s307 + $0x44] sm:$0xf] %v3317
          %3382 = vst [vmem:[%s307 + $0x48] sm:$0xf] %v3318
          %3383 = vst [vmem:[%s307 + $0x4c] sm:$0xf] %v3319
          %3384 = vst [vmem:[%s307 + $0x50] sm:$0xf] %v3320
          %3385 = vst [vmem:[%s307 + $0x54] sm:$0xf] %v3321
          %3386 = vst [vmem:[%s307 + $0x58] sm:$0xf] %v3322
          %3387 = vst [vmem:[%s307 + $0x5c] sm:$0xf] %v3323
          %3388 = vst [vmem:[%s307 + $0x60] sm:$0xf] %v3324
          %3389 = vst [vmem:[%s307 + $0x64] sm:$0xf] %v3325
          %3390 = vst [vmem:[%s307 + $0x68] sm:$0xf] %v3326
          %3391 = vst [vmem:[%s307 + $0x6c] sm:$0xf] %v3327
          %3392 = vst [vmem:[%s307 + $0x70] sm:$0xf] %v3328
          %3393 = vst [vmem:[%s307 + $0x74] sm:$0xf] %v3329
          %3394 = vst [vmem:[%s307 + $0x78] sm:$0xf] %v3330
          %3395 = vst [vmem:[%s307 + $0x7c] sm:$0xf] %v3331
        $region67: #{variational_gat_forward.6} parent=54 // pred_fallthru
          _
        %s3396 = smul.u32 32, %s19
        %p3397 = scmp.lt.s32.totalorder %s3396, 63
        %s3398 = scalar_select %p3397, %s3396, 63
        %s3399 = smul.addr %s3398, 4
        %s3400 = scalar_lea.vmem %s4, %s3399
        // Predicated region
        $region68: #{variational_gat_forward.6} parent=54 // pred_check
          %p3401 = pneg %p146
        $region69: #{variational_gat_forward.6} parent=54 // pred_check_branch
          %3403 = sbr.rel (%p3401) target = $region71
        $region70: #{variational_gat_forward.6} parent=54 // pred_region
          %s3404 = smul.u32 32, %s19
        $region71: #{variational_gat_forward.6} parent=54 // pred_fallthru
          _
      $region55: #{variational_gat_forward.6} parent=5 // pred_fallthru
        _
      %p3405 = scmp.le.s32.totalorder 2, %s10
      // Predicated region
      $region72: #{variational_gat_forward.6} parent=5 // pred_check
        %p3406 = pneg %p3405
      $region73: #{variational_gat_forward.6} parent=5 // pred_check_branch
        %3408 = sbr.rel (%p3406) target = $region75
      $region74: #{variational_gat_forward.6} parent=5 // pred_region
        %s3409 = ssub.s32 %s10, 2
        // Predicated region
        $region76: #{variational_gat_forward.6} parent=74 // pred_check
          %p3410 = pneg %p152
        $region77: #{variational_gat_forward.6} parent=74 // pred_check_branch
          %3412 = sbr.rel (%p3410) target = $region79
        $region78: #{variational_gat_forward.6} parent=74 // pred_region
          %s3413 = smul.u32 32, %s21
          %p3414 = scmp.lt.s32.totalorder %s3413, 63
          %s3415 = scalar_select %p3414, %s3413, 63
          %s3416 = smul.addr %s3415, 4
          %s3417 = scalar_lea.vmem %s4, %s3416
        $region79: #{variational_gat_forward.6} parent=74 // pred_fallthru
          _
      $region75: #{variational_gat_forward.6} parent=5 // pred_fallthru
        _
    $region6: #{variational_gat_forward.6} parent=1 // loop_footer
      %s14 = sadd.s32 1, %s10
    $region7: #{variational_gat_forward.6} parent=1 // loop_footer_branch
      %9 = sbr.rel target = $region3
    $region8: #{variational_gat_forward.6} parent=1 // loop_exit
      _

// kernel: variational_gat_forward.9
$region0: #{variational_gat_forward.9}
  #allocation0 [shape = 'u32[]', space=smem, size = 0x4, offset = 0x4, fixed_abs, tag = 'smem constant byte address 0x4 - core index']
  #allocation1 [shape = 'u32[144,128]{1,0:T(1,128)}', space=vmem, size = 0x12000, scoped, tag = 'internal scratch']
  #allocation2 [shape = 'f32[256,1]{1,0:T(8,128)}', space=vmem, size = 0x20000, scoped, tag = 'scratch operand']
  #allocation3 [shape = 'f32[256,1]{1,0:T(8,128)}', space=vmem, size = 0x20000, scoped, tag = 'scratch operand']
  #allocation4 [shape = 'f32[256,128]{1,0:T(8,128)}', space=vmem, size = 0x20000, scoped, tag = 'scratch operand']
  #allocation5 [shape = 'f32[256,1]{1,0:T(8,128)}', space=vmem, size = 0x20000, scoped, tag = 'scratch operand']
  #allocation6 [shape = 'f32[256,1]{1,0:T(8,128)}', space=vmem, size = 0x20000, scoped, tag = 'scratch operand']
  #allocation7 [shape = 'f32[256,128]{1,0:T(8,128)}', space=vmem, size = 0x20000, scoped, tag = 'scratch operand']
  %s0 = inlined_call_operand.vmem [shape: f32[512,1], index: 0, kind: input, shape index: {}]
  %s1 = inlined_call_operand.vmem [shape: f32[1,512], index: 1, kind: input, shape index: {}]
  %s2 = inlined_call_operand.vmem [shape: f32[512,1], index: 2, kind: input, shape index: {}]
  %s3 = inlined_call_operand.vmem [shape: f32[1,512], index: 3, kind: input, shape index: {}]
  %s4 = inlined_call_operand.vmem [shape: s8[512,512], index: 4, kind: input, shape index: {}]
  %s5 = inlined_call_operand.vmem [shape: bf16[512,128], index: 5, kind: input, shape index: {}]
  %s6 = inlined_call_operand.vmem [shape: bf16[512,128], index: 6, kind: input, shape index: {}]
  %s7 = inlined_call_operand.vmem [shape: f32[512,128], index: 7, kind: input, shape index: {}]
  %s8 = inlined_call_operand.vmem [shape: f32[128,128], index: 8, kind: input, shape index: {}]
  %s9 = inlined_call_operand.vmem [shape: f32[1,128], index: 9, kind: input, shape index: {}]
  %s10 = inlined_call_operand.vmem [shape: f32[512,128], index: 10, kind: output, shape index: {0}]
  %s11 = inlined_call_operand.vmem [shape: f32[512,128], index: 11, kind: output, shape index: {1}]
  %s12 = inlined_call_operand.vmem [shape: f32[512,128], index: 12, kind: output, shape index: {2}]
  %13 = xla_tuple %s10, %s11, %s12
  %s14 = sld [smem:[#allocation0]]
  $region135: #{variational_gat_forward.9} parent=0
    _
  %s16 = ssub.s32 1, %s14
  %s17 = scalar_select 0, %s16, %s14
  $region1: #{variational_gat_forward.9} parent=0
    #allocation8 [shape = 'u8[65536]{0}', space=vmem, size = 0x10000, scoped, tag = 'input window, operand 4']
    loop: start=0, step=1, limit=10
    $region2: #{variational_gat_forward.9} parent=1 // loop_pre_header
      _
    $region3: #{variational_gat_forward.9} parent=1 // loop_header
      %s19 = sphi 0, %s23
      %p20 = scmp.ge.s32.totalorder %s19, 10
      %s26 = sphi 0, %s38
      %s27 = sphi 0, %s34
      %s28 = sphi 0, %s26
      %s29 = sphi 0, %s27
      %s30 = sphi 0, %s28
      %s31 = sphi 0, %s29
      %s41 = sphi 0, %s43
      %s44 = sphi 0, %s41
      %s45 = sphi 0, %s44
      %s61 = sphi 0, %s45
      %s67 = sphi 0, %s69
      %s70 = sphi 0, %s67
      %s71 = sphi 0, %s70
      %s87 = sphi 0, %s71
      %s93 = sphi 0, %s95
      %s96 = sphi 0, %s93
      %s97 = sphi 0, %s96
      %s113 = sphi 0, %s97
      %s119 = sphi 0, %s121
      %s122 = sphi 0, %s119
      %s123 = sphi 0, %s122
      %s139 = sphi 0, %s123
      %s147 = sphi 0, %s149
      %s150 = sphi 0, %s147
      %s151 = sphi 0, %s150
      %s167 = sphi 0, %s151
      %s171 = sphi 0, %s171
      %s173 = sphi 0, %s171
      %s174 = sphi 0, %s173
      %s188 = sphi 0, %s174
      %s192 = sphi 0, %s192
      %s194 = sphi 0, %s192
      %s195 = sphi 0, %s194
      %s209 = sphi 0, %s195
      %s215 = sphi 0, %s217
      %s218 = sphi 0, %s215
      %s219 = sphi 0, %s218
      %s235 = sphi 0, %s219
      %s239 = sphi 0, %s239
      %s241 = sphi 0, %s239
      %s242 = sphi 0, %s241
      %s256 = sphi 0, %s242
      %s260 = sphi 0, %s260
      %s262 = sphi 0, %s260
      %s263 = sphi 0, %s262
      %s277 = sphi 0, %s263
      %s283 = sphi 0, %s285
      %s286 = sphi 0, %s283
      %s287 = sphi 0, %s286
      %s303 = sphi 0, %s287
      %s309 = sphi 0, %s311
      %s312 = sphi 0, %s309
      %s313 = sphi 0, %s312
      %s329 = sphi 0, %s313
      %s335 = sphi 0, %s337
      %s338 = sphi 0, %s335
      %s339 = sphi 0, %s338
      %s355 = sphi 0, %s339
    $region4: #{variational_gat_forward.9} parent=1 // loop_header_branch
      %22 = sbr.rel (%p20) target = $region8
    $region5: #{variational_gat_forward.9} parent=1 // loop_body
      %s24 = ssub.s32 %s19, 1
      %s25 = ssub.s32 %s19, 2
      %s32 = sadd.s32 1, %s27
      %p33 = scmp.ge.s32.totalorder %s32, 4
      %s34 = scalar_select %p33, 0, %s32
      %s35 = sadd.s32 1, %s26
      %s36 = scalar_select %p33, %s35, %s26
      %p37 = scmp.ge.s32.totalorder %s36, 2
      %s38 = scalar_select %p37, 0, %s36
      %s39 = ssub.s32 %s26, %s38
      %p40 = scmp.eq.s32.totalorder %s39, 0
      %s42 = sadd.s32 %s41, 1
      %s43 = scalar_select %p40, %s41, %s42
      %p46 = pneg %p40
      %p47 = scmp.eq.s32.totalorder %s19, 7
      %p48 = por %p46, %p47
      %p49 = scmp.ne.s32.totalorder %s41, %s44
      %p50 = scmp.eq.s32.totalorder %s19, 0
      %p51 = por %p49, %p50
      %p52 = scmp.ne.s32.totalorder %s41, %s44
      %p53 = scmp.eq.s32.totalorder %s24, 7
      %p54 = por %p52, %p53
      %p55 = scmp.ne.s32.totalorder %s44, %s45
      %p56 = scmp.eq.s32.totalorder %s24, 0
      %p57 = por %p55, %p56
      %p58 = scmp.ne.s32.totalorder %s44, %s45
      %p59 = scmp.eq.s32.totalorder %s25, 7
      %p60 = por %p58, %p59
      %p62 = scmp.ne.s32.totalorder %s45, %s61
      %p63 = scmp.eq.s32.totalorder %s25, 0
      %p64 = por %p62, %p63
      %s65 = ssub.s32 %s27, %s34
      %p66 = scmp.eq.s32.totalorder %s65, 0
      %s68 = sadd.s32 %s67, 1
      %s69 = scalar_select %p66, %s67, %s68
      %p72 = pneg %p66
      %p73 = scmp.eq.s32.totalorder %s19, 7
      %p74 = por %p72, %p73
      %p75 = scmp.ne.s32.totalorder %s67, %s70
      %p76 = scmp.eq.s32.totalorder %s19, 0
      %p77 = por %p75, %p76
      %p78 = scmp.ne.s32.totalorder %s67, %s70
      %p79 = scmp.eq.s32.totalorder %s24, 7
      %p80 = por %p78, %p79
      %p81 = scmp.ne.s32.totalorder %s70, %s71
      %p82 = scmp.eq.s32.totalorder %s24, 0
      %p83 = por %p81, %p82
      %p84 = scmp.ne.s32.totalorder %s70, %s71
      %p85 = scmp.eq.s32.totalorder %s25, 7
      %p86 = por %p84, %p85
      %p88 = scmp.ne.s32.totalorder %s71, %s87
      %p89 = scmp.eq.s32.totalorder %s25, 0
      %p90 = por %p88, %p89
      %s91 = ssub.s32 %s26, %s38
      %p92 = scmp.eq.s32.totalorder %s91, 0
      %s94 = sadd.s32 %s93, 1
      %s95 = scalar_select %p92, %s93, %s94
      %p98 = pneg %p92
      %p99 = scmp.eq.s32.totalorder %s19, 7
      %p100 = por %p98, %p99
      %p101 = scmp.ne.s32.totalorder %s93, %s96
      %p102 = scmp.eq.s32.totalorder %s19, 0
      %p103 = por %p101, %p102
      %p104 = scmp.ne.s32.totalorder %s93, %s96
      %p105 = scmp.eq.s32.totalorder %s24, 7
      %p106 = por %p104, %p105
      %p107 = scmp.ne.s32.totalorder %s96, %s97
      %p108 = scmp.eq.s32.totalorder %s24, 0
      %p109 = por %p107, %p108
      %p110 = scmp.ne.s32.totalorder %s96, %s97
      %p111 = scmp.eq.s32.totalorder %s25, 7
      %p112 = por %p110, %p111
      %p114 = scmp.ne.s32.totalorder %s97, %s113
      %p115 = scmp.eq.s32.totalorder %s25, 0
      %p116 = por %p114, %p115
      %s117 = ssub.s32 %s27, %s34
      %p118 = scmp.eq.s32.totalorder %s117, 0
      %s120 = sadd.s32 %s119, 1
      %s121 = scalar_select %p118, %s119, %s120
      %p124 = pneg %p118
      %p125 = scmp.eq.s32.totalorder %s19, 7
      %p126 = por %p124, %p125
      %p127 = scmp.ne.s32.totalorder %s119, %s122
      %p128 = scmp.eq.s32.totalorder %s19, 0
      %p129 = por %p127, %p128
      %p130 = scmp.ne.s32.totalorder %s119, %s122
      %p131 = scmp.eq.s32.totalorder %s24, 7
      %p132 = por %p130, %p131
      %p133 = scmp.ne.s32.totalorder %s122, %s123
      %p134 = scmp.eq.s32.totalorder %s24, 0
      %p135 = por %p133, %p134
      %p136 = scmp.ne.s32.totalorder %s122, %s123
      %p137 = scmp.eq.s32.totalorder %s25, 7
      %p138 = por %p136, %p137
      %p140 = scmp.ne.s32.totalorder %s123, %s139
      %p141 = scmp.eq.s32.totalorder %s25, 0
      %p142 = por %p140, %p141
      %s143 = ssub.s32 %s26, %s38
      %s144 = ssub.s32 %s27, %s34
      %s145 = sor.u32 %s143, %s144
      %p146 = scmp.eq.s32.totalorder %s145, 0
      %s148 = sadd.s32 %s147, 1
      %s149 = scalar_select %p146, %s147, %s148
      %p152 = pneg %p146
      %p153 = scmp.eq.s32.totalorder %s19, 7
      %p154 = por %p152, %p153
      %p155 = scmp.ne.s32.totalorder %s147, %s150
      %p156 = scmp.eq.s32.totalorder %s19, 0
      %p157 = por %p155, %p156
      %p158 = scmp.ne.s32.totalorder %s147, %s150
      %p159 = scmp.eq.s32.totalorder %s24, 7
      %p160 = por %p158, %p159
      %p161 = scmp.ne.s32.totalorder %s150, %s151
      %p162 = scmp.eq.s32.totalorder %s24, 0
      %p163 = por %p161, %p162
      %p164 = scmp.ne.s32.totalorder %s150, %s151
      %p165 = scmp.eq.s32.totalorder %s25, 7
      %p166 = por %p164, %p165
      %p168 = scmp.ne.s32.totalorder %s151, %s167
      %p169 = scmp.eq.s32.totalorder %s25, 0
      %p170 = por %p168, %p169
      %s172 = sadd.s32 %s171, 1
      %p175 = scmp.eq.s32.totalorder %s19, 7
      %p176 = scmp.ne.s32.totalorder %s171, %s173
      %p177 = scmp.eq.s32.totalorder %s19, 0
      %p178 = por %p176, %p177
      %p179 = scmp.ne.s32.totalorder %s171, %s173
      %p180 = scmp.eq.s32.totalorder %s24, 7
      %p181 = por %p179, %p180
      %p182 = scmp.ne.s32.totalorder %s173, %s174
      %p183 = scmp.eq.s32.totalorder %s24, 0
      %p184 = por %p182, %p183
      %p185 = scmp.ne.s32.totalorder %s173, %s174
      %p186 = scmp.eq.s32.totalorder %s25, 7
      %p187 = por %p185, %p186
      %p189 = scmp.ne.s32.totalorder %s174, %s188
      %p190 = scmp.eq.s32.totalorder %s25, 0
      %p191 = por %p189, %p190
      %s193 = sadd.s32 %s192, 1
      %p196 = scmp.eq.s32.totalorder %s19, 7
      %p197 = scmp.ne.s32.totalorder %s192, %s194
      %p198 = scmp.eq.s32.totalorder %s19, 0
      %p199 = por %p197, %p198
      %p200 = scmp.ne.s32.totalorder %s192, %s194
      %p201 = scmp.eq.s32.totalorder %s24, 7
      %p202 = por %p200, %p201
      %p203 = scmp.ne.s32.totalorder %s194, %s195
      %p204 = scmp.eq.s32.totalorder %s24, 0
      %p205 = por %p203, %p204
      %p206 = scmp.ne.s32.totalorder %s194, %s195
      %p207 = scmp.eq.s32.totalorder %s25, 7
      %p208 = por %p206, %p207
      %p210 = scmp.ne.s32.totalorder %s195, %s209
      %p211 = scmp.eq.s32.totalorder %s25, 0
      %p212 = por %p210, %p211
      %s213 = ssub.s32 %s26, %s38
      %p214 = scmp.eq.s32.totalorder %s213, 0
      %s216 = sadd.s32 %s215, 1
      %s217 = scalar_select %p214, %s215, %s216
      %p220 = pneg %p214
      %p221 = scmp.eq.s32.totalorder %s19, 7
      %p222 = por %p220, %p221
      %p223 = scmp.ne.s32.totalorder %s215, %s218
      %p224 = scmp.eq.s32.totalorder %s19, 0
      %p225 = por %p223, %p224
      %p226 = scmp.ne.s32.totalorder %s215, %s218
      %p227 = scmp.eq.s32.totalorder %s24, 7
      %p228 = por %p226, %p227
      %p229 = scmp.ne.s32.totalorder %s218, %s219
      %p230 = scmp.eq.s32.totalorder %s24, 0
      %p231 = por %p229, %p230
      %p232 = scmp.ne.s32.totalorder %s218, %s219
      %p233 = scmp.eq.s32.totalorder %s25, 7
      %p234 = por %p232, %p233
      %p236 = scmp.ne.s32.totalorder %s219, %s235
      %p237 = scmp.eq.s32.totalorder %s25, 0
      %p238 = por %p236, %p237
      %s240 = sadd.s32 %s239, 1
      %p243 = scmp.eq.s32.totalorder %s19, 7
      %p244 = scmp.ne.s32.totalorder %s239, %s241
      %p245 = scmp.eq.s32.totalorder %s19, 0
      %p246 = por %p244, %p245
      %p247 = scmp.ne.s32.totalorder %s239, %s241
      %p248 = scmp.eq.s32.totalorder %s24, 7
      %p249 = por %p247, %p248
      %p250 = scmp.ne.s32.totalorder %s241, %s242
      %p251 = scmp.eq.s32.totalorder %s24, 0
      %p252 = por %p250, %p251
      %p253 = scmp.ne.s32.totalorder %s241, %s242
      %p254 = scmp.eq.s32.totalorder %s25, 7
      %p255 = por %p253, %p254
      %p257 = scmp.ne.s32.totalorder %s242, %s256
      %p258 = scmp.eq.s32.totalorder %s25, 0
      %p259 = por %p257, %p258
      %s261 = sadd.s32 %s260, 1
      %p264 = scmp.eq.s32.totalorder %s19, 7
      %p265 = scmp.ne.s32.totalorder %s260, %s262
      %p266 = scmp.eq.s32.totalorder %s19, 0
      %p267 = por %p265, %p266
      %p268 = scmp.ne.s32.totalorder %s260, %s262
      %p269 = scmp.eq.s32.totalorder %s24, 7
      %p270 = por %p268, %p269
      %p271 = scmp.ne.s32.totalorder %s262, %s263
      %p272 = scmp.eq.s32.totalorder %s24, 0
      %p273 = por %p271, %p272
      %p274 = scmp.ne.s32.totalorder %s262, %s263
      %p275 = scmp.eq.s32.totalorder %s25, 7
      %p276 = por %p274, %p275
      %p278 = scmp.ne.s32.totalorder %s263, %s277
      %p279 = scmp.eq.s32.totalorder %s25, 0
      %p280 = por %p278, %p279
      %s281 = ssub.s32 %s26, %s38
      %p282 = scmp.eq.s32.totalorder %s281, 0
      %s284 = sadd.s32 %s283, 1
      %s285 = scalar_select %p282, %s283, %s284
      %p288 = pneg %p282
      %p289 = scmp.eq.s32.totalorder %s19, 7
      %p290 = por %p288, %p289
      %p291 = scmp.ne.s32.totalorder %s283, %s286
      %p292 = scmp.eq.s32.totalorder %s19, 0
      %p293 = por %p291, %p292
      %p294 = scmp.ne.s32.totalorder %s283, %s286
      %p295 = scmp.eq.s32.totalorder %s24, 7
      %p296 = por %p294, %p295
      %p297 = scmp.ne.s32.totalorder %s286, %s287
      %p298 = scmp.eq.s32.totalorder %s24, 0
      %p299 = por %p297, %p298
      %p300 = scmp.ne.s32.totalorder %s286, %s287
      %p301 = scmp.eq.s32.totalorder %s25, 7
      %p302 = por %p300, %p301
      %p304 = scmp.ne.s32.totalorder %s287, %s303
      %p305 = scmp.eq.s32.totalorder %s25, 0
      %p306 = por %p304, %p305
      %s307 = ssub.s32 %s26, %s38
      %p308 = scmp.eq.s32.totalorder %s307, 0
      %s310 = sadd.s32 %s309, 1
      %s311 = scalar_select %p308, %s309, %s310
      %p314 = pneg %p308
      %p315 = scmp.eq.s32.totalorder %s19, 7
      %p316 = por %p314, %p315
      %p317 = scmp.ne.s32.totalorder %s309, %s312
      %p318 = scmp.eq.s32.totalorder %s19, 0
      %p319 = por %p317, %p318
      %p320 = scmp.ne.s32.totalorder %s309, %s312
      %p321 = scmp.eq.s32.totalorder %s24, 7
      %p322 = por %p320, %p321
      %p323 = scmp.ne.s32.totalorder %s312, %s313
      %p324 = scmp.eq.s32.totalorder %s24, 0
      %p325 = por %p323, %p324
      %p326 = scmp.ne.s32.totalorder %s312, %s313
      %p327 = scmp.eq.s32.totalorder %s25, 7
      %p328 = por %p326, %p327
      %p330 = scmp.ne.s32.totalorder %s313, %s329
      %p331 = scmp.eq.s32.totalorder %s25, 0
      %p332 = por %p330, %p331
      %s333 = ssub.s32 %s26, %s38
      %p334 = scmp.eq.s32.totalorder %s333, 0
      %s336 = sadd.s32 %s335, 1
      %s337 = scalar_select %p334, %s335, %s336
      %p340 = pneg %p334
      %p341 = scmp.eq.s32.totalorder %s19, 7
      %p342 = por %p340, %p341
      %p343 = scmp.ne.s32.totalorder %s335, %s338
      %p344 = scmp.eq.s32.totalorder %s19, 0
      %p345 = por %p343, %p344
      %p346 = scmp.ne.s32.totalorder %s335, %s338
      %p347 = scmp.eq.s32.totalorder %s24, 7
      %p348 = por %p346, %p347
      %p349 = scmp.ne.s32.totalorder %s338, %s339
      %p350 = scmp.eq.s32.totalorder %s24, 0
      %p351 = por %p349, %p350
      %p352 = scmp.ne.s32.totalorder %s338, %s339
      %p353 = scmp.eq.s32.totalorder %s25, 7
      %p354 = por %p352, %p353
      %p356 = scmp.ne.s32.totalorder %s339, %s355
      %p357 = scmp.eq.s32.totalorder %s25, 0
      %p358 = por %p356, %p357
      %p359 = scmp.le.s32.totalorder 1, %s19
      %p360 = scmp.lt.s32.totalorder %s19, 9
      %p361 = pnand %p359, %p360
      %p362 = pneg %p361
      // Predicated region
      $region9: #{variational_gat_forward.9} parent=5 // pred_check
        _
      $region10: #{variational_gat_forward.9} parent=5 // pred_check_branch
        %364 = sbr.rel (%p361) target = $region12
      $region11: #{variational_gat_forward.9} parent=5 // pred_region
        %s365 = ssub.s32 %s19, 1
        // Predicated region
        $region13: #{variational_gat_forward.9} parent=11 // pred_check
          %p366 = pneg %p184
        $region14: #{variational_gat_forward.9} parent=11 // pred_check_branch
          %368 = sbr.rel (%p366) target = $region16
        $region15: #{variational_gat_forward.9} parent=11 // pred_region
          _
        $region16: #{variational_gat_forward.9} parent=11 // pred_fallthru
          _
        // Predicated region
        $region17: #{variational_gat_forward.9} parent=11 // pred_check
          %p369 = pneg %p205
        $region18: #{variational_gat_forward.9} parent=11 // pred_check_branch
          %371 = sbr.rel (%p369) target = $region20
        $region19: #{variational_gat_forward.9} parent=11 // pred_region
          _
        $region20: #{variational_gat_forward.9} parent=11 // pred_fallthru
          _
        // Predicated region
        $region21: #{variational_gat_forward.9} parent=11 // pred_check
          %p372 = pneg %p252
        $region22: #{variational_gat_forward.9} parent=11 // pred_check_branch
          %374 = sbr.rel (%p372) target = $region24
        $region23: #{variational_gat_forward.9} parent=11 // pred_region
          _
        $region24: #{variational_gat_forward.9} parent=11 // pred_fallthru
          _
        // Predicated region
        $region25: #{variational_gat_forward.9} parent=11 // pred_check
          %p375 = pneg %p273
        $region26: #{variational_gat_forward.9} parent=11 // pred_check_branch
          %377 = sbr.rel (%p375) target = $region28
        $region27: #{variational_gat_forward.9} parent=11 // pred_region
          _
        $region28: #{variational_gat_forward.9} parent=11 // pred_fallthru
          _
      $region12: #{variational_gat_forward.9} parent=5 // pred_fallthru
        _
      %p378 = scmp.lt.s32.totalorder %s19, 8
      // Predicated region
      $region29: #{variational_gat_forward.9} parent=5 // pred_check
        %p379 = pneg %p378
      $region30: #{variational_gat_forward.9} parent=5 // pred_check_branch
        %381 = sbr.rel (%p379) target = $region32
      $region31: #{variational_gat_forward.9} parent=5 // pred_region
        // Predicated region
        $region33: #{variational_gat_forward.9} parent=31 // pred_check
          %p382 = pneg %p51
        $region34: #{variational_gat_forward.9} parent=31 // pred_check_branch
          %384 = sbr.rel (%p382) target = $region36
        $region35: #{variational_gat_forward.9} parent=31 // pred_region
          %s385 = smul.u32 32, %s26
          %p386 = scmp.lt.s32.totalorder %s385, 63
          %s387 = scalar_select %p386, %s385, 63
          %s388 = smul.addr %s387, 8
          %s389 = scalar_lea.vmem %s0, %s388
          %s390 = smul.u32 32, %s26
        $region36: #{variational_gat_forward.9} parent=31 // pred_fallthru
          _
        // Predicated region
        $region37: #{variational_gat_forward.9} parent=31 // pred_check
          %p391 = pneg %p77
        $region38: #{variational_gat_forward.9} parent=31 // pred_check_branch
          %393 = sbr.rel (%p391) target = $region40
        $region39: #{variational_gat_forward.9} parent=31 // pred_region
          %p394 = scmp.lt.s32.totalorder %s27, 3
          %s395 = scalar_select %p394, %s27, 3
          %s396 = scalar_lea.vmem %s1, %s395
        $region40: #{variational_gat_forward.9} parent=31 // pred_fallthru
          _
        // Predicated region
        $region41: #{variational_gat_forward.9} parent=31 // pred_check
          %p397 = pneg %p103
        $region42: #{variational_gat_forward.9} parent=31 // pred_check_branch
          %399 = sbr.rel (%p397) target = $region44
        $region43: #{variational_gat_forward.9} parent=31 // pred_region
          %s400 = smul.u32 32, %s26
          %p401 = scmp.lt.s32.totalorder %s400, 63
          %s402 = scalar_select %p401, %s400, 63
          %s403 = smul.addr %s402, 8
          %s404 = scalar_lea.vmem %s2, %s403
          %s405 = smul.u32 32, %s26
        $region44: #{variational_gat_forward.9} parent=31 // pred_fallthru
          _
        // Predicated region
        $region45: #{variational_gat_forward.9} parent=31 // pred_check
          %p406 = pneg %p129
        $region46: #{variational_gat_forward.9} parent=31 // pred_check_branch
          %408 = sbr.rel (%p406) target = $region48
        $region47: #{variational_gat_forward.9} parent=31 // pred_region
          %p409 = scmp.lt.s32.totalorder %s27, 3
          %s410 = scalar_select %p409, %s27, 3
          %s411 = scalar_lea.vmem %s3, %s410
        $region48: #{variational_gat_forward.9} parent=31 // pred_fallthru
          _
        // Predicated region
        $region49: #{variational_gat_forward.9} parent=31 // pred_check
          %p412 = pneg %p157
        $region50: #{variational_gat_forward.9} parent=31 // pred_check_branch
          %414 = sbr.rel (%p412) target = $region52
        $region51: #{variational_gat_forward.9} parent=31 // pred_region
          %s415 = sand.u32 %s147, 1
          %s416 = sand.u32 %s147, 1
          %s417 = smul.addr %s416, 64
          %s418 = scalar_lea.vmem [#allocation8], %s417
          %s419 = smul.u32 8, %s26
          %s420 = smul.addr %s419, 4
          %s421 = sadd.s32 %s27, %s420
          %s422 = smul.addr %s421, 8
          %s423 = scalar_lea.vmem %s4, %s422
          // Predicated region
          $region53: #{variational_gat_forward.9} parent=51 // pred_check
            _
          $region54: #{variational_gat_forward.9} parent=51 // pred_check_branch
            %425 = sbr.rel (0) target = $region56
          $region55: #{variational_gat_forward.9} parent=51 // pred_region
            // Predicated region
            $region57: #{variational_gat_forward.9} parent=55 // pred_check
              _
            $region58: #{variational_gat_forward.9} parent=55 // pred_check_branch
              %427 = sbr.rel (0) target = $region60
            $region59: #{variational_gat_forward.9} parent=55 // pred_region
              // Predicated region
              $region72: #{variational_gat_forward.9} parent=59 // pred_check
                _
              $region73: #{variational_gat_forward.9} parent=59 // pred_check_branch
                %456 = sbr.rel (0) target = $region75
              $region74: #{variational_gat_forward.9} parent=59 // pred_region
                loop: start=0, step=1, limit=1
                $region76: #{variational_gat_forward.9} parent=74 // loop_pre_header
                  _
                $region77: #{variational_gat_forward.9} parent=74 // loop_header
                  %s458 = sphi 0, %s462
                  %p459 = scmp.ge.s32.totalorder %s458, 1
                  %s463 = sphi %s423, %s423
                  %s464 = sphi %s418, %s418
                $region78: #{variational_gat_forward.9} parent=74 // loop_header_branch
                  %461 = sbr.rel (%p459) target = $region82
                $region79: #{variational_gat_forward.9} parent=74 // loop_body
                  %v465 = vld [vmem:[%s463] sm:$0xff]
                  %466 = vst [vmem:[%s464] sm:$0xff] %v465
                  %v467 = vld [vmem:[%s463 + $0x20] sm:$0xff]
                  %468 = vst [vmem:[%s464 + $0x8] sm:$0xff] %v467
                  %v469 = vld [vmem:[%s463 + $0x40] sm:$0xff]
                  %470 = vst [vmem:[%s464 + $0x10] sm:$0xff] %v469
                  %v471 = vld [vmem:[%s463 + $0x60] sm:$0xff]
                  %472 = vst [vmem:[%s464 + $0x18] sm:$0xff] %v471
                  %v473 = vld [vmem:[%s463 + $0x80] sm:$0xff]
                  %474 = vst [vmem:[%s464 + $0x20] sm:$0xff] %v473
                  %v475 = vld [vmem:[%s463 + $0xa0] sm:$0xff]
                  %476 = vst [vmem:[%s464 + $0x28] sm:$0xff] %v475
                  %v477 = vld [vmem:[%s463 + $0xc0] sm:$0xff]
                  %478 = vst [vmem:[%s464 + $0x30] sm:$0xff] %v477
                  %v479 = vld [vmem:[%s463 + $0xe0] sm:$0xff]
                  %480 = vst [vmem:[%s464 + $0x38] sm:$0xff] %v479
                $region80: #{variational_gat_forward.9} parent=74 // loop_footer
                  %s462 = sadd.s32 1, %s458
                $region81: #{variational_gat_forward.9} parent=74 // loop_footer_branch
                  %457 = sbr.rel target = $region77
                $region82: #{variational_gat_forward.9} parent=74 // loop_exit
                  _
              $region75: #{variational_gat_forward.9} parent=59 // pred_fallthru
                _
              // Predicated region
              $region83: #{variational_gat_forward.9} parent=59 // pred_check
                _
              $region84: #{variational_gat_forward.9} parent=59 // pred_check_branch
                %482 = sbr.rel target = $region86
              $region85: #{variational_gat_forward.9} parent=59 // pred_region
                _
              $region86: #{variational_gat_forward.9} parent=59 // pred_fallthru
                _
            $region60: #{variational_gat_forward.9} parent=55 // pred_fallthru
              _
            // Predicated region
            $region61: #{variational_gat_forward.9} parent=55 // pred_check
              _
            $region62: #{variational_gat_forward.9} parent=55 // pred_check_branch
              %429 = sbr.rel target = $region64
            $region63: #{variational_gat_forward.9} parent=55 // pred_region
              loop: start=0, step=1, limit=1
              $region65: #{variational_gat_forward.9} parent=63 // loop_pre_header
                _
              $region66: #{variational_gat_forward.9} parent=63 // loop_header
                %s432 = sphi 0, %s436
                %p433 = scmp.ge.s32.totalorder %s432, 1
                %s437 = sphi %s423, %s423
                %s438 = sphi %s418, %s418
              $region67: #{variational_gat_forward.9} parent=63 // loop_header_branch
                %435 = sbr.rel (%p433) target = $region71
              $region68: #{variational_gat_forward.9} parent=63 // loop_body
                %v439 = vld [vmem:[%s437] sm:$0xff]
                %440 = vst [vmem:[%s438] sm:$0xff] %v439
                %v441 = vld [vmem:[%s437 + $0x20] sm:$0xff]
                %442 = vst [vmem:[%s438 + $0x8] sm:$0xff] %v441
                %v443 = vld [vmem:[%s437 + $0x40] sm:$0xff]
                %444 = vst [vmem:[%s438 + $0x10] sm:$0xff] %v443
                %v445 = vld [vmem:[%s437 + $0x60] sm:$0xff]
                %446 = vst [vmem:[%s438 + $0x18] sm:$0xff] %v445
                %v447 = vld [vmem:[%s437 + $0x80] sm:$0xff]
                %448 = vst [vmem:[%s438 + $0x20] sm:$0xff] %v447
                %v449 = vld [vmem:[%s437 + $0xa0] sm:$0xff]
                %450 = vst [vmem:[%s438 + $0x28] sm:$0xff] %v449
                %v451 = vld [vmem:[%s437 + $0xc0] sm:$0xff]
                %452 = vst [vmem:[%s438 + $0x30] sm:$0xff] %v451
                %v453 = vld [vmem:[%s437 + $0xe0] sm:$0xff]
                %454 = vst [vmem:[%s438 + $0x38] sm:$0xff] %v453
              $region69: #{variational_gat_forward.9} parent=63 // loop_footer
                %s436 = sadd.s32 1, %s432
              $region70: #{variational_gat_forward.9} parent=63 // loop_footer_branch
                %431 = sbr.rel target = $region66
              $region71: #{variational_gat_forward.9} parent=63 // loop_exit
                _
            $region64: #{variational_gat_forward.9} parent=55 // pred_fallthru
              _
          $region56: #{variational_gat_forward.9} parent=51 // pred_fallthru
            _
          %483 = vnop
        $region52: #{variational_gat_forward.9} parent=31 // pred_fallthru
          _
        // Predicated region
        $region87: #{variational_gat_forward.9} parent=31 // pred_check
          %p484 = pneg %p225
        $region88: #{variational_gat_forward.9} parent=31 // pred_check_branch
          %486 = sbr.rel (%p484) target = $region90
        $region89: #{variational_gat_forward.9} parent=31 // pred_region
          %s487 = smul.u32 32, %s26
          %p488 = scmp.lt.s32.totalorder %s487, 63
          %s489 = scalar_select %p488, %s487, 63
          %s490 = smul.addr %s489, 8
          %s491 = scalar_lea.vmem %s7, %s490
          %s492 = smul.u32 32, %s26
        $region90: #{variational_gat_forward.9} parent=31 // pred_fallthru
          _
      $region32: #{variational_gat_forward.9} parent=5 // pred_fallthru
        _
      %p493 = scmp.le.s32.totalorder 1, %s19
      %p494 = scmp.lt.s32.totalorder %s19, 9
      %p495 = pnand %p493, %p494
      %p496 = pneg %p495
      // Predicated region
      $region91: #{variational_gat_forward.9} parent=5 // pred_check
        _
      $region92: #{variational_gat_forward.9} parent=5 // pred_check_branch
        %498 = sbr.rel (%p495) target = $region94
      $region93: #{variational_gat_forward.9} parent=5 // pred_region
        %s499 = ssub.s32 %s19, 1
        %s500 = sand.u32 %s150, 1
        %s501 = sand.u32 %s150, 1
        %s502 = smul.addr %s501, 64
        %s503 = scalar_lea.vmem [#allocation8], %s502
        // Predicated region
        $region95: #{variational_gat_forward.9} parent=93 // pred_check
          %p504 = pneg %p163
        $region96: #{variational_gat_forward.9} parent=93 // pred_check_branch
          %506 = sbr.rel (%p504) target = $region98
        $region97: #{variational_gat_forward.9} parent=93 // pred_region
          _
        $region98: #{variational_gat_forward.9} parent=93 // pred_fallthru
          _
        %s507 = smul.u32 32, %s28
        %p508 = scmp.lt.s32.totalorder %s507, 63
        %s509 = scalar_select %p508, %s507, 63
        %s510 = smul.addr %s509, 8
        %s511 = scalar_lea.vmem %s0, %s510
        %p512 = pneg %p57
        %p513 = pneg %p54
        %p514 = scmp.lt.s32.totalorder %s29, 3
        %s515 = scalar_select %p514, %s29, 3
        %s516 = scalar_lea.vmem %s1, %s515
        %p517 = pneg %p83
        %p518 = pneg %p80
        %s519 = smul.u32 32, %s28
        %p520 = scmp.lt.s32.totalorder %s519, 63
        %s521 = scalar_select %p520, %s519, 63
        %s522 = smul.addr %s521, 8
        %s523 = scalar_lea.vmem %s2, %s522
        %p524 = pneg %p109
        %p525 = pneg %p106
        %p526 = scmp.lt.s32.totalorder %s29, 3
        %s527 = scalar_select %p526, %s29, 3
        %s528 = scalar_lea.vmem %s3, %s527
        %p529 = pneg %p135
        %p530 = pneg %p132
        %s531 = sand.u32 %s150, 1
        %s532 = sand.u32 %s150, 1
        %s533 = smul.addr %s532, 64
        %s534 = scalar_lea.vmem [#allocation8], %s533
        %p535 = pneg %p163
        %p536 = pneg %p160
        %p537 = pneg %p184
        %p538 = pneg %p181
        %p539 = pneg %p205
        %p540 = pneg %p202
        %s541 = smul.u32 32, %s28
        %p542 = scmp.lt.s32.totalorder %s541, 63
        %s543 = scalar_select %p542, %s541, 63
        %s544 = smul.addr %s543, 8
        %s545 = scalar_lea.vmem %s7, %s544
        %p546 = pneg %p231
        %p547 = pneg %p228
        %p548 = pneg %p252
        %p549 = pneg %p249
        %p550 = pneg %p273
        %p551 = pneg %p270
        %p552 = pneg %p299
        %p553 = pneg %p296
        %s554 = smul.u32 32, %s28
        %p555 = scmp.lt.s32.totalorder %s554, 63
        %s556 = scalar_select %p555, %s554, 63
        %s557 = smul.addr %s556, 8
        %s558 = scalar_lea.vmem %s10, %s557
        %p559 = pneg %p325
        %p560 = pneg %p322
        %s561 = smul.u32 32, %s28
        %p562 = scmp.lt.s32.totalorder %s561, 63
        %s563 = scalar_select %p562, %s561, 63
        %s564 = smul.addr %s563, 8
        %s565 = scalar_lea.vmem %s11, %s564
        %p566 = pneg %p351
        %p567 = pneg %p348
        %s568 = smul.u32 32, %s28
        %p569 = scmp.lt.s32.totalorder %s568, 63
        %s570 = scalar_select %p569, %s568, 63
        %s571 = smul.addr %s570, 8
        %s572 = scalar_lea.vmem %s12, %s571
        %s573 = smul.u32 32, %s28
        %p574 = scmp.lt.s32.totalorder %s573, 63
        %s575 = scalar_select %p574, %s573, 63
        %s576 = smul.addr %s575, 8
        %s577 = scalar_lea.vmem %s0, %s576
        %s578 = smul.u32 32, %s28
        %p579 = scmp.lt.s32.totalorder %s29, 3
        %s580 = scalar_select %p579, %s29, 3
        %s581 = scalar_lea.vmem %s1, %s580
        %s582 = smul.u32 32, %s28
        %p583 = scmp.lt.s32.totalorder %s582, 63
        %s584 = scalar_select %p583, %s582, 63
        %s585 = smul.addr %s584, 8
        %s586 = scalar_lea.vmem %s2, %s585
        %s587 = smul.u32 32, %s28
        %p588 = scmp.lt.s32.totalorder %s29, 3
        %s589 = scalar_select %p588, %s29, 3
        %s590 = scalar_lea.vmem %s3, %s589
        %s591 = smul.u32 8, %s28
        %s592 = smul.u32 32, %s28
        %p593 = scmp.lt.s32.totalorder %s592, 63
        %s594 = scalar_select %p593, %s592, 63
        %s595 = smul.addr %s594, 8
        %s596 = scalar_lea.vmem %s7, %s595
        %s597 = smul.u32 32, %s28
        %s598 = smul.u32 32, %s28
        %p599 = scmp.lt.s32.totalorder %s598, 63
        %s600 = scalar_select %p599, %s598, 63
        %s601 = smul.addr %s600, 8
        %s602 = scalar_lea.vmem %s10, %s601
        %s603 = smul.u32 32, %s28
        %s604 = smul.u32 32, %s28
        %p605 = scmp.lt.s32.totalorder %s604, 63
        %s606 = scalar_select %p605, %s604, 63
        %s607 = smul.addr %s606, 8
        %s608 = scalar_lea.vmem %s11, %s607
        %s609 = smul.u32 32, %s28
        %s610 = smul.u32 32, %s28
        %p611 = scmp.lt.s32.totalorder %s610, 63
        %s612 = scalar_select %p611, %s610, 63
        %s613 = smul.addr %s612, 8
        %s614 = scalar_lea.vmem %s12, %s613
        %s615 = smul.u32 32, %s28
        %p619 = scmp.eq.s32.totalorder %s29, 0
        // Predicated region
        $region99: #{variational_gat_forward.9} parent=93 // pred_check
          %p620 = pneg %p619
        $region100: #{variational_gat_forward.9} parent=93 // pred_check_branch
          %622 = sbr.rel (%p620) target = $region102
        $region101: #{variational_gat_forward.9} parent=93 // pred_region
          %vm623 = vcmask 7168
          %624 = vst.msk [vmem:[#allocation2] sm:$0xff] %vm623, -inf
          %625 = vst.msk [vmem:[#allocation2 + $0x8] sm:$0xff] %vm623, -inf
          %626 = vst.msk [vmem:[#allocation2 + $0x10] sm:$0xff] %vm623, -inf
          %627 = vst.msk [vmem:[#allocation2 + $0x18] sm:$0xff] %vm623, -inf
          %628 = vst.msk [vmem:[#allocation2 + $0x20] sm:$0xff] %vm623, -inf
          %629 = vst.msk [vmem:[#allocation2 + $0x28] sm:$0xff] %vm623, -inf
          %630 = vst.msk [vmem:[#allocation2 + $0x30] sm:$0xff] %vm623, -inf
          %631 = vst.msk [vmem:[#allocation2 + $0x38] sm:$0xff] %vm623, -inf
          %632 = vst.msk [vmem:[#allocation2 + $0x40] sm:$0xff] %vm623, -inf
          %633 = vst.msk [vmem:[#allocation2 + $0x48] sm:$0xff] %vm623, -inf
          %634 = vst.msk [vmem:[#allocation2 + $0x50] sm:$0xff] %vm623, -inf
          %635 = vst.msk [vmem:[#allocation2 + $0x58] sm:$0xff] %vm623, -inf
          %636 = vst.msk [vmem:[#allocation2 + $0x60] sm:$0xff] %vm623, -inf
          %637 = vst.msk [vmem:[#allocation2 + $0x68] sm:$0xff] %vm623, -inf
          %638 = vst.msk [vmem:[#allocation2 + $0x70] sm:$0xff] %vm623, -inf
          %639 = vst.msk [vmem:[#allocation2 + $0x78] sm:$0xff] %vm623, -inf
          %640 = vst.msk [vmem:[#allocation2 + $0x80] sm:$0xff] %vm623, -inf
          %641 = vst.msk [vmem:[#allocation2 + $0x88] sm:$0xff] %vm623, -inf
          %642 = vst.msk [vmem:[#allocation2 + $0x90] sm:$0xff] %vm623, -inf
          %643 = vst.msk [vmem:[#allocation2 + $0x98] sm:$0xff] %vm623, -inf
          %644 = vst.msk [vmem:[#allocation2 + $0xa0] sm:$0xff] %vm623, -inf
          %645 = vst.msk [vmem:[#allocation2 + $0xa8] sm:$0xff] %vm623, -inf
          %646 = vst.msk [vmem:[#allocation2 + $0xb0] sm:$0xff] %vm623, -inf
          %647 = vst.msk [vmem:[#allocation2 + $0xb8] sm:$0xff] %vm623, -inf
          %648 = vst.msk [vmem:[#allocation2 + $0xc0] sm:$0xff] %vm623, -inf
          %649 = vst.msk [vmem:[#allocation2 + $0xc8] sm:$0xff] %vm623, -inf
          %650 = vst.msk [vmem:[#allocation2 + $0xd0] sm:$0xff] %vm623, -inf
          %651 = vst.msk [vmem:[#allocation2 + $0xd8] sm:$0xff] %vm623, -inf
          %652 = vst.msk [vmem:[#allocation2 + $0xe0] sm:$0xff] %vm623, -inf
          %653 = vst.msk [vmem:[#allocation2 + $0xe8] sm:$0xff] %vm623, -inf
          %654 = vst.msk [vmem:[#allocation2 + $0xf0] sm:$0xff] %vm623, -inf
          %655 = vst.msk [vmem:[#allocation2 + $0xf8] sm:$0xff] %vm623, -inf
          %656 = vst.msk [vmem:[#allocation3] sm:$0xff] %vm623, 0.0
          %657 = vst.msk [vmem:[#allocation3 + $0x8] sm:$0xff] %vm623, 0.0
          %658 = vst.msk [vmem:[#allocation3 + $0x10] sm:$0xff] %vm623, 0.0
          %659 = vst.msk [vmem:[#allocation3 + $0x18] sm:$0xff] %vm623, 0.0
          %660 = vst.msk [vmem:[#allocation3 + $0x20] sm:$0xff] %vm623, 0.0
          %661 = vst.msk [vmem:[#allocation3 + $0x28] sm:$0xff] %vm623, 0.0
          %662 = vst.msk [vmem:[#allocation3 + $0x30] sm:$0xff] %vm623, 0.0
          %663 = vst.msk [vmem:[#allocation3 + $0x38] sm:$0xff] %vm623, 0.0
          %664 = vst.msk [vmem:[#allocation3 + $0x40] sm:$0xff] %vm623, 0.0
          %665 = vst.msk [vmem:[#allocation3 + $0x48] sm:$0xff] %vm623, 0.0
          %666 = vst.msk [vmem:[#allocation3 + $0x50] sm:$0xff] %vm623, 0.0
          %667 = vst.msk [vmem:[#allocation3 + $0x58] sm:$0xff] %vm623, 0.0
          %668 = vst.msk [vmem:[#allocation3 + $0x60] sm:$0xff] %vm623, 0.0
          %669 = vst.msk [vmem:[#allocation3 + $0x68] sm:$0xff] %vm623, 0.0
          %670 = vst.msk [vmem:[#allocation3 + $0x70] sm:$0xff] %vm623, 0.0
          %671 = vst.msk [vmem:[#allocation3 + $0x78] sm:$0xff] %vm623, 0.0
          %672 = vst.msk [vmem:[#allocation3 + $0x80] sm:$0xff] %vm623, 0.0
          %673 = vst.msk [vmem:[#allocation3 + $0x88] sm:$0xff] %vm623, 0.0
          %674 = vst.msk [vmem:[#allocation3 + $0x90] sm:$0xff] %vm623, 0.0
          %675 = vst.msk [vmem:[#allocation3 + $0x98] sm:$0xff] %vm623, 0.0
          %676 = vst.msk [vmem:[#allocation3 + $0xa0] sm:$0xff] %vm623, 0.0
          %677 = vst.msk [vmem:[#allocation3 + $0xa8] sm:$0xff] %vm623, 0.0
          %678 = vst.msk [vmem:[#allocation3 + $0xb0] sm:$0xff] %vm623, 0.0
          %679 = vst.msk [vmem:[#allocation3 + $0xb8] sm:$0xff] %vm623, 0.0
          %680 = vst.msk [vmem:[#allocation3 + $0xc0] sm:$0xff] %vm623, 0.0
          %681 = vst.msk [vmem:[#allocation3 + $0xc8] sm:$0xff] %vm623, 0.0
          %682 = vst.msk [vmem:[#allocation3 + $0xd0] sm:$0xff] %vm623, 0.0
          %683 = vst.msk [vmem:[#allocation3 + $0xd8] sm:$0xff] %vm623, 0.0
          %684 = vst.msk [vmem:[#allocation3 + $0xe0] sm:$0xff] %vm623, 0.0
          %685 = vst.msk [vmem:[#allocation3 + $0xe8] sm:$0xff] %vm623, 0.0
          %686 = vst.msk [vmem:[#allocation3 + $0xf0] sm:$0xff] %vm623, 0.0
          %687 = vst.msk [vmem:[#allocation3 + $0xf8] sm:$0xff] %vm623, 0.0
          %688 = vst [vmem:[#allocation4] sm:$0xff] 0.0
          %689 = vst [vmem:[#allocation4 + $0x8] sm:$0xff] 0.0
          %690 = vst [vmem:[#allocation4 + $0x10] sm:$0xff] 0.0
          %691 = vst [vmem:[#allocation4 + $0x18] sm:$0xff] 0.0
          %692 = vst [vmem:[#allocation4 + $0x20] sm:$0xff] 0.0
          %693 = vst [vmem:[#allocation4 + $0x28] sm:$0xff] 0.0
          %694 = vst [vmem:[#allocation4 + $0x30] sm:$0xff] 0.0
          %695 = vst [vmem:[#allocation4 + $0x38] sm:$0xff] 0.0
          %696 = vst [vmem:[#allocation4 + $0x40] sm:$0xff] 0.0
          %697 = vst [vmem:[#allocation4 + $0x48] sm:$0xff] 0.0
          %698 = vst [vmem:[#allocation4 + $0x50] sm:$0xff] 0.0
          %699 = vst [vmem:[#allocation4 + $0x58] sm:$0xff] 0.0
          %700 = vst [vmem:[#allocation4 + $0x60] sm:$0xff] 0.0
          %701 = vst [vmem:[#allocation4 + $0x68] sm:$0xff] 0.0
          %702 = vst [vmem:[#allocation4 + $0x70] sm:$0xff] 0.0
          %703 = vst [vmem:[#allocation4 + $0x78] sm:$0xff] 0.0
          %704 = vst [vmem:[#allocation4 + $0x80] sm:$0xff] 0.0
          %705 = vst [vmem:[#allocation4 + $0x88] sm:$0xff] 0.0
          %706 = vst [vmem:[#allocation4 + $0x90] sm:$0xff] 0.0
          %707 = vst [vmem:[#allocation4 + $0x98] sm:$0xff] 0.0
          %708 = vst [vmem:[#allocation4 + $0xa0] sm:$0xff] 0.0
          %709 = vst [vmem:[#allocation4 + $0xa8] sm:$0xff] 0.0
          %710 = vst [vmem:[#allocation4 + $0xb0] sm:$0xff] 0.0
          %711 = vst [vmem:[#allocation4 + $0xb8] sm:$0xff] 0.0
          %712 = vst [vmem:[#allocation4 + $0xc0] sm:$0xff] 0.0
          %713 = vst [vmem:[#allocation4 + $0xc8] sm:$0xff] 0.0
          %714 = vst [vmem:[#allocation4 + $0xd0] sm:$0xff] 0.0
          %715 = vst [vmem:[#allocation4 + $0xd8] sm:$0xff] 0.0
          %716 = vst [vmem:[#allocation4 + $0xe0] sm:$0xff] 0.0
          %717 = vst [vmem:[#allocation4 + $0xe8] sm:$0xff] 0.0
          %718 = vst [vmem:[#allocation4 + $0xf0] sm:$0xff] 0.0
          %719 = vst [vmem:[#allocation4 + $0xf8] sm:$0xff] 0.0
          %720 = vst.msk [vmem:[#allocation5] sm:$0xff] %vm623, -inf
          %721 = vst.msk [vmem:[#allocation5 + $0x8] sm:$0xff] %vm623, -inf
          %722 = vst.msk [vmem:[#allocation5 + $0x10] sm:$0xff] %vm623, -inf
          %723 = vst.msk [vmem:[#allocation5 + $0x18] sm:$0xff] %vm623, -inf
          %724 = vst.msk [vmem:[#allocation5 + $0x20] sm:$0xff] %vm623, -inf
          %725 = vst.msk [vmem:[#allocation5 + $0x28] sm:$0xff] %vm623, -inf
          %726 = vst.msk [vmem:[#allocation5 + $0x30] sm:$0xff] %vm623, -inf
          %727 = vst.msk [vmem:[#allocation5 + $0x38] sm:$0xff] %vm623, -inf
          %728 = vst.msk [vmem:[#allocation5 + $0x40] sm:$0xff] %vm623, -inf
          %729 = vst.msk [vmem:[#allocation5 + $0x48] sm:$0xff] %vm623, -inf
          %730 = vst.msk [vmem:[#allocation5 + $0x50] sm:$0xff] %vm623, -inf
          %731 = vst.msk [vmem:[#allocation5 + $0x58] sm:$0xff] %vm623, -inf
          %732 = vst.msk [vmem:[#allocation5 + $0x60] sm:$0xff] %vm623, -inf
          %733 = vst.msk [vmem:[#allocation5 + $0x68] sm:$0xff] %vm623, -inf
          %734 = vst.msk [vmem:[#allocation5 + $0x70] sm:$0xff] %vm623, -inf
          %735 = vst.msk [vmem:[#allocation5 + $0x78] sm:$0xff] %vm623, -inf
          %736 = vst.msk [vmem:[#allocation5 + $0x80] sm:$0xff] %vm623, -inf
          %737 = vst.msk [vmem:[#allocation5 + $0x88] sm:$0xff] %vm623, -inf
          %738 = vst.msk [vmem:[#allocation5 + $0x90] sm:$0xff] %vm623, -inf
          %739 = vst.msk [vmem:[#allocation5 + $0x98] sm:$0xff] %vm623, -inf
          %740 = vst.msk [vmem:[#allocation5 + $0xa0] sm:$0xff] %vm623, -inf
          %741 = vst.msk [vmem:[#allocation5 + $0xa8] sm:$0xff] %vm623, -inf
          %742 = vst.msk [vmem:[#allocation5 + $0xb0] sm:$0xff] %vm623, -inf
          %743 = vst.msk [vmem:[#allocation5 + $0xb8] sm:$0xff] %vm623, -inf
          %744 = vst.msk [vmem:[#allocation5 + $0xc0] sm:$0xff] %vm623, -inf
          %745 = vst.msk [vmem:[#allocation5 + $0xc8] sm:$0xff] %vm623, -inf
          %746 = vst.msk [vmem:[#allocation5 + $0xd0] sm:$0xff] %vm623, -inf
          %747 = vst.msk [vmem:[#allocation5 + $0xd8] sm:$0xff] %vm623, -inf
          %748 = vst.msk [vmem:[#allocation5 + $0xe0] sm:$0xff] %vm623, -inf
          %749 = vst.msk [vmem:[#allocation5 + $0xe8] sm:$0xff] %vm623, -inf
          %750 = vst.msk [vmem:[#allocation5 + $0xf0] sm:$0xff] %vm623, -inf
          %751 = vst.msk [vmem:[#allocation5 + $0xf8] sm:$0xff] %vm623, -inf
          %752 = vst.msk [vmem:[#allocation6] sm:$0xff] %vm623, 0.0
          %753 = vst.msk [vmem:[#allocation6 + $0x8] sm:$0xff] %vm623, 0.0
          %754 = vst.msk [vmem:[#allocation6 + $0x10] sm:$0xff] %vm623, 0.0
          %755 = vst.msk [vmem:[#allocation6 + $0x18] sm:$0xff] %vm623, 0.0
          %756 = vst.msk [vmem:[#allocation6 + $0x20] sm:$0xff] %vm623, 0.0
          %757 = vst.msk [vmem:[#allocation6 + $0x28] sm:$0xff] %vm623, 0.0
          %758 = vst.msk [vmem:[#allocation6 + $0x30] sm:$0xff] %vm623, 0.0
          %759 = vst.msk [vmem:[#allocation6 + $0x38] sm:$0xff] %vm623, 0.0
          %760 = vst.msk [vmem:[#allocation6 + $0x40] sm:$0xff] %vm623, 0.0
          %761 = vst.msk [vmem:[#allocation6 + $0x48] sm:$0xff] %vm623, 0.0
          %762 = vst.msk [vmem:[#allocation6 + $0x50] sm:$0xff] %vm623, 0.0
          %763 = vst.msk [vmem:[#allocation6 + $0x58] sm:$0xff] %vm623, 0.0
          %764 = vst.msk [vmem:[#allocation6 + $0x60] sm:$0xff] %vm623, 0.0
          %765 = vst.msk [vmem:[#allocation6 + $0x68] sm:$0xff] %vm623, 0.0
          %766 = vst.msk [vmem:[#allocation6 + $0x70] sm:$0xff] %vm623, 0.0
          %767 = vst.msk [vmem:[#allocation6 + $0x78] sm:$0xff] %vm623, 0.0
          %768 = vst.msk [vmem:[#allocation6 + $0x80] sm:$0xff] %vm623, 0.0
          %769 = vst.msk [vmem:[#allocation6 + $0x88] sm:$0xff] %vm623, 0.0
          %770 = vst.msk [vmem:[#allocation6 + $0x90] sm:$0xff] %vm623, 0.0
          %771 = vst.msk [vmem:[#allocation6 + $0x98] sm:$0xff] %vm623, 0.0
          %772 = vst.msk [vmem:[#allocation6 + $0xa0] sm:$0xff] %vm623, 0.0
          %773 = vst.msk [vmem:[#allocation6 + $0xa8] sm:$0xff] %vm623, 0.0
          %774 = vst.msk [vmem:[#allocation6 + $0xb0] sm:$0xff] %vm623, 0.0
          %775 = vst.msk [vmem:[#allocation6 + $0xb8] sm:$0xff] %vm623, 0.0
          %776 = vst.msk [vmem:[#allocation6 + $0xc0] sm:$0xff] %vm623, 0.0
          %777 = vst.msk [vmem:[#allocation6 + $0xc8] sm:$0xff] %vm623, 0.0
          %778 = vst.msk [vmem:[#allocation6 + $0xd0] sm:$0xff] %vm623, 0.0
          %779 = vst.msk [vmem:[#allocation6 + $0xd8] sm:$0xff] %vm623, 0.0
          %780 = vst.msk [vmem:[#allocation6 + $0xe0] sm:$0xff] %vm623, 0.0
          %781 = vst.msk [vmem:[#allocation6 + $0xe8] sm:$0xff] %vm623, 0.0
          %782 = vst.msk [vmem:[#allocation6 + $0xf0] sm:$0xff] %vm623, 0.0
          %783 = vst.msk [vmem:[#allocation6 + $0xf8] sm:$0xff] %vm623, 0.0
          %784 = vst [vmem:[#allocation7] sm:$0xff] 0.0
          %785 = vst [vmem:[#allocation7 + $0x8] sm:$0xff] 0.0
          %786 = vst [vmem:[#allocation7 + $0x10] sm:$0xff] 0.0
          %787 = vst [vmem:[#allocation7 + $0x18] sm:$0xff] 0.0
          %788 = vst [vmem:[#allocation7 + $0x20] sm:$0xff] 0.0
          %789 = vst [vmem:[#allocation7 + $0x28] sm:$0xff] 0.0
          %790 = vst [vmem:[#allocation7 + $0x30] sm:$0xff] 0.0
          %791 = vst [vmem:[#allocation7 + $0x38] sm:$0xff] 0.0
          %792 = vst [vmem:[#allocation7 + $0x40] sm:$0xff] 0.0
          %793 = vst [vmem:[#allocation7 + $0x48] sm:$0xff] 0.0
          %794 = vst [vmem:[#allocation7 + $0x50] sm:$0xff] 0.0
          %795 = vst [vmem:[#allocation7 + $0x58] sm:$0xff] 0.0
          %796 = vst [vmem:[#allocation7 + $0x60] sm:$0xff] 0.0
          %797 = vst [vmem:[#allocation7 + $0x68] sm:$0xff] 0.0
          %798 = vst [vmem:[#allocation7 + $0x70] sm:$0xff] 0.0
          %799 = vst [vmem:[#allocation7 + $0x78] sm:$0xff] 0.0
          %800 = vst [vmem:[#allocation7 + $0x80] sm:$0xff] 0.0
          %801 = vst [vmem:[#allocation7 + $0x88] sm:$0xff] 0.0
          %802 = vst [vmem:[#allocation7 + $0x90] sm:$0xff] 0.0
          %803 = vst [vmem:[#allocation7 + $0x98] sm:$0xff] 0.0
          %804 = vst [vmem:[#allocation7 + $0xa0] sm:$0xff] 0.0
          %805 = vst [vmem:[#allocation7 + $0xa8] sm:$0xff] 0.0
          %806 = vst [vmem:[#allocation7 + $0xb0] sm:$0xff] 0.0
          %807 = vst [vmem:[#allocation7 + $0xb8] sm:$0xff] 0.0
          %808 = vst [vmem:[#allocation7 + $0xc0] sm:$0xff] 0.0
          %809 = vst [vmem:[#allocation7 + $0xc8] sm:$0xff] 0.0
          %810 = vst [vmem:[#allocation7 + $0xd0] sm:$0xff] 0.0
          %811 = vst [vmem:[#allocation7 + $0xd8] sm:$0xff] 0.0
          %812 = vst [vmem:[#allocation7 + $0xe0] sm:$0xff] 0.0
          %813 = vst [vmem:[#allocation7 + $0xe8] sm:$0xff] 0.0
          %814 = vst [vmem:[#allocation7 + $0xf0] sm:$0xff] 0.0
          %815 = vst [vmem:[#allocation7 + $0xf8] sm:$0xff] 0.0
        $region102: #{variational_gat_forward.9} parent=93 // pred_fallthru
          _
        %v816 = vld [vmem:[%s503] sm:$0xff]
        %v817 = vld [vmem:[%s503 + $0x8] sm:$0xff]
        %v818 = vld [vmem:[%s503 + $0x10] sm:$0xff]
        %v819 = vld [vmem:[%s503 + $0x18] sm:$0xff]
        %v820 = vld [vmem:[%s503 + $0x20] sm:$0xff]
        %v821 = vld [vmem:[%s503 + $0x28] sm:$0xff]
        %v822 = vld [vmem:[%s503 + $0x30] sm:$0xff]
        %v823 = vld [vmem:[%s503 + $0x38] sm:$0xff]
        %vm824 = vnez %v816
        %vm825 = vnez %v817
        %vm826 = vnez %v818
        %vm827 = vnez %v819
        %vm828 = vnez %v820
        %vm829 = vnez %v821
        %vm830 = vnez %v822
        %vm831 = vnez %v823
        %s832 = smul.u32 %s29, 128
        %v833 = vld [vmem:[%s577] sm:$0xff]
        %v834 = vld [vmem:[%s577 + $0x8] sm:$0xff]
        %v835 = vld [vmem:[%s577 + $0x10] sm:$0xff]
        %v836 = vld [vmem:[%s577 + $0x18] sm:$0xff]
        %v837 = vld [vmem:[%s577 + $0x20] sm:$0xff]
        %v838 = vld [vmem:[%s577 + $0x28] sm:$0xff]
        %v839 = vld [vmem:[%s577 + $0x30] sm:$0xff]
        %v840 = vld [vmem:[%s577 + $0x38] sm:$0xff]
        %v841 = vld [vmem:[%s577 + $0x40] sm:$0xff]
        %v842 = vld [vmem:[%s577 + $0x48] sm:$0xff]
        %v843 = vld [vmem:[%s577 + $0x50] sm:$0xff]
        %v844 = vld [vmem:[%s577 + $0x58] sm:$0xff]
        %v845 = vld [vmem:[%s577 + $0x60] sm:$0xff]
        %v846 = vld [vmem:[%s577 + $0x68] sm:$0xff]
        %v847 = vld [vmem:[%s577 + $0x70] sm:$0xff]
        %v848 = vld [vmem:[%s577 + $0x78] sm:$0xff]
        %v849 = vld [vmem:[%s577 + $0x80] sm:$0xff]
        %v850 = vld [vmem:[%s577 + $0x88] sm:$0xff]
        %v851 = vld [vmem:[%s577 + $0x90] sm:$0xff]
        %v852 = vld [vmem:[%s577 + $0x98] sm:$0xff]
        %v853 = vld [vmem:[%s577 + $0xa0] sm:$0xff]
        %v854 = vld [vmem:[%s577 + $0xa8] sm:$0xff]
        %v855 = vld [vmem:[%s577 + $0xb0] sm:$0xff]
        %v856 = vld [vmem:[%s577 + $0xb8] sm:$0xff]
        %v857 = vld [vmem:[%s577 + $0xc0] sm:$0xff]
        %v858 = vld [vmem:[%s577 + $0xc8] sm:$0xff]
        %v859 = vld [vmem:[%s577 + $0xd0] sm:$0xff]
        %v860 = vld [vmem:[%s577 + $0xd8] sm:$0xff]
        %v861 = vld [vmem:[%s577 + $0xe0] sm:$0xff]
        %v862 = vld [vmem:[%s577 + $0xe8] sm:$0xff]
        %v863 = vld [vmem:[%s577 + $0xf0] sm:$0xff]
        %v864 = vld [vmem:[%s577 + $0xf8] sm:$0xff]
        %v865 = vld [vmem:[%s581] sm:$0x1]
        %867 = vset.pattern.permute.xlu0 0
        %868 = vperm.xlu0 %867, %v833
        %v869 = vpop.permute.xlu0 %868
        %872 = vset.pattern.permute.xlu0 0
        %873 = vperm.xlu0 %872, %v834
        %v874 = vpop.permute.xlu0 %873
        %877 = vset.pattern.permute.xlu0 0
        %878 = vperm.xlu0 %877, %v835
        %v879 = vpop.permute.xlu0 %878
        %882 = vset.pattern.permute.xlu0 0
        %883 = vperm.xlu0 %882, %v836
        %v884 = vpop.permute.xlu0 %883
        %887 = vset.pattern.permute.xlu0 0
        %888 = vperm.xlu0 %887, %v837
        %v889 = vpop.permute.xlu0 %888
        %892 = vset.pattern.permute.xlu0 0
        %893 = vperm.xlu0 %892, %v838
        %v894 = vpop.permute.xlu0 %893
        %897 = vset.pattern.permute.xlu0 0
        %898 = vperm.xlu0 %897, %v839
        %v899 = vpop.permute.xlu0 %898
        %902 = vset.pattern.permute.xlu0 0
        %903 = vperm.xlu0 %902, %v840
        %v904 = vpop.permute.xlu0 %903
        %907 = vset.pattern.permute.xlu0 0
        %908 = vperm.xlu0 %907, %v841
        %v909 = vpop.permute.xlu0 %908
        %912 = vset.pattern.permute.xlu0 0
        %913 = vperm.xlu0 %912, %v842
        %v914 = vpop.permute.xlu0 %913
        %917 = vset.pattern.permute.xlu0 0
        %918 = vperm.xlu0 %917, %v843
        %v919 = vpop.permute.xlu0 %918
        %922 = vset.pattern.permute.xlu0 0
        %923 = vperm.xlu0 %922, %v844
        %v924 = vpop.permute.xlu0 %923
        %927 = vset.pattern.permute.xlu0 0
        %928 = vperm.xlu0 %927, %v845
        %v929 = vpop.permute.xlu0 %928
        %932 = vset.pattern.permute.xlu0 0
        %933 = vperm.xlu0 %932, %v846
        %v934 = vpop.permute.xlu0 %933
        %937 = vset.pattern.permute.xlu0 0
        %938 = vperm.xlu0 %937, %v847
        %v939 = vpop.permute.xlu0 %938
        %942 = vset.pattern.permute.xlu0 0
        %943 = vperm.xlu0 %942, %v848
        %v944 = vpop.permute.xlu0 %943
        %947 = vset.pattern.permute.xlu0 0
        %948 = vperm.xlu0 %947, %v849
        %v949 = vpop.permute.xlu0 %948
        %952 = vset.pattern.permute.xlu0 0
        %953 = vperm.xlu0 %952, %v850
        %v954 = vpop.permute.xlu0 %953
        %957 = vset.pattern.permute.xlu0 0
        %958 = vperm.xlu0 %957, %v851
        %v959 = vpop.permute.xlu0 %958
        %962 = vset.pattern.permute.xlu0 0
        %963 = vperm.xlu0 %962, %v852
        %v964 = vpop.permute.xlu0 %963
        %967 = vset.pattern.permute.xlu0 0
        %968 = vperm.xlu0 %967, %v853
        %v969 = vpop.permute.xlu0 %968
        %972 = vset.pattern.permute.xlu0 0
        %973 = vperm.xlu0 %972, %v854
        %v974 = vpop.permute.xlu0 %973
        %977 = vset.pattern.permute.xlu0 0
        %978 = vperm.xlu0 %977, %v855
        %v979 = vpop.permute.xlu0 %978
        %982 = vset.pattern.permute.xlu0 0
        %983 = vperm.xlu0 %982, %v856
        %v984 = vpop.permute.xlu0 %983
        %987 = vset.pattern.permute.xlu0 0
        %988 = vperm.xlu0 %987, %v857
        %v989 = vpop.permute.xlu0 %988
        %992 = vset.pattern.permute.xlu0 0
        %993 = vperm.xlu0 %992, %v858
        %v994 = vpop.permute.xlu0 %993
        %997 = vset.pattern.permute.xlu0 0
        %998 = vperm.xlu0 %997, %v859
        %v999 = vpop.permute.xlu0 %998
        %1002 = vset.pattern.permute.xlu0 0
        %1003 = vperm.xlu0 %1002, %v860
        %v1004 = vpop.permute.xlu0 %1003
        %1007 = vset.pattern.permute.xlu0 0
        %1008 = vperm.xlu0 %1007, %v861
        %v1009 = vpop.permute.xlu0 %1008
        %1012 = vset.pattern.permute.xlu0 0
        %1013 = vperm.xlu0 %1012, %v862
        %v1014 = vpop.permute.xlu0 %1013
        %1017 = vset.pattern.permute.xlu0 0
        %1018 = vperm.xlu0 %1017, %v863
        %v1019 = vpop.permute.xlu0 %1018
        %1022 = vset.pattern.permute.xlu0 0
        %1023 = vperm.xlu0 %1022, %v864
        %v1024 = vpop.permute.xlu0 %1023
        %v1027 = vlaneseq
        %v1028 = vshrl.u32 %v1027, 7
        %v1029 = vsub.s32 0, %v1028
        %v1030 = vrot.slane %v865, %v1029
        %v1032 = vadd.f32 %v869, %v1030
        %v1033 = vadd.f32 %v874, %v1030
        %v1034 = vadd.f32 %v879, %v1030
        %v1035 = vadd.f32 %v884, %v1030
        %v1036 = vadd.f32 %v889, %v1030
        %v1037 = vadd.f32 %v894, %v1030
        %v1038 = vadd.f32 %v899, %v1030
        %v1039 = vadd.f32 %v904, %v1030
        %v1040 = vadd.f32 %v909, %v1030
        %v1041 = vadd.f32 %v914, %v1030
        %v1042 = vadd.f32 %v919, %v1030
        %v1043 = vadd.f32 %v924, %v1030
        %v1044 = vadd.f32 %v929, %v1030
        %v1045 = vadd.f32 %v934, %v1030
        %v1046 = vadd.f32 %v939, %v1030
        %v1047 = vadd.f32 %v944, %v1030
        %v1048 = vadd.f32 %v949, %v1030
        %v1049 = vadd.f32 %v954, %v1030
        %v1050 = vadd.f32 %v959, %v1030
        %v1051 = vadd.f32 %v964, %v1030
        %v1052 = vadd.f32 %v969, %v1030
        %v1053 = vadd.f32 %v974, %v1030
        %v1054 = vadd.f32 %v979, %v1030
        %v1055 = vadd.f32 %v984, %v1030
        %v1056 = vadd.f32 %v989, %v1030
        %v1057 = vadd.f32 %v994, %v1030
        %v1058 = vadd.f32 %v999, %v1030
        %v1059 = vadd.f32 %v1004, %v1030
        %v1060 = vadd.f32 %v1009, %v1030
        %v1061 = vadd.f32 %v1014, %v1030
        %v1062 = vadd.f32 %v1019, %v1030
        %v1063 = vadd.f32 %v1024, %v1030
        %v1064 = vmul.f32 %v1032, 0.2
        %v1065 = vmul.f32 %v1033, 0.2
        %v1066 = vmul.f32 %v1034, 0.2
        %v1067 = vmul.f32 %v1035, 0.2
        %v1068 = vmul.f32 %v1036, 0.2
        %v1069 = vmul.f32 %v1037, 0.2
        %v1070 = vmul.f32 %v1038, 0.2
        %v1071 = vmul.f32 %v1039, 0.2
        %v1072 = vmul.f32 %v1040, 0.2
        %v1073 = vmul.f32 %v1041, 0.2
        %v1074 = vmul.f32 %v1042, 0.2
        %v1075 = vmul.f32 %v1043, 0.2
        %v1076 = vmul.f32 %v1044, 0.2
        %v1077 = vmul.f32 %v1045, 0.2
        %v1078 = vmul.f32 %v1046, 0.2
        %v1079 = vmul.f32 %v1047, 0.2
        %v1080 = vmul.f32 %v1048, 0.2
        %v1081 = vmul.f32 %v1049, 0.2
        %v1082 = vmul.f32 %v1050, 0.2
        %v1083 = vmul.f32 %v1051, 0.2
        %v1084 = vmul.f32 %v1052, 0.2
        %v1085 = vmul.f32 %v1053, 0.2
        %v1086 = vmul.f32 %v1054, 0.2
        %v1087 = vmul.f32 %v1055, 0.2
        %v1088 = vmul.f32 %v1056, 0.2
        %v1089 = vmul.f32 %v1057, 0.2
        %v1090 = vmul.f32 %v1058, 0.2
        %v1091 = vmul.f32 %v1059, 0.2
        %v1092 = vmul.f32 %v1060, 0.2
        %v1093 = vmul.f32 %v1061, 0.2
        %v1094 = vmul.f32 %v1062, 0.2
        %v1095 = vmul.f32 %v1063, 0.2
        %v1096 = vmax.f32 %v1032, %v1064
        %v1097 = vmax.f32 %v1033, %v1065
        %v1098 = vmax.f32 %v1034, %v1066
        %v1099 = vmax.f32 %v1035, %v1067
        %v1100 = vmax.f32 %v1036, %v1068
        %v1101 = vmax.f32 %v1037, %v1069
        %v1102 = vmax.f32 %v1038, %v1070
        %v1103 = vmax.f32 %v1039, %v1071
        %v1104 = vmax.f32 %v1040, %v1072
        %v1105 = vmax.f32 %v1041, %v1073
        %v1106 = vmax.f32 %v1042, %v1074
        %v1107 = vmax.f32 %v1043, %v1075
        %v1108 = vmax.f32 %v1044, %v1076
        %v1109 = vmax.f32 %v1045, %v1077
        %v1110 = vmax.f32 %v1046, %v1078
        %v1111 = vmax.f32 %v1047, %v1079
        %v1112 = vmax.f32 %v1048, %v1080
        %v1113 = vmax.f32 %v1049, %v1081
        %v1114 = vmax.f32 %v1050, %v1082
        %v1115 = vmax.f32 %v1051, %v1083
        %v1116 = vmax.f32 %v1052, %v1084
        %v1117 = vmax.f32 %v1053, %v1085
        %v1118 = vmax.f32 %v1054, %v1086
        %v1119 = vmax.f32 %v1055, %v1087
        %v1120 = vmax.f32 %v1056, %v1088
        %v1121 = vmax.f32 %v1057, %v1089
        %v1122 = vmax.f32 %v1058, %v1090
        %v1123 = vmax.f32 %v1059, %v1091
        %v1124 = vmax.f32 %v1060, %v1092
        %v1125 = vmax.f32 %v1061, %v1093
        %v1126 = vmax.f32 %v1062, %v1094
        %v1127 = vmax.f32 %v1063, %v1095
        %v1128 = vsel %vm824, 16843009, 0
        %v1129 = vsel %vm825, 16843009, 0
        %v1130 = vsel %vm826, 16843009, 0
        %v1131 = vsel %vm827, 16843009, 0
        %v1132 = vsel %vm828, 16843009, 0
        %v1133 = vsel %vm829, 16843009, 0
        %v1134 = vsel %vm830, 16843009, 0
        %v1135 = vsel %vm831, 16843009, 0
        %v1136 = vunpack.c.0.s8 %v1128
        %v1137 = vunpack.c.1.s8 %v1128
        %v1138 = vunpack.c.2.s8 %v1128
        %v1139 = vunpack.c.3.s8 %v1128
        %v1140 = vunpack.c.0.s8 %v1129
        %v1141 = vunpack.c.1.s8 %v1129
        %v1142 = vunpack.c.2.s8 %v1129
        %v1143 = vunpack.c.3.s8 %v1129
        %v1144 = vunpack.c.0.s8 %v1130
        %v1145 = vunpack.c.1.s8 %v1130
        %v1146 = vunpack.c.2.s8 %v1130
        %v1147 = vunpack.c.3.s8 %v1130
        %v1148 = vunpack.c.0.s8 %v1131
        %v1149 = vunpack.c.1.s8 %v1131
        %v1150 = vunpack.c.2.s8 %v1131
        %v1151 = vunpack.c.3.s8 %v1131
        %v1152 = vunpack.c.0.s8 %v1132
        %v1153 = vunpack.c.1.s8 %v1132
        %v1154 = vunpack.c.2.s8 %v1132
        %v1155 = vunpack.c.3.s8 %v1132
        %v1156 = vunpack.c.0.s8 %v1133
        %v1157 = vunpack.c.1.s8 %v1133
        %v1158 = vunpack.c.2.s8 %v1133
        %v1159 = vunpack.c.3.s8 %v1133
        %v1160 = vunpack.c.0.s8 %v1134
        %v1161 = vunpack.c.1.s8 %v1134
        %v1162 = vunpack.c.2.s8 %v1134
        %v1163 = vunpack.c.3.s8 %v1134
        %v1164 = vunpack.c.0.s8 %v1135
        %v1165 = vunpack.c.1.s8 %v1135
        %v1166 = vunpack.c.2.s8 %v1135
        %v1167 = vunpack.c.3.s8 %v1135
        %v1168 = vpack.c.b16 %v1136, %v1136
        %v1169 = vpack.c.b8 %v1168, %v1168
        %v1170 = vpack.c.b16 %v1137, %v1137
        %v1171 = vpack.c.b8 %v1170, %v1170
        %v1172 = vpack.c.b16 %v1138, %v1138
        %v1173 = vpack.c.b8 %v1172, %v1172
        %v1174 = vpack.c.b16 %v1139, %v1139
        %v1175 = vpack.c.b8 %v1174, %v1174
        %v1176 = vpack.c.b16 %v1140, %v1140
        %v1177 = vpack.c.b8 %v1176, %v1176
        %v1178 = vpack.c.b16 %v1141, %v1141
        %v1179 = vpack.c.b8 %v1178, %v1178
        %v1180 = vpack.c.b16 %v1142, %v1142
        %v1181 = vpack.c.b8 %v1180, %v1180
        %v1182 = vpack.c.b16 %v1143, %v1143
        %v1183 = vpack.c.b8 %v1182, %v1182
        %v1184 = vpack.c.b16 %v1144, %v1144
        %v1185 = vpack.c.b8 %v1184, %v1184
        %v1186 = vpack.c.b16 %v1145, %v1145
        %v1187 = vpack.c.b8 %v1186, %v1186
        %v1188 = vpack.c.b16 %v1146, %v1146
        %v1189 = vpack.c.b8 %v1188, %v1188
        %v1190 = vpack.c.b16 %v1147, %v1147
        %v1191 = vpack.c.b8 %v1190, %v1190
        %v1192 = vpack.c.b16 %v1148, %v1148
        %v1193 = vpack.c.b8 %v1192, %v1192
        %v1194 = vpack.c.b16 %v1149, %v1149
        %v1195 = vpack.c.b8 %v1194, %v1194
        %v1196 = vpack.c.b16 %v1150, %v1150
        %v1197 = vpack.c.b8 %v1196, %v1196
        %v1198 = vpack.c.b16 %v1151, %v1151
        %v1199 = vpack.c.b8 %v1198, %v1198
        %v1200 = vpack.c.b16 %v1152, %v1152
        %v1201 = vpack.c.b8 %v1200, %v1200
        %v1202 = vpack.c.b16 %v1153, %v1153
        %v1203 = vpack.c.b8 %v1202, %v1202
        %v1204 = vpack.c.b16 %v1154, %v1154
        %v1205 = vpack.c.b8 %v1204, %v1204
        %v1206 = vpack.c.b16 %v1155, %v1155
        %v1207 = vpack.c.b8 %v1206, %v1206
        %v1208 = vpack.c.b16 %v1156, %v1156
        %v1209 = vpack.c.b8 %v1208, %v1208
        %v1210 = vpack.c.b16 %v1157, %v1157
        %v1211 = vpack.c.b8 %v1210, %v1210
        %v1212 = vpack.c.b16 %v1158, %v1158
        %v1213 = vpack.c.b8 %v1212, %v1212
        %v1214 = vpack.c.b16 %v1159, %v1159
        %v1215 = vpack.c.b8 %v1214, %v1214
        %v1216 = vpack.c.b16 %v1160, %v1160
        %v1217 = vpack.c.b8 %v1216, %v1216
        %v1218 = vpack.c.b16 %v1161, %v1161
        %v1219 = vpack.c.b8 %v1218, %v1218
        %v1220 = vpack.c.b16 %v1162, %v1162
        %v1221 = vpack.c.b8 %v1220, %v1220
        %v1222 = vpack.c.b16 %v1163, %v1163
        %v1223 = vpack.c.b8 %v1222, %v1222
        %v1224 = vpack.c.b16 %v1164, %v1164
        %v1225 = vpack.c.b8 %v1224, %v1224
        %v1226 = vpack.c.b16 %v1165, %v1165
        %v1227 = vpack.c.b8 %v1226, %v1226
        %v1228 = vpack.c.b16 %v1166, %v1166
        %v1229 = vpack.c.b8 %v1228, %v1228
        %v1230 = vpack.c.b16 %v1167, %v1167
        %v1231 = vpack.c.b8 %v1230, %v1230
        %vm1232 = vnez %v1169
        %vm1233 = vnez %v1171
        %vm1234 = vnez %v1173
        %vm1235 = vnez %v1175
        %vm1236 = vnez %v1177
        %vm1237 = vnez %v1179
        %vm1238 = vnez %v1181
        %vm1239 = vnez %v1183
        %vm1240 = vnez %v1185
        %vm1241 = vnez %v1187
        %vm1242 = vnez %v1189
        %vm1243 = vnez %v1191
        %vm1244 = vnez %v1193
        %vm1245 = vnez %v1195
        %vm1246 = vnez %v1197
        %vm1247 = vnez %v1199
        %vm1248 = vnez %v1201
        %vm1249 = vnez %v1203
        %vm1250 = vnez %v1205
        %vm1251 = vnez %v1207
        %vm1252 = vnez %v1209
        %vm1253 = vnez %v1211
        %vm1254 = vnez %v1213
        %vm1255 = vnez %v1215
        %vm1256 = vnez %v1217
        %vm1257 = vnez %v1219
        %vm1258 = vnez %v1221
        %vm1259 = vnez %v1223
        %vm1260 = vnez %v1225
        %vm1261 = vnez %v1227
        %vm1262 = vnez %v1229
        %vm1263 = vnez %v1231
        %v1264 = vsel %vm1232, 16843009, 0
        %v1265 = vsel %vm1233, 16843009, 0
        %v1266 = vsel %vm1234, 16843009, 0
        %v1267 = vsel %vm1235, 16843009, 0
        %v1268 = vsel %vm1236, 16843009, 0
        %v1269 = vsel %vm1237, 16843009, 0
        %v1270 = vsel %vm1238, 16843009, 0
        %v1271 = vsel %vm1239, 16843009, 0
        %v1272 = vsel %vm1240, 16843009, 0
        %v1273 = vsel %vm1241, 16843009, 0
        %v1274 = vsel %vm1242, 16843009, 0
        %v1275 = vsel %vm1243, 16843009, 0
        %v1276 = vsel %vm1244, 16843009, 0
        %v1277 = vsel %vm1245, 16843009, 0
        %v1278 = vsel %vm1246, 16843009, 0
        %v1279 = vsel %vm1247, 16843009, 0
        %v1280 = vsel %vm1248, 16843009, 0
        %v1281 = vsel %vm1249, 16843009, 0
        %v1282 = vsel %vm1250, 16843009, 0
        %v1283 = vsel %vm1251, 16843009, 0
        %v1284 = vsel %vm1252, 16843009, 0
        %v1285 = vsel %vm1253, 16843009, 0
        %v1286 = vsel %vm1254, 16843009, 0
        %v1287 = vsel %vm1255, 16843009, 0
        %v1288 = vsel %vm1256, 16843009, 0
        %v1289 = vsel %vm1257, 16843009, 0
        %v1290 = vsel %vm1258, 16843009, 0
        %v1291 = vsel %vm1259, 16843009, 0
        %v1292 = vsel %vm1260, 16843009, 0
        %v1293 = vsel %vm1261, 16843009, 0
        %v1294 = vsel %vm1262, 16843009, 0
        %v1295 = vsel %vm1263, 16843009, 0
        %v1296 = vunpack.c.0.s8 %v1264
        %v1297 = vunpack.c.0.s8 %v1265
        %v1298 = vunpack.c.0.s8 %v1266
        %v1299 = vunpack.c.0.s8 %v1267
        %v1300 = vunpack.c.0.s8 %v1268
        %v1301 = vunpack.c.0.s8 %v1269
        %v1302 = vunpack.c.0.s8 %v1270
        %v1303 = vunpack.c.0.s8 %v1271
        %v1304 = vunpack.c.0.s8 %v1272
        %v1305 = vunpack.c.0.s8 %v1273
        %v1306 = vunpack.c.0.s8 %v1274
        %v1307 = vunpack.c.0.s8 %v1275
        %v1308 = vunpack.c.0.s8 %v1276
        %v1309 = vunpack.c.0.s8 %v1277
        %v1310 = vunpack.c.0.s8 %v1278
        %v1311 = vunpack.c.0.s8 %v1279
        %v1312 = vunpack.c.0.s8 %v1280
        %v1313 = vunpack.c.0.s8 %v1281
        %v1314 = vunpack.c.0.s8 %v1282
        %v1315 = vunpack.c.0.s8 %v1283
        %v1316 = vunpack.c.0.s8 %v1284
        %v1317 = vunpack.c.0.s8 %v1285
        %v1318 = vunpack.c.0.s8 %v1286
        %v1319 = vunpack.c.0.s8 %v1287
        %v1320 = vunpack.c.0.s8 %v1288
        %v1321 = vunpack.c.0.s8 %v1289
        %v1322 = vunpack.c.0.s8 %v1290
        %v1323 = vunpack.c.0.s8 %v1291
        %v1324 = vunpack.c.0.s8 %v1292
        %v1325 = vunpack.c.0.s8 %v1293
        %v1326 = vunpack.c.0.s8 %v1294
        %v1327 = vunpack.c.0.s8 %v1295
        %vm1328 = vcmp.ne.s32.totalorder %v1296, 0
        %vm1329 = vcmp.ne.s32.totalorder %v1297, 0
        %vm1330 = vcmp.ne.s32.totalorder %v1298, 0
        %vm1331 = vcmp.ne.s32.totalorder %v1299, 0
        %vm1332 = vcmp.ne.s32.totalorder %v1300, 0
        %vm1333 = vcmp.ne.s32.totalorder %v1301, 0
        %vm1334 = vcmp.ne.s32.totalorder %v1302, 0
        %vm1335 = vcmp.ne.s32.totalorder %v1303, 0
        %vm1336 = vcmp.ne.s32.totalorder %v1304, 0
        %vm1337 = vcmp.ne.s32.totalorder %v1305, 0
        %vm1338 = vcmp.ne.s32.totalorder %v1306, 0
        %vm1339 = vcmp.ne.s32.totalorder %v1307, 0
        %vm1340 = vcmp.ne.s32.totalorder %v1308, 0
        %vm1341 = vcmp.ne.s32.totalorder %v1309, 0
        %vm1342 = vcmp.ne.s32.totalorder %v1310, 0
        %vm1343 = vcmp.ne.s32.totalorder %v1311, 0
        %vm1344 = vcmp.ne.s32.totalorder %v1312, 0
        %vm1345 = vcmp.ne.s32.totalorder %v1313, 0
        %vm1346 = vcmp.ne.s32.totalorder %v1314, 0
        %vm1347 = vcmp.ne.s32.totalorder %v1315, 0
        %vm1348 = vcmp.ne.s32.totalorder %v1316, 0
        %vm1349 = vcmp.ne.s32.totalorder %v1317, 0
        %vm1350 = vcmp.ne.s32.totalorder %v1318, 0
        %vm1351 = vcmp.ne.s32.totalorder %v1319, 0
        %vm1352 = vcmp.ne.s32.totalorder %v1320, 0
        %vm1353 = vcmp.ne.s32.totalorder %v1321, 0
        %vm1354 = vcmp.ne.s32.totalorder %v1322, 0
        %vm1355 = vcmp.ne.s32.totalorder %v1323, 0
        %vm1356 = vcmp.ne.s32.totalorder %v1324, 0
        %vm1357 = vcmp.ne.s32.totalorder %v1325, 0
        %vm1358 = vcmp.ne.s32.totalorder %v1326, 0
        %vm1359 = vcmp.ne.s32.totalorder %v1327, 0
        %v1360 = vsel %vm1328, %v1096, -9e+15
        %v1361 = vsel %vm1329, %v1097, -9e+15
        %v1362 = vsel %vm1330, %v1098, -9e+15
        %v1363 = vsel %vm1331, %v1099, -9e+15
        %v1364 = vsel %vm1332, %v1100, -9e+15
        %v1365 = vsel %vm1333, %v1101, -9e+15
        %v1366 = vsel %vm1334, %v1102, -9e+15
        %v1367 = vsel %vm1335, %v1103, -9e+15
        %v1368 = vsel %vm1336, %v1104, -9e+15
        %v1369 = vsel %vm1337, %v1105, -9e+15
        %v1370 = vsel %vm1338, %v1106, -9e+15
        %v1371 = vsel %vm1339, %v1107, -9e+15
        %v1372 = vsel %vm1340, %v1108, -9e+15
        %v1373 = vsel %vm1341, %v1109, -9e+15
        %v1374 = vsel %vm1342, %v1110, -9e+15
        %v1375 = vsel %vm1343, %v1111, -9e+15
        %v1376 = vsel %vm1344, %v1112, -9e+15
        %v1377 = vsel %vm1345, %v1113, -9e+15
        %v1378 = vsel %vm1346, %v1114, -9e+15
        %v1379 = vsel %vm1347, %v1115, -9e+15
        %v1380 = vsel %vm1348, %v1116, -9e+15
        %v1381 = vsel %vm1349, %v1117, -9e+15
        %v1382 = vsel %vm1350, %v1118, -9e+15
        %v1383 = vsel %vm1351, %v1119, -9e+15
        %v1384 = vsel %vm1352, %v1120, -9e+15
        %v1385 = vsel %vm1353, %v1121, -9e+15
        %v1386 = vsel %vm1354, %v1122, -9e+15
        %v1387 = vsel %vm1355, %v1123, -9e+15
        %v1388 = vsel %vm1356, %v1124, -9e+15
        %v1389 = vsel %vm1357, %v1125, -9e+15
        %v1390 = vsel %vm1358, %v1126, -9e+15
        %v1391 = vsel %vm1359, %v1127, -9e+15
        %v1392 = vld [vmem:[#allocation2] sm:$0xff]
        %v1393 = vld [vmem:[#allocation2 + $0x8] sm:$0xff]
        %v1394 = vld [vmem:[#allocation2 + $0x10] sm:$0xff]
        %v1395 = vld [vmem:[#allocation2 + $0x18] sm:$0xff]
        %v1396 = vld [vmem:[#allocation2 + $0x20] sm:$0xff]
        %v1397 = vld [vmem:[#allocation2 + $0x28] sm:$0xff]
        %v1398 = vld [vmem:[#allocation2 + $0x30] sm:$0xff]
        %v1399 = vld [vmem:[#allocation2 + $0x38] sm:$0xff]
        %v1400 = vld [vmem:[#allocation2 + $0x40] sm:$0xff]
        %v1401 = vld [vmem:[#allocation2 + $0x48] sm:$0xff]
        %v1402 = vld [vmem:[#allocation2 + $0x50] sm:$0xff]
        %v1403 = vld [vmem:[#allocation2 + $0x58] sm:$0xff]
        %v1404 = vld [vmem:[#allocation2 + $0x60] sm:$0xff]
        %v1405 = vld [vmem:[#allocation2 + $0x68] sm:$0xff]
        %v1406 = vld [vmem:[#allocation2 + $0x70] sm:$0xff]
        %v1407 = vld [vmem:[#allocation2 + $0x78] sm:$0xff]
        %v1408 = vld [vmem:[#allocation2 + $0x80] sm:$0xff]
        %v1409 = vld [vmem:[#allocation2 + $0x88] sm:$0xff]
        %v1410 = vld [vmem:[#allocation2 + $0x90] sm:$0xff]
        %v1411 = vld [vmem:[#allocation2 + $0x98] sm:$0xff]
        %v1412 = vld [vmem:[#allocation2 + $0xa0] sm:$0xff]
        %v1413 = vld [vmem:[#allocation2 + $0xa8] sm:$0xff]
        %v1414 = vld [vmem:[#allocation2 + $0xb0] sm:$0xff]
        %v1415 = vld [vmem:[#allocation2 + $0xb8] sm:$0xff]
        %v1416 = vld [vmem:[#allocation2 + $0xc0] sm:$0xff]
        %v1417 = vld [vmem:[#allocation2 + $0xc8] sm:$0xff]
        %v1418 = vld [vmem:[#allocation2 + $0xd0] sm:$0xff]
        %v1419 = vld [vmem:[#allocation2 + $0xd8] sm:$0xff]
        %v1420 = vld [vmem:[#allocation2 + $0xe0] sm:$0xff]
        %v1421 = vld [vmem:[#allocation2 + $0xe8] sm:$0xff]
        %v1422 = vld [vmem:[#allocation2 + $0xf0] sm:$0xff]
        %v1423 = vld [vmem:[#allocation2 + $0xf8] sm:$0xff]
        %1424 = vmax.xlane.f32.xlu0 %v1360
        %v1425 = vpop.xlane.xlu0 %1424
        %1426 = vmax.xlane.f32.xlu0 %v1361
        %v1427 = vpop.xlane.xlu0 %1426
        %1428 = vmax.xlane.f32.xlu0 %v1362
        %v1429 = vpop.xlane.xlu0 %1428
        %1430 = vmax.xlane.f32.xlu0 %v1363
        %v1431 = vpop.xlane.xlu0 %1430
        %1432 = vmax.xlane.f32.xlu0 %v1364
        %v1433 = vpop.xlane.xlu0 %1432
        %1434 = vmax.xlane.f32.xlu0 %v1365
        %v1435 = vpop.xlane.xlu0 %1434
        %1436 = vmax.xlane.f32.xlu0 %v1366
        %v1437 = vpop.xlane.xlu0 %1436
        %1438 = vmax.xlane.f32.xlu0 %v1367
        %v1439 = vpop.xlane.xlu0 %1438
        %1440 = vmax.xlane.f32.xlu0 %v1368
        %v1441 = vpop.xlane.xlu0 %1440
        %1442 = vmax.xlane.f32.xlu0 %v1369
        %v1443 = vpop.xlane.xlu0 %1442
        %1444 = vmax.xlane.f32.xlu0 %v1370
        %v1445 = vpop.xlane.xlu0 %1444
        %1446 = vmax.xlane.f32.xlu0 %v1371
        %v1447 = vpop.xlane.xlu0 %1446
        %1448 = vmax.xlane.f32.xlu0 %v1372
        %v1449 = vpop.xlane.xlu0 %1448
        %1450 = vmax.xlane.f32.xlu0 %v1373
        %v1451 = vpop.xlane.xlu0 %1450
        %1452 = vmax.xlane.f32.xlu0 %v1374
        %v1453 = vpop.xlane.xlu0 %1452
        %1454 = vmax.xlane.f32.xlu0 %v1375
        %v1455 = vpop.xlane.xlu0 %1454
        %1456 = vmax.xlane.f32.xlu0 %v1376
        %v1457 = vpop.xlane.xlu0 %1456
        %1458 = vmax.xlane.f32.xlu0 %v1377
        %v1459 = vpop.xlane.xlu0 %1458
        %1460 = vmax.xlane.f32.xlu0 %v1378
        %v1461 = vpop.xlane.xlu0 %1460
        %1462 = vmax.xlane.f32.xlu0 %v1379
        %v1463 = vpop.xlane.xlu0 %1462
        %1464 = vmax.xlane.f32.xlu0 %v1380
        %v1465 = vpop.xlane.xlu0 %1464
        %1466 = vmax.xlane.f32.xlu0 %v1381
        %v1467 = vpop.xlane.xlu0 %1466
        %1468 = vmax.xlane.f32.xlu0 %v1382
        %v1469 = vpop.xlane.xlu0 %1468
        %1470 = vmax.xlane.f32.xlu0 %v1383
        %v1471 = vpop.xlane.xlu0 %1470
        %1472 = vmax.xlane.f32.xlu0 %v1384
        %v1473 = vpop.xlane.xlu0 %1472
        %1474 = vmax.xlane.f32.xlu0 %v1385
        %v1475 = vpop.xlane.xlu0 %1474
        %1476 = vmax.xlane.f32.xlu0 %v1386
        %v1477 = vpop.xlane.xlu0 %1476
        %1478 = vmax.xlane.f32.xlu0 %v1387
        %v1479 = vpop.xlane.xlu0 %1478
        %1480 = vmax.xlane.f32.xlu0 %v1388
        %v1481 = vpop.xlane.xlu0 %1480
        %1482 = vmax.xlane.f32.xlu0 %v1389
        %v1483 = vpop.xlane.xlu0 %1482
        %1484 = vmax.xlane.f32.xlu0 %v1390
        %v1485 = vpop.xlane.xlu0 %1484
        %1486 = vmax.xlane.f32.xlu0 %v1391
        %v1487 = vpop.xlane.xlu0 %1486
        %v1488 = vmax.f32 %v1392, %v1425
        %v1489 = vmax.f32 %v1393, %v1427
        %v1490 = vmax.f32 %v1394, %v1429
        %v1491 = vmax.f32 %v1395, %v1431
        %v1492 = vmax.f32 %v1396, %v1433
        %v1493 = vmax.f32 %v1397, %v1435
        %v1494 = vmax.f32 %v1398, %v1437
        %v1495 = vmax.f32 %v1399, %v1439
        %v1496 = vmax.f32 %v1400, %v1441
        %v1497 = vmax.f32 %v1401, %v1443
        %v1498 = vmax.f32 %v1402, %v1445
        %v1499 = vmax.f32 %v1403, %v1447
        %v1500 = vmax.f32 %v1404, %v1449
        %v1501 = vmax.f32 %v1405, %v1451
        %v1502 = vmax.f32 %v1406, %v1453
        %v1503 = vmax.f32 %v1407, %v1455
        %v1504 = vmax.f32 %v1408, %v1457
        %v1505 = vmax.f32 %v1409, %v1459
        %v1506 = vmax.f32 %v1410, %v1461
        %v1507 = vmax.f32 %v1411, %v1463
        %v1508 = vmax.f32 %v1412, %v1465
        %v1509 = vmax.f32 %v1413, %v1467
        %v1510 = vmax.f32 %v1414, %v1469
        %v1511 = vmax.f32 %v1415, %v1471
        %v1512 = vmax.f32 %v1416, %v1473
        %v1513 = vmax.f32 %v1417, %v1475
        %v1514 = vmax.f32 %v1418, %v1477
        %v1515 = vmax.f32 %v1419, %v1479
        %v1516 = vmax.f32 %v1420, %v1481
        %v1517 = vmax.f32 %v1421, %v1483
        %v1518 = vmax.f32 %v1422, %v1485
        %v1519 = vmax.f32 %v1423, %v1487
        %v1520 = vsub.f32 %v1392, %v1488
        %v1521 = vsub.f32 %v1393, %v1489
        %v1522 = vsub.f32 %v1394, %v1490
        %v1523 = vsub.f32 %v1395, %v1491
        %v1524 = vsub.f32 %v1396, %v1492
        %v1525 = vsub.f32 %v1397, %v1493
        %v1526 = vsub.f32 %v1398, %v1494
        %v1527 = vsub.f32 %v1399, %v1495
        %v1528 = vsub.f32 %v1400, %v1496
        %v1529 = vsub.f32 %v1401, %v1497
        %v1530 = vsub.f32 %v1402, %v1498
        %v1531 = vsub.f32 %v1403, %v1499
        %v1532 = vsub.f32 %v1404, %v1500
        %v1533 = vsub.f32 %v1405, %v1501
        %v1534 = vsub.f32 %v1406, %v1502
        %v1535 = vsub.f32 %v1407, %v1503
        %v1536 = vsub.f32 %v1408, %v1504
        %v1537 = vsub.f32 %v1409, %v1505
        %v1538 = vsub.f32 %v1410, %v1506
        %v1539 = vsub.f32 %v1411, %v1507
        %v1540 = vsub.f32 %v1412, %v1508
        %v1541 = vsub.f32 %v1413, %v1509
        %v1542 = vsub.f32 %v1414, %v1510
        %v1543 = vsub.f32 %v1415, %v1511
        %v1544 = vsub.f32 %v1416, %v1512
        %v1545 = vsub.f32 %v1417, %v1513
        %v1546 = vsub.f32 %v1418, %v1514
        %v1547 = vsub.f32 %v1419, %v1515
        %v1548 = vsub.f32 %v1420, %v1516
        %v1549 = vsub.f32 %v1421, %v1517
        %v1550 = vsub.f32 %v1422, %v1518
        %v1551 = vsub.f32 %v1423, %v1519
        %v1552 = vmul.f32 %v1520, 1.442695
        %v1553 = vpow.pop %v1552
        %v1554 = vmul.f32 %v1521, 1.442695
        %v1555 = vpow.pop %v1554
        %v1556 = vmul.f32 %v1522, 1.442695
        %v1557 = vpow.pop %v1556
        %v1558 = vmul.f32 %v1523, 1.442695
        %v1559 = vpow.pop %v1558
        %v1560 = vmul.f32 %v1524, 1.442695
        %v1561 = vpow.pop %v1560
        %v1562 = vmul.f32 %v1525, 1.442695
        %v1563 = vpow.pop %v1562
        %v1564 = vmul.f32 %v1526, 1.442695
        %v1565 = vpow.pop %v1564
        %v1566 = vmul.f32 %v1527, 1.442695
        %v1567 = vpow.pop %v1566
        %v1568 = vmul.f32 %v1528, 1.442695
        %v1569 = vpow.pop %v1568
        %v1570 = vmul.f32 %v1529, 1.442695
        %v1571 = vpow.pop %v1570
        %v1572 = vmul.f32 %v1530, 1.442695
        %v1573 = vpow.pop %v1572
        %v1574 = vmul.f32 %v1531, 1.442695
        %v1575 = vpow.pop %v1574
        %v1576 = vmul.f32 %v1532, 1.442695
        %v1577 = vpow.pop %v1576
        %v1578 = vmul.f32 %v1533, 1.442695
        %v1579 = vpow.pop %v1578
        %v1580 = vmul.f32 %v1534, 1.442695
        %v1581 = vpow.pop %v1580
        %v1582 = vmul.f32 %v1535, 1.442695
        %v1583 = vpow.pop %v1582
        %v1584 = vmul.f32 %v1536, 1.442695
        %v1585 = vpow.pop %v1584
        %v1586 = vmul.f32 %v1537, 1.442695
        %v1587 = vpow.pop %v1586
        %v1588 = vmul.f32 %v1538, 1.442695
        %v1589 = vpow.pop %v1588
        %v1590 = vmul.f32 %v1539, 1.442695
        %v1591 = vpow.pop %v1590
        %v1592 = vmul.f32 %v1540, 1.442695
        %v1593 = vpow.pop %v1592
        %v1594 = vmul.f32 %v1541, 1.442695
        %v1595 = vpow.pop %v1594
        %v1596 = vmul.f32 %v1542, 1.442695
        %v1597 = vpow.pop %v1596
        %v1598 = vmul.f32 %v1543, 1.442695
        %v1599 = vpow.pop %v1598
        %v1600 = vmul.f32 %v1544, 1.442695
        %v1601 = vpow.pop %v1600
        %v1602 = vmul.f32 %v1545, 1.442695
        %v1603 = vpow.pop %v1602
        %v1604 = vmul.f32 %v1546, 1.442695
        %v1605 = vpow.pop %v1604
        %v1606 = vmul.f32 %v1547, 1.442695
        %v1607 = vpow.pop %v1606
        %v1608 = vmul.f32 %v1548, 1.442695
        %v1609 = vpow.pop %v1608
        %v1610 = vmul.f32 %v1549, 1.442695
        %v1611 = vpow.pop %v1610
        %v1612 = vmul.f32 %v1550, 1.442695
        %v1613 = vpow.pop %v1612
        %v1614 = vmul.f32 %v1551, 1.442695
        %v1615 = vpow.pop %v1614
        %1617 = vset.pattern.permute.xlu0 0
        %1618 = vperm.xlu0 %1617, %v1488
        %v1619 = vpop.permute.xlu0 %1618
        %1622 = vset.pattern.permute.xlu0 0
        %1623 = vperm.xlu0 %1622, %v1489
        %v1624 = vpop.permute.xlu0 %1623
        %1627 = vset.pattern.permute.xlu0 0
        %1628 = vperm.xlu0 %1627, %v1490
        %v1629 = vpop.permute.xlu0 %1628
        %1632 = vset.pattern.permute.xlu0 0
        %1633 = vperm.xlu0 %1632, %v1491
        %v1634 = vpop.permute.xlu0 %1633
        %1637 = vset.pattern.permute.xlu0 0
        %1638 = vperm.xlu0 %1637, %v1492
        %v1639 = vpop.permute.xlu0 %1638
        %1642 = vset.pattern.permute.xlu0 0
        %1643 = vperm.xlu0 %1642, %v1493
        %v1644 = vpop.permute.xlu0 %1643
        %1647 = vset.pattern.permute.xlu0 0
        %1648 = vperm.xlu0 %1647, %v1494
        %v1649 = vpop.permute.xlu0 %1648
        %1652 = vset.pattern.permute.xlu0 0
        %1653 = vperm.xlu0 %1652, %v1495
        %v1654 = vpop.permute.xlu0 %1653
        %1657 = vset.pattern.permute.xlu0 0
        %1658 = vperm.xlu0 %1657, %v1496
        %v1659 = vpop.permute.xlu0 %1658
        %1662 = vset.pattern.permute.xlu0 0
        %1663 = vperm.xlu0 %1662, %v1497
        %v1664 = vpop.permute.xlu0 %1663
        %1667 = vset.pattern.permute.xlu0 0
        %1668 = vperm.xlu0 %1667, %v1498
        %v1669 = vpop.permute.xlu0 %1668
        %1672 = vset.pattern.permute.xlu0 0
        %1673 = vperm.xlu0 %1672, %v1499
        %v1674 = vpop.permute.xlu0 %1673
        %1677 = vset.pattern.permute.xlu0 0
        %1678 = vperm.xlu0 %1677, %v1500
        %v1679 = vpop.permute.xlu0 %1678
        %1682 = vset.pattern.permute.xlu0 0
        %1683 = vperm.xlu0 %1682, %v1501
        %v1684 = vpop.permute.xlu0 %1683
        %1687 = vset.pattern.permute.xlu0 0
        %1688 = vperm.xlu0 %1687, %v1502
        %v1689 = vpop.permute.xlu0 %1688
        %1692 = vset.pattern.permute.xlu0 0
        %1693 = vperm.xlu0 %1692, %v1503
        %v1694 = vpop.permute.xlu0 %1693
        %1697 = vset.pattern.permute.xlu0 0
        %1698 = vperm.xlu0 %1697, %v1504
        %v1699 = vpop.permute.xlu0 %1698
        %1702 = vset.pattern.permute.xlu0 0
        %1703 = vperm.xlu0 %1702, %v1505
        %v1704 = vpop.permute.xlu0 %1703
        %1707 = vset.pattern.permute.xlu0 0
        %1708 = vperm.xlu0 %1707, %v1506
        %v1709 = vpop.permute.xlu0 %1708
        %1712 = vset.pattern.permute.xlu0 0
        %1713 = vperm.xlu0 %1712, %v1507
        %v1714 = vpop.permute.xlu0 %1713
        %1717 = vset.pattern.permute.xlu0 0
        %1718 = vperm.xlu0 %1717, %v1508
        %v1719 = vpop.permute.xlu0 %1718
        %1722 = vset.pattern.permute.xlu0 0
        %1723 = vperm.xlu0 %1722, %v1509
        %v1724 = vpop.permute.xlu0 %1723
        %1727 = vset.pattern.permute.xlu0 0
        %1728 = vperm.xlu0 %1727, %v1510
        %v1729 = vpop.permute.xlu0 %1728
        %1732 = vset.pattern.permute.xlu0 0
        %1733 = vperm.xlu0 %1732, %v1511
        %v1734 = vpop.permute.xlu0 %1733
        %1737 = vset.pattern.permute.xlu0 0
        %1738 = vperm.xlu0 %1737, %v1512
        %v1739 = vpop.permute.xlu0 %1738
        %1742 = vset.pattern.permute.xlu0 0
        %1743 = vperm.xlu0 %1742, %v1513
        %v1744 = vpop.permute.xlu0 %1743
        %1747 = vset.pattern.permute.xlu0 0
        %1748 = vperm.xlu0 %1747, %v1514
        %v1749 = vpop.permute.xlu0 %1748
        %1752 = vset.pattern.permute.xlu0 0
        %1753 = vperm.xlu0 %1752, %v1515
        %v1754 = vpop.permute.xlu0 %1753
        %1757 = vset.pattern.permute.xlu0 0
        %1758 = vperm.xlu0 %1757, %v1516
        %v1759 = vpop.permute.xlu0 %1758
        %1762 = vset.pattern.permute.xlu0 0
        %1763 = vperm.xlu0 %1762, %v1517
        %v1764 = vpop.permute.xlu0 %1763
        %1767 = vset.pattern.permute.xlu0 0
        %1768 = vperm.xlu0 %1767, %v1518
        %v1769 = vpop.permute.xlu0 %1768
        %1772 = vset.pattern.permute.xlu0 0
        %1773 = vperm.xlu0 %1772, %v1519
        %v1774 = vpop.permute.xlu0 %1773
        %v1776 = vsub.f32 %v1360, %v1619
        %v1777 = vsub.f32 %v1361, %v1624
        %v1778 = vsub.f32 %v1362, %v1629
        %v1779 = vsub.f32 %v1363, %v1634
        %v1780 = vsub.f32 %v1364, %v1639
        %v1781 = vsub.f32 %v1365, %v1644
        %v1782 = vsub.f32 %v1366, %v1649
        %v1783 = vsub.f32 %v1367, %v1654
        %v1784 = vsub.f32 %v1368, %v1659
        %v1785 = vsub.f32 %v1369, %v1664
        %v1786 = vsub.f32 %v1370, %v1669
        %v1787 = vsub.f32 %v1371, %v1674
        %v1788 = vsub.f32 %v1372, %v1679
        %v1789 = vsub.f32 %v1373, %v1684
        %v1790 = vsub.f32 %v1374, %v1689
        %v1791 = vsub.f32 %v1375, %v1694
        %v1792 = vsub.f32 %v1376, %v1699
        %v1793 = vsub.f32 %v1377, %v1704
        %v1794 = vsub.f32 %v1378, %v1709
        %v1795 = vsub.f32 %v1379, %v1714
        %v1796 = vsub.f32 %v1380, %v1719
        %v1797 = vsub.f32 %v1381, %v1724
        %v1798 = vsub.f32 %v1382, %v1729
        %v1799 = vsub.f32 %v1383, %v1734
        %v1800 = vsub.f32 %v1384, %v1739
        %v1801 = vsub.f32 %v1385, %v1744
        %v1802 = vsub.f32 %v1386, %v1749
        %v1803 = vsub.f32 %v1387, %v1754
        %v1804 = vsub.f32 %v1388, %v1759
        %v1805 = vsub.f32 %v1389, %v1764
        %v1806 = vsub.f32 %v1390, %v1769
        %v1807 = vsub.f32 %v1391, %v1774
        %v1808 = vpack.c.bf16 %v1777, %v1776
        %v1809 = vpack.c.bf16 %v1779, %v1778
        %v1810 = vpack.c.bf16 %v1781, %v1780
        %v1811 = vpack.c.bf16 %v1783, %v1782
        %v1812 = vpack.c.bf16 %v1785, %v1784
        %v1813 = vpack.c.bf16 %v1787, %v1786
        %v1814 = vpack.c.bf16 %v1789, %v1788
        %v1815 = vpack.c.bf16 %v1791, %v1790
        %v1816 = vpack.c.bf16 %v1793, %v1792
        %v1817 = vpack.c.bf16 %v1795, %v1794
        %v1818 = vpack.c.bf16 %v1797, %v1796
        %v1819 = vpack.c.bf16 %v1799, %v1798
        %v1820 = vpack.c.bf16 %v1801, %v1800
        %v1821 = vpack.c.bf16 %v1803, %v1802
        %v1822 = vpack.c.bf16 %v1805, %v1804
        %v1823 = vpack.c.bf16 %v1807, %v1806
        %v1825 = vmul.bf16 %v1808, 1069105081
        %v1826 = vpow.bf16.pop %v1825
        %v1828 = vmul.bf16 %v1809, 1069105081
        %v1829 = vpow.bf16.pop %v1828
        %v1831 = vmul.bf16 %v1810, 1069105081
        %v1832 = vpow.bf16.pop %v1831
        %v1834 = vmul.bf16 %v1811, 1069105081
        %v1835 = vpow.bf16.pop %v1834
        %v1837 = vmul.bf16 %v1812, 1069105081
        %v1838 = vpow.bf16.pop %v1837
        %v1840 = vmul.bf16 %v1813, 1069105081
        %v1841 = vpow.bf16.pop %v1840
        %v1843 = vmul.bf16 %v1814, 1069105081
        %v1844 = vpow.bf16.pop %v1843
        %v1846 = vmul.bf16 %v1815, 1069105081
        %v1847 = vpow.bf16.pop %v1846
        %v1849 = vmul.bf16 %v1816, 1069105081
        %v1850 = vpow.bf16.pop %v1849
        %v1852 = vmul.bf16 %v1817, 1069105081
        %v1853 = vpow.bf16.pop %v1852
        %v1855 = vmul.bf16 %v1818, 1069105081
        %v1856 = vpow.bf16.pop %v1855
        %v1858 = vmul.bf16 %v1819, 1069105081
        %v1859 = vpow.bf16.pop %v1858
        %v1861 = vmul.bf16 %v1820, 1069105081
        %v1862 = vpow.bf16.pop %v1861
        %v1864 = vmul.bf16 %v1821, 1069105081
        %v1865 = vpow.bf16.pop %v1864
        %v1867 = vmul.bf16 %v1822, 1069105081
        %v1868 = vpow.bf16.pop %v1867
        %v1870 = vmul.bf16 %v1823, 1069105081
        %v1871 = vpow.bf16.pop %v1870
        %v1872 = vld [vmem:[#allocation3] sm:$0xff]
        %v1873 = vld [vmem:[#allocation3 + $0x8] sm:$0xff]
        %v1874 = vld [vmem:[#allocation3 + $0x10] sm:$0xff]
        %v1875 = vld [vmem:[#allocation3 + $0x18] sm:$0xff]
        %v1876 = vld [vmem:[#allocation3 + $0x20] sm:$0xff]
        %v1877 = vld [vmem:[#allocation3 + $0x28] sm:$0xff]
        %v1878 = vld [vmem:[#allocation3 + $0x30] sm:$0xff]
        %v1879 = vld [vmem:[#allocation3 + $0x38] sm:$0xff]
        %v1880 = vld [vmem:[#allocation3 + $0x40] sm:$0xff]
        %v1881 = vld [vmem:[#allocation3 + $0x48] sm:$0xff]
        %v1882 = vld [vmem:[#allocation3 + $0x50] sm:$0xff]
        %v1883 = vld [vmem:[#allocation3 + $0x58] sm:$0xff]
        %v1884 = vld [vmem:[#allocation3 + $0x60] sm:$0xff]
        %v1885 = vld [vmem:[#allocation3 + $0x68] sm:$0xff]
        %v1886 = vld [vmem:[#allocation3 + $0x70] sm:$0xff]
        %v1887 = vld [vmem:[#allocation3 + $0x78] sm:$0xff]
        %v1888 = vld [vmem:[#allocation3 + $0x80] sm:$0xff]
        %v1889 = vld [vmem:[#allocation3 + $0x88] sm:$0xff]
        %v1890 = vld [vmem:[#allocation3 + $0x90] sm:$0xff]
        %v1891 = vld [vmem:[#allocation3 + $0x98] sm:$0xff]
        %v1892 = vld [vmem:[#allocation3 + $0xa0] sm:$0xff]
        %v1893 = vld [vmem:[#allocation3 + $0xa8] sm:$0xff]
        %v1894 = vld [vmem:[#allocation3 + $0xb0] sm:$0xff]
        %v1895 = vld [vmem:[#allocation3 + $0xb8] sm:$0xff]
        %v1896 = vld [vmem:[#allocation3 + $0xc0] sm:$0xff]
        %v1897 = vld [vmem:[#allocation3 + $0xc8] sm:$0xff]
        %v1898 = vld [vmem:[#allocation3 + $0xd0] sm:$0xff]
        %v1899 = vld [vmem:[#allocation3 + $0xd8] sm:$0xff]
        %v1900 = vld [vmem:[#allocation3 + $0xe0] sm:$0xff]
        %v1901 = vld [vmem:[#allocation3 + $0xe8] sm:$0xff]
        %v1902 = vld [vmem:[#allocation3 + $0xf0] sm:$0xff]
        %v1903 = vld [vmem:[#allocation3 + $0xf8] sm:$0xff]
        %v1904 = vmul.f32 %v1553, %v1872
        %v1905 = vmul.f32 %v1555, %v1873
        %v1906 = vmul.f32 %v1557, %v1874
        %v1907 = vmul.f32 %v1559, %v1875
        %v1908 = vmul.f32 %v1561, %v1876
        %v1909 = vmul.f32 %v1563, %v1877
        %v1910 = vmul.f32 %v1565, %v1878
        %v1911 = vmul.f32 %v1567, %v1879
        %v1912 = vmul.f32 %v1569, %v1880
        %v1913 = vmul.f32 %v1571, %v1881
        %v1914 = vmul.f32 %v1573, %v1882
        %v1915 = vmul.f32 %v1575, %v1883
        %v1916 = vmul.f32 %v1577, %v1884
        %v1917 = vmul.f32 %v1579, %v1885
        %v1918 = vmul.f32 %v1581, %v1886
        %v1919 = vmul.f32 %v1583, %v1887
        %v1920 = vmul.f32 %v1585, %v1888
        %v1921 = vmul.f32 %v1587, %v1889
        %v1922 = vmul.f32 %v1589, %v1890
        %v1923 = vmul.f32 %v1591, %v1891
        %v1924 = vmul.f32 %v1593, %v1892
        %v1925 = vmul.f32 %v1595, %v1893
        %v1926 = vmul.f32 %v1597, %v1894
        %v1927 = vmul.f32 %v1599, %v1895
        %v1928 = vmul.f32 %v1601, %v1896
        %v1929 = vmul.f32 %v1603, %v1897
        %v1930 = vmul.f32 %v1605, %v1898
        %v1931 = vmul.f32 %v1607, %v1899
        %v1932 = vmul.f32 %v1609, %v1900
        %v1933 = vmul.f32 %v1611, %v1901
        %v1934 = vmul.f32 %v1613, %v1902
        %v1935 = vmul.f32 %v1615, %v1903
        %v1936 = vunpack.c.l.bf16 %v1826
        %v1937 = vunpack.c.h.bf16 %v1826
        %v1938 = vunpack.c.l.bf16 %v1829
        %v1939 = vunpack.c.h.bf16 %v1829
        %v1940 = vunpack.c.l.bf16 %v1832
        %v1941 = vunpack.c.h.bf16 %v1832
        %v1942 = vunpack.c.l.bf16 %v1835
        %v1943 = vunpack.c.h.bf16 %v1835
        %v1944 = vunpack.c.l.bf16 %v1838
        %v1945 = vunpack.c.h.bf16 %v1838
        %v1946 = vunpack.c.l.bf16 %v1841
        %v1947 = vunpack.c.h.bf16 %v1841
        %v1948 = vunpack.c.l.bf16 %v1844
        %v1949 = vunpack.c.h.bf16 %v1844
        %v1950 = vunpack.c.l.bf16 %v1847
        %v1951 = vunpack.c.h.bf16 %v1847
        %v1952 = vunpack.c.l.bf16 %v1850
        %v1953 = vunpack.c.h.bf16 %v1850
        %v1954 = vunpack.c.l.bf16 %v1853
        %v1955 = vunpack.c.h.bf16 %v1853
        %v1956 = vunpack.c.l.bf16 %v1856
        %v1957 = vunpack.c.h.bf16 %v1856
        %v1958 = vunpack.c.l.bf16 %v1859
        %v1959 = vunpack.c.h.bf16 %v1859
        %v1960 = vunpack.c.l.bf16 %v1862
        %v1961 = vunpack.c.h.bf16 %v1862
        %v1962 = vunpack.c.l.bf16 %v1865
        %v1963 = vunpack.c.h.bf16 %v1865
        %v1964 = vunpack.c.l.bf16 %v1868
        %v1965 = vunpack.c.h.bf16 %v1868
        %v1966 = vunpack.c.l.bf16 %v1871
        %v1967 = vunpack.c.h.bf16 %v1871
        %1968 = vadd.xlane.f32.xlu0 %v1936
        %v1969 = vpop.xlane.xlu0 %1968
        %1970 = vadd.xlane.f32.xlu0 %v1937
        %v1971 = vpop.xlane.xlu0 %1970
        %1972 = vadd.xlane.f32.xlu0 %v1938
        %v1973 = vpop.xlane.xlu0 %1972
        %1974 = vadd.xlane.f32.xlu0 %v1939
        %v1975 = vpop.xlane.xlu0 %1974
        %1976 = vadd.xlane.f32.xlu0 %v1940
        %v1977 = vpop.xlane.xlu0 %1976
        %1978 = vadd.xlane.f32.xlu0 %v1941
        %v1979 = vpop.xlane.xlu0 %1978
        %1980 = vadd.xlane.f32.xlu0 %v1942
        %v1981 = vpop.xlane.xlu0 %1980
        %1982 = vadd.xlane.f32.xlu0 %v1943
        %v1983 = vpop.xlane.xlu0 %1982
        %1984 = vadd.xlane.f32.xlu0 %v1944
        %v1985 = vpop.xlane.xlu0 %1984
        %1986 = vadd.xlane.f32.xlu0 %v1945
        %v1987 = vpop.xlane.xlu0 %1986
        %1988 = vadd.xlane.f32.xlu0 %v1946
        %v1989 = vpop.xlane.xlu0 %1988
        %1990 = vadd.xlane.f32.xlu0 %v1947
        %v1991 = vpop.xlane.xlu0 %1990
        %1992 = vadd.xlane.f32.xlu0 %v1948
        %v1993 = vpop.xlane.xlu0 %1992
        %1994 = vadd.xlane.f32.xlu0 %v1949
        %v1995 = vpop.xlane.xlu0 %1994
        %1996 = vadd.xlane.f32.xlu0 %v1950
        %v1997 = vpop.xlane.xlu0 %1996
        %1998 = vadd.xlane.f32.xlu0 %v1951
        %v1999 = vpop.xlane.xlu0 %1998
        %2000 = vadd.xlane.f32.xlu0 %v1952
        %v2001 = vpop.xlane.xlu0 %2000
        %2002 = vadd.xlane.f32.xlu0 %v1953
        %v2003 = vpop.xlane.xlu0 %2002
        %2004 = vadd.xlane.f32.xlu0 %v1954
        %v2005 = vpop.xlane.xlu0 %2004
        %2006 = vadd.xlane.f32.xlu0 %v1955
        %v2007 = vpop.xlane.xlu0 %2006
        %2008 = vadd.xlane.f32.xlu0 %v1956
        %v2009 = vpop.xlane.xlu0 %2008
        %2010 = vadd.xlane.f32.xlu0 %v1957
        %v2011 = vpop.xlane.xlu0 %2010
        %2012 = vadd.xlane.f32.xlu0 %v1958
        %v2013 = vpop.xlane.xlu0 %2012
        %2014 = vadd.xlane.f32.xlu0 %v1959
        %v2015 = vpop.xlane.xlu0 %2014
        %2016 = vadd.xlane.f32.xlu0 %v1960
        %v2017 = vpop.xlane.xlu0 %2016
        %2018 = vadd.xlane.f32.xlu0 %v1961
        %v2019 = vpop.xlane.xlu0 %2018
        %2020 = vadd.xlane.f32.xlu0 %v1962
        %v2021 = vpop.xlane.xlu0 %2020
        %2022 = vadd.xlane.f32.xlu0 %v1963
        %v2023 = vpop.xlane.xlu0 %2022
        %2024 = vadd.xlane.f32.xlu0 %v1964
        %v2025 = vpop.xlane.xlu0 %2024
        %2026 = vadd.xlane.f32.xlu0 %v1965
        %v2027 = vpop.xlane.xlu0 %2026
        %2028 = vadd.xlane.f32.xlu0 %v1966
        %v2029 = vpop.xlane.xlu0 %2028
        %2030 = vadd.xlane.f32.xlu0 %v1967
        %v2031 = vpop.xlane.xlu0 %2030
        %v2032 = vadd.f32 %v1904, %v1969
        %v2033 = vadd.f32 %v1905, %v1971
        %v2034 = vadd.f32 %v1906, %v1973
        %v2035 = vadd.f32 %v1907, %v1975
        %v2036 = vadd.f32 %v1908, %v1977
        %v2037 = vadd.f32 %v1909, %v1979
        %v2038 = vadd.f32 %v1910, %v1981
        %v2039 = vadd.f32 %v1911, %v1983
        %v2040 = vadd.f32 %v1912, %v1985
        %v2041 = vadd.f32 %v1913, %v1987
        %v2042 = vadd.f32 %v1914, %v1989
        %v2043 = vadd.f32 %v1915, %v1991
        %v2044 = vadd.f32 %v1916, %v1993
        %v2045 = vadd.f32 %v1917, %v1995
        %v2046 = vadd.f32 %v1918, %v1997
        %v2047 = vadd.f32 %v1919, %v1999
        %v2048 = vadd.f32 %v1920, %v2001
        %v2049 = vadd.f32 %v1921, %v2003
        %v2050 = vadd.f32 %v1922, %v2005
        %v2051 = vadd.f32 %v1923, %v2007
        %v2052 = vadd.f32 %v1924, %v2009
        %v2053 = vadd.f32 %v1925, %v2011
        %v2054 = vadd.f32 %v1926, %v2013
        %v2055 = vadd.f32 %v1927, %v2015
        %v2056 = vadd.f32 %v1928, %v2017
        %v2057 = vadd.f32 %v1929, %v2019
        %v2058 = vadd.f32 %v1930, %v2021
        %v2059 = vadd.f32 %v1931, %v2023
        %v2060 = vadd.f32 %v1932, %v2025
        %v2061 = vadd.f32 %v1933, %v2027
        %v2062 = vadd.f32 %v1934, %v2029
        %v2063 = vadd.f32 %v1935, %v2031
        %vm2064 = vcmask 7168
        %2065 = vst.msk [vmem:[#allocation3] sm:$0xff] %vm2064, %v2032
        %2066 = vst.msk [vmem:[#allocation3 + $0x8] sm:$0xff] %vm2064, %v2033
        %2067 = vst.msk [vmem:[#allocation3 + $0x10] sm:$0xff] %vm2064, %v2034
        %2068 = vst.msk [vmem:[#allocation3 + $0x18] sm:$0xff] %vm2064, %v2035
        %2069 = vst.msk [vmem:[#allocation3 + $0x20] sm:$0xff] %vm2064, %v2036
        %2070 = vst.msk [vmem:[#allocation3 + $0x28] sm:$0xff] %vm2064, %v2037
        %2071 = vst.msk [vmem:[#allocation3 + $0x30] sm:$0xff] %vm2064, %v2038
        %2072 = vst.msk [vmem:[#allocation3 + $0x38] sm:$0xff] %vm2064, %v2039
        %2073 = vst.msk [vmem:[#allocation3 + $0x40] sm:$0xff] %vm2064, %v2040
        %2074 = vst.msk [vmem:[#allocation3 + $0x48] sm:$0xff] %vm2064, %v2041
        %2075 = vst.msk [vmem:[#allocation3 + $0x50] sm:$0xff] %vm2064, %v2042
        %2076 = vst.msk [vmem:[#allocation3 + $0x58] sm:$0xff] %vm2064, %v2043
        %2077 = vst.msk [vmem:[#allocation3 + $0x60] sm:$0xff] %vm2064, %v2044
        %2078 = vst.msk [vmem:[#allocation3 + $0x68] sm:$0xff] %vm2064, %v2045
        %2079 = vst.msk [vmem:[#allocation3 + $0x70] sm:$0xff] %vm2064, %v2046
        %2080 = vst.msk [vmem:[#allocation3 + $0x78] sm:$0xff] %vm2064, %v2047
        %2081 = vst.msk [vmem:[#allocation3 + $0x80] sm:$0xff] %vm2064, %v2048
        %2082 = vst.msk [vmem:[#allocation3 + $0x88] sm:$0xff] %vm2064, %v2049
        %2083 = vst.msk [vmem:[#allocation3 + $0x90] sm:$0xff] %vm2064, %v2050
        %2084 = vst.msk [vmem:[#allocation3 + $0x98] sm:$0xff] %vm2064, %v2051
        %2085 = vst.msk [vmem:[#allocation3 + $0xa0] sm:$0xff] %vm2064, %v2052
        %2086 = vst.msk [vmem:[#allocation3 + $0xa8] sm:$0xff] %vm2064, %v2053
        %2087 = vst.msk [vmem:[#allocation3 + $0xb0] sm:$0xff] %vm2064, %v2054
        %2088 = vst.msk [vmem:[#allocation3 + $0xb8] sm:$0xff] %vm2064, %v2055
        %2089 = vst.msk [vmem:[#allocation3 + $0xc0] sm:$0xff] %vm2064, %v2056
        %2090 = vst.msk [vmem:[#allocation3 + $0xc8] sm:$0xff] %vm2064, %v2057
        %2091 = vst.msk [vmem:[#allocation3 + $0xd0] sm:$0xff] %vm2064, %v2058
        %2092 = vst.msk [vmem:[#allocation3 + $0xd8] sm:$0xff] %vm2064, %v2059
        %2093 = vst.msk [vmem:[#allocation3 + $0xe0] sm:$0xff] %vm2064, %v2060
        %2094 = vst.msk [vmem:[#allocation3 + $0xe8] sm:$0xff] %vm2064, %v2061
        %2095 = vst.msk [vmem:[#allocation3 + $0xf0] sm:$0xff] %vm2064, %v2062
        %2096 = vst.msk [vmem:[#allocation3 + $0xf8] sm:$0xff] %vm2064, %v2063
        %v2097 = vld [vmem:[#allocation4] sm:$0xff]
        %v2098 = vld [vmem:[#allocation4 + $0x8] sm:$0xff]
        %v2099 = vld [vmem:[#allocation4 + $0x10] sm:$0xff]
        %v2100 = vld [vmem:[#allocation4 + $0x18] sm:$0xff]
        %v2101 = vld [vmem:[#allocation4 + $0x20] sm:$0xff]
        %v2102 = vld [vmem:[#allocation4 + $0x28] sm:$0xff]
        %v2103 = vld [vmem:[#allocation4 + $0x30] sm:$0xff]
        %v2104 = vld [vmem:[#allocation4 + $0x38] sm:$0xff]
        %v2105 = vld [vmem:[#allocation4 + $0x40] sm:$0xff]
        %v2106 = vld [vmem:[#allocation4 + $0x48] sm:$0xff]
        %v2107 = vld [vmem:[#allocation4 + $0x50] sm:$0xff]
        %v2108 = vld [vmem:[#allocation4 + $0x58] sm:$0xff]
        %v2109 = vld [vmem:[#allocation4 + $0x60] sm:$0xff]
        %v2110 = vld [vmem:[#allocation4 + $0x68] sm:$0xff]
        %v2111 = vld [vmem:[#allocation4 + $0x70] sm:$0xff]
        %v2112 = vld [vmem:[#allocation4 + $0x78] sm:$0xff]
        %v2113 = vld [vmem:[#allocation4 + $0x80] sm:$0xff]
        %v2114 = vld [vmem:[#allocation4 + $0x88] sm:$0xff]
        %v2115 = vld [vmem:[#allocation4 + $0x90] sm:$0xff]
        %v2116 = vld [vmem:[#allocation4 + $0x98] sm:$0xff]
        %v2117 = vld [vmem:[#allocation4 + $0xa0] sm:$0xff]
        %v2118 = vld [vmem:[#allocation4 + $0xa8] sm:$0xff]
        %v2119 = vld [vmem:[#allocation4 + $0xb0] sm:$0xff]
        %v2120 = vld [vmem:[#allocation4 + $0xb8] sm:$0xff]
        %v2121 = vld [vmem:[#allocation4 + $0xc0] sm:$0xff]
        %v2122 = vld [vmem:[#allocation4 + $0xc8] sm:$0xff]
        %v2123 = vld [vmem:[#allocation4 + $0xd0] sm:$0xff]
        %v2124 = vld [vmem:[#allocation4 + $0xd8] sm:$0xff]
        %v2125 = vld [vmem:[#allocation4 + $0xe0] sm:$0xff]
        %v2126 = vld [vmem:[#allocation4 + $0xe8] sm:$0xff]
        %v2127 = vld [vmem:[#allocation4 + $0xf0] sm:$0xff]
        %v2128 = vld [vmem:[#allocation4 + $0xf8] sm:$0xff]
        %2130 = vset.pattern.permute.xlu0 0
        %2131 = vperm.xlu0 %2130, %v1553
        %v2132 = vpop.permute.xlu0 %2131
        %2135 = vset.pattern.permute.xlu0 0
        %2136 = vperm.xlu0 %2135, %v1555
        %v2137 = vpop.permute.xlu0 %2136
        %2140 = vset.pattern.permute.xlu0 0
        %2141 = vperm.xlu0 %2140, %v1557
        %v2142 = vpop.permute.xlu0 %2141
        %2145 = vset.pattern.permute.xlu0 0
        %2146 = vperm.xlu0 %2145, %v1559
        %v2147 = vpop.permute.xlu0 %2146
        %2150 = vset.pattern.permute.xlu0 0
        %2151 = vperm.xlu0 %2150, %v1561
        %v2152 = vpop.permute.xlu0 %2151
        %2155 = vset.pattern.permute.xlu0 0
        %2156 = vperm.xlu0 %2155, %v1563
        %v2157 = vpop.permute.xlu0 %2156
        %2160 = vset.pattern.permute.xlu0 0
        %2161 = vperm.xlu0 %2160, %v1565
        %v2162 = vpop.permute.xlu0 %2161
        %2165 = vset.pattern.permute.xlu0 0
        %2166 = vperm.xlu0 %2165, %v1567
        %v2167 = vpop.permute.xlu0 %2166
        %2170 = vset.pattern.permute.xlu0 0
        %2171 = vperm.xlu0 %2170, %v1569
        %v2172 = vpop.permute.xlu0 %2171
        %2175 = vset.pattern.permute.xlu0 0
        %2176 = vperm.xlu0 %2175, %v1571
        %v2177 = vpop.permute.xlu0 %2176
        %2180 = vset.pattern.permute.xlu0 0
        %2181 = vperm.xlu0 %2180, %v1573
        %v2182 = vpop.permute.xlu0 %2181
        %2185 = vset.pattern.permute.xlu0 0
        %2186 = vperm.xlu0 %2185, %v1575
        %v2187 = vpop.permute.xlu0 %2186
        %2190 = vset.pattern.permute.xlu0 0
        %2191 = vperm.xlu0 %2190, %v1577
        %v2192 = vpop.permute.xlu0 %2191
        %2195 = vset.pattern.permute.xlu0 0
        %2196 = vperm.xlu0 %2195, %v1579
        %v2197 = vpop.permute.xlu0 %2196
        %2200 = vset.pattern.permute.xlu0 0
        %2201 = vperm.xlu0 %2200, %v1581
        %v2202 = vpop.permute.xlu0 %2201
        %2205 = vset.pattern.permute.xlu0 0
        %2206 = vperm.xlu0 %2205, %v1583
        %v2207 = vpop.permute.xlu0 %2206
        %2210 = vset.pattern.permute.xlu0 0
        %2211 = vperm.xlu0 %2210, %v1585
        %v2212 = vpop.permute.xlu0 %2211
        %2215 = vset.pattern.permute.xlu0 0
        %2216 = vperm.xlu0 %2215, %v1587
        %v2217 = vpop.permute.xlu0 %2216
        %2220 = vset.pattern.permute.xlu0 0
        %2221 = vperm.xlu0 %2220, %v1589
        %v2222 = vpop.permute.xlu0 %2221
        %2225 = vset.pattern.permute.xlu0 0
        %2226 = vperm.xlu0 %2225, %v1591
        %v2227 = vpop.permute.xlu0 %2226
        %2230 = vset.pattern.permute.xlu0 0
        %2231 = vperm.xlu0 %2230, %v1593
        %v2232 = vpop.permute.xlu0 %2231
        %2235 = vset.pattern.permute.xlu0 0
        %2236 = vperm.xlu0 %2235, %v1595
        %v2237 = vpop.permute.xlu0 %2236
        %2240 = vset.pattern.permute.xlu0 0
        %2241 = vperm.xlu0 %2240, %v1597
        %v2242 = vpop.permute.xlu0 %2241
        %2245 = vset.pattern.permute.xlu0 0
        %2246 = vperm.xlu0 %2245, %v1599
        %v2247 = vpop.permute.xlu0 %2246
        %2250 = vset.pattern.permute.xlu0 0
        %2251 = vperm.xlu0 %2250, %v1601
        %v2252 = vpop.permute.xlu0 %2251
        %2255 = vset.pattern.permute.xlu0 0
        %2256 = vperm.xlu0 %2255, %v1603
        %v2257 = vpop.permute.xlu0 %2256
        %2260 = vset.pattern.permute.xlu0 0
        %2261 = vperm.xlu0 %2260, %v1605
        %v2262 = vpop.permute.xlu0 %2261
        %2265 = vset.pattern.permute.xlu0 0
        %2266 = vperm.xlu0 %2265, %v1607
        %v2267 = vpop.permute.xlu0 %2266
        %2270 = vset.pattern.permute.xlu0 0
        %2271 = vperm.xlu0 %2270, %v1609
        %v2272 = vpop.permute.xlu0 %2271
        %2275 = vset.pattern.permute.xlu0 0
        %2276 = vperm.xlu0 %2275, %v1611
        %v2277 = vpop.permute.xlu0 %2276
        %2280 = vset.pattern.permute.xlu0 0
        %2281 = vperm.xlu0 %2280, %v1613
        %v2282 = vpop.permute.xlu0 %2281
        %2285 = vset.pattern.permute.xlu0 0
        %2286 = vperm.xlu0 %2285, %v1615
        %v2287 = vpop.permute.xlu0 %2286
        %v2289 = vmul.f32 %v2132, %v2097
        %v2290 = vmul.f32 %v2137, %v2098
        %v2291 = vmul.f32 %v2142, %v2099
        %v2292 = vmul.f32 %v2147, %v2100
        %v2293 = vmul.f32 %v2152, %v2101
        %v2294 = vmul.f32 %v2157, %v2102
        %v2295 = vmul.f32 %v2162, %v2103
        %v2296 = vmul.f32 %v2167, %v2104
        %v2297 = vmul.f32 %v2172, %v2105
        %v2298 = vmul.f32 %v2177, %v2106
        %v2299 = vmul.f32 %v2182, %v2107
        %v2300 = vmul.f32 %v2187, %v2108
        %v2301 = vmul.f32 %v2192, %v2109
        %v2302 = vmul.f32 %v2197, %v2110
        %v2303 = vmul.f32 %v2202, %v2111
        %v2304 = vmul.f32 %v2207, %v2112
        %v2305 = vmul.f32 %v2212, %v2113
        %v2306 = vmul.f32 %v2217, %v2114
        %v2307 = vmul.f32 %v2222, %v2115
        %v2308 = vmul.f32 %v2227, %v2116
        %v2309 = vmul.f32 %v2232, %v2117
        %v2310 = vmul.f32 %v2237, %v2118
        %v2311 = vmul.f32 %v2242, %v2119
        %v2312 = vmul.f32 %v2247, %v2120
        %v2313 = vmul.f32 %v2252, %v2121
        %v2314 = vmul.f32 %v2257, %v2122
        %v2315 = vmul.f32 %v2262, %v2123
        %v2316 = vmul.f32 %v2267, %v2124
        %v2317 = vmul.f32 %v2272, %v2125
        %v2318 = vmul.f32 %v2277, %v2126
        %v2319 = vmul.f32 %v2282, %v2127
        %v2320 = vmul.f32 %v2287, %v2128
        %s2321 = sshra.s32 %s832, 3
        %s2322 = sand.u32 %s832, 7
        %s2323 = smul.addr %s2321, 4
        %s2324 = scalar_lea.vmem %s5, %s2323
        %v2325 = vld [vmem:[%s2324] sm:$0xf]
        %v2326 = vld [vmem:[%s2324 + $0x4] sm:$0xf]
        %v2327 = vld [vmem:[%s2324 + $0x8] sm:$0xf]
        %v2328 = vld [vmem:[%s2324 + $0xc] sm:$0xf]
        %v2329 = vld [vmem:[%s2324 + $0x10] sm:$0xf]
        %v2330 = vld [vmem:[%s2324 + $0x14] sm:$0xf]
        %v2331 = vld [vmem:[%s2324 + $0x18] sm:$0xf]
        %v2332 = vld [vmem:[%s2324 + $0x1c] sm:$0xf]
        %v2333 = vld [vmem:[%s2324 + $0x20] sm:$0xf]
        %v2334 = vld [vmem:[%s2324 + $0x24] sm:$0xf]
        %v2335 = vld [vmem:[%s2324 + $0x28] sm:$0xf]
        %v2336 = vld [vmem:[%s2324 + $0x2c] sm:$0xf]
        %v2337 = vld [vmem:[%s2324 + $0x30] sm:$0xf]
        %v2338 = vld [vmem:[%s2324 + $0x34] sm:$0xf]
        %v2339 = vld [vmem:[%s2324 + $0x38] sm:$0xf]
        %v2340 = vld [vmem:[%s2324 + $0x3c] sm:$0xf]
        %v2357 = vunpack.c.l.b16 %v2325
        %v2358 = vunpack.c.l.b16 %v2326
        %v2359 = vunpack.c.l.b16 %v2327
        %v2360 = vunpack.c.l.b16 %v2328
        %v2361 = vunpack.c.l.b16 %v2329
        %v2362 = vunpack.c.l.b16 %v2330
        %v2363 = vunpack.c.l.b16 %v2331
        %v2364 = vunpack.c.l.b16 %v2332
        %v2365 = vunpack.c.l.b16 %v2333
        %v2366 = vunpack.c.l.b16 %v2334
        %v2367 = vunpack.c.l.b16 %v2335
        %v2368 = vunpack.c.l.b16 %v2336
        %v2369 = vunpack.c.l.b16 %v2337
        %v2370 = vunpack.c.l.b16 %v2338
        %v2371 = vunpack.c.l.b16 %v2339
        %v2372 = vunpack.c.l.b16 %v2340
        %v2373 = vpack.c.b16 %v2358, %v2357
        %v2374 = vpack.c.b16 %v2360, %v2359
        %v2375 = vpack.c.b16 %v2362, %v2361
        %v2376 = vpack.c.b16 %v2364, %v2363
        %v2377 = vpack.c.b16 %v2366, %v2365
        %v2378 = vpack.c.b16 %v2368, %v2367
        %v2379 = vpack.c.b16 %v2370, %v2369
        %v2380 = vpack.c.b16 %v2372, %v2371
        %2389 = vmatprep.subr.bf16.mxu0 0
        %2390 = vmatpush1.bf16.msra.mxu0 %v2373
        %2391 = vmatprep.subr.bf16.mxu0 0
        %2392 = vmatpush1.bf16.msra.mxu0 %v2374
        %2393 = vmatprep.subr.bf16.mxu0 0
        %2394 = vmatpush1.bf16.msra.mxu0 %v2375
        %2395 = vmatprep.subr.bf16.mxu0 0
        %2396 = vmatpush1.bf16.msra.mxu0 %v2376
        %2397 = vmatprep.subr.bf16.mxu0 0
        %2398 = vmatpush1.bf16.msra.mxu0 %v2377
        %2399 = vmatprep.subr.bf16.mxu0 0
        %2400 = vmatpush1.bf16.msra.mxu0 %v2378
        %2401 = vmatprep.subr.bf16.mxu0 0
        %2402 = vmatpush1.bf16.msra.mxu0 %v2379
        %2403 = vmatprep.subr.bf16.mxu0 0
        %2404 = vmatpush1.bf16.msra.mxu0 %v2380
        %2405 = vmatprep.subr.bf16.mxu0 0
        %2406 = vmatpush1.bf16.msra.mxu0 0
        %2407 = vmatprep.subr.bf16.mxu0 0
        %2408 = vmatpush1.bf16.msra.mxu0 0
        %2409 = vmatprep.subr.bf16.mxu0 0
        %2410 = vmatpush1.bf16.msra.mxu0 0
        %2411 = vmatprep.subr.bf16.mxu0 0
        %2412 = vmatpush1.bf16.msra.mxu0 0
        %2413 = vmatprep.subr.bf16.mxu0 0
        %2414 = vmatpush1.bf16.msra.mxu0 0
        %2415 = vmatprep.subr.bf16.mxu0 0
        %2416 = vmatpush1.bf16.msra.mxu0 0
        %2417 = vmatprep.subr.bf16.mxu0 0
        %2418 = vmatpush1.bf16.msra.mxu0 0
        %2419 = vmatprep.subr.bf16.mxu0 0
        %2420 = vmatpush1.bf16.msra.mxu0 0
        %2421 = vmatprep.mubr.bf16.mxu0 0
        %2422 = vmatmul.mubr.bf16.gmra.mrb[0].mxu0 %v1826
        %v2423 = vpop.f32.mrb[0].mxu0
        %v2424 = vadd.f32 0.0, %v2423
        %v2425 = vpop.f32.mrb[0].mxu0
        %v2426 = vpop.f32.mrb[0].mxu0
        %v2427 = vadd.f32 0.0, %v2426
        %v2428 = vpop.f32.mrb[0].mxu0
        %2429 = vmatprep.mubr.bf16.mxu0 0
        %2430 = vmatmul.mubr.bf16.gmra.mrb[0].mxu0 %v1829
        %v2431 = vpop.f32.mrb[0].mxu0
        %v2432 = vadd.f32 0.0, %v2431
        %v2433 = vpop.f32.mrb[0].mxu0
        %v2434 = vpop.f32.mrb[0].mxu0
        %v2435 = vadd.f32 0.0, %v2434
        %v2436 = vpop.f32.mrb[0].mxu0
        %2437 = vmatprep.mubr.bf16.mxu0 0
        %2438 = vmatmul.mubr.bf16.gmra.mrb[0].mxu0 %v1832
        %v2439 = vpop.f32.mrb[0].mxu0
        %v2440 = vadd.f32 0.0, %v2439
        %v2441 = vpop.f32.mrb[0].mxu0
        %v2442 = vpop.f32.mrb[0].mxu0
        %v2443 = vadd.f32 0.0, %v2442
        %v2444 = vpop.f32.mrb[0].mxu0
        %2445 = vmatprep.mubr.bf16.mxu0 0
        %2446 = vmatmul.mubr.bf16.gmra.mrb[0].mxu0 %v1835
        %v2447 = vpop.f32.mrb[0].mxu0
        %v2448 = vadd.f32 0.0, %v2447
        %v2449 = vpop.f32.mrb[0].mxu0
        %v2450 = vpop.f32.mrb[0].mxu0
        %v2451 = vadd.f32 0.0, %v2450
        %v2452 = vpop.f32.mrb[0].mxu0
        %2453 = vmatprep.mubr.bf16.mxu0 0
        %2454 = vmatmul.mubr.bf16.gmra.mrb[0].mxu0 %v1838
        %v2455 = vpop.f32.mrb[0].mxu0
        %v2456 = vadd.f32 0.0, %v2455
        %v2457 = vpop.f32.mrb[0].mxu0
        %v2458 = vpop.f32.mrb[0].mxu0
        %v2459 = vadd.f32 0.0, %v2458
        %v2460 = vpop.f32.mrb[0].mxu0
        %2461 = vmatprep.mubr.bf16.mxu0 0
        %2462 = vmatmul.mubr.bf16.gmra.mrb[0].mxu0 %v1841
        %v2463 = vpop.f32.mrb[0].mxu0
        %v2464 = vadd.f32 0.0, %v2463
        %v2465 = vpop.f32.mrb[0].mxu0
        %v2466 = vpop.f32.mrb[0].mxu0
        %v2467 = vadd.f32 0.0, %v2466
        %v2468 = vpop.f32.mrb[0].mxu0
        %2469 = vmatprep.mubr.bf16.mxu0 0
        %2470 = vmatmul.mubr.bf16.gmra.mrb[0].mxu0 %v1844
        %v2471 = vpop.f32.mrb[0].mxu0
        %v2472 = vadd.f32 0.0, %v2471
        %v2473 = vpop.f32.mrb[0].mxu0
        %v2474 = vpop.f32.mrb[0].mxu0
        %v2475 = vadd.f32 0.0, %v2474
        %v2476 = vpop.f32.mrb[0].mxu0
        %2477 = vmatprep.mubr.bf16.mxu0 0
        %2478 = vmatmul.mubr.bf16.gmra.mrb[0].mxu0 %v1847
        %v2479 = vpop.f32.mrb[0].mxu0
        %v2480 = vadd.f32 0.0, %v2479
        %v2481 = vpop.f32.mrb[0].mxu0
        %v2482 = vpop.f32.mrb[0].mxu0
        %v2483 = vadd.f32 0.0, %v2482
        %v2484 = vpop.f32.mrb[0].mxu0
        %2485 = vmatprep.mubr.bf16.mxu0 0
        %2486 = vmatmul.mubr.bf16.gmra.mrb[0].mxu0 %v1850
        %v2487 = vpop.f32.mrb[0].mxu0
        %v2488 = vadd.f32 0.0, %v2487
        %v2489 = vpop.f32.mrb[0].mxu0
        %v2490 = vpop.f32.mrb[0].mxu0
        %v2491 = vadd.f32 0.0, %v2490
        %v2492 = vpop.f32.mrb[0].mxu0
        %2493 = vmatprep.mubr.bf16.mxu0 0
        %2494 = vmatmul.mubr.bf16.gmra.mrb[0].mxu0 %v1853
        %v2495 = vpop.f32.mrb[0].mxu0
        %v2496 = vadd.f32 0.0, %v2495
        %v2497 = vpop.f32.mrb[0].mxu0
        %v2498 = vpop.f32.mrb[0].mxu0
        %v2499 = vadd.f32 0.0, %v2498
        %v2500 = vpop.f32.mrb[0].mxu0
        %2501 = vmatprep.mubr.bf16.mxu0 0
        %2502 = vmatmul.mubr.bf16.gmra.mrb[0].mxu0 %v1856
        %v2503 = vpop.f32.mrb[0].mxu0
        %v2504 = vadd.f32 0.0, %v2503
        %v2505 = vpop.f32.mrb[0].mxu0
        %v2506 = vpop.f32.mrb[0].mxu0
        %v2507 = vadd.f32 0.0, %v2506
        %v2508 = vpop.f32.mrb[0].mxu0
        %2509 = vmatprep.mubr.bf16.mxu0 0
        %2510 = vmatmul.mubr.bf16.gmra.mrb[0].mxu0 %v1859
        %v2511 = vpop.f32.mrb[0].mxu0
        %v2512 = vadd.f32 0.0, %v2511
        %v2513 = vpop.f32.mrb[0].mxu0
        %v2514 = vpop.f32.mrb[0].mxu0
        %v2515 = vadd.f32 0.0, %v2514
        %v2516 = vpop.f32.mrb[0].mxu0
        %2517 = vmatprep.mubr.bf16.mxu0 0
        %2518 = vmatmul.mubr.bf16.gmra.mrb[0].mxu0 %v1862
        %v2519 = vpop.f32.mrb[0].mxu0
        %v2520 = vadd.f32 0.0, %v2519
        %v2521 = vpop.f32.mrb[0].mxu0
        %v2522 = vpop.f32.mrb[0].mxu0
        %v2523 = vadd.f32 0.0, %v2522
        %v2524 = vpop.f32.mrb[0].mxu0
        %2525 = vmatprep.mubr.bf16.mxu0 0
        %2526 = vmatmul.mubr.bf16.gmra.mrb[0].mxu0 %v1865
        %v2527 = vpop.f32.mrb[0].mxu0
        %v2528 = vadd.f32 0.0, %v2527
        %v2529 = vpop.f32.mrb[0].mxu0
        %v2530 = vpop.f32.mrb[0].mxu0
        %v2531 = vadd.f32 0.0, %v2530
        %v2532 = vpop.f32.mrb[0].mxu0
        %2533 = vmatprep.mubr.bf16.mxu0 0
        %2534 = vmatmul.mubr.bf16.gmra.mrb[0].mxu0 %v1868
        %v2535 = vpop.f32.mrb[0].mxu0
        %v2536 = vadd.f32 0.0, %v2535
        %v2537 = vpop.f32.mrb[0].mxu0
        %v2538 = vpop.f32.mrb[0].mxu0
        %v2539 = vadd.f32 0.0, %v2538
        %v2540 = vpop.f32.mrb[0].mxu0
        %2541 = vmatprep.mubr.bf16.mxu0 0
        %2542 = vmatmul.mubr.bf16.gmra.mrb[0].mxu0 %v1871
        %v2543 = vpop.f32.mrb[0].mxu0
        %v2544 = vadd.f32 0.0, %v2543
        %v2545 = vpop.f32.mrb[0].mxu0
        %v2546 = vpop.f32.mrb[0].mxu0
        %v2547 = vadd.f32 0.0, %v2546
        %v2548 = vpop.f32.mrb[0].mxu0
        %2549 = vdwg.mxu0
        %v2550 = vadd.f32 %v2289, %v2424
        %v2551 = vadd.f32 %v2290, %v2427
        %v2552 = vadd.f32 %v2291, %v2432
        %v2553 = vadd.f32 %v2292, %v2435
        %v2554 = vadd.f32 %v2293, %v2440
        %v2555 = vadd.f32 %v2294, %v2443
        %v2556 = vadd.f32 %v2295, %v2448
        %v2557 = vadd.f32 %v2296, %v2451
        %v2558 = vadd.f32 %v2297, %v2456
        %v2559 = vadd.f32 %v2298, %v2459
        %v2560 = vadd.f32 %v2299, %v2464
        %v2561 = vadd.f32 %v2300, %v2467
        %v2562 = vadd.f32 %v2301, %v2472
        %v2563 = vadd.f32 %v2302, %v2475
        %v2564 = vadd.f32 %v2303, %v2480
        %v2565 = vadd.f32 %v2304, %v2483
        %v2566 = vadd.f32 %v2305, %v2488
        %v2567 = vadd.f32 %v2306, %v2491
        %v2568 = vadd.f32 %v2307, %v2496
        %v2569 = vadd.f32 %v2308, %v2499
        %v2570 = vadd.f32 %v2309, %v2504
        %v2571 = vadd.f32 %v2310, %v2507
        %v2572 = vadd.f32 %v2311, %v2512
        %v2573 = vadd.f32 %v2312, %v2515
        %v2574 = vadd.f32 %v2313, %v2520
        %v2575 = vadd.f32 %v2314, %v2523
        %v2576 = vadd.f32 %v2315, %v2528
        %v2577 = vadd.f32 %v2316, %v2531
        %v2578 = vadd.f32 %v2317, %v2536
        %v2579 = vadd.f32 %v2318, %v2539
        %v2580 = vadd.f32 %v2319, %v2544
        %v2581 = vadd.f32 %v2320, %v2547
        %2582 = vst [vmem:[#allocation4] sm:$0xff] %v2550
        %2583 = vst [vmem:[#allocation4 + $0x8] sm:$0xff] %v2551
        %2584 = vst [vmem:[#allocation4 + $0x10] sm:$0xff] %v2552
        %2585 = vst [vmem:[#allocation4 + $0x18] sm:$0xff] %v2553
        %2586 = vst [vmem:[#allocation4 + $0x20] sm:$0xff] %v2554
        %2587 = vst [vmem:[#allocation4 + $0x28] sm:$0xff] %v2555
        %2588 = vst [vmem:[#allocation4 + $0x30] sm:$0xff] %v2556
        %2589 = vst [vmem:[#allocation4 + $0x38] sm:$0xff] %v2557
        %2590 = vst [vmem:[#allocation4 + $0x40] sm:$0xff] %v2558
        %2591 = vst [vmem:[#allocation4 + $0x48] sm:$0xff] %v2559
        %2592 = vst [vmem:[#allocation4 + $0x50] sm:$0xff] %v2560
        %2593 = vst [vmem:[#allocation4 + $0x58] sm:$0xff] %v2561
        %2594 = vst [vmem:[#allocation4 + $0x60] sm:$0xff] %v2562
        %2595 = vst [vmem:[#allocation4 + $0x68] sm:$0xff] %v2563
        %2596 = vst [vmem:[#allocation4 + $0x70] sm:$0xff] %v2564
        %2597 = vst [vmem:[#allocation4 + $0x78] sm:$0xff] %v2565
        %2598 = vst [vmem:[#allocation4 + $0x80] sm:$0xff] %v2566
        %2599 = vst [vmem:[#allocation4 + $0x88] sm:$0xff] %v2567
        %2600 = vst [vmem:[#allocation4 + $0x90] sm:$0xff] %v2568
        %2601 = vst [vmem:[#allocation4 + $0x98] sm:$0xff] %v2569
        %2602 = vst [vmem:[#allocation4 + $0xa0] sm:$0xff] %v2570
        %2603 = vst [vmem:[#allocation4 + $0xa8] sm:$0xff] %v2571
        %2604 = vst [vmem:[#allocation4 + $0xb0] sm:$0xff] %v2572
        %2605 = vst [vmem:[#allocation4 + $0xb8] sm:$0xff] %v2573
        %2606 = vst [vmem:[#allocation4 + $0xc0] sm:$0xff] %v2574
        %2607 = vst [vmem:[#allocation4 + $0xc8] sm:$0xff] %v2575
        %2608 = vst [vmem:[#allocation4 + $0xd0] sm:$0xff] %v2576
        %2609 = vst [vmem:[#allocation4 + $0xd8] sm:$0xff] %v2577
        %2610 = vst [vmem:[#allocation4 + $0xe0] sm:$0xff] %v2578
        %2611 = vst [vmem:[#allocation4 + $0xe8] sm:$0xff] %v2579
        %2612 = vst [vmem:[#allocation4 + $0xf0] sm:$0xff] %v2580
        %2613 = vst [vmem:[#allocation4 + $0xf8] sm:$0xff] %v2581
        %2614 = vst.msk [vmem:[#allocation2] sm:$0xff] %vm2064, %v1488
        %2615 = vst.msk [vmem:[#allocation2 + $0x8] sm:$0xff] %vm2064, %v1489
        %2616 = vst.msk [vmem:[#allocation2 + $0x10] sm:$0xff] %vm2064, %v1490
        %2617 = vst.msk [vmem:[#allocation2 + $0x18] sm:$0xff] %vm2064, %v1491
        %2618 = vst.msk [vmem:[#allocation2 + $0x20] sm:$0xff] %vm2064, %v1492
        %2619 = vst.msk [vmem:[#allocation2 + $0x28] sm:$0xff] %vm2064, %v1493
        %2620 = vst.msk [vmem:[#allocation2 + $0x30] sm:$0xff] %vm2064, %v1494
        %2621 = vst.msk [vmem:[#allocation2 + $0x38] sm:$0xff] %vm2064, %v1495
        %2622 = vst.msk [vmem:[#allocation2 + $0x40] sm:$0xff] %vm2064, %v1496
        %2623 = vst.msk [vmem:[#allocation2 + $0x48] sm:$0xff] %vm2064, %v1497
        %2624 = vst.msk [vmem:[#allocation2 + $0x50] sm:$0xff] %vm2064, %v1498
        %2625 = vst.msk [vmem:[#allocation2 + $0x58] sm:$0xff] %vm2064, %v1499
        %2626 = vst.msk [vmem:[#allocation2 + $0x60] sm:$0xff] %vm2064, %v1500
        %2627 = vst.msk [vmem:[#allocation2 + $0x68] sm:$0xff] %vm2064, %v1501
        %2628 = vst.msk [vmem:[#allocation2 + $0x70] sm:$0xff] %vm2064, %v1502
        %2629 = vst.msk [vmem:[#allocation2 + $0x78] sm:$0xff] %vm2064, %v1503
        %2630 = vst.msk [vmem:[#allocation2 + $0x80] sm:$0xff] %vm2064, %v1504
        %2631 = vst.msk [vmem:[#allocation2 + $0x88] sm:$0xff] %vm2064, %v1505
        %2632 = vst.msk [vmem:[#allocation2 + $0x90] sm:$0xff] %vm2064, %v1506
        %2633 = vst.msk [vmem:[#allocation2 + $0x98] sm:$0xff] %vm2064, %v1507
        %2634 = vst.msk [vmem:[#allocation2 + $0xa0] sm:$0xff] %vm2064, %v1508
        %2635 = vst.msk [vmem:[#allocation2 + $0xa8] sm:$0xff] %vm2064, %v1509
        %2636 = vst.msk [vmem:[#allocation2 + $0xb0] sm:$0xff] %vm2064, %v1510
        %2637 = vst.msk [vmem:[#allocation2 + $0xb8] sm:$0xff] %vm2064, %v1511
        %2638 = vst.msk [vmem:[#allocation2 + $0xc0] sm:$0xff] %vm2064, %v1512
        %2639 = vst.msk [vmem:[#allocation2 + $0xc8] sm:$0xff] %vm2064, %v1513
        %2640 = vst.msk [vmem:[#allocation2 + $0xd0] sm:$0xff] %vm2064, %v1514
        %2641 = vst.msk [vmem:[#allocation2 + $0xd8] sm:$0xff] %vm2064, %v1515
        %2642 = vst.msk [vmem:[#allocation2 + $0xe0] sm:$0xff] %vm2064, %v1516
        %2643 = vst.msk [vmem:[#allocation2 + $0xe8] sm:$0xff] %vm2064, %v1517
        %2644 = vst.msk [vmem:[#allocation2 + $0xf0] sm:$0xff] %vm2064, %v1518
        %2645 = vst.msk [vmem:[#allocation2 + $0xf8] sm:$0xff] %vm2064, %v1519
        %v2646 = vld [vmem:[%s586] sm:$0xff]
        %v2647 = vld [vmem:[%s586 + $0x8] sm:$0xff]
        %v2648 = vld [vmem:[%s586 + $0x10] sm:$0xff]
        %v2649 = vld [vmem:[%s586 + $0x18] sm:$0xff]
        %v2650 = vld [vmem:[%s586 + $0x20] sm:$0xff]
        %v2651 = vld [vmem:[%s586 + $0x28] sm:$0xff]
        %v2652 = vld [vmem:[%s586 + $0x30] sm:$0xff]
        %v2653 = vld [vmem:[%s586 + $0x38] sm:$0xff]
        %v2654 = vld [vmem:[%s586 + $0x40] sm:$0xff]
        %v2655 = vld [vmem:[%s586 + $0x48] sm:$0xff]
        %v2656 = vld [vmem:[%s586 + $0x50] sm:$0xff]
        %v2657 = vld [vmem:[%s586 + $0x58] sm:$0xff]
        %v2658 = vld [vmem:[%s586 + $0x60] sm:$0xff]
        %v2659 = vld [vmem:[%s586 + $0x68] sm:$0xff]
        %v2660 = vld [vmem:[%s586 + $0x70] sm:$0xff]
        %v2661 = vld [vmem:[%s586 + $0x78] sm:$0xff]
        %v2662 = vld [vmem:[%s586 + $0x80] sm:$0xff]
        %v2663 = vld [vmem:[%s586 + $0x88] sm:$0xff]
        %v2664 = vld [vmem:[%s586 + $0x90] sm:$0xff]
        %v2665 = vld [vmem:[%s586 + $0x98] sm:$0xff]
        %v2666 = vld [vmem:[%s586 + $0xa0] sm:$0xff]
        %v2667 = vld [vmem:[%s586 + $0xa8] sm:$0xff]
        %v2668 = vld [vmem:[%s586 + $0xb0] sm:$0xff]
        %v2669 = vld [vmem:[%s586 + $0xb8] sm:$0xff]
        %v2670 = vld [vmem:[%s586 + $0xc0] sm:$0xff]
        %v2671 = vld [vmem:[%s586 + $0xc8] sm:$0xff]
        %v2672 = vld [vmem:[%s586 + $0xd0] sm:$0xff]
        %v2673 = vld [vmem:[%s586 + $0xd8] sm:$0xff]
        %v2674 = vld [vmem:[%s586 + $0xe0] sm:$0xff]
        %v2675 = vld [vmem:[%s586 + $0xe8] sm:$0xff]
        %v2676 = vld [vmem:[%s586 + $0xf0] sm:$0xff]
        %v2677 = vld [vmem:[%s586 + $0xf8] sm:$0xff]
        %v2678 = vld [vmem:[%s590] sm:$0x1]
        %2680 = vset.pattern.permute.xlu0 0
        %2681 = vperm.xlu0 %2680, %v2646
        %v2682 = vpop.permute.xlu0 %2681
        %2685 = vset.pattern.permute.xlu0 0
        %2686 = vperm.xlu0 %2685, %v2647
        %v2687 = vpop.permute.xlu0 %2686
        %2690 = vset.pattern.permute.xlu0 0
        %2691 = vperm.xlu0 %2690, %v2648
        %v2692 = vpop.permute.xlu0 %2691
        %2695 = vset.pattern.permute.xlu0 0
        %2696 = vperm.xlu0 %2695, %v2649
        %v2697 = vpop.permute.xlu0 %2696
        %2700 = vset.pattern.permute.xlu0 0
        %2701 = vperm.xlu0 %2700, %v2650
        %v2702 = vpop.permute.xlu0 %2701
        %2705 = vset.pattern.permute.xlu0 0
        %2706 = vperm.xlu0 %2705, %v2651
        %v2707 = vpop.permute.xlu0 %2706
        %2710 = vset.pattern.permute.xlu0 0
        %2711 = vperm.xlu0 %2710, %v2652
        %v2712 = vpop.permute.xlu0 %2711
        %2715 = vset.pattern.permute.xlu0 0
        %2716 = vperm.xlu0 %2715, %v2653
        %v2717 = vpop.permute.xlu0 %2716
        %2720 = vset.pattern.permute.xlu0 0
        %2721 = vperm.xlu0 %2720, %v2654
        %v2722 = vpop.permute.xlu0 %2721
        %2725 = vset.pattern.permute.xlu0 0
        %2726 = vperm.xlu0 %2725, %v2655
        %v2727 = vpop.permute.xlu0 %2726
        %2730 = vset.pattern.permute.xlu0 0
        %2731 = vperm.xlu0 %2730, %v2656
        %v2732 = vpop.permute.xlu0 %2731
        %2735 = vset.pattern.permute.xlu0 0
        %2736 = vperm.xlu0 %2735, %v2657
        %v2737 = vpop.permute.xlu0 %2736
        %2740 = vset.pattern.permute.xlu0 0
        %2741 = vperm.xlu0 %2740, %v2658
        %v2742 = vpop.permute.xlu0 %2741
        %2745 = vset.pattern.permute.xlu0 0
        %2746 = vperm.xlu0 %2745, %v2659
        %v2747 = vpop.permute.xlu0 %2746
        %2750 = vset.pattern.permute.xlu0 0
        %2751 = vperm.xlu0 %2750, %v2660
        %v2752 = vpop.permute.xlu0 %2751
        %2755 = vset.pattern.permute.xlu0 0
        %2756 = vperm.xlu0 %2755, %v2661
        %v2757 = vpop.permute.xlu0 %2756
        %2760 = vset.pattern.permute.xlu0 0
        %2761 = vperm.xlu0 %2760, %v2662
        %v2762 = vpop.permute.xlu0 %2761
        %2765 = vset.pattern.permute.xlu0 0
        %2766 = vperm.xlu0 %2765, %v2663
        %v2767 = vpop.permute.xlu0 %2766
        %2770 = vset.pattern.permute.xlu0 0
        %2771 = vperm.xlu0 %2770, %v2664
        %v2772 = vpop.permute.xlu0 %2771
        %2775 = vset.pattern.permute.xlu0 0
        %2776 = vperm.xlu0 %2775, %v2665
        %v2777 = vpop.permute.xlu0 %2776
        %2780 = vset.pattern.permute.xlu0 0
        %2781 = vperm.xlu0 %2780, %v2666
        %v2782 = vpop.permute.xlu0 %2781
        %2785 = vset.pattern.permute.xlu0 0
        %2786 = vperm.xlu0 %2785, %v2667
        %v2787 = vpop.permute.xlu0 %2786
        %2790 = vset.pattern.permute.xlu0 0
        %2791 = vperm.xlu0 %2790, %v2668
        %v2792 = vpop.permute.xlu0 %2791
        %2795 = vset.pattern.permute.xlu0 0
        %2796 = vperm.xlu0 %2795, %v2669
        %v2797 = vpop.permute.xlu0 %2796
        %2800 = vset.pattern.permute.xlu0 0
        %2801 = vperm.xlu0 %2800, %v2670
        %v2802 = vpop.permute.xlu0 %2801
        %2805 = vset.pattern.permute.xlu0 0
        %2806 = vperm.xlu0 %2805, %v2671
        %v2807 = vpop.permute.xlu0 %2806
        %2810 = vset.pattern.permute.xlu0 0
        %2811 = vperm.xlu0 %2810, %v2672
        %v2812 = vpop.permute.xlu0 %2811
        %2815 = vset.pattern.permute.xlu0 0
        %2816 = vperm.xlu0 %2815, %v2673
        %v2817 = vpop.permute.xlu0 %2816
        %2820 = vset.pattern.permute.xlu0 0
        %2821 = vperm.xlu0 %2820, %v2674
        %v2822 = vpop.permute.xlu0 %2821
        %2825 = vset.pattern.permute.xlu0 0
        %2826 = vperm.xlu0 %2825, %v2675
        %v2827 = vpop.permute.xlu0 %2826
        %2830 = vset.pattern.permute.xlu0 0
        %2831 = vperm.xlu0 %2830, %v2676
        %v2832 = vpop.permute.xlu0 %2831
        %2835 = vset.pattern.permute.xlu0 0
        %2836 = vperm.xlu0 %2835, %v2677
        %v2837 = vpop.permute.xlu0 %2836
        %v2840 = vlaneseq
        %v2841 = vshrl.u32 %v2840, 7
        %v2842 = vsub.s32 0, %v2841
        %v2843 = vrot.slane %v2678, %v2842
        %v2845 = vadd.f32 %v2682, %v2843
        %v2846 = vadd.f32 %v2687, %v2843
        %v2847 = vadd.f32 %v2692, %v2843
        %v2848 = vadd.f32 %v2697, %v2843
        %v2849 = vadd.f32 %v2702, %v2843
        %v2850 = vadd.f32 %v2707, %v2843
        %v2851 = vadd.f32 %v2712, %v2843
        %v2852 = vadd.f32 %v2717, %v2843
        %v2853 = vadd.f32 %v2722, %v2843
        %v2854 = vadd.f32 %v2727, %v2843
        %v2855 = vadd.f32 %v2732, %v2843
        %v2856 = vadd.f32 %v2737, %v2843
        %v2857 = vadd.f32 %v2742, %v2843
        %v2858 = vadd.f32 %v2747, %v2843
        %v2859 = vadd.f32 %v2752, %v2843
        %v2860 = vadd.f32 %v2757, %v2843
        %v2861 = vadd.f32 %v2762, %v2843
        %v2862 = vadd.f32 %v2767, %v2843
        %v2863 = vadd.f32 %v2772, %v2843
        %v2864 = vadd.f32 %v2777, %v2843
        %v2865 = vadd.f32 %v2782, %v2843
        %v2866 = vadd.f32 %v2787, %v2843
        %v2867 = vadd.f32 %v2792, %v2843
        %v2868 = vadd.f32 %v2797, %v2843
        %v2869 = vadd.f32 %v2802, %v2843
        %v2870 = vadd.f32 %v2807, %v2843
        %v2871 = vadd.f32 %v2812, %v2843
        %v2872 = vadd.f32 %v2817, %v2843
        %v2873 = vadd.f32 %v2822, %v2843
        %v2874 = vadd.f32 %v2827, %v2843
        %v2875 = vadd.f32 %v2832, %v2843
        %v2876 = vadd.f32 %v2837, %v2843
        %v2877 = vmul.f32 %v2845, 0.2
        %v2878 = vmul.f32 %v2846, 0.2
        %v2879 = vmul.f32 %v2847, 0.2
        %v2880 = vmul.f32 %v2848, 0.2
        %v2881 = vmul.f32 %v2849, 0.2
        %v2882 = vmul.f32 %v2850, 0.2
        %v2883 = vmul.f32 %v2851, 0.2
        %v2884 = vmul.f32 %v2852, 0.2
        %v2885 = vmul.f32 %v2853, 0.2
        %v2886 = vmul.f32 %v2854, 0.2
        %v2887 = vmul.f32 %v2855, 0.2
        %v2888 = vmul.f32 %v2856, 0.2
        %v2889 = vmul.f32 %v2857, 0.2
        %v2890 = vmul.f32 %v2858, 0.2
        %v2891 = vmul.f32 %v2859, 0.2
        %v2892 = vmul.f32 %v2860, 0.2
        %v2893 = vmul.f32 %v2861, 0.2
        %v2894 = vmul.f32 %v2862, 0.2
        %v2895 = vmul.f32 %v2863, 0.2
        %v2896 = vmul.f32 %v2864, 0.2
        %v2897 = vmul.f32 %v2865, 0.2
        %v2898 = vmul.f32 %v2866, 0.2
        %v2899 = vmul.f32 %v2867, 0.2
        %v2900 = vmul.f32 %v2868, 0.2
        %v2901 = vmul.f32 %v2869, 0.2
        %v2902 = vmul.f32 %v2870, 0.2
        %v2903 = vmul.f32 %v2871, 0.2
        %v2904 = vmul.f32 %v2872, 0.2
        %v2905 = vmul.f32 %v2873, 0.2
        %v2906 = vmul.f32 %v2874, 0.2
        %v2907 = vmul.f32 %v2875, 0.2
        %v2908 = vmul.f32 %v2876, 0.2
        %v2909 = vmax.f32 %v2845, %v2877
        %v2910 = vmax.f32 %v2846, %v2878
        %v2911 = vmax.f32 %v2847, %v2879
        %v2912 = vmax.f32 %v2848, %v2880
        %v2913 = vmax.f32 %v2849, %v2881
        %v2914 = vmax.f32 %v2850, %v2882
        %v2915 = vmax.f32 %v2851, %v2883
        %v2916 = vmax.f32 %v2852, %v2884
        %v2917 = vmax.f32 %v2853, %v2885
        %v2918 = vmax.f32 %v2854, %v2886
        %v2919 = vmax.f32 %v2855, %v2887
        %v2920 = vmax.f32 %v2856, %v2888
        %v2921 = vmax.f32 %v2857, %v2889
        %v2922 = vmax.f32 %v2858, %v2890
        %v2923 = vmax.f32 %v2859, %v2891
        %v2924 = vmax.f32 %v2860, %v2892
        %v2925 = vmax.f32 %v2861, %v2893
        %v2926 = vmax.f32 %v2862, %v2894
        %v2927 = vmax.f32 %v2863, %v2895
        %v2928 = vmax.f32 %v2864, %v2896
        %v2929 = vmax.f32 %v2865, %v2897
        %v2930 = vmax.f32 %v2866, %v2898
        %v2931 = vmax.f32 %v2867, %v2899
        %v2932 = vmax.f32 %v2868, %v2900
        %v2933 = vmax.f32 %v2869, %v2901
        %v2934 = vmax.f32 %v2870, %v2902
        %v2935 = vmax.f32 %v2871, %v2903
        %v2936 = vmax.f32 %v2872, %v2904
        %v2937 = vmax.f32 %v2873, %v2905
        %v2938 = vmax.f32 %v2874, %v2906
        %v2939 = vmax.f32 %v2875, %v2907
        %v2940 = vmax.f32 %v2876, %v2908
        %v2941 = vsel %vm1328, %v2909, -9e+15
        %v2942 = vsel %vm1329, %v2910, -9e+15
        %v2943 = vsel %vm1330, %v2911, -9e+15
        %v2944 = vsel %vm1331, %v2912, -9e+15
        %v2945 = vsel %vm1332, %v2913, -9e+15
        %v2946 = vsel %vm1333, %v2914, -9e+15
        %v2947 = vsel %vm1334, %v2915, -9e+15
        %v2948 = vsel %vm1335, %v2916, -9e+15
        %v2949 = vsel %vm1336, %v2917, -9e+15
        %v2950 = vsel %vm1337, %v2918, -9e+15
        %v2951 = vsel %vm1338, %v2919, -9e+15
        %v2952 = vsel %vm1339, %v2920, -9e+15
        %v2953 = vsel %vm1340, %v2921, -9e+15
        %v2954 = vsel %vm1341, %v2922, -9e+15
        %v2955 = vsel %vm1342, %v2923, -9e+15
        %v2956 = vsel %vm1343, %v2924, -9e+15
        %v2957 = vsel %vm1344, %v2925, -9e+15
        %v2958 = vsel %vm1345, %v2926, -9e+15
        %v2959 = vsel %vm1346, %v2927, -9e+15
        %v2960 = vsel %vm1347, %v2928, -9e+15
        %v2961 = vsel %vm1348, %v2929, -9e+15
        %v2962 = vsel %vm1349, %v2930, -9e+15
        %v2963 = vsel %vm1350, %v2931, -9e+15
        %v2964 = vsel %vm1351, %v2932, -9e+15
        %v2965 = vsel %vm1352, %v2933, -9e+15
        %v2966 = vsel %vm1353, %v2934, -9e+15
        %v2967 = vsel %vm1354, %v2935, -9e+15
        %v2968 = vsel %vm1355, %v2936, -9e+15
        %v2969 = vsel %vm1356, %v2937, -9e+15
        %v2970 = vsel %vm1357, %v2938, -9e+15
        %v2971 = vsel %vm1358, %v2939, -9e+15
        %v2972 = vsel %vm1359, %v2940, -9e+15
        %v2973 = vld [vmem:[#allocation5] sm:$0xff]
        %v2974 = vld [vmem:[#allocation5 + $0x8] sm:$0xff]
        %v2975 = vld [vmem:[#allocation5 + $0x10] sm:$0xff]
        %v2976 = vld [vmem:[#allocation5 + $0x18] sm:$0xff]
        %v2977 = vld [vmem:[#allocation5 + $0x20] sm:$0xff]
        %v2978 = vld [vmem:[#allocation5 + $0x28] sm:$0xff]
        %v2979 = vld [vmem:[#allocation5 + $0x30] sm:$0xff]
        %v2980 = vld [vmem:[#allocation5 + $0x38] sm:$0xff]
        %v2981 = vld [vmem:[#allocation5 + $0x40] sm:$0xff]
        %v2982 = vld [vmem:[#allocation5 + $0x48] sm:$0xff]
        %v2983 = vld [vmem:[#allocation5 + $0x50] sm:$0xff]
        %v2984 = vld [vmem:[#allocation5 + $0x58] sm:$0xff]
        %v2985 = vld [vmem:[#allocation5 + $0x60] sm:$0xff]
        %v2986 = vld [vmem:[#allocation5 + $0x68] sm:$0xff]
        %v2987 = vld [vmem:[#allocation5 + $0x70] sm:$0xff]
        %v2988 = vld [vmem:[#allocation5 + $0x78] sm:$0xff]
        %v2989 = vld [vmem:[#allocation5 + $0x80] sm:$0xff]
        %v2990 = vld [vmem:[#allocation5 + $0x88] sm:$0xff]
        %v2991 = vld [vmem:[#allocation5 + $0x90] sm:$0xff]
        %v2992 = vld [vmem:[#allocation5 + $0x98] sm:$0xff]
        %v2993 = vld [vmem:[#allocation5 + $0xa0] sm:$0xff]
        %v2994 = vld [vmem:[#allocation5 + $0xa8] sm:$0xff]
        %v2995 = vld [vmem:[#allocation5 + $0xb0] sm:$0xff]
        %v2996 = vld [vmem:[#allocation5 + $0xb8] sm:$0xff]
        %v2997 = vld [vmem:[#allocation5 + $0xc0] sm:$0xff]
        %v2998 = vld [vmem:[#allocation5 + $0xc8] sm:$0xff]
        %v2999 = vld [vmem:[#allocation5 + $0xd0] sm:$0xff]
        %v3000 = vld [vmem:[#allocation5 + $0xd8] sm:$0xff]
        %v3001 = vld [vmem:[#allocation5 + $0xe0] sm:$0xff]
        %v3002 = vld [vmem:[#allocation5 + $0xe8] sm:$0xff]
        %v3003 = vld [vmem:[#allocation5 + $0xf0] sm:$0xff]
        %v3004 = vld [vmem:[#allocation5 + $0xf8] sm:$0xff]
        %3005 = vmax.xlane.f32.xlu0 %v2941
        %v3006 = vpop.xlane.xlu0 %3005
        %3007 = vmax.xlane.f32.xlu0 %v2942
        %v3008 = vpop.xlane.xlu0 %3007
        %3009 = vmax.xlane.f32.xlu0 %v2943
        %v3010 = vpop.xlane.xlu0 %3009
        %3011 = vmax.xlane.f32.xlu0 %v2944
        %v3012 = vpop.xlane.xlu0 %3011
        %3013 = vmax.xlane.f32.xlu0 %v2945
        %v3014 = vpop.xlane.xlu0 %3013
        %3015 = vmax.xlane.f32.xlu0 %v2946
        %v3016 = vpop.xlane.xlu0 %3015
        %3017 = vmax.xlane.f32.xlu0 %v2947
        %v3018 = vpop.xlane.xlu0 %3017
        %3019 = vmax.xlane.f32.xlu0 %v2948
        %v3020 = vpop.xlane.xlu0 %3019
        %3021 = vmax.xlane.f32.xlu0 %v2949
        %v3022 = vpop.xlane.xlu0 %3021
        %3023 = vmax.xlane.f32.xlu0 %v2950
        %v3024 = vpop.xlane.xlu0 %3023
        %3025 = vmax.xlane.f32.xlu0 %v2951
        %v3026 = vpop.xlane.xlu0 %3025
        %3027 = vmax.xlane.f32.xlu0 %v2952
        %v3028 = vpop.xlane.xlu0 %3027
        %3029 = vmax.xlane.f32.xlu0 %v2953
        %v3030 = vpop.xlane.xlu0 %3029
        %3031 = vmax.xlane.f32.xlu0 %v2954
        %v3032 = vpop.xlane.xlu0 %3031
        %3033 = vmax.xlane.f32.xlu0 %v2955
        %v3034 = vpop.xlane.xlu0 %3033
        %3035 = vmax.xlane.f32.xlu0 %v2956
        %v3036 = vpop.xlane.xlu0 %3035
        %3037 = vmax.xlane.f32.xlu0 %v2957
        %v3038 = vpop.xlane.xlu0 %3037
        %3039 = vmax.xlane.f32.xlu0 %v2958
        %v3040 = vpop.xlane.xlu0 %3039
        %3041 = vmax.xlane.f32.xlu0 %v2959
        %v3042 = vpop.xlane.xlu0 %3041
        %3043 = vmax.xlane.f32.xlu0 %v2960
        %v3044 = vpop.xlane.xlu0 %3043
        %3045 = vmax.xlane.f32.xlu0 %v2961
        %v3046 = vpop.xlane.xlu0 %3045
        %3047 = vmax.xlane.f32.xlu0 %v2962
        %v3048 = vpop.xlane.xlu0 %3047
        %3049 = vmax.xlane.f32.xlu0 %v2963
        %v3050 = vpop.xlane.xlu0 %3049
        %3051 = vmax.xlane.f32.xlu0 %v2964
        %v3052 = vpop.xlane.xlu0 %3051
        %3053 = vmax.xlane.f32.xlu0 %v2965
        %v3054 = vpop.xlane.xlu0 %3053
        %3055 = vmax.xlane.f32.xlu0 %v2966
        %v3056 = vpop.xlane.xlu0 %3055
        %3057 = vmax.xlane.f32.xlu0 %v2967
        %v3058 = vpop.xlane.xlu0 %3057
        %3059 = vmax.xlane.f32.xlu0 %v2968
        %v3060 = vpop.xlane.xlu0 %3059
        %3061 = vmax.xlane.f32.xlu0 %v2969
        %v3062 = vpop.xlane.xlu0 %3061
        %3063 = vmax.xlane.f32.xlu0 %v2970
        %v3064 = vpop.xlane.xlu0 %3063
        %3065 = vmax.xlane.f32.xlu0 %v2971
        %v3066 = vpop.xlane.xlu0 %3065
        %3067 = vmax.xlane.f32.xlu0 %v2972
        %v3068 = vpop.xlane.xlu0 %3067
        %v3069 = vmax.f32 %v2973, %v3006
        %v3070 = vmax.f32 %v2974, %v3008
        %v3071 = vmax.f32 %v2975, %v3010
        %v3072 = vmax.f32 %v2976, %v3012
        %v3073 = vmax.f32 %v2977, %v3014
        %v3074 = vmax.f32 %v2978, %v3016
        %v3075 = vmax.f32 %v2979, %v3018
        %v3076 = vmax.f32 %v2980, %v3020
        %v3077 = vmax.f32 %v2981, %v3022
        %v3078 = vmax.f32 %v2982, %v3024
        %v3079 = vmax.f32 %v2983, %v3026
        %v3080 = vmax.f32 %v2984, %v3028
        %v3081 = vmax.f32 %v2985, %v3030
        %v3082 = vmax.f32 %v2986, %v3032
        %v3083 = vmax.f32 %v2987, %v3034
        %v3084 = vmax.f32 %v2988, %v3036
        %v3085 = vmax.f32 %v2989, %v3038
        %v3086 = vmax.f32 %v2990, %v3040
        %v3087 = vmax.f32 %v2991, %v3042
        %v3088 = vmax.f32 %v2992, %v3044
        %v3089 = vmax.f32 %v2993, %v3046
        %v3090 = vmax.f32 %v2994, %v3048
        %v3091 = vmax.f32 %v2995, %v3050
        %v3092 = vmax.f32 %v2996, %v3052
        %v3093 = vmax.f32 %v2997, %v3054
        %v3094 = vmax.f32 %v2998, %v3056
        %v3095 = vmax.f32 %v2999, %v3058
        %v3096 = vmax.f32 %v3000, %v3060
        %v3097 = vmax.f32 %v3001, %v3062
        %v3098 = vmax.f32 %v3002, %v3064
        %v3099 = vmax.f32 %v3003, %v3066
        %v3100 = vmax.f32 %v3004, %v3068
        %v3101 = vsub.f32 %v2973, %v3069
        %v3102 = vsub.f32 %v2974, %v3070
        %v3103 = vsub.f32 %v2975, %v3071
        %v3104 = vsub.f32 %v2976, %v3072
        %v3105 = vsub.f32 %v2977, %v3073
        %v3106 = vsub.f32 %v2978, %v3074
        %v3107 = vsub.f32 %v2979, %v3075
        %v3108 = vsub.f32 %v2980, %v3076
        %v3109 = vsub.f32 %v2981, %v3077
        %v3110 = vsub.f32 %v2982, %v3078
        %v3111 = vsub.f32 %v2983, %v3079
        %v3112 = vsub.f32 %v2984, %v3080
        %v3113 = vsub.f32 %v2985, %v3081
        %v3114 = vsub.f32 %v2986, %v3082
        %v3115 = vsub.f32 %v2987, %v3083
        %v3116 = vsub.f32 %v2988, %v3084
        %v3117 = vsub.f32 %v2989, %v3085
        %v3118 = vsub.f32 %v2990, %v3086
        %v3119 = vsub.f32 %v2991, %v3087
        %v3120 = vsub.f32 %v2992, %v3088
        %v3121 = vsub.f32 %v2993, %v3089
        %v3122 = vsub.f32 %v2994, %v3090
        %v3123 = vsub.f32 %v2995, %v3091
        %v3124 = vsub.f32 %v2996, %v3092
        %v3125 = vsub.f32 %v2997, %v3093
        %v3126 = vsub.f32 %v2998, %v3094
        %v3127 = vsub.f32 %v2999, %v3095
        %v3128 = vsub.f32 %v3000, %v3096
        %v3129 = vsub.f32 %v3001, %v3097
        %v3130 = vsub.f32 %v3002, %v3098
        %v3131 = vsub.f32 %v3003, %v3099
        %v3132 = vsub.f32 %v3004, %v3100
        %v3133 = vmul.f32 %v3101, 1.442695
        %v3134 = vpow.pop %v3133
        %v3135 = vmul.f32 %v3102, 1.442695
        %v3136 = vpow.pop %v3135
        %v3137 = vmul.f32 %v3103, 1.442695
        %v3138 = vpow.pop %v3137
        %v3139 = vmul.f32 %v3104, 1.442695
        %v3140 = vpow.pop %v3139
        %v3141 = vmul.f32 %v3105, 1.442695
        %v3142 = vpow.pop %v3141
        %v3143 = vmul.f32 %v3106, 1.442695
        %v3144 = vpow.pop %v3143
        %v3145 = vmul.f32 %v3107, 1.442695
        %v3146 = vpow.pop %v3145
        %v3147 = vmul.f32 %v3108, 1.442695
        %v3148 = vpow.pop %v3147
        %v3149 = vmul.f32 %v3109, 1.442695
        %v3150 = vpow.pop %v3149
        %v3151 = vmul.f32 %v3110, 1.442695
        %v3152 = vpow.pop %v3151
        %v3153 = vmul.f32 %v3111, 1.442695
        %v3154 = vpow.pop %v3153
        %v3155 = vmul.f32 %v3112, 1.442695
        %v3156 = vpow.pop %v3155
        %v3157 = vmul.f32 %v3113, 1.442695
        %v3158 = vpow.pop %v3157
        %v3159 = vmul.f32 %v3114, 1.442695
        %v3160 = vpow.pop %v3159
        %v3161 = vmul.f32 %v3115, 1.442695
        %v3162 = vpow.pop %v3161
        %v3163 = vmul.f32 %v3116, 1.442695
        %v3164 = vpow.pop %v3163
        %v3165 = vmul.f32 %v3117, 1.442695
        %v3166 = vpow.pop %v3165
        %v3167 = vmul.f32 %v3118, 1.442695
        %v3168 = vpow.pop %v3167
        %v3169 = vmul.f32 %v3119, 1.442695
        %v3170 = vpow.pop %v3169
        %v3171 = vmul.f32 %v3120, 1.442695
        %v3172 = vpow.pop %v3171
        %v3173 = vmul.f32 %v3121, 1.442695
        %v3174 = vpow.pop %v3173
        %v3175 = vmul.f32 %v3122, 1.442695
        %v3176 = vpow.pop %v3175
        %v3177 = vmul.f32 %v3123, 1.442695
        %v3178 = vpow.pop %v3177
        %v3179 = vmul.f32 %v3124, 1.442695
        %v3180 = vpow.pop %v3179
        %v3181 = vmul.f32 %v3125, 1.442695
        %v3182 = vpow.pop %v3181
        %v3183 = vmul.f32 %v3126, 1.442695
        %v3184 = vpow.pop %v3183
        %v3185 = vmul.f32 %v3127, 1.442695
        %v3186 = vpow.pop %v3185
        %v3187 = vmul.f32 %v3128, 1.442695
        %v3188 = vpow.pop %v3187
        %v3189 = vmul.f32 %v3129, 1.442695
        %v3190 = vpow.pop %v3189
        %v3191 = vmul.f32 %v3130, 1.442695
        %v3192 = vpow.pop %v3191
        %v3193 = vmul.f32 %v3131, 1.442695
        %v3194 = vpow.pop %v3193
        %v3195 = vmul.f32 %v3132, 1.442695
        %v3196 = vpow.pop %v3195
        %3198 = vset.pattern.permute.xlu0 0
        %3199 = vperm.xlu0 %3198, %v3069
        %v3200 = vpop.permute.xlu0 %3199
        %3203 = vset.pattern.permute.xlu0 0
        %3204 = vperm.xlu0 %3203, %v3070
        %v3205 = vpop.permute.xlu0 %3204
        %3208 = vset.pattern.permute.xlu0 0
        %3209 = vperm.xlu0 %3208, %v3071
        %v3210 = vpop.permute.xlu0 %3209
        %3213 = vset.pattern.permute.xlu0 0
        %3214 = vperm.xlu0 %3213, %v3072
        %v3215 = vpop.permute.xlu0 %3214
        %3218 = vset.pattern.permute.xlu0 0
        %3219 = vperm.xlu0 %3218, %v3073
        %v3220 = vpop.permute.xlu0 %3219
        %3223 = vset.pattern.permute.xlu0 0
        %3224 = vperm.xlu0 %3223, %v3074
        %v3225 = vpop.permute.xlu0 %3224
        %3228 = vset.pattern.permute.xlu0 0
        %3229 = vperm.xlu0 %3228, %v3075
        %v3230 = vpop.permute.xlu0 %3229
        %3233 = vset.pattern.permute.xlu0 0
        %3234 = vperm.xlu0 %3233, %v3076
        %v3235 = vpop.permute.xlu0 %3234
        %3238 = vset.pattern.permute.xlu0 0
        %3239 = vperm.xlu0 %3238, %v3077
        %v3240 = vpop.permute.xlu0 %3239
        %3243 = vset.pattern.permute.xlu0 0
        %3244 = vperm.xlu0 %3243, %v3078
        %v3245 = vpop.permute.xlu0 %3244
        %3248 = vset.pattern.permute.xlu0 0
        %3249 = vperm.xlu0 %3248, %v3079
        %v3250 = vpop.permute.xlu0 %3249
        %3253 = vset.pattern.permute.xlu0 0
        %3254 = vperm.xlu0 %3253, %v3080
        %v3255 = vpop.permute.xlu0 %3254
        %3258 = vset.pattern.permute.xlu0 0
        %3259 = vperm.xlu0 %3258, %v3081
        %v3260 = vpop.permute.xlu0 %3259
        %3263 = vset.pattern.permute.xlu0 0
        %3264 = vperm.xlu0 %3263, %v3082
        %v3265 = vpop.permute.xlu0 %3264
        %3268 = vset.pattern.permute.xlu0 0
        %3269 = vperm.xlu0 %3268, %v3083
        %v3270 = vpop.permute.xlu0 %3269
        %3273 = vset.pattern.permute.xlu0 0
        %3274 = vperm.xlu0 %3273, %v3084
        %v3275 = vpop.permute.xlu0 %3274
        %3278 = vset.pattern.permute.xlu0 0
        %3279 = vperm.xlu0 %3278, %v3085
        %v3280 = vpop.permute.xlu0 %3279
        %3283 = vset.pattern.permute.xlu0 0
        %3284 = vperm.xlu0 %3283, %v3086
        %v3285 = vpop.permute.xlu0 %3284
        %3288 = vset.pattern.permute.xlu0 0
        %3289 = vperm.xlu0 %3288, %v3087
        %v3290 = vpop.permute.xlu0 %3289
        %3293 = vset.pattern.permute.xlu0 0
        %3294 = vperm.xlu0 %3293, %v3088
        %v3295 = vpop.permute.xlu0 %3294
        %3298 = vset.pattern.permute.xlu0 0
        %3299 = vperm.xlu0 %3298, %v3089
        %v3300 = vpop.permute.xlu0 %3299
        %3303 = vset.pattern.permute.xlu0 0
        %3304 = vperm.xlu0 %3303, %v3090
        %v3305 = vpop.permute.xlu0 %3304
        %3308 = vset.pattern.permute.xlu0 0
        %3309 = vperm.xlu0 %3308, %v3091
        %v3310 = vpop.permute.xlu0 %3309
        %3313 = vset.pattern.permute.xlu0 0
        %3314 = vperm.xlu0 %3313, %v3092
        %v3315 = vpop.permute.xlu0 %3314
        %3318 = vset.pattern.permute.xlu0 0
        %3319 = vperm.xlu0 %3318, %v3093
        %v3320 = vpop.permute.xlu0 %3319
        %3323 = vset.pattern.permute.xlu0 0
        %3324 = vperm.xlu0 %3323, %v3094
        %v3325 = vpop.permute.xlu0 %3324
        %3328 = vset.pattern.permute.xlu0 0
        %3329 = vperm.xlu0 %3328, %v3095
        %v3330 = vpop.permute.xlu0 %3329
        %3333 = vset.pattern.permute.xlu0 0
        %3334 = vperm.xlu0 %3333, %v3096
        %v3335 = vpop.permute.xlu0 %3334
        %3338 = vset.pattern.permute.xlu0 0
        %3339 = vperm.xlu0 %3338, %v3097
        %v3340 = vpop.permute.xlu0 %3339
        %3343 = vset.pattern.permute.xlu0 0
        %3344 = vperm.xlu0 %3343, %v3098
        %v3345 = vpop.permute.xlu0 %3344
        %3348 = vset.pattern.permute.xlu0 0
        %3349 = vperm.xlu0 %3348, %v3099
        %v3350 = vpop.permute.xlu0 %3349
        %3353 = vset.pattern.permute.xlu0 0
        %3354 = vperm.xlu0 %3353, %v3100
        %v3355 = vpop.permute.xlu0 %3354
        %v3357 = vsub.f32 %v2941, %v3200
        %v3358 = vsub.f32 %v2942, %v3205
        %v3359 = vsub.f32 %v2943, %v3210
        %v3360 = vsub.f32 %v2944, %v3215
        %v3361 = vsub.f32 %v2945, %v3220
        %v3362 = vsub.f32 %v2946, %v3225
        %v3363 = vsub.f32 %v2947, %v3230
        %v3364 = vsub.f32 %v2948, %v3235
        %v3365 = vsub.f32 %v2949, %v3240
        %v3366 = vsub.f32 %v2950, %v3245
        %v3367 = vsub.f32 %v2951, %v3250
        %v3368 = vsub.f32 %v2952, %v3255
        %v3369 = vsub.f32 %v2953, %v3260
        %v3370 = vsub.f32 %v2954, %v3265
        %v3371 = vsub.f32 %v2955, %v3270
        %v3372 = vsub.f32 %v2956, %v3275
        %v3373 = vsub.f32 %v2957, %v3280
        %v3374 = vsub.f32 %v2958, %v3285
        %v3375 = vsub.f32 %v2959, %v3290
        %v3376 = vsub.f32 %v2960, %v3295
        %v3377 = vsub.f32 %v2961, %v3300
        %v3378 = vsub.f32 %v2962, %v3305
        %v3379 = vsub.f32 %v2963, %v3310
        %v3380 = vsub.f32 %v2964, %v3315
        %v3381 = vsub.f32 %v2965, %v3320
        %v3382 = vsub.f32 %v2966, %v3325
        %v3383 = vsub.f32 %v2967, %v3330
        %v3384 = vsub.f32 %v2968, %v3335
        %v3385 = vsub.f32 %v2969, %v3340
        %v3386 = vsub.f32 %v2970, %v3345
        %v3387 = vsub.f32 %v2971, %v3350
        %v3388 = vsub.f32 %v2972, %v3355
        %v3389 = vpack.c.bf16 %v3358, %v3357
        %v3390 = vpack.c.bf16 %v3360, %v3359
        %v3391 = vpack.c.bf16 %v3362, %v3361
        %v3392 = vpack.c.bf16 %v3364, %v3363
        %v3393 = vpack.c.bf16 %v3366, %v3365
        %v3394 = vpack.c.bf16 %v3368, %v3367
        %v3395 = vpack.c.bf16 %v3370, %v3369
        %v3396 = vpack.c.bf16 %v3372, %v3371
        %v3397 = vpack.c.bf16 %v3374, %v3373
        %v3398 = vpack.c.bf16 %v3376, %v3375
        %v3399 = vpack.c.bf16 %v3378, %v3377
        %v3400 = vpack.c.bf16 %v3380, %v3379
        %v3401 = vpack.c.bf16 %v3382, %v3381
        %v3402 = vpack.c.bf16 %v3384, %v3383
        %v3403 = vpack.c.bf16 %v3386, %v3385
        %v3404 = vpack.c.bf16 %v3388, %v3387
        %v3406 = vmul.bf16 %v3389, 1069105081
        %v3407 = vpow.bf16.pop %v3406
        %v3409 = vmul.bf16 %v3390, 1069105081
        %v3410 = vpow.bf16.pop %v3409
        %v3412 = vmul.bf16 %v3391, 1069105081
        %v3413 = vpow.bf16.pop %v3412
        %v3415 = vmul.bf16 %v3392, 1069105081
        %v3416 = vpow.bf16.pop %v3415
        %v3418 = vmul.bf16 %v3393, 1069105081
        %v3419 = vpow.bf16.pop %v3418
        %v3421 = vmul.bf16 %v3394, 1069105081
        %v3422 = vpow.bf16.pop %v3421
        %v3424 = vmul.bf16 %v3395, 1069105081
        %v3425 = vpow.bf16.pop %v3424
        %v3427 = vmul.bf16 %v3396, 1069105081
        %v3428 = vpow.bf16.pop %v3427
        %v3430 = vmul.bf16 %v3397, 1069105081
        %v3431 = vpow.bf16.pop %v3430
        %v3433 = vmul.bf16 %v3398, 1069105081
        %v3434 = vpow.bf16.pop %v3433
        %v3436 = vmul.bf16 %v3399, 1069105081
        %v3437 = vpow.bf16.pop %v3436
        %v3439 = vmul.bf16 %v3400, 1069105081
        %v3440 = vpow.bf16.pop %v3439
        %v3442 = vmul.bf16 %v3401, 1069105081
        %v3443 = vpow.bf16.pop %v3442
        %v3445 = vmul.bf16 %v3402, 1069105081
        %v3446 = vpow.bf16.pop %v3445
        %v3448 = vmul.bf16 %v3403, 1069105081
        %v3449 = vpow.bf16.pop %v3448
        %v3451 = vmul.bf16 %v3404, 1069105081
        %v3452 = vpow.bf16.pop %v3451
        %v3453 = vld [vmem:[#allocation6] sm:$0xff]
        %v3454 = vld [vmem:[#allocation6 + $0x8] sm:$0xff]
        %v3455 = vld [vmem:[#allocation6 + $0x10] sm:$0xff]
        %v3456 = vld [vmem:[#allocation6 + $0x18] sm:$0xff]
        %v3457 = vld [vmem:[#allocation6 + $0x20] sm:$0xff]
        %v3458 = vld [vmem:[#allocation6 + $0x28] sm:$0xff]
        %v3459 = vld [vmem:[#allocation6 + $0x30] sm:$0xff]
        %v3460 = vld [vmem:[#allocation6 + $0x38] sm:$0xff]
        %v3461 = vld [vmem:[#allocation6 + $0x40] sm:$0xff]
        %v3462 = vld [vmem:[#allocation6 + $0x48] sm:$0xff]
        %v3463 = vld [vmem:[#allocation6 + $0x50] sm:$0xff]
        %v3464 = vld [vmem:[#allocation6 + $0x58] sm:$0xff]
        %v3465 = vld [vmem:[#allocation6 + $0x60] sm:$0xff]
        %v3466 = vld [vmem:[#allocation6 + $0x68] sm:$0xff]
        %v3467 = vld [vmem:[#allocation6 + $0x70] sm:$0xff]
        %v3468 = vld [vmem:[#allocation6 + $0x78] sm:$0xff]
        %v3469 = vld [vmem:[#allocation6 + $0x80] sm:$0xff]
        %v3470 = vld [vmem:[#allocation6 + $0x88] sm:$0xff]
        %v3471 = vld [vmem:[#allocation6 + $0x90] sm:$0xff]
        %v3472 = vld [vmem:[#allocation6 + $0x98] sm:$0xff]
        %v3473 = vld [vmem:[#allocation6 + $0xa0] sm:$0xff]
        %v3474 = vld [vmem:[#allocation6 + $0xa8] sm:$0xff]
        %v3475 = vld [vmem:[#allocation6 + $0xb0] sm:$0xff]
        %v3476 = vld [vmem:[#allocation6 + $0xb8] sm:$0xff]
        %v3477 = vld [vmem:[#allocation6 + $0xc0] sm:$0xff]
        %v3478 = vld [vmem:[#allocation6 + $0xc8] sm:$0xff]
        %v3479 = vld [vmem:[#allocation6 + $0xd0] sm:$0xff]
        %v3480 = vld [vmem:[#allocation6 + $0xd8] sm:$0xff]
        %v3481 = vld [vmem:[#allocation6 + $0xe0] sm:$0xff]
        %v3482 = vld [vmem:[#allocation6 + $0xe8] sm:$0xff]
        %v3483 = vld [vmem:[#allocation6 + $0xf0] sm:$0xff]
        %v3484 = vld [vmem:[#allocation6 + $0xf8] sm:$0xff]
        %v3485 = vmul.f32 %v3134, %v3453
        %v3486 = vmul.f32 %v3136, %v3454
        %v3487 = vmul.f32 %v3138, %v3455
        %v3488 = vmul.f32 %v3140, %v3456
        %v3489 = vmul.f32 %v3142, %v3457
        %v3490 = vmul.f32 %v3144, %v3458
        %v3491 = vmul.f32 %v3146, %v3459
        %v3492 = vmul.f32 %v3148, %v3460
        %v3493 = vmul.f32 %v3150, %v3461
        %v3494 = vmul.f32 %v3152, %v3462
        %v3495 = vmul.f32 %v3154, %v3463
        %v3496 = vmul.f32 %v3156, %v3464
        %v3497 = vmul.f32 %v3158, %v3465
        %v3498 = vmul.f32 %v3160, %v3466
        %v3499 = vmul.f32 %v3162, %v3467
        %v3500 = vmul.f32 %v3164, %v3468
        %v3501 = vmul.f32 %v3166, %v3469
        %v3502 = vmul.f32 %v3168, %v3470
        %v3503 = vmul.f32 %v3170, %v3471
        %v3504 = vmul.f32 %v3172, %v3472
        %v3505 = vmul.f32 %v3174, %v3473
        %v3506 = vmul.f32 %v3176, %v3474
        %v3507 = vmul.f32 %v3178, %v3475
        %v3508 = vmul.f32 %v3180, %v3476
        %v3509 = vmul.f32 %v3182, %v3477
        %v3510 = vmul.f32 %v3184, %v3478
        %v3511 = vmul.f32 %v3186, %v3479
        %v3512 = vmul.f32 %v3188, %v3480
        %v3513 = vmul.f32 %v3190, %v3481
        %v3514 = vmul.f32 %v3192, %v3482
        %v3515 = vmul.f32 %v3194, %v3483
        %v3516 = vmul.f32 %v3196, %v3484
        %v3517 = vunpack.c.l.bf16 %v3407
        %v3518 = vunpack.c.h.bf16 %v3407
        %v3519 = vunpack.c.l.bf16 %v3410
        %v3520 = vunpack.c.h.bf16 %v3410
        %v3521 = vunpack.c.l.bf16 %v3413
        %v3522 = vunpack.c.h.bf16 %v3413
        %v3523 = vunpack.c.l.bf16 %v3416
        %v3524 = vunpack.c.h.bf16 %v3416
        %v3525 = vunpack.c.l.bf16 %v3419
        %v3526 = vunpack.c.h.bf16 %v3419
        %v3527 = vunpack.c.l.bf16 %v3422
        %v3528 = vunpack.c.h.bf16 %v3422
        %v3529 = vunpack.c.l.bf16 %v3425
        %v3530 = vunpack.c.h.bf16 %v3425
        %v3531 = vunpack.c.l.bf16 %v3428
        %v3532 = vunpack.c.h.bf16 %v3428
        %v3533 = vunpack.c.l.bf16 %v3431
        %v3534 = vunpack.c.h.bf16 %v3431
        %v3535 = vunpack.c.l.bf16 %v3434
        %v3536 = vunpack.c.h.bf16 %v3434
        %v3537 = vunpack.c.l.bf16 %v3437
        %v3538 = vunpack.c.h.bf16 %v3437
        %v3539 = vunpack.c.l.bf16 %v3440
        %v3540 = vunpack.c.h.bf16 %v3440
        %v3541 = vunpack.c.l.bf16 %v3443
        %v3542 = vunpack.c.h.bf16 %v3443
        %v3543 = vunpack.c.l.bf16 %v3446
        %v3544 = vunpack.c.h.bf16 %v3446
        %v3545 = vunpack.c.l.bf16 %v3449
        %v3546 = vunpack.c.h.bf16 %v3449
        %v3547 = vunpack.c.l.bf16 %v3452
        %v3548 = vunpack.c.h.bf16 %v3452
        %3549 = vadd.xlane.f32.xlu0 %v3517
        %v3550 = vpop.xlane.xlu0 %3549
        %3551 = vadd.xlane.f32.xlu0 %v3518
        %v3552 = vpop.xlane.xlu0 %3551
        %3553 = vadd.xlane.f32.xlu0 %v3519
        %v3554 = vpop.xlane.xlu0 %3553
        %3555 = vadd.xlane.f32.xlu0 %v3520
        %v3556 = vpop.xlane.xlu0 %3555
        %3557 = vadd.xlane.f32.xlu0 %v3521
        %v3558 = vpop.xlane.xlu0 %3557
        %3559 = vadd.xlane.f32.xlu0 %v3522
        %v3560 = vpop.xlane.xlu0 %3559
        %3561 = vadd.xlane.f32.xlu0 %v3523
        %v3562 = vpop.xlane.xlu0 %3561
        %3563 = vadd.xlane.f32.xlu0 %v3524
        %v3564 = vpop.xlane.xlu0 %3563
        %3565 = vadd.xlane.f32.xlu0 %v3525
        %v3566 = vpop.xlane.xlu0 %3565
        %3567 = vadd.xlane.f32.xlu0 %v3526
        %v3568 = vpop.xlane.xlu0 %3567
        %3569 = vadd.xlane.f32.xlu0 %v3527
        %v3570 = vpop.xlane.xlu0 %3569
        %3571 = vadd.xlane.f32.xlu0 %v3528
        %v3572 = vpop.xlane.xlu0 %3571
        %3573 = vadd.xlane.f32.xlu0 %v3529
        %v3574 = vpop.xlane.xlu0 %3573
        %3575 = vadd.xlane.f32.xlu0 %v3530
        %v3576 = vpop.xlane.xlu0 %3575
        %3577 = vadd.xlane.f32.xlu0 %v3531
        %v3578 = vpop.xlane.xlu0 %3577
        %3579 = vadd.xlane.f32.xlu0 %v3532
        %v3580 = vpop.xlane.xlu0 %3579
        %3581 = vadd.xlane.f32.xlu0 %v3533
        %v3582 = vpop.xlane.xlu0 %3581
        %3583 = vadd.xlane.f32.xlu0 %v3534
        %v3584 = vpop.xlane.xlu0 %3583
        %3585 = vadd.xlane.f32.xlu0 %v3535
        %v3586 = vpop.xlane.xlu0 %3585
        %3587 = vadd.xlane.f32.xlu0 %v3536
        %v3588 = vpop.xlane.xlu0 %3587
        %3589 = vadd.xlane.f32.xlu0 %v3537
        %v3590 = vpop.xlane.xlu0 %3589
        %3591 = vadd.xlane.f32.xlu0 %v3538
        %v3592 = vpop.xlane.xlu0 %3591
        %3593 = vadd.xlane.f32.xlu0 %v3539
        %v3594 = vpop.xlane.xlu0 %3593
        %3595 = vadd.xlane.f32.xlu0 %v3540
        %v3596 = vpop.xlane.xlu0 %3595
        %3597 = vadd.xlane.f32.xlu0 %v3541
        %v3598 = vpop.xlane.xlu0 %3597
        %3599 = vadd.xlane.f32.xlu0 %v3542
        %v3600 = vpop.xlane.xlu0 %3599
        %3601 = vadd.xlane.f32.xlu0 %v3543
        %v3602 = vpop.xlane.xlu0 %3601
        %3603 = vadd.xlane.f32.xlu0 %v3544
        %v3604 = vpop.xlane.xlu0 %3603
        %3605 = vadd.xlane.f32.xlu0 %v3545
        %v3606 = vpop.xlane.xlu0 %3605
        %3607 = vadd.xlane.f32.xlu0 %v3546
        %v3608 = vpop.xlane.xlu0 %3607
        %3609 = vadd.xlane.f32.xlu0 %v3547
        %v3610 = vpop.xlane.xlu0 %3609
        %3611 = vadd.xlane.f32.xlu0 %v3548
        %v3612 = vpop.xlane.xlu0 %3611
        %v3613 = vadd.f32 %v3485, %v3550
        %v3614 = vadd.f32 %v3486, %v3552
        %v3615 = vadd.f32 %v3487, %v3554
        %v3616 = vadd.f32 %v3488, %v3556
        %v3617 = vadd.f32 %v3489, %v3558
        %v3618 = vadd.f32 %v3490, %v3560
        %v3619 = vadd.f32 %v3491, %v3562
        %v3620 = vadd.f32 %v3492, %v3564
        %v3621 = vadd.f32 %v3493, %v3566
        %v3622 = vadd.f32 %v3494, %v3568
        %v3623 = vadd.f32 %v3495, %v3570
        %v3624 = vadd.f32 %v3496, %v3572
        %v3625 = vadd.f32 %v3497, %v3574
        %v3626 = vadd.f32 %v3498, %v3576
        %v3627 = vadd.f32 %v3499, %v3578
        %v3628 = vadd.f32 %v3500, %v3580
        %v3629 = vadd.f32 %v3501, %v3582
        %v3630 = vadd.f32 %v3502, %v3584
        %v3631 = vadd.f32 %v3503, %v3586
        %v3632 = vadd.f32 %v3504, %v3588
        %v3633 = vadd.f32 %v3505, %v3590
        %v3634 = vadd.f32 %v3506, %v3592
        %v3635 = vadd.f32 %v3507, %v3594
        %v3636 = vadd.f32 %v3508, %v3596
        %v3637 = vadd.f32 %v3509, %v3598
        %v3638 = vadd.f32 %v3510, %v3600
        %v3639 = vadd.f32 %v3511, %v3602
        %v3640 = vadd.f32 %v3512, %v3604
        %v3641 = vadd.f32 %v3513, %v3606
        %v3642 = vadd.f32 %v3514, %v3608
        %v3643 = vadd.f32 %v3515, %v3610
        %v3644 = vadd.f32 %v3516, %v3612
        %3645 = vst.msk [vmem:[#allocation6] sm:$0xff] %vm2064, %v3613
        %3646 = vst.msk [vmem:[#allocation6 + $0x8] sm:$0xff] %vm2064, %v3614
        %3647 = vst.msk [vmem:[#allocation6 + $0x10] sm:$0xff] %vm2064, %v3615
        %3648 = vst.msk [vmem:[#allocation6 + $0x18] sm:$0xff] %vm2064, %v3616
        %3649 = vst.msk [vmem:[#allocation6 + $0x20] sm:$0xff] %vm2064, %v3617
        %3650 = vst.msk [vmem:[#allocation6 + $0x28] sm:$0xff] %vm2064, %v3618
        %3651 = vst.msk [vmem:[#allocation6 + $0x30] sm:$0xff] %vm2064, %v3619
        %3652 = vst.msk [vmem:[#allocation6 + $0x38] sm:$0xff] %vm2064, %v3620
        %3653 = vst.msk [vmem:[#allocation6 + $0x40] sm:$0xff] %vm2064, %v3621
        %3654 = vst.msk [vmem:[#allocation6 + $0x48] sm:$0xff] %vm2064, %v3622
        %3655 = vst.msk [vmem:[#allocation6 + $0x50] sm:$0xff] %vm2064, %v3623
        %3656 = vst.msk [vmem:[#allocation6 + $0x58] sm:$0xff] %vm2064, %v3624
        %3657 = vst.msk [vmem:[#allocation6 + $0x60] sm:$0xff] %vm2064, %v3625
        %3658 = vst.msk [vmem:[#allocation6 + $0x68] sm:$0xff] %vm2064, %v3626
        %3659 = vst.msk [vmem:[#allocation6 + $0x70] sm:$0xff] %vm2064, %v3627
        %3660 = vst.msk [vmem:[#allocation6 + $0x78] sm:$0xff] %vm2064, %v3628
        %3661 = vst.msk [vmem:[#allocation6 + $0x80] sm:$0xff] %vm2064, %v3629
        %3662 = vst.msk [vmem:[#allocation6 + $0x88] sm:$0xff] %vm2064, %v3630
        %3663 = vst.msk [vmem:[#allocation6 + $0x90] sm:$0xff] %vm2064, %v3631
        %3664 = vst.msk [vmem:[#allocation6 + $0x98] sm:$0xff] %vm2064, %v3632
        %3665 = vst.msk [vmem:[#allocation6 + $0xa0] sm:$0xff] %vm2064, %v3633
        %3666 = vst.msk [vmem:[#allocation6 + $0xa8] sm:$0xff] %vm2064, %v3634
        %3667 = vst.msk [vmem:[#allocation6 + $0xb0] sm:$0xff] %vm2064, %v3635
        %3668 = vst.msk [vmem:[#allocation6 + $0xb8] sm:$0xff] %vm2064, %v3636
        %3669 = vst.msk [vmem:[#allocation6 + $0xc0] sm:$0xff] %vm2064, %v3637
        %3670 = vst.msk [vmem:[#allocation6 + $0xc8] sm:$0xff] %vm2064, %v3638
        %3671 = vst.msk [vmem:[#allocation6 + $0xd0] sm:$0xff] %vm2064, %v3639
        %3672 = vst.msk [vmem:[#allocation6 + $0xd8] sm:$0xff] %vm2064, %v3640
        %3673 = vst.msk [vmem:[#allocation6 + $0xe0] sm:$0xff] %vm2064, %v3641
        %3674 = vst.msk [vmem:[#allocation6 + $0xe8] sm:$0xff] %vm2064, %v3642
        %3675 = vst.msk [vmem:[#allocation6 + $0xf0] sm:$0xff] %vm2064, %v3643
        %3676 = vst.msk [vmem:[#allocation6 + $0xf8] sm:$0xff] %vm2064, %v3644
        %v3677 = vld [vmem:[#allocation7] sm:$0xff]
        %v3678 = vld [vmem:[#allocation7 + $0x8] sm:$0xff]
        %v3679 = vld [vmem:[#allocation7 + $0x10] sm:$0xff]
        %v3680 = vld [vmem:[#allocation7 + $0x18] sm:$0xff]
        %v3681 = vld [vmem:[#allocation7 + $0x20] sm:$0xff]
        %v3682 = vld [vmem:[#allocation7 + $0x28] sm:$0xff]
        %v3683 = vld [vmem:[#allocation7 + $0x30] sm:$0xff]
        %v3684 = vld [vmem:[#allocation7 + $0x38] sm:$0xff]
        %v3685 = vld [vmem:[#allocation7 + $0x40] sm:$0xff]
        %v3686 = vld [vmem:[#allocation7 + $0x48] sm:$0xff]
        %v3687 = vld [vmem:[#allocation7 + $0x50] sm:$0xff]
        %v3688 = vld [vmem:[#allocation7 + $0x58] sm:$0xff]
        %v3689 = vld [vmem:[#allocation7 + $0x60] sm:$0xff]
        %v3690 = vld [vmem:[#allocation7 + $0x68] sm:$0xff]
        %v3691 = vld [vmem:[#allocation7 + $0x70] sm:$0xff]
        %v3692 = vld [vmem:[#allocation7 + $0x78] sm:$0xff]
        %v3693 = vld [vmem:[#allocation7 + $0x80] sm:$0xff]
        %v3694 = vld [vmem:[#allocation7 + $0x88] sm:$0xff]
        %v3695 = vld [vmem:[#allocation7 + $0x90] sm:$0xff]
        %v3696 = vld [vmem:[#allocation7 + $0x98] sm:$0xff]
        %v3697 = vld [vmem:[#allocation7 + $0xa0] sm:$0xff]
        %v3698 = vld [vmem:[#allocation7 + $0xa8] sm:$0xff]
        %v3699 = vld [vmem:[#allocation7 + $0xb0] sm:$0xff]
        %v3700 = vld [vmem:[#allocation7 + $0xb8] sm:$0xff]
        %v3701 = vld [vmem:[#allocation7 + $0xc0] sm:$0xff]
        %v3702 = vld [vmem:[#allocation7 + $0xc8] sm:$0xff]
        %v3703 = vld [vmem:[#allocation7 + $0xd0] sm:$0xff]
        %v3704 = vld [vmem:[#allocation7 + $0xd8] sm:$0xff]
        %v3705 = vld [vmem:[#allocation7 + $0xe0] sm:$0xff]
        %v3706 = vld [vmem:[#allocation7 + $0xe8] sm:$0xff]
        %v3707 = vld [vmem:[#allocation7 + $0xf0] sm:$0xff]
        %v3708 = vld [vmem:[#allocation7 + $0xf8] sm:$0xff]
        %3710 = vset.pattern.permute.xlu0 0
        %3711 = vperm.xlu0 %3710, %v3134
        %v3712 = vpop.permute.xlu0 %3711
        %3715 = vset.pattern.permute.xlu0 0
        %3716 = vperm.xlu0 %3715, %v3136
        %v3717 = vpop.permute.xlu0 %3716
        %3720 = vset.pattern.permute.xlu0 0
        %3721 = vperm.xlu0 %3720, %v3138
        %v3722 = vpop.permute.xlu0 %3721
        %3725 = vset.pattern.permute.xlu0 0
        %3726 = vperm.xlu0 %3725, %v3140
        %v3727 = vpop.permute.xlu0 %3726
        %3730 = vset.pattern.permute.xlu0 0
        %3731 = vperm.xlu0 %3730, %v3142
        %v3732 = vpop.permute.xlu0 %3731
        %3735 = vset.pattern.permute.xlu0 0
        %3736 = vperm.xlu0 %3735, %v3144
        %v3737 = vpop.permute.xlu0 %3736
        %3740 = vset.pattern.permute.xlu0 0
        %3741 = vperm.xlu0 %3740, %v3146
        %v3742 = vpop.permute.xlu0 %3741
        %3745 = vset.pattern.permute.xlu0 0
        %3746 = vperm.xlu0 %3745, %v3148
        %v3747 = vpop.permute.xlu0 %3746
        %3750 = vset.pattern.permute.xlu0 0
        %3751 = vperm.xlu0 %3750, %v3150
        %v3752 = vpop.permute.xlu0 %3751
        %3755 = vset.pattern.permute.xlu0 0
        %3756 = vperm.xlu0 %3755, %v3152
        %v3757 = vpop.permute.xlu0 %3756
        %3760 = vset.pattern.permute.xlu0 0
        %3761 = vperm.xlu0 %3760, %v3154
        %v3762 = vpop.permute.xlu0 %3761
        %3765 = vset.pattern.permute.xlu0 0
        %3766 = vperm.xlu0 %3765, %v3156
        %v3767 = vpop.permute.xlu0 %3766
        %3770 = vset.pattern.permute.xlu0 0
        %3771 = vperm.xlu0 %3770, %v3158
        %v3772 = vpop.permute.xlu0 %3771
        %3775 = vset.pattern.permute.xlu0 0
        %3776 = vperm.xlu0 %3775, %v3160
        %v3777 = vpop.permute.xlu0 %3776
        %3780 = vset.pattern.permute.xlu0 0
        %3781 = vperm.xlu0 %3780, %v3162
        %v3782 = vpop.permute.xlu0 %3781
        %3785 = vset.pattern.permute.xlu0 0
        %3786 = vperm.xlu0 %3785, %v3164
        %v3787 = vpop.permute.xlu0 %3786
        %3790 = vset.pattern.permute.xlu0 0
        %3791 = vperm.xlu0 %3790, %v3166
        %v3792 = vpop.permute.xlu0 %3791
        %3795 = vset.pattern.permute.xlu0 0
        %3796 = vperm.xlu0 %3795, %v3168
        %v3797 = vpop.permute.xlu0 %3796
        %3800 = vset.pattern.permute.xlu0 0
        %3801 = vperm.xlu0 %3800, %v3170
        %v3802 = vpop.permute.xlu0 %3801
        %3805 = vset.pattern.permute.xlu0 0
        %3806 = vperm.xlu0 %3805, %v3172
        %v3807 = vpop.permute.xlu0 %3806
        %3810 = vset.pattern.permute.xlu0 0
        %3811 = vperm.xlu0 %3810, %v3174
        %v3812 = vpop.permute.xlu0 %3811
        %3815 = vset.pattern.permute.xlu0 0
        %3816 = vperm.xlu0 %3815, %v3176
        %v3817 = vpop.permute.xlu0 %3816
        %3820 = vset.pattern.permute.xlu0 0
        %3821 = vperm.xlu0 %3820, %v3178
        %v3822 = vpop.permute.xlu0 %3821
        %3825 = vset.pattern.permute.xlu0 0
        %3826 = vperm.xlu0 %3825, %v3180
        %v3827 = vpop.permute.xlu0 %3826
        %3830 = vset.pattern.permute.xlu0 0
        %3831 = vperm.xlu0 %3830, %v3182
        %v3832 = vpop.permute.xlu0 %3831
        %3835 = vset.pattern.permute.xlu0 0
        %3836 = vperm.xlu0 %3835, %v3184
        %v3837 = vpop.permute.xlu0 %3836
        %3840 = vset.pattern.permute.xlu0 0
        %3841 = vperm.xlu0 %3840, %v3186
        %v3842 = vpop.permute.xlu0 %3841
        %3845 = vset.pattern.permute.xlu0 0
        %3846 = vperm.xlu0 %3845, %v3188
        %v3847 = vpop.permute.xlu0 %3846
        %3850 = vset.pattern.permute.xlu0 0
        %3851 = vperm.xlu0 %3850, %v3190
        %v3852 = vpop.permute.xlu0 %3851
        %3855 = vset.pattern.permute.xlu0 0
        %3856 = vperm.xlu0 %3855, %v3192
        %v3857 = vpop.permute.xlu0 %3856
        %3860 = vset.pattern.permute.xlu0 0
        %3861 = vperm.xlu0 %3860, %v3194
        %v3862 = vpop.permute.xlu0 %3861
        %3865 = vset.pattern.permute.xlu0 0
        %3866 = vperm.xlu0 %3865, %v3196
        %v3867 = vpop.permute.xlu0 %3866
        %v3869 = vmul.f32 %v3712, %v3677
        %v3870 = vmul.f32 %v3717, %v3678
        %v3871 = vmul.f32 %v3722, %v3679
        %v3872 = vmul.f32 %v3727, %v3680
        %v3873 = vmul.f32 %v3732, %v3681
        %v3874 = vmul.f32 %v3737, %v3682
        %v3875 = vmul.f32 %v3742, %v3683
        %v3876 = vmul.f32 %v3747, %v3684
        %v3877 = vmul.f32 %v3752, %v3685
        %v3878 = vmul.f32 %v3757, %v3686
        %v3879 = vmul.f32 %v3762, %v3687
        %v3880 = vmul.f32 %v3767, %v3688
        %v3881 = vmul.f32 %v3772, %v3689
        %v3882 = vmul.f32 %v3777, %v3690
        %v3883 = vmul.f32 %v3782, %v3691
        %v3884 = vmul.f32 %v3787, %v3692
        %v3885 = vmul.f32 %v3792, %v3693
        %v3886 = vmul.f32 %v3797, %v3694
        %v3887 = vmul.f32 %v3802, %v3695
        %v3888 = vmul.f32 %v3807, %v3696
        %v3889 = vmul.f32 %v3812, %v3697
        %v3890 = vmul.f32 %v3817, %v3698
        %v3891 = vmul.f32 %v3822, %v3699
        %v3892 = vmul.f32 %v3827, %v3700
        %v3893 = vmul.f32 %v3832, %v3701
        %v3894 = vmul.f32 %v3837, %v3702
        %v3895 = vmul.f32 %v3842, %v3703
        %v3896 = vmul.f32 %v3847, %v3704
        %v3897 = vmul.f32 %v3852, %v3705
        %v3898 = vmul.f32 %v3857, %v3706
        %v3899 = vmul.f32 %v3862, %v3707
        %v3900 = vmul.f32 %v3867, %v3708
        %s3901 = smul.addr %s2321, 4
        %s3902 = scalar_lea.vmem %s6, %s3901
        %v3903 = vld [vmem:[%s3902] sm:$0xf]
        %v3904 = vld [vmem:[%s3902 + $0x4] sm:$0xf]
        %v3905 = vld [vmem:[%s3902 + $0x8] sm:$0xf]
        %v3906 = vld [vmem:[%s3902 + $0xc] sm:$0xf]
        %v3907 = vld [vmem:[%s3902 + $0x10] sm:$0xf]
        %v3908 = vld [vmem:[%s3902 + $0x14] sm:$0xf]
        %v3909 = vld [vmem:[%s3902 + $0x18] sm:$0xf]
        %v3910 = vld [vmem:[%s3902 + $0x1c] sm:$0xf]
        %v3911 = vld [vmem:[%s3902 + $0x20] sm:$0xf]
        %v3912 = vld [vmem:[%s3902 + $0x24] sm:$0xf]
        %v3913 = vld [vmem:[%s3902 + $0x28] sm:$0xf]
        %v3914 = vld [vmem:[%s3902 + $0x2c] sm:$0xf]
        %v3915 = vld [vmem:[%s3902 + $0x30] sm:$0xf]
        %v3916 = vld [vmem:[%s3902 + $0x34] sm:$0xf]
        %v3917 = vld [vmem:[%s3902 + $0x38] sm:$0xf]
        %v3918 = vld [vmem:[%s3902 + $0x3c] sm:$0xf]
        %v3935 = vunpack.c.l.b16 %v3903
        %v3936 = vunpack.c.l.b16 %v3904
        %v3937 = vunpack.c.l.b16 %v3905
        %v3938 = vunpack.c.l.b16 %v3906
        %v3939 = vunpack.c.l.b16 %v3907
        %v3940 = vunpack.c.l.b16 %v3908
        %v3941 = vunpack.c.l.b16 %v3909
        %v3942 = vunpack.c.l.b16 %v3910
        %v3943 = vunpack.c.l.b16 %v3911
        %v3944 = vunpack.c.l.b16 %v3912
        %v3945 = vunpack.c.l.b16 %v3913
        %v3946 = vunpack.c.l.b16 %v3914
        %v3947 = vunpack.c.l.b16 %v3915
        %v3948 = vunpack.c.l.b16 %v3916
        %v3949 = vunpack.c.l.b16 %v3917
        %v3950 = vunpack.c.l.b16 %v3918
        %v3951 = vpack.c.b16 %v3936, %v3935
        %v3952 = vpack.c.b16 %v3938, %v3937
        %v3953 = vpack.c.b16 %v3940, %v3939
        %v3954 = vpack.c.b16 %v3942, %v3941
        %v3955 = vpack.c.b16 %v3944, %v3943
        %v3956 = vpack.c.b16 %v3946, %v3945
        %v3957 = vpack.c.b16 %v3948, %v3947
        %v3958 = vpack.c.b16 %v3950, %v3949
        %3967 = vmatprep.subr.bf16.mxu0 0
        %3968 = vmatpush1.bf16.msra.mxu0 %v3951
        %3969 = vmatprep.subr.bf16.mxu0 0
        %3970 = vmatpush1.bf16.msra.mxu0 %v3952
        %3971 = vmatprep.subr.bf16.mxu0 0
        %3972 = vmatpush1.bf16.msra.mxu0 %v3953
        %3973 = vmatprep.subr.bf16.mxu0 0
        %3974 = vmatpush1.bf16.msra.mxu0 %v3954
        %3975 = vmatprep.subr.bf16.mxu0 0
        %3976 = vmatpush1.bf16.msra.mxu0 %v3955
        %3977 = vmatprep.subr.bf16.mxu0 0
        %3978 = vmatpush1.bf16.msra.mxu0 %v3956
        %3979 = vmatprep.subr.bf16.mxu0 0
        %3980 = vmatpush1.bf16.msra.mxu0 %v3957
        %3981 = vmatprep.subr.bf16.mxu0 0
        %3982 = vmatpush1.bf16.msra.mxu0 %v3958
        %3983 = vmatprep.subr.bf16.mxu0 0
        %3984 = vmatpush1.bf16.msra.mxu0 0
        %3985 = vmatprep.subr.bf16.mxu0 0
        %3986 = vmatpush1.bf16.msra.mxu0 0
        %3987 = vmatprep.subr.bf16.mxu0 0
        %3988 = vmatpush1.bf16.msra.mxu0 0
        %3989 = vmatprep.subr.bf16.mxu0 0
        %3990 = vmatpush1.bf16.msra.mxu0 0
        %3991 = vmatprep.subr.bf16.mxu0 0
        %3992 = vmatpush1.bf16.msra.mxu0 0
        %3993 = vmatprep.subr.bf16.mxu0 0
        %3994 = vmatpush1.bf16.msra.mxu0 0
        %3995 = vmatprep.subr.bf16.mxu0 0
        %3996 = vmatpush1.bf16.msra.mxu0 0
        %3997 = vmatprep.subr.bf16.mxu0 0
        %3998 = vmatpush1.bf16.msra.mxu0 0
        %3999 = vmatprep.mubr.bf16.mxu0 0
        %4000 = vmatmul.mubr.bf16.gmra.mrb[0].mxu0 %v3407
        %v4001 = vpop.f32.mrb[0].mxu0
        %v4002 = vadd.f32 0.0, %v4001
        %v4003 = vpop.f32.mrb[0].mxu0
        %v4004 = vpop.f32.mrb[0].mxu0
        %v4005 = vadd.f32 0.0, %v4004
        %v4006 = vpop.f32.mrb[0].mxu0
        %4007 = vmatprep.mubr.bf16.mxu0 0
        %4008 = vmatmul.mubr.bf16.gmra.mrb[0].mxu0 %v3410
        %v4009 = vpop.f32.mrb[0].mxu0
        %v4010 = vadd.f32 0.0, %v4009
        %v4011 = vpop.f32.mrb[0].mxu0
        %v4012 = vpop.f32.mrb[0].mxu0
        %v4013 = vadd.f32 0.0, %v4012
        %v4014 = vpop.f32.mrb[0].mxu0
        %4015 = vmatprep.mubr.bf16.mxu0 0
        %4016 = vmatmul.mubr.bf16.gmra.mrb[0].mxu0 %v3413
        %v4017 = vpop.f32.mrb[0].mxu0
        %v4018 = vadd.f32 0.0, %v4017
        %v4019 = vpop.f32.mrb[0].mxu0
        %v4020 = vpop.f32.mrb[0].mxu0
        %v4021 = vadd.f32 0.0, %v4020
        %v4022 = vpop.f32.mrb[0].mxu0
        %4023 = vmatprep.mubr.bf16.mxu0 0
        %4024 = vmatmul.mubr.bf16.gmra.mrb[0].mxu0 %v3416
        %v4025 = vpop.f32.mrb[0].mxu0
        %v4026 = vadd.f32 0.0, %v4025
        %v4027 = vpop.f32.mrb[0].mxu0
        %v4028 = vpop.f32.mrb[0].mxu0
        %v4029 = vadd.f32 0.0, %v4028
        %v4030 = vpop.f32.mrb[0].mxu0
        %4031 = vmatprep.mubr.bf16.mxu0 0
        %4032 = vmatmul.mubr.bf16.gmra.mrb[0].mxu0 %v3419
        %v4033 = vpop.f32.mrb[0].mxu0
        %v4034 = vadd.f32 0.0, %v4033
        %v4035 = vpop.f32.mrb[0].mxu0
        %v4036 = vpop.f32.mrb[0].mxu0
        %v4037 = vadd.f32 0.0, %v4036
        %v4038 = vpop.f32.mrb[0].mxu0
        %4039 = vmatprep.mubr.bf16.mxu0 0
        %4040 = vmatmul.mubr.bf16.gmra.mrb[0].mxu0 %v3422
        %v4041 = vpop.f32.mrb[0].mxu0
        %v4042 = vadd.f32 0.0, %v4041
        %v4043 = vpop.f32.mrb[0].mxu0
        %v4044 = vpop.f32.mrb[0].mxu0
        %v4045 = vadd.f32 0.0, %v4044
        %v4046 = vpop.f32.mrb[0].mxu0
        %4047 = vmatprep.mubr.bf16.mxu0 0
        %4048 = vmatmul.mubr.bf16.gmra.mrb[0].mxu0 %v3425
        %v4049 = vpop.f32.mrb[0].mxu0
        %v4050 = vadd.f32 0.0, %v4049
        %v4051 = vpop.f32.mrb[0].mxu0
        %v4052 = vpop.f32.mrb[0].mxu0
        %v4053 = vadd.f32 0.0, %v4052
        %v4054 = vpop.f32.mrb[0].mxu0
        %4055 = vmatprep.mubr.bf16.mxu0 0
        %4056 = vmatmul.mubr.bf16.gmra.mrb[0].mxu0 %v3428
        %v4057 = vpop.f32.mrb[0].mxu0
        %v4058 = vadd.f32 0.0, %v4057
        %v4059 = vpop.f32.mrb[0].mxu0
        %v4060 = vpop.f32.mrb[0].mxu0
        %v4061 = vadd.f32 0.0, %v4060
        %v4062 = vpop.f32.mrb[0].mxu0
        %4063 = vmatprep.mubr.bf16.mxu0 0
        %4064 = vmatmul.mubr.bf16.gmra.mrb[0].mxu0 %v3431
        %v4065 = vpop.f32.mrb[0].mxu0
        %v4066 = vadd.f32 0.0, %v4065
        %v4067 = vpop.f32.mrb[0].mxu0
        %v4068 = vpop.f32.mrb[0].mxu0
        %v4069 = vadd.f32 0.0, %v4068
        %v4070 = vpop.f32.mrb[0].mxu0
        %4071 = vmatprep.mubr.bf16.mxu0 0
        %4072 = vmatmul.mubr.bf16.gmra.mrb[0].mxu0 %v3434
        %v4073 = vpop.f32.mrb[0].mxu0
        %v4074 = vadd.f32 0.0, %v4073
        %v4075 = vpop.f32.mrb[0].mxu0
        %v4076 = vpop.f32.mrb[0].mxu0
        %v4077 = vadd.f32 0.0, %v4076
        %v4078 = vpop.f32.mrb[0].mxu0
        %4079 = vmatprep.mubr.bf16.mxu0 0
        %4080 = vmatmul.mubr.bf16.gmra.mrb[0].mxu0 %v3437
        %v4081 = vpop.f32.mrb[0].mxu0
        %v4082 = vadd.f32 0.0, %v4081
        %v4083 = vpop.f32.mrb[0].mxu0
        %v4084 = vpop.f32.mrb[0].mxu0
        %v4085 = vadd.f32 0.0, %v4084
        %v4086 = vpop.f32.mrb[0].mxu0
        %4087 = vmatprep.mubr.bf16.mxu0 0
        %4088 = vmatmul.mubr.bf16.gmra.mrb[0].mxu0 %v3440
        %v4089 = vpop.f32.mrb[0].mxu0
        %v4090 = vadd.f32 0.0, %v4089
        %v4091 = vpop.f32.mrb[0].mxu0
        %v4092 = vpop.f32.mrb[0].mxu0
        %v4093 = vadd.f32 0.0, %v4092
        %v4094 = vpop.f32.mrb[0].mxu0
        %4095 = vmatprep.mubr.bf16.mxu0 0
        %4096 = vmatmul.mubr.bf16.gmra.mrb[0].mxu0 %v3443
        %v4097 = vpop.f32.mrb[0].mxu0
        %v4098 = vadd.f32 0.0, %v4097
        %v4099 = vpop.f32.mrb[0].mxu0
        %v4100 = vpop.f32.mrb[0].mxu0
        %v4101 = vadd.f32 0.0, %v4100
        %v4102 = vpop.f32.mrb[0].mxu0
        %4103 = vmatprep.mubr.bf16.mxu0 0
        %4104 = vmatmul.mubr.bf16.gmra.mrb[0].mxu0 %v3446
        %v4105 = vpop.f32.mrb[0].mxu0
        %v4106 = vadd.f32 0.0, %v4105
        %v4107 = vpop.f32.mrb[0].mxu0
        %v4108 = vpop.f32.mrb[0].mxu0
        %v4109 = vadd.f32 0.0, %v4108
        %v4110 = vpop.f32.mrb[0].mxu0
        %4111 = vmatprep.mubr.bf16.mxu0 0
        %4112 = vmatmul.mubr.bf16.gmra.mrb[0].mxu0 %v3449
        %v4113 = vpop.f32.mrb[0].mxu0
        %v4114 = vadd.f32 0.0, %v4113
        %v4115 = vpop.f32.mrb[0].mxu0
        %v4116 = vpop.f32.mrb[0].mxu0
        %v4117 = vadd.f32 0.0, %v4116
        %v4118 = vpop.f32.mrb[0].mxu0
        %4119 = vmatprep.mubr.bf16.mxu0 0
        %4120 = vmatmul.mubr.bf16.gmra.mrb[0].mxu0 %v3452
        %v4121 = vpop.f32.mrb[0].mxu0
        %v4122 = vadd.f32 0.0, %v4121
        %v4123 = vpop.f32.mrb[0].mxu0
        %v4124 = vpop.f32.mrb[0].mxu0
        %v4125 = vadd.f32 0.0, %v4124
        %v4126 = vpop.f32.mrb[0].mxu0
        %4127 = vdwg.mxu0
        %v4128 = vadd.f32 %v3869, %v4002
        %v4129 = vadd.f32 %v3870, %v4005
        %v4130 = vadd.f32 %v3871, %v4010
        %v4131 = vadd.f32 %v3872, %v4013
        %v4132 = vadd.f32 %v3873, %v4018
        %v4133 = vadd.f32 %v3874, %v4021
        %v4134 = vadd.f32 %v3875, %v4026
        %v4135 = vadd.f32 %v3876, %v4029
        %v4136 = vadd.f32 %v3877, %v4034
        %v4137 = vadd.f32 %v3878, %v4037
        %v4138 = vadd.f32 %v3879, %v4042
        %v4139 = vadd.f32 %v3880, %v4045
        %v4140 = vadd.f32 %v3881, %v4050
        %v4141 = vadd.f32 %v3882, %v4053
        %v4142 = vadd.f32 %v3883, %v4058
        %v4143 = vadd.f32 %v3884, %v4061
        %v4144 = vadd.f32 %v3885, %v4066
        %v4145 = vadd.f32 %v3886, %v4069
        %v4146 = vadd.f32 %v3887, %v4074
        %v4147 = vadd.f32 %v3888, %v4077
        %v4148 = vadd.f32 %v3889, %v4082
        %v4149 = vadd.f32 %v3890, %v4085
        %v4150 = vadd.f32 %v3891, %v4090
        %v4151 = vadd.f32 %v3892, %v4093
        %v4152 = vadd.f32 %v3893, %v4098
        %v4153 = vadd.f32 %v3894, %v4101
        %v4154 = vadd.f32 %v3895, %v4106
        %v4155 = vadd.f32 %v3896, %v4109
        %v4156 = vadd.f32 %v3897, %v4114
        %v4157 = vadd.f32 %v3898, %v4117
        %v4158 = vadd.f32 %v3899, %v4122
        %v4159 = vadd.f32 %v3900, %v4125
        %4160 = vst [vmem:[#allocation7] sm:$0xff] %v4128
        %4161 = vst [vmem:[#allocation7 + $0x8] sm:$0xff] %v4129
        %4162 = vst [vmem:[#allocation7 + $0x10] sm:$0xff] %v4130
        %4163 = vst [vmem:[#allocation7 + $0x18] sm:$0xff] %v4131
        %4164 = vst [vmem:[#allocation7 + $0x20] sm:$0xff] %v4132
        %4165 = vst [vmem:[#allocation7 + $0x28] sm:$0xff] %v4133
        %4166 = vst [vmem:[#allocation7 + $0x30] sm:$0xff] %v4134
        %4167 = vst [vmem:[#allocation7 + $0x38] sm:$0xff] %v4135
        %4168 = vst [vmem:[#allocation7 + $0x40] sm:$0xff] %v4136
        %4169 = vst [vmem:[#allocation7 + $0x48] sm:$0xff] %v4137
        %4170 = vst [vmem:[#allocation7 + $0x50] sm:$0xff] %v4138
        %4171 = vst [vmem:[#allocation7 + $0x58] sm:$0xff] %v4139
        %4172 = vst [vmem:[#allocation7 + $0x60] sm:$0xff] %v4140
        %4173 = vst [vmem:[#allocation7 + $0x68] sm:$0xff] %v4141
        %4174 = vst [vmem:[#allocation7 + $0x70] sm:$0xff] %v4142
        %4175 = vst [vmem:[#allocation7 + $0x78] sm:$0xff] %v4143
        %4176 = vst [vmem:[#allocation7 + $0x80] sm:$0xff] %v4144
        %4177 = vst [vmem:[#allocation7 + $0x88] sm:$0xff] %v4145
        %4178 = vst [vmem:[#allocation7 + $0x90] sm:$0xff] %v4146
        %4179 = vst [vmem:[#allocation7 + $0x98] sm:$0xff] %v4147
        %4180 = vst [vmem:[#allocation7 + $0xa0] sm:$0xff] %v4148
        %4181 = vst [vmem:[#allocation7 + $0xa8] sm:$0xff] %v4149
        %4182 = vst [vmem:[#allocation7 + $0xb0] sm:$0xff] %v4150
        %4183 = vst [vmem:[#allocation7 + $0xb8] sm:$0xff] %v4151
        %4184 = vst [vmem:[#allocation7 + $0xc0] sm:$0xff] %v4152
        %4185 = vst [vmem:[#allocation7 + $0xc8] sm:$0xff] %v4153
        %4186 = vst [vmem:[#allocation7 + $0xd0] sm:$0xff] %v4154
        %4187 = vst [vmem:[#allocation7 + $0xd8] sm:$0xff] %v4155
        %4188 = vst [vmem:[#allocation7 + $0xe0] sm:$0xff] %v4156
        %4189 = vst [vmem:[#allocation7 + $0xe8] sm:$0xff] %v4157
        %4190 = vst [vmem:[#allocation7 + $0xf0] sm:$0xff] %v4158
        %4191 = vst [vmem:[#allocation7 + $0xf8] sm:$0xff] %v4159
        %4192 = vst.msk [vmem:[#allocation5] sm:$0xff] %vm2064, %v3069
        %4193 = vst.msk [vmem:[#allocation5 + $0x8] sm:$0xff] %vm2064, %v3070
        %4194 = vst.msk [vmem:[#allocation5 + $0x10] sm:$0xff] %vm2064, %v3071
        %4195 = vst.msk [vmem:[#allocation5 + $0x18] sm:$0xff] %vm2064, %v3072
        %4196 = vst.msk [vmem:[#allocation5 + $0x20] sm:$0xff] %vm2064, %v3073
        %4197 = vst.msk [vmem:[#allocation5 + $0x28] sm:$0xff] %vm2064, %v3074
        %4198 = vst.msk [vmem:[#allocation5 + $0x30] sm:$0xff] %vm2064, %v3075
        %4199 = vst.msk [vmem:[#allocation5 + $0x38] sm:$0xff] %vm2064, %v3076
        %4200 = vst.msk [vmem:[#allocation5 + $0x40] sm:$0xff] %vm2064, %v3077
        %4201 = vst.msk [vmem:[#allocation5 + $0x48] sm:$0xff] %vm2064, %v3078
        %4202 = vst.msk [vmem:[#allocation5 + $0x50] sm:$0xff] %vm2064, %v3079
        %4203 = vst.msk [vmem:[#allocation5 + $0x58] sm:$0xff] %vm2064, %v3080
        %4204 = vst.msk [vmem:[#allocation5 + $0x60] sm:$0xff] %vm2064, %v3081
        %4205 = vst.msk [vmem:[#allocation5 + $0x68] sm:$0xff] %vm2064, %v3082
        %4206 = vst.msk [vmem:[#allocation5 + $0x70] sm:$0xff] %vm2064, %v3083
        %4207 = vst.msk [vmem:[#allocation5 + $0x78] sm:$0xff] %vm2064, %v3084
        %4208 = vst.msk [vmem:[#allocation5 + $0x80] sm:$0xff] %vm2064, %v3085
        %4209 = vst.msk [vmem:[#allocation5 + $0x88] sm:$0xff] %vm2064, %v3086
        %4210 = vst.msk [vmem:[#allocation5 + $0x90] sm:$0xff] %vm2064, %v3087
        %4211 = vst.msk [vmem:[#allocation5 + $0x98] sm:$0xff] %vm2064, %v3088
        %4212 = vst.msk [vmem:[#allocation5 + $0xa0] sm:$0xff] %vm2064, %v3089
        %4213 = vst.msk [vmem:[#allocation5 + $0xa8] sm:$0xff] %vm2064, %v3090
        %4214 = vst.msk [vmem:[#allocation5 + $0xb0] sm:$0xff] %vm2064, %v3091
        %4215 = vst.msk [vmem:[#allocation5 + $0xb8] sm:$0xff] %vm2064, %v3092
        %4216 = vst.msk [vmem:[#allocation5 + $0xc0] sm:$0xff] %vm2064, %v3093
        %4217 = vst.msk [vmem:[#allocation5 + $0xc8] sm:$0xff] %vm2064, %v3094
        %4218 = vst.msk [vmem:[#allocation5 + $0xd0] sm:$0xff] %vm2064, %v3095
        %4219 = vst.msk [vmem:[#allocation5 + $0xd8] sm:$0xff] %vm2064, %v3096
        %4220 = vst.msk [vmem:[#allocation5 + $0xe0] sm:$0xff] %vm2064, %v3097
        %4221 = vst.msk [vmem:[#allocation5 + $0xe8] sm:$0xff] %vm2064, %v3098
        %4222 = vst.msk [vmem:[#allocation5 + $0xf0] sm:$0xff] %vm2064, %v3099
        %4223 = vst.msk [vmem:[#allocation5 + $0xf8] sm:$0xff] %vm2064, %v3100
        %p4224 = scmp.eq.s32.totalorder %s29, 3
        // Predicated region
        $region103: #{variational_gat_forward.9} parent=93 // pred_check
          %p4225 = pneg %p4224
        $region104: #{variational_gat_forward.9} parent=93 // pred_check_branch
          %4227 = sbr.rel (%p4225) target = $region106
        $region105: #{variational_gat_forward.9} parent=93 // pred_region
          %v4228 = vld [vmem:[#allocation4] sm:$0xff]
          %v4229 = vld [vmem:[#allocation4 + $0x8] sm:$0xff]
          %v4230 = vld [vmem:[#allocation4 + $0x10] sm:$0xff]
          %v4231 = vld [vmem:[#allocation4 + $0x18] sm:$0xff]
          %v4232 = vld [vmem:[#allocation4 + $0x20] sm:$0xff]
          %v4233 = vld [vmem:[#allocation4 + $0x28] sm:$0xff]
          %v4234 = vld [vmem:[#allocation4 + $0x30] sm:$0xff]
          %v4235 = vld [vmem:[#allocation4 + $0x38] sm:$0xff]
          %v4236 = vld [vmem:[#allocation4 + $0x40] sm:$0xff]
          %v4237 = vld [vmem:[#allocation4 + $0x48] sm:$0xff]
          %v4238 = vld [vmem:[#allocation4 + $0x50] sm:$0xff]
          %v4239 = vld [vmem:[#allocation4 + $0x58] sm:$0xff]
          %v4240 = vld [vmem:[#allocation4 + $0x60] sm:$0xff]
          %v4241 = vld [vmem:[#allocation4 + $0x68] sm:$0xff]
          %v4242 = vld [vmem:[#allocation4 + $0x70] sm:$0xff]
          %v4243 = vld [vmem:[#allocation4 + $0x78] sm:$0xff]
          %v4244 = vld [vmem:[#allocation4 + $0x80] sm:$0xff]
          %v4245 = vld [vmem:[#allocation4 + $0x88] sm:$0xff]
          %v4246 = vld [vmem:[#allocation4 + $0x90] sm:$0xff]
          %v4247 = vld [vmem:[#allocation4 + $0x98] sm:$0xff]
          %v4248 = vld [vmem:[#allocation4 + $0xa0] sm:$0xff]
          %v4249 = vld [vmem:[#allocation4 + $0xa8] sm:$0xff]
          %v4250 = vld [vmem:[#allocation4 + $0xb0] sm:$0xff]
          %v4251 = vld [vmem:[#allocation4 + $0xb8] sm:$0xff]
          %v4252 = vld [vmem:[#allocation4 + $0xc0] sm:$0xff]
          %v4253 = vld [vmem:[#allocation4 + $0xc8] sm:$0xff]
          %v4254 = vld [vmem:[#allocation4 + $0xd0] sm:$0xff]
          %v4255 = vld [vmem:[#allocation4 + $0xd8] sm:$0xff]
          %v4256 = vld [vmem:[#allocation4 + $0xe0] sm:$0xff]
          %v4257 = vld [vmem:[#allocation4 + $0xe8] sm:$0xff]
          %v4258 = vld [vmem:[#allocation4 + $0xf0] sm:$0xff]
          %v4259 = vld [vmem:[#allocation4 + $0xf8] sm:$0xff]
          %v4260 = vld [vmem:[#allocation3] sm:$0xff]
          %v4261 = vld [vmem:[#allocation3 + $0x8] sm:$0xff]
          %v4262 = vld [vmem:[#allocation3 + $0x10] sm:$0xff]
          %v4263 = vld [vmem:[#allocation3 + $0x18] sm:$0xff]
          %v4264 = vld [vmem:[#allocation3 + $0x20] sm:$0xff]
          %v4265 = vld [vmem:[#allocation3 + $0x28] sm:$0xff]
          %v4266 = vld [vmem:[#allocation3 + $0x30] sm:$0xff]
          %v4267 = vld [vmem:[#allocation3 + $0x38] sm:$0xff]
          %v4268 = vld [vmem:[#allocation3 + $0x40] sm:$0xff]
          %v4269 = vld [vmem:[#allocation3 + $0x48] sm:$0xff]
          %v4270 = vld [vmem:[#allocation3 + $0x50] sm:$0xff]
          %v4271 = vld [vmem:[#allocation3 + $0x58] sm:$0xff]
          %v4272 = vld [vmem:[#allocation3 + $0x60] sm:$0xff]
          %v4273 = vld [vmem:[#allocation3 + $0x68] sm:$0xff]
          %v4274 = vld [vmem:[#allocation3 + $0x70] sm:$0xff]
          %v4275 = vld [vmem:[#allocation3 + $0x78] sm:$0xff]
          %v4276 = vld [vmem:[#allocation3 + $0x80] sm:$0xff]
          %v4277 = vld [vmem:[#allocation3 + $0x88] sm:$0xff]
          %v4278 = vld [vmem:[#allocation3 + $0x90] sm:$0xff]
          %v4279 = vld [vmem:[#allocation3 + $0x98] sm:$0xff]
          %v4280 = vld [vmem:[#allocation3 + $0xa0] sm:$0xff]
          %v4281 = vld [vmem:[#allocation3 + $0xa8] sm:$0xff]
          %v4282 = vld [vmem:[#allocation3 + $0xb0] sm:$0xff]
          %v4283 = vld [vmem:[#allocation3 + $0xb8] sm:$0xff]
          %v4284 = vld [vmem:[#allocation3 + $0xc0] sm:$0xff]
          %v4285 = vld [vmem:[#allocation3 + $0xc8] sm:$0xff]
          %v4286 = vld [vmem:[#allocation3 + $0xd0] sm:$0xff]
          %v4287 = vld [vmem:[#allocation3 + $0xd8] sm:$0xff]
          %v4288 = vld [vmem:[#allocation3 + $0xe0] sm:$0xff]
          %v4289 = vld [vmem:[#allocation3 + $0xe8] sm:$0xff]
          %v4290 = vld [vmem:[#allocation3 + $0xf0] sm:$0xff]
          %v4291 = vld [vmem:[#allocation3 + $0xf8] sm:$0xff]
          %v4292 = vrcp.pop %v4260
          %v4293 = vrcp.pop %v4261
          %v4294 = vrcp.pop %v4262
          %v4295 = vrcp.pop %v4263
          %v4296 = vrcp.pop %v4264
          %v4297 = vrcp.pop %v4265
          %v4298 = vrcp.pop %v4266
          %v4299 = vrcp.pop %v4267
          %v4300 = vrcp.pop %v4268
          %v4301 = vrcp.pop %v4269
          %v4302 = vrcp.pop %v4270
          %v4303 = vrcp.pop %v4271
          %v4304 = vrcp.pop %v4272
          %v4305 = vrcp.pop %v4273
          %v4306 = vrcp.pop %v4274
          %v4307 = vrcp.pop %v4275
          %v4308 = vrcp.pop %v4276
          %v4309 = vrcp.pop %v4277
          %v4310 = vrcp.pop %v4278
          %v4311 = vrcp.pop %v4279
          %v4312 = vrcp.pop %v4280
          %v4313 = vrcp.pop %v4281
          %v4314 = vrcp.pop %v4282
          %v4315 = vrcp.pop %v4283
          %v4316 = vrcp.pop %v4284
          %v4317 = vrcp.pop %v4285
          %v4318 = vrcp.pop %v4286
          %v4319 = vrcp.pop %v4287
          %v4320 = vrcp.pop %v4288
          %v4321 = vrcp.pop %v4289
          %v4322 = vrcp.pop %v4290
          %v4323 = vrcp.pop %v4291
          %4325 = vset.pattern.permute.xlu0 0
          %4326 = vperm.xlu0 %4325, %v4292
          %v4327 = vpop.permute.xlu0 %4326
          %4330 = vset.pattern.permute.xlu0 0
          %4331 = vperm.xlu0 %4330, %v4293
          %v4332 = vpop.permute.xlu0 %4331
          %4335 = vset.pattern.permute.xlu0 0
          %4336 = vperm.xlu0 %4335, %v4294
          %v4337 = vpop.permute.xlu0 %4336
          %4340 = vset.pattern.permute.xlu0 0
          %4341 = vperm.xlu0 %4340, %v4295
          %v4342 = vpop.permute.xlu0 %4341
          %4345 = vset.pattern.permute.xlu0 0
          %4346 = vperm.xlu0 %4345, %v4296
          %v4347 = vpop.permute.xlu0 %4346
          %4350 = vset.pattern.permute.xlu0 0
          %4351 = vperm.xlu0 %4350, %v4297
          %v4352 = vpop.permute.xlu0 %4351
          %4355 = vset.pattern.permute.xlu0 0
          %4356 = vperm.xlu0 %4355, %v4298
          %v4357 = vpop.permute.xlu0 %4356
          %4360 = vset.pattern.permute.xlu0 0
          %4361 = vperm.xlu0 %4360, %v4299
          %v4362 = vpop.permute.xlu0 %4361
          %4365 = vset.pattern.permute.xlu0 0
          %4366 = vperm.xlu0 %4365, %v4300
          %v4367 = vpop.permute.xlu0 %4366
          %4370 = vset.pattern.permute.xlu0 0
          %4371 = vperm.xlu0 %4370, %v4301
          %v4372 = vpop.permute.xlu0 %4371
          %4375 = vset.pattern.permute.xlu0 0
          %4376 = vperm.xlu0 %4375, %v4302
          %v4377 = vpop.permute.xlu0 %4376
          %4380 = vset.pattern.permute.xlu0 0
          %4381 = vperm.xlu0 %4380, %v4303
          %v4382 = vpop.permute.xlu0 %4381
          %4385 = vset.pattern.permute.xlu0 0
          %4386 = vperm.xlu0 %4385, %v4304
          %v4387 = vpop.permute.xlu0 %4386
          %4390 = vset.pattern.permute.xlu0 0
          %4391 = vperm.xlu0 %4390, %v4305
          %v4392 = vpop.permute.xlu0 %4391
          %4395 = vset.pattern.permute.xlu0 0
          %4396 = vperm.xlu0 %4395, %v4306
          %v4397 = vpop.permute.xlu0 %4396
          %4400 = vset.pattern.permute.xlu0 0
          %4401 = vperm.xlu0 %4400, %v4307
          %v4402 = vpop.permute.xlu0 %4401
          %4405 = vset.pattern.permute.xlu0 0
          %4406 = vperm.xlu0 %4405, %v4308
          %v4407 = vpop.permute.xlu0 %4406
          %4410 = vset.pattern.permute.xlu0 0
          %4411 = vperm.xlu0 %4410, %v4309
          %v4412 = vpop.permute.xlu0 %4411
          %4415 = vset.pattern.permute.xlu0 0
          %4416 = vperm.xlu0 %4415, %v4310
          %v4417 = vpop.permute.xlu0 %4416
          %4420 = vset.pattern.permute.xlu0 0
          %4421 = vperm.xlu0 %4420, %v4311
          %v4422 = vpop.permute.xlu0 %4421
          %4425 = vset.pattern.permute.xlu0 0
          %4426 = vperm.xlu0 %4425, %v4312
          %v4427 = vpop.permute.xlu0 %4426
          %4430 = vset.pattern.permute.xlu0 0
          %4431 = vperm.xlu0 %4430, %v4313
          %v4432 = vpop.permute.xlu0 %4431
          %4435 = vset.pattern.permute.xlu0 0
          %4436 = vperm.xlu0 %4435, %v4314
          %v4437 = vpop.permute.xlu0 %4436
          %4440 = vset.pattern.permute.xlu0 0
          %4441 = vperm.xlu0 %4440, %v4315
          %v4442 = vpop.permute.xlu0 %4441
          %4445 = vset.pattern.permute.xlu0 0
          %4446 = vperm.xlu0 %4445, %v4316
          %v4447 = vpop.permute.xlu0 %4446
          %4450 = vset.pattern.permute.xlu0 0
          %4451 = vperm.xlu0 %4450, %v4317
          %v4452 = vpop.permute.xlu0 %4451
          %4455 = vset.pattern.permute.xlu0 0
          %4456 = vperm.xlu0 %4455, %v4318
          %v4457 = vpop.permute.xlu0 %4456
          %4460 = vset.pattern.permute.xlu0 0
          %4461 = vperm.xlu0 %4460, %v4319
          %v4462 = vpop.permute.xlu0 %4461
          %4465 = vset.pattern.permute.xlu0 0
          %4466 = vperm.xlu0 %4465, %v4320
          %v4467 = vpop.permute.xlu0 %4466
          %4470 = vset.pattern.permute.xlu0 0
          %4471 = vperm.xlu0 %4470, %v4321
          %v4472 = vpop.permute.xlu0 %4471
          %4475 = vset.pattern.permute.xlu0 0
          %4476 = vperm.xlu0 %4475, %v4322
          %v4477 = vpop.permute.xlu0 %4476
          %4480 = vset.pattern.permute.xlu0 0
          %4481 = vperm.xlu0 %4480, %v4323
          %v4482 = vpop.permute.xlu0 %4481
          %v4484 = vmul.f32 %v4228, %v4327
          %v4485 = vmul.f32 %v4229, %v4332
          %v4486 = vmul.f32 %v4230, %v4337
          %v4487 = vmul.f32 %v4231, %v4342
          %v4488 = vmul.f32 %v4232, %v4347
          %v4489 = vmul.f32 %v4233, %v4352
          %v4490 = vmul.f32 %v4234, %v4357
          %v4491 = vmul.f32 %v4235, %v4362
          %v4492 = vmul.f32 %v4236, %v4367
          %v4493 = vmul.f32 %v4237, %v4372
          %v4494 = vmul.f32 %v4238, %v4377
          %v4495 = vmul.f32 %v4239, %v4382
          %v4496 = vmul.f32 %v4240, %v4387
          %v4497 = vmul.f32 %v4241, %v4392
          %v4498 = vmul.f32 %v4242, %v4397
          %v4499 = vmul.f32 %v4243, %v4402
          %v4500 = vmul.f32 %v4244, %v4407
          %v4501 = vmul.f32 %v4245, %v4412
          %v4502 = vmul.f32 %v4246, %v4417
          %v4503 = vmul.f32 %v4247, %v4422
          %v4504 = vmul.f32 %v4248, %v4427
          %v4505 = vmul.f32 %v4249, %v4432
          %v4506 = vmul.f32 %v4250, %v4437
          %v4507 = vmul.f32 %v4251, %v4442
          %v4508 = vmul.f32 %v4252, %v4447
          %v4509 = vmul.f32 %v4253, %v4452
          %v4510 = vmul.f32 %v4254, %v4457
          %v4511 = vmul.f32 %v4255, %v4462
          %v4512 = vmul.f32 %v4256, %v4467
          %v4513 = vmul.f32 %v4257, %v4472
          %v4514 = vmul.f32 %v4258, %v4477
          %v4515 = vmul.f32 %v4259, %v4482
          %v4516 = vld [vmem:[#allocation7] sm:$0xff]
          %v4517 = vld [vmem:[#allocation7 + $0x8] sm:$0xff]
          %v4518 = vld [vmem:[#allocation7 + $0x10] sm:$0xff]
          %v4519 = vld [vmem:[#allocation7 + $0x18] sm:$0xff]
          %v4520 = vld [vmem:[#allocation7 + $0x20] sm:$0xff]
          %v4521 = vld [vmem:[#allocation7 + $0x28] sm:$0xff]
          %v4522 = vld [vmem:[#allocation7 + $0x30] sm:$0xff]
          %v4523 = vld [vmem:[#allocation7 + $0x38] sm:$0xff]
          %v4524 = vld [vmem:[#allocation7 + $0x40] sm:$0xff]
          %v4525 = vld [vmem:[#allocation7 + $0x48] sm:$0xff]
          %v4526 = vld [vmem:[#allocation7 + $0x50] sm:$0xff]
          %v4527 = vld [vmem:[#allocation7 + $0x58] sm:$0xff]
          %v4528 = vld [vmem:[#allocation7 + $0x60] sm:$0xff]
          %v4529 = vld [vmem:[#allocation7 + $0x68] sm:$0xff]
          %v4530 = vld [vmem:[#allocation7 + $0x70] sm:$0xff]
          %v4531 = vld [vmem:[#allocation7 + $0x78] sm:$0xff]
          %v4532 = vld [vmem:[#allocation7 + $0x80] sm:$0xff]
          %v4533 = vld [vmem:[#allocation7 + $0x88] sm:$0xff]
          %v4534 = vld [vmem:[#allocation7 + $0x90] sm:$0xff]
          %v4535 = vld [vmem:[#allocation7 + $0x98] sm:$0xff]
          %v4536 = vld [vmem:[#allocation7 + $0xa0] sm:$0xff]
          %v4537 = vld [vmem:[#allocation7 + $0xa8] sm:$0xff]
          %v4538 = vld [vmem:[#allocation7 + $0xb0] sm:$0xff]
          %v4539 = vld [vmem:[#allocation7 + $0xb8] sm:$0xff]
          %v4540 = vld [vmem:[#allocation7 + $0xc0] sm:$0xff]
          %v4541 = vld [vmem:[#allocation7 + $0xc8] sm:$0xff]
          %v4542 = vld [vmem:[#allocation7 + $0xd0] sm:$0xff]
          %v4543 = vld [vmem:[#allocation7 + $0xd8] sm:$0xff]
          %v4544 = vld [vmem:[#allocation7 + $0xe0] sm:$0xff]
          %v4545 = vld [vmem:[#allocation7 + $0xe8] sm:$0xff]
          %v4546 = vld [vmem:[#allocation7 + $0xf0] sm:$0xff]
          %v4547 = vld [vmem:[#allocation7 + $0xf8] sm:$0xff]
          %v4548 = vld [vmem:[#allocation6] sm:$0xff]
          %v4549 = vld [vmem:[#allocation6 + $0x8] sm:$0xff]
          %v4550 = vld [vmem:[#allocation6 + $0x10] sm:$0xff]
          %v4551 = vld [vmem:[#allocation6 + $0x18] sm:$0xff]
          %v4552 = vld [vmem:[#allocation6 + $0x20] sm:$0xff]
          %v4553 = vld [vmem:[#allocation6 + $0x28] sm:$0xff]
          %v4554 = vld [vmem:[#allocation6 + $0x30] sm:$0xff]
          %v4555 = vld [vmem:[#allocation6 + $0x38] sm:$0xff]
          %v4556 = vld [vmem:[#allocation6 + $0x40] sm:$0xff]
          %v4557 = vld [vmem:[#allocation6 + $0x48] sm:$0xff]
          %v4558 = vld [vmem:[#allocation6 + $0x50] sm:$0xff]
          %v4559 = vld [vmem:[#allocation6 + $0x58] sm:$0xff]
          %v4560 = vld [vmem:[#allocation6 + $0x60] sm:$0xff]
          %v4561 = vld [vmem:[#allocation6 + $0x68] sm:$0xff]
          %v4562 = vld [vmem:[#allocation6 + $0x70] sm:$0xff]
          %v4563 = vld [vmem:[#allocation6 + $0x78] sm:$0xff]
          %v4564 = vld [vmem:[#allocation6 + $0x80] sm:$0xff]
          %v4565 = vld [vmem:[#allocation6 + $0x88] sm:$0xff]
          %v4566 = vld [vmem:[#allocation6 + $0x90] sm:$0xff]
          %v4567 = vld [vmem:[#allocation6 + $0x98] sm:$0xff]
          %v4568 = vld [vmem:[#allocation6 + $0xa0] sm:$0xff]
          %v4569 = vld [vmem:[#allocation6 + $0xa8] sm:$0xff]
          %v4570 = vld [vmem:[#allocation6 + $0xb0] sm:$0xff]
          %v4571 = vld [vmem:[#allocation6 + $0xb8] sm:$0xff]
          %v4572 = vld [vmem:[#allocation6 + $0xc0] sm:$0xff]
          %v4573 = vld [vmem:[#allocation6 + $0xc8] sm:$0xff]
          %v4574 = vld [vmem:[#allocation6 + $0xd0] sm:$0xff]
          %v4575 = vld [vmem:[#allocation6 + $0xd8] sm:$0xff]
          %v4576 = vld [vmem:[#allocation6 + $0xe0] sm:$0xff]
          %v4577 = vld [vmem:[#allocation6 + $0xe8] sm:$0xff]
          %v4578 = vld [vmem:[#allocation6 + $0xf0] sm:$0xff]
          %v4579 = vld [vmem:[#allocation6 + $0xf8] sm:$0xff]
          %v4580 = vrcp.pop %v4548
          %v4581 = vrcp.pop %v4549
          %v4582 = vrcp.pop %v4550
          %v4583 = vrcp.pop %v4551
          %v4584 = vrcp.pop %v4552
          %v4585 = vrcp.pop %v4553
          %v4586 = vrcp.pop %v4554
          %v4587 = vrcp.pop %v4555
          %v4588 = vrcp.pop %v4556
          %v4589 = vrcp.pop %v4557
          %v4590 = vrcp.pop %v4558
          %v4591 = vrcp.pop %v4559
          %v4592 = vrcp.pop %v4560
          %v4593 = vrcp.pop %v4561
          %v4594 = vrcp.pop %v4562
          %v4595 = vrcp.pop %v4563
          %v4596 = vrcp.pop %v4564
          %v4597 = vrcp.pop %v4565
          %v4598 = vrcp.pop %v4566
          %v4599 = vrcp.pop %v4567
          %v4600 = vrcp.pop %v4568
          %v4601 = vrcp.pop %v4569
          %v4602 = vrcp.pop %v4570
          %v4603 = vrcp.pop %v4571
          %v4604 = vrcp.pop %v4572
          %v4605 = vrcp.pop %v4573
          %v4606 = vrcp.pop %v4574
          %v4607 = vrcp.pop %v4575
          %v4608 = vrcp.pop %v4576
          %v4609 = vrcp.pop %v4577
          %v4610 = vrcp.pop %v4578
          %v4611 = vrcp.pop %v4579
          %4613 = vset.pattern.permute.xlu0 0
          %4614 = vperm.xlu0 %4613, %v4580
          %v4615 = vpop.permute.xlu0 %4614
          %4618 = vset.pattern.permute.xlu0 0
          %4619 = vperm.xlu0 %4618, %v4581
          %v4620 = vpop.permute.xlu0 %4619
          %4623 = vset.pattern.permute.xlu0 0
          %4624 = vperm.xlu0 %4623, %v4582
          %v4625 = vpop.permute.xlu0 %4624
          %4628 = vset.pattern.permute.xlu0 0
          %4629 = vperm.xlu0 %4628, %v4583
          %v4630 = vpop.permute.xlu0 %4629
          %4633 = vset.pattern.permute.xlu0 0
          %4634 = vperm.xlu0 %4633, %v4584
          %v4635 = vpop.permute.xlu0 %4634
          %4638 = vset.pattern.permute.xlu0 0
          %4639 = vperm.xlu0 %4638, %v4585
          %v4640 = vpop.permute.xlu0 %4639
          %4643 = vset.pattern.permute.xlu0 0
          %4644 = vperm.xlu0 %4643, %v4586
          %v4645 = vpop.permute.xlu0 %4644
          %4648 = vset.pattern.permute.xlu0 0
          %4649 = vperm.xlu0 %4648, %v4587
          %v4650 = vpop.permute.xlu0 %4649
          %4653 = vset.pattern.permute.xlu0 0
          %4654 = vperm.xlu0 %4653, %v4588
          %v4655 = vpop.permute.xlu0 %4654
          %4658 = vset.pattern.permute.xlu0 0
          %4659 = vperm.xlu0 %4658, %v4589
          %v4660 = vpop.permute.xlu0 %4659
          %4663 = vset.pattern.permute.xlu0 0
          %4664 = vperm.xlu0 %4663, %v4590
          %v4665 = vpop.permute.xlu0 %4664
          %4668 = vset.pattern.permute.xlu0 0
          %4669 = vperm.xlu0 %4668, %v4591
          %v4670 = vpop.permute.xlu0 %4669
          %4673 = vset.pattern.permute.xlu0 0
          %4674 = vperm.xlu0 %4673, %v4592
          %v4675 = vpop.permute.xlu0 %4674
          %4678 = vset.pattern.permute.xlu0 0
          %4679 = vperm.xlu0 %4678, %v4593
          %v4680 = vpop.permute.xlu0 %4679
          %4683 = vset.pattern.permute.xlu0 0
          %4684 = vperm.xlu0 %4683, %v4594
          %v4685 = vpop.permute.xlu0 %4684
          %4688 = vset.pattern.permute.xlu0 0
          %4689 = vperm.xlu0 %4688, %v4595
          %v4690 = vpop.permute.xlu0 %4689
          %4693 = vset.pattern.permute.xlu0 0
          %4694 = vperm.xlu0 %4693, %v4596
          %v4695 = vpop.permute.xlu0 %4694
          %4698 = vset.pattern.permute.xlu0 0
          %4699 = vperm.xlu0 %4698, %v4597
          %v4700 = vpop.permute.xlu0 %4699
          %4703 = vset.pattern.permute.xlu0 0
          %4704 = vperm.xlu0 %4703, %v4598
          %v4705 = vpop.permute.xlu0 %4704
          %4708 = vset.pattern.permute.xlu0 0
          %4709 = vperm.xlu0 %4708, %v4599
          %v4710 = vpop.permute.xlu0 %4709
          %4713 = vset.pattern.permute.xlu0 0
          %4714 = vperm.xlu0 %4713, %v4600
          %v4715 = vpop.permute.xlu0 %4714
          %4718 = vset.pattern.permute.xlu0 0
          %4719 = vperm.xlu0 %4718, %v4601
          %v4720 = vpop.permute.xlu0 %4719
          %4723 = vset.pattern.permute.xlu0 0
          %4724 = vperm.xlu0 %4723, %v4602
          %v4725 = vpop.permute.xlu0 %4724
          %4728 = vset.pattern.permute.xlu0 0
          %4729 = vperm.xlu0 %4728, %v4603
          %v4730 = vpop.permute.xlu0 %4729
          %4733 = vset.pattern.permute.xlu0 0
          %4734 = vperm.xlu0 %4733, %v4604
          %v4735 = vpop.permute.xlu0 %4734
          %4738 = vset.pattern.permute.xlu0 0
          %4739 = vperm.xlu0 %4738, %v4605
          %v4740 = vpop.permute.xlu0 %4739
          %4743 = vset.pattern.permute.xlu0 0
          %4744 = vperm.xlu0 %4743, %v4606
          %v4745 = vpop.permute.xlu0 %4744
          %4748 = vset.pattern.permute.xlu0 0
          %4749 = vperm.xlu0 %4748, %v4607
          %v4750 = vpop.permute.xlu0 %4749
          %4753 = vset.pattern.permute.xlu0 0
          %4754 = vperm.xlu0 %4753, %v4608
          %v4755 = vpop.permute.xlu0 %4754
          %4758 = vset.pattern.permute.xlu0 0
          %4759 = vperm.xlu0 %4758, %v4609
          %v4760 = vpop.permute.xlu0 %4759
          %4763 = vset.pattern.permute.xlu0 0
          %4764 = vperm.xlu0 %4763, %v4610
          %v4765 = vpop.permute.xlu0 %4764
          %4768 = vset.pattern.permute.xlu0 0
          %4769 = vperm.xlu0 %4768, %v4611
          %v4770 = vpop.permute.xlu0 %4769
          %v4772 = vmul.f32 %v4516, %v4615
          %v4773 = vmul.f32 %v4517, %v4620
          %v4774 = vmul.f32 %v4518, %v4625
          %v4775 = vmul.f32 %v4519, %v4630
          %v4776 = vmul.f32 %v4520, %v4635
          %v4777 = vmul.f32 %v4521, %v4640
          %v4778 = vmul.f32 %v4522, %v4645
          %v4779 = vmul.f32 %v4523, %v4650
          %v4780 = vmul.f32 %v4524, %v4655
          %v4781 = vmul.f32 %v4525, %v4660
          %v4782 = vmul.f32 %v4526, %v4665
          %v4783 = vmul.f32 %v4527, %v4670
          %v4784 = vmul.f32 %v4528, %v4675
          %v4785 = vmul.f32 %v4529, %v4680
          %v4786 = vmul.f32 %v4530, %v4685
          %v4787 = vmul.f32 %v4531, %v4690
          %v4788 = vmul.f32 %v4532, %v4695
          %v4789 = vmul.f32 %v4533, %v4700
          %v4790 = vmul.f32 %v4534, %v4705
          %v4791 = vmul.f32 %v4535, %v4710
          %v4792 = vmul.f32 %v4536, %v4715
          %v4793 = vmul.f32 %v4537, %v4720
          %v4794 = vmul.f32 %v4538, %v4725
          %v4795 = vmul.f32 %v4539, %v4730
          %v4796 = vmul.f32 %v4540, %v4735
          %v4797 = vmul.f32 %v4541, %v4740
          %v4798 = vmul.f32 %v4542, %v4745
          %v4799 = vmul.f32 %v4543, %v4750
          %v4800 = vmul.f32 %v4544, %v4755
          %v4801 = vmul.f32 %v4545, %v4760
          %v4802 = vmul.f32 %v4546, %v4765
          %v4803 = vmul.f32 %v4547, %v4770
          %4804 = vst [vmem:[%s608] sm:$0xff] %v4484
          %4805 = vst [vmem:[%s608 + $0x8] sm:$0xff] %v4485
          %4806 = vst [vmem:[%s608 + $0x10] sm:$0xff] %v4486
          %4807 = vst [vmem:[%s608 + $0x18] sm:$0xff] %v4487
          %4808 = vst [vmem:[%s608 + $0x20] sm:$0xff] %v4488
          %4809 = vst [vmem:[%s608 + $0x28] sm:$0xff] %v4489
          %4810 = vst [vmem:[%s608 + $0x30] sm:$0xff] %v4490
          %4811 = vst [vmem:[%s608 + $0x38] sm:$0xff] %v4491
          %4812 = vst [vmem:[%s608 + $0x40] sm:$0xff] %v4492
          %4813 = vst [vmem:[%s608 + $0x48] sm:$0xff] %v4493
          %4814 = vst [vmem:[%s608 + $0x50] sm:$0xff] %v4494
          %4815 = vst [vmem:[%s608 + $0x58] sm:$0xff] %v4495
          %4816 = vst [vmem:[%s608 + $0x60] sm:$0xff] %v4496
          %4817 = vst [vmem:[%s608 + $0x68] sm:$0xff] %v4497
          %4818 = vst [vmem:[%s608 + $0x70] sm:$0xff] %v4498
          %4819 = vst [vmem:[%s608 + $0x78] sm:$0xff] %v4499
          %4820 = vst [vmem:[%s608 + $0x80] sm:$0xff] %v4500
          %4821 = vst [vmem:[%s608 + $0x88] sm:$0xff] %v4501
          %4822 = vst [vmem:[%s608 + $0x90] sm:$0xff] %v4502
          %4823 = vst [vmem:[%s608 + $0x98] sm:$0xff] %v4503
          %4824 = vst [vmem:[%s608 + $0xa0] sm:$0xff] %v4504
          %4825 = vst [vmem:[%s608 + $0xa8] sm:$0xff] %v4505
          %4826 = vst [vmem:[%s608 + $0xb0] sm:$0xff] %v4506
          %4827 = vst [vmem:[%s608 + $0xb8] sm:$0xff] %v4507
          %4828 = vst [vmem:[%s608 + $0xc0] sm:$0xff] %v4508
          %4829 = vst [vmem:[%s608 + $0xc8] sm:$0xff] %v4509
          %4830 = vst [vmem:[%s608 + $0xd0] sm:$0xff] %v4510
          %4831 = vst [vmem:[%s608 + $0xd8] sm:$0xff] %v4511
          %4832 = vst [vmem:[%s608 + $0xe0] sm:$0xff] %v4512
          %4833 = vst [vmem:[%s608 + $0xe8] sm:$0xff] %v4513
          %4834 = vst [vmem:[%s608 + $0xf0] sm:$0xff] %v4514
          %4835 = vst [vmem:[%s608 + $0xf8] sm:$0xff] %v4515
          %4836 = vst [vmem:[%s614] sm:$0xff] %v4772
          %4837 = vst [vmem:[%s614 + $0x8] sm:$0xff] %v4773
          %4838 = vst [vmem:[%s614 + $0x10] sm:$0xff] %v4774
          %4839 = vst [vmem:[%s614 + $0x18] sm:$0xff] %v4775
          %4840 = vst [vmem:[%s614 + $0x20] sm:$0xff] %v4776
          %4841 = vst [vmem:[%s614 + $0x28] sm:$0xff] %v4777
          %4842 = vst [vmem:[%s614 + $0x30] sm:$0xff] %v4778
          %4843 = vst [vmem:[%s614 + $0x38] sm:$0xff] %v4779
          %4844 = vst [vmem:[%s614 + $0x40] sm:$0xff] %v4780
          %4845 = vst [vmem:[%s614 + $0x48] sm:$0xff] %v4781
          %4846 = vst [vmem:[%s614 + $0x50] sm:$0xff] %v4782
          %4847 = vst [vmem:[%s614 + $0x58] sm:$0xff] %v4783
          %4848 = vst [vmem:[%s614 + $0x60] sm:$0xff] %v4784
          %4849 = vst [vmem:[%s614 + $0x68] sm:$0xff] %v4785
          %4850 = vst [vmem:[%s614 + $0x70] sm:$0xff] %v4786
          %4851 = vst [vmem:[%s614 + $0x78] sm:$0xff] %v4787
          %4852 = vst [vmem:[%s614 + $0x80] sm:$0xff] %v4788
          %4853 = vst [vmem:[%s614 + $0x88] sm:$0xff] %v4789
          %4854 = vst [vmem:[%s614 + $0x90] sm:$0xff] %v4790
          %4855 = vst [vmem:[%s614 + $0x98] sm:$0xff] %v4791
          %4856 = vst [vmem:[%s614 + $0xa0] sm:$0xff] %v4792
          %4857 = vst [vmem:[%s614 + $0xa8] sm:$0xff] %v4793
          %4858 = vst [vmem:[%s614 + $0xb0] sm:$0xff] %v4794
          %4859 = vst [vmem:[%s614 + $0xb8] sm:$0xff] %v4795
          %4860 = vst [vmem:[%s614 + $0xc0] sm:$0xff] %v4796
          %4861 = vst [vmem:[%s614 + $0xc8] sm:$0xff] %v4797
          %4862 = vst [vmem:[%s614 + $0xd0] sm:$0xff] %v4798
          %4863 = vst [vmem:[%s614 + $0xd8] sm:$0xff] %v4799
          %4864 = vst [vmem:[%s614 + $0xe0] sm:$0xff] %v4800
          %4865 = vst [vmem:[%s614 + $0xe8] sm:$0xff] %v4801
          %4866 = vst [vmem:[%s614 + $0xf0] sm:$0xff] %v4802
          %4867 = vst [vmem:[%s614 + $0xf8] sm:$0xff] %v4803
          %v4868 = vld [vmem:[%s596] sm:$0xff]
          %v4869 = vld [vmem:[%s596 + $0x8] sm:$0xff]
          %v4870 = vld [vmem:[%s596 + $0x10] sm:$0xff]
          %v4871 = vld [vmem:[%s596 + $0x18] sm:$0xff]
          %v4872 = vld [vmem:[%s596 + $0x20] sm:$0xff]
          %v4873 = vld [vmem:[%s596 + $0x28] sm:$0xff]
          %v4874 = vld [vmem:[%s596 + $0x30] sm:$0xff]
          %v4875 = vld [vmem:[%s596 + $0x38] sm:$0xff]
          %v4876 = vld [vmem:[%s596 + $0x40] sm:$0xff]
          %v4877 = vld [vmem:[%s596 + $0x48] sm:$0xff]
          %v4878 = vld [vmem:[%s596 + $0x50] sm:$0xff]
          %v4879 = vld [vmem:[%s596 + $0x58] sm:$0xff]
          %v4880 = vld [vmem:[%s596 + $0x60] sm:$0xff]
          %v4881 = vld [vmem:[%s596 + $0x68] sm:$0xff]
          %v4882 = vld [vmem:[%s596 + $0x70] sm:$0xff]
          %v4883 = vld [vmem:[%s596 + $0x78] sm:$0xff]
          %v4884 = vld [vmem:[%s596 + $0x80] sm:$0xff]
          %v4885 = vld [vmem:[%s596 + $0x88] sm:$0xff]
          %v4886 = vld [vmem:[%s596 + $0x90] sm:$0xff]
          %v4887 = vld [vmem:[%s596 + $0x98] sm:$0xff]
          %v4888 = vld [vmem:[%s596 + $0xa0] sm:$0xff]
          %v4889 = vld [vmem:[%s596 + $0xa8] sm:$0xff]
          %v4890 = vld [vmem:[%s596 + $0xb0] sm:$0xff]
          %v4891 = vld [vmem:[%s596 + $0xb8] sm:$0xff]
          %v4892 = vld [vmem:[%s596 + $0xc0] sm:$0xff]
          %v4893 = vld [vmem:[%s596 + $0xc8] sm:$0xff]
          %v4894 = vld [vmem:[%s596 + $0xd0] sm:$0xff]
          %v4895 = vld [vmem:[%s596 + $0xd8] sm:$0xff]
          %v4896 = vld [vmem:[%s596 + $0xe0] sm:$0xff]
          %v4897 = vld [vmem:[%s596 + $0xe8] sm:$0xff]
          %v4898 = vld [vmem:[%s596 + $0xf0] sm:$0xff]
          %v4899 = vld [vmem:[%s596 + $0xf8] sm:$0xff]
          %v4900 = vmul.f32 %v4772, 0.5
          %v4901 = vmul.f32 %v4773, 0.5
          %v4902 = vmul.f32 %v4774, 0.5
          %v4903 = vmul.f32 %v4775, 0.5
          %v4904 = vmul.f32 %v4776, 0.5
          %v4905 = vmul.f32 %v4777, 0.5
          %v4906 = vmul.f32 %v4778, 0.5
          %v4907 = vmul.f32 %v4779, 0.5
          %v4908 = vmul.f32 %v4780, 0.5
          %v4909 = vmul.f32 %v4781, 0.5
          %v4910 = vmul.f32 %v4782, 0.5
          %v4911 = vmul.f32 %v4783, 0.5
          %v4912 = vmul.f32 %v4784, 0.5
          %v4913 = vmul.f32 %v4785, 0.5
          %v4914 = vmul.f32 %v4786, 0.5
          %v4915 = vmul.f32 %v4787, 0.5
          %v4916 = vmul.f32 %v4788, 0.5
          %v4917 = vmul.f32 %v4789, 0.5
          %v4918 = vmul.f32 %v4790, 0.5
          %v4919 = vmul.f32 %v4791, 0.5
          %v4920 = vmul.f32 %v4792, 0.5
          %v4921 = vmul.f32 %v4793, 0.5
          %v4922 = vmul.f32 %v4794, 0.5
          %v4923 = vmul.f32 %v4795, 0.5
          %v4924 = vmul.f32 %v4796, 0.5
          %v4925 = vmul.f32 %v4797, 0.5
          %v4926 = vmul.f32 %v4798, 0.5
          %v4927 = vmul.f32 %v4799, 0.5
          %v4928 = vmul.f32 %v4800, 0.5
          %v4929 = vmul.f32 %v4801, 0.5
          %v4930 = vmul.f32 %v4802, 0.5
          %v4931 = vmul.f32 %v4803, 0.5
          %v4932 = vmul.f32 %v4900, 1.442695
          %v4933 = vpow.pop %v4932
          %v4934 = vmul.f32 %v4901, 1.442695
          %v4935 = vpow.pop %v4934
          %v4936 = vmul.f32 %v4902, 1.442695
          %v4937 = vpow.pop %v4936
          %v4938 = vmul.f32 %v4903, 1.442695
          %v4939 = vpow.pop %v4938
          %v4940 = vmul.f32 %v4904, 1.442695
          %v4941 = vpow.pop %v4940
          %v4942 = vmul.f32 %v4905, 1.442695
          %v4943 = vpow.pop %v4942
          %v4944 = vmul.f32 %v4906, 1.442695
          %v4945 = vpow.pop %v4944
          %v4946 = vmul.f32 %v4907, 1.442695
          %v4947 = vpow.pop %v4946
          %v4948 = vmul.f32 %v4908, 1.442695
          %v4949 = vpow.pop %v4948
          %v4950 = vmul.f32 %v4909, 1.442695
          %v4951 = vpow.pop %v4950
          %v4952 = vmul.f32 %v4910, 1.442695
          %v4953 = vpow.pop %v4952
          %v4954 = vmul.f32 %v4911, 1.442695
          %v4955 = vpow.pop %v4954
          %v4956 = vmul.f32 %v4912, 1.442695
          %v4957 = vpow.pop %v4956
          %v4958 = vmul.f32 %v4913, 1.442695
          %v4959 = vpow.pop %v4958
          %v4960 = vmul.f32 %v4914, 1.442695
          %v4961 = vpow.pop %v4960
          %v4962 = vmul.f32 %v4915, 1.442695
          %v4963 = vpow.pop %v4962
          %v4964 = vmul.f32 %v4916, 1.442695
          %v4965 = vpow.pop %v4964
          %v4966 = vmul.f32 %v4917, 1.442695
          %v4967 = vpow.pop %v4966
          %v4968 = vmul.f32 %v4918, 1.442695
          %v4969 = vpow.pop %v4968
          %v4970 = vmul.f32 %v4919, 1.442695
          %v4971 = vpow.pop %v4970
          %v4972 = vmul.f32 %v4920, 1.442695
          %v4973 = vpow.pop %v4972
          %v4974 = vmul.f32 %v4921, 1.442695
          %v4975 = vpow.pop %v4974
          %v4976 = vmul.f32 %v4922, 1.442695
          %v4977 = vpow.pop %v4976
          %v4978 = vmul.f32 %v4923, 1.442695
          %v4979 = vpow.pop %v4978
          %v4980 = vmul.f32 %v4924, 1.442695
          %v4981 = vpow.pop %v4980
          %v4982 = vmul.f32 %v4925, 1.442695
          %v4983 = vpow.pop %v4982
          %v4984 = vmul.f32 %v4926, 1.442695
          %v4985 = vpow.pop %v4984
          %v4986 = vmul.f32 %v4927, 1.442695
          %v4987 = vpow.pop %v4986
          %v4988 = vmul.f32 %v4928, 1.442695
          %v4989 = vpow.pop %v4988
          %v4990 = vmul.f32 %v4929, 1.442695
          %v4991 = vpow.pop %v4990
          %v4992 = vmul.f32 %v4930, 1.442695
          %v4993 = vpow.pop %v4992
          %v4994 = vmul.f32 %v4931, 1.442695
          %v4995 = vpow.pop %v4994
          %v4996 = vmul.f32 %v4868, %v4933
          %v4997 = vmul.f32 %v4869, %v4935
          %v4998 = vmul.f32 %v4870, %v4937
          %v4999 = vmul.f32 %v4871, %v4939
          %v5000 = vmul.f32 %v4872, %v4941
          %v5001 = vmul.f32 %v4873, %v4943
          %v5002 = vmul.f32 %v4874, %v4945
          %v5003 = vmul.f32 %v4875, %v4947
          %v5004 = vmul.f32 %v4876, %v4949
          %v5005 = vmul.f32 %v4877, %v4951
          %v5006 = vmul.f32 %v4878, %v4953
          %v5007 = vmul.f32 %v4879, %v4955
          %v5008 = vmul.f32 %v4880, %v4957
          %v5009 = vmul.f32 %v4881, %v4959
          %v5010 = vmul.f32 %v4882, %v4961
          %v5011 = vmul.f32 %v4883, %v4963
          %v5012 = vmul.f32 %v4884, %v4965
          %v5013 = vmul.f32 %v4885, %v4967
          %v5014 = vmul.f32 %v4886, %v4969
          %v5015 = vmul.f32 %v4887, %v4971
          %v5016 = vmul.f32 %v4888, %v4973
          %v5017 = vmul.f32 %v4889, %v4975
          %v5018 = vmul.f32 %v4890, %v4977
          %v5019 = vmul.f32 %v4891, %v4979
          %v5020 = vmul.f32 %v4892, %v4981
          %v5021 = vmul.f32 %v4893, %v4983
          %v5022 = vmul.f32 %v4894, %v4985
          %v5023 = vmul.f32 %v4895, %v4987
          %v5024 = vmul.f32 %v4896, %v4989
          %v5025 = vmul.f32 %v4897, %v4991
          %v5026 = vmul.f32 %v4898, %v4993
          %v5027 = vmul.f32 %v4899, %v4995
          %v5028 = vadd.f32 %v4484, %v4996
          %v5029 = vadd.f32 %v4485, %v4997
          %v5030 = vadd.f32 %v4486, %v4998
          %v5031 = vadd.f32 %v4487, %v4999
          %v5032 = vadd.f32 %v4488, %v5000
          %v5033 = vadd.f32 %v4489, %v5001
          %v5034 = vadd.f32 %v4490, %v5002
          %v5035 = vadd.f32 %v4491, %v5003
          %v5036 = vadd.f32 %v4492, %v5004
          %v5037 = vadd.f32 %v4493, %v5005
          %v5038 = vadd.f32 %v4494, %v5006
          %v5039 = vadd.f32 %v4495, %v5007
          %v5040 = vadd.f32 %v4496, %v5008
          %v5041 = vadd.f32 %v4497, %v5009
          %v5042 = vadd.f32 %v4498, %v5010
          %v5043 = vadd.f32 %v4499, %v5011
          %v5044 = vadd.f32 %v4500, %v5012
          %v5045 = vadd.f32 %v4501, %v5013
          %v5046 = vadd.f32 %v4502, %v5014
          %v5047 = vadd.f32 %v4503, %v5015
          %v5048 = vadd.f32 %v4504, %v5016
          %v5049 = vadd.f32 %v4505, %v5017
          %v5050 = vadd.f32 %v4506, %v5018
          %v5051 = vadd.f32 %v4507, %v5019
          %v5052 = vadd.f32 %v4508, %v5020
          %v5053 = vadd.f32 %v4509, %v5021
          %v5054 = vadd.f32 %v4510, %v5022
          %v5055 = vadd.f32 %v4511, %v5023
          %v5056 = vadd.f32 %v4512, %v5024
          %v5057 = vadd.f32 %v4513, %v5025
          %v5058 = vadd.f32 %v4514, %v5026
          %v5059 = vadd.f32 %v4515, %v5027
          %v5060 = vld [vmem:[%s8] sm:$0xff]
          %v5061 = vld [vmem:[%s8 + $0x8] sm:$0xff]
          %v5062 = vld [vmem:[%s8 + $0x10] sm:$0xff]
          %v5063 = vld [vmem:[%s8 + $0x18] sm:$0xff]
          %v5064 = vld [vmem:[%s8 + $0x20] sm:$0xff]
          %v5065 = vld [vmem:[%s8 + $0x28] sm:$0xff]
          %v5066 = vld [vmem:[%s8 + $0x30] sm:$0xff]
          %v5067 = vld [vmem:[%s8 + $0x38] sm:$0xff]
          %v5068 = vld [vmem:[%s8 + $0x40] sm:$0xff]
          %v5069 = vld [vmem:[%s8 + $0x48] sm:$0xff]
          %v5070 = vld [vmem:[%s8 + $0x50] sm:$0xff]
          %v5071 = vld [vmem:[%s8 + $0x58] sm:$0xff]
          %v5072 = vld [vmem:[%s8 + $0x60] sm:$0xff]
          %v5073 = vld [vmem:[%s8 + $0x68] sm:$0xff]
          %v5074 = vld [vmem:[%s8 + $0x70] sm:$0xff]
          %v5075 = vld [vmem:[%s8 + $0x78] sm:$0xff]
          %v5076 = vld [vmem:[%s9] sm:$0x1]
          %v5078 = vlaneseq
          %v5079 = vshrl.u32 %v5078, 7
          %v5080 = vsub.s32 0, %v5079
          %v5081 = vrot.slane %v5076, %v5080
          %5083 = vmatprep.subr.mxu0 0.0
          %5084 = vmatpush1.msra.mxu0 %v5060
          %5085 = vmatprep.subr.mxu0 0.0
          %5086 = vmatpush1.msra.mxu0 %v5061
          %5087 = vmatprep.subr.mxu0 0.0
          %5088 = vmatpush1.msra.mxu0 %v5062
          %5089 = vmatprep.subr.mxu0 0.0
          %5090 = vmatpush1.msra.mxu0 %v5063
          %5091 = vmatprep.subr.mxu0 0.0
          %5092 = vmatpush1.msra.mxu0 %v5064
          %5093 = vmatprep.subr.mxu0 0.0
          %5094 = vmatpush1.msra.mxu0 %v5065
          %5095 = vmatprep.subr.mxu0 0.0
          %5096 = vmatpush1.msra.mxu0 %v5066
          %5097 = vmatprep.subr.mxu0 0.0
          %5098 = vmatpush1.msra.mxu0 %v5067
          %5099 = vmatprep.subr.mxu0 0.0
          %5100 = vmatpush1.msra.mxu0 %v5068
          %5101 = vmatprep.subr.mxu0 0.0
          %5102 = vmatpush1.msra.mxu0 %v5069
          %5103 = vmatprep.subr.mxu0 0.0
          %5104 = vmatpush1.msra.mxu0 %v5070
          %5105 = vmatprep.subr.mxu0 0.0
          %5106 = vmatpush1.msra.mxu0 %v5071
          %5107 = vmatprep.subr.mxu0 0.0
          %5108 = vmatpush1.msra.mxu0 %v5072
          %5109 = vmatprep.subr.mxu0 0.0
          %5110 = vmatpush1.msra.mxu0 %v5073
          %5111 = vmatprep.subr.mxu0 0.0
          %5112 = vmatpush1.msra.mxu0 %v5074
          %5113 = vmatprep.subr.mxu0 0.0
          %5114 = vmatpush1.msra.mxu0 %v5075
          %5115 = vmatprep.subr.mxu0 0.0
          %5116 = vmatpush1.msra.mxu0 0.0
          %5117 = vmatprep.subr.mxu0 0.0
          %5118 = vmatpush1.msra.mxu0 0.0
          %5119 = vmatprep.subr.mxu0 0.0
          %5120 = vmatpush1.msra.mxu0 0.0
          %5121 = vmatprep.subr.mxu0 0.0
          %5122 = vmatpush1.msra.mxu0 0.0
          %5123 = vmatprep.subr.mxu0 0.0
          %5124 = vmatpush1.msra.mxu0 0.0
          %5125 = vmatprep.subr.mxu0 0.0
          %5126 = vmatpush1.msra.mxu0 0.0
          %5127 = vmatprep.subr.mxu0 0.0
          %5128 = vmatpush1.msra.mxu0 0.0
          %5129 = vmatprep.subr.mxu0 0.0
          %5130 = vmatpush1.msra.mxu0 0.0
          %5131 = vmatprep.subr.mxu0 0.0
          %5132 = vmatpush1.msra.mxu0 0.0
          %5133 = vmatprep.subr.mxu0 0.0
          %5134 = vmatpush1.msra.mxu0 0.0
          %5135 = vmatprep.subr.mxu0 0.0
          %5136 = vmatpush1.msra.mxu0 0.0
          %5137 = vmatprep.subr.mxu0 0.0
          %5138 = vmatpush1.msra.mxu0 0.0
          %5139 = vmatprep.subr.mxu0 0.0
          %5140 = vmatpush1.msra.mxu0 0.0
          %5141 = vmatprep.subr.mxu0 0.0
          %5142 = vmatpush1.msra.mxu0 0.0
          %5143 = vmatprep.subr.mxu0 0.0
          %5144 = vmatpush1.msra.mxu0 0.0
          %5145 = vmatprep.subr.mxu0 0.0
          %5146 = vmatpush1.msra.mxu0 0.0
          %5147 = vmatprep.mubr.f32.mxu0 0.0
          %5148 = vmatmul.mubr.f32.gmra.mrb[0].mxu0 %v5028
          %v5149 = vpop.f32.mrb[0].mxu0
          %v5150 = vadd.f32 %v5081, %v5149
          %v5151 = vpop.f32.mrb[0].mxu0
          %5152 = vmatprep.mubr.f32.mxu0 0.0
          %5153 = vmatmul.mubr.f32.gmra.mrb[0].mxu0 %v5029
          %v5154 = vpop.f32.mrb[0].mxu0
          %v5155 = vadd.f32 %v5081, %v5154
          %v5156 = vpop.f32.mrb[0].mxu0
          %5157 = vmatprep.mubr.f32.mxu0 0.0
          %5158 = vmatmul.mubr.f32.gmra.mrb[0].mxu0 %v5030
          %v5159 = vpop.f32.mrb[0].mxu0
          %v5160 = vadd.f32 %v5081, %v5159
          %v5161 = vpop.f32.mrb[0].mxu0
          %5162 = vmatprep.mubr.f32.mxu0 0.0
          %5163 = vmatmul.mubr.f32.gmra.mrb[0].mxu0 %v5031
          %v5164 = vpop.f32.mrb[0].mxu0
          %v5165 = vadd.f32 %v5081, %v5164
          %v5166 = vpop.f32.mrb[0].mxu0
          %5167 = vmatprep.mubr.f32.mxu0 0.0
          %5168 = vmatmul.mubr.f32.gmra.mrb[0].mxu0 %v5032
          %v5169 = vpop.f32.mrb[0].mxu0
          %v5170 = vadd.f32 %v5081, %v5169
          %v5171 = vpop.f32.mrb[0].mxu0
          %5172 = vmatprep.mubr.f32.mxu0 0.0
          %5173 = vmatmul.mubr.f32.gmra.mrb[0].mxu0 %v5033
          %v5174 = vpop.f32.mrb[0].mxu0
          %v5175 = vadd.f32 %v5081, %v5174
          %v5176 = vpop.f32.mrb[0].mxu0
          %5177 = vmatprep.mubr.f32.mxu0 0.0
          %5178 = vmatmul.mubr.f32.gmra.mrb[0].mxu0 %v5034
          %v5179 = vpop.f32.mrb[0].mxu0
          %v5180 = vadd.f32 %v5081, %v5179
          %v5181 = vpop.f32.mrb[0].mxu0
          %5182 = vmatprep.mubr.f32.mxu0 0.0
          %5183 = vmatmul.mubr.f32.gmra.mrb[0].mxu0 %v5035
          %v5184 = vpop.f32.mrb[0].mxu0
          %v5185 = vadd.f32 %v5081, %v5184
          %v5186 = vpop.f32.mrb[0].mxu0
          %5187 = vmatprep.mubr.f32.mxu0 0.0
          %5188 = vmatmul.mubr.f32.gmra.mrb[0].mxu0 %v5036
          %v5189 = vpop.f32.mrb[0].mxu0
          %v5190 = vadd.f32 %v5081, %v5189
          %v5191 = vpop.f32.mrb[0].mxu0
          %5192 = vmatprep.mubr.f32.mxu0 0.0
          %5193 = vmatmul.mubr.f32.gmra.mrb[0].mxu0 %v5037
          %v5194 = vpop.f32.mrb[0].mxu0
          %v5195 = vadd.f32 %v5081, %v5194
          %v5196 = vpop.f32.mrb[0].mxu0
          %5197 = vmatprep.mubr.f32.mxu0 0.0
          %5198 = vmatmul.mubr.f32.gmra.mrb[0].mxu0 %v5038
          %v5199 = vpop.f32.mrb[0].mxu0
          %v5200 = vadd.f32 %v5081, %v5199
          %v5201 = vpop.f32.mrb[0].mxu0
          %5202 = vmatprep.mubr.f32.mxu0 0.0
          %5203 = vmatmul.mubr.f32.gmra.mrb[0].mxu0 %v5039
          %v5204 = vpop.f32.mrb[0].mxu0
          %v5205 = vadd.f32 %v5081, %v5204
          %v5206 = vpop.f32.mrb[0].mxu0
          %5207 = vmatprep.mubr.f32.mxu0 0.0
          %5208 = vmatmul.mubr.f32.gmra.mrb[0].mxu0 %v5040
          %v5209 = vpop.f32.mrb[0].mxu0
          %v5210 = vadd.f32 %v5081, %v5209
          %v5211 = vpop.f32.mrb[0].mxu0
          %5212 = vmatprep.mubr.f32.mxu0 0.0
          %5213 = vmatmul.mubr.f32.gmra.mrb[0].mxu0 %v5041
          %v5214 = vpop.f32.mrb[0].mxu0
          %v5215 = vadd.f32 %v5081, %v5214
          %v5216 = vpop.f32.mrb[0].mxu0
          %5217 = vmatprep.mubr.f32.mxu0 0.0
          %5218 = vmatmul.mubr.f32.gmra.mrb[0].mxu0 %v5042
          %v5219 = vpop.f32.mrb[0].mxu0
          %v5220 = vadd.f32 %v5081, %v5219
          %v5221 = vpop.f32.mrb[0].mxu0
          %5222 = vmatprep.mubr.f32.mxu0 0.0
          %5223 = vmatmul.mubr.f32.gmra.mrb[0].mxu0 %v5043
          %v5224 = vpop.f32.mrb[0].mxu0
          %v5225 = vadd.f32 %v5081, %v5224
          %v5226 = vpop.f32.mrb[0].mxu0
          %5227 = vmatprep.mubr.f32.mxu0 0.0
          %5228 = vmatmul.mubr.f32.gmra.mrb[0].mxu0 %v5044
          %v5229 = vpop.f32.mrb[0].mxu0
          %v5230 = vadd.f32 %v5081, %v5229
          %v5231 = vpop.f32.mrb[0].mxu0
          %5232 = vmatprep.mubr.f32.mxu0 0.0
          %5233 = vmatmul.mubr.f32.gmra.mrb[0].mxu0 %v5045
          %v5234 = vpop.f32.mrb[0].mxu0
          %v5235 = vadd.f32 %v5081, %v5234
          %v5236 = vpop.f32.mrb[0].mxu0
          %5237 = vmatprep.mubr.f32.mxu0 0.0
          %5238 = vmatmul.mubr.f32.gmra.mrb[0].mxu0 %v5046
          %v5239 = vpop.f32.mrb[0].mxu0
          %v5240 = vadd.f32 %v5081, %v5239
          %v5241 = vpop.f32.mrb[0].mxu0
          %5242 = vmatprep.mubr.f32.mxu0 0.0
          %5243 = vmatmul.mubr.f32.gmra.mrb[0].mxu0 %v5047
          %v5244 = vpop.f32.mrb[0].mxu0
          %v5245 = vadd.f32 %v5081, %v5244
          %v5246 = vpop.f32.mrb[0].mxu0
          %5247 = vmatprep.mubr.f32.mxu0 0.0
          %5248 = vmatmul.mubr.f32.gmra.mrb[0].mxu0 %v5048
          %v5249 = vpop.f32.mrb[0].mxu0
          %v5250 = vadd.f32 %v5081, %v5249
          %v5251 = vpop.f32.mrb[0].mxu0
          %5252 = vmatprep.mubr.f32.mxu0 0.0
          %5253 = vmatmul.mubr.f32.gmra.mrb[0].mxu0 %v5049
          %v5254 = vpop.f32.mrb[0].mxu0
          %v5255 = vadd.f32 %v5081, %v5254
          %v5256 = vpop.f32.mrb[0].mxu0
          %5257 = vmatprep.mubr.f32.mxu0 0.0
          %5258 = vmatmul.mubr.f32.gmra.mrb[0].mxu0 %v5050
          %v5259 = vpop.f32.mrb[0].mxu0
          %v5260 = vadd.f32 %v5081, %v5259
          %v5261 = vpop.f32.mrb[0].mxu0
          %5262 = vmatprep.mubr.f32.mxu0 0.0
          %5263 = vmatmul.mubr.f32.gmra.mrb[0].mxu0 %v5051
          %v5264 = vpop.f32.mrb[0].mxu0
          %v5265 = vadd.f32 %v5081, %v5264
          %v5266 = vpop.f32.mrb[0].mxu0
          %5267 = vmatprep.mubr.f32.mxu0 0.0
          %5268 = vmatmul.mubr.f32.gmra.mrb[0].mxu0 %v5052
          %v5269 = vpop.f32.mrb[0].mxu0
          %v5270 = vadd.f32 %v5081, %v5269
          %v5271 = vpop.f32.mrb[0].mxu0
          %5272 = vmatprep.mubr.f32.mxu0 0.0
          %5273 = vmatmul.mubr.f32.gmra.mrb[0].mxu0 %v5053
          %v5274 = vpop.f32.mrb[0].mxu0
          %v5275 = vadd.f32 %v5081, %v5274
          %v5276 = vpop.f32.mrb[0].mxu0
          %5277 = vmatprep.mubr.f32.mxu0 0.0
          %5278 = vmatmul.mubr.f32.gmra.mrb[0].mxu0 %v5054
          %v5279 = vpop.f32.mrb[0].mxu0
          %v5280 = vadd.f32 %v5081, %v5279
          %v5281 = vpop.f32.mrb[0].mxu0
          %5282 = vmatprep.mubr.f32.mxu0 0.0
          %5283 = vmatmul.mubr.f32.gmra.mrb[0].mxu0 %v5055
          %v5284 = vpop.f32.mrb[0].mxu0
          %v5285 = vadd.f32 %v5081, %v5284
          %v5286 = vpop.f32.mrb[0].mxu0
          %5287 = vmatprep.mubr.f32.mxu0 0.0
          %5288 = vmatmul.mubr.f32.gmra.mrb[0].mxu0 %v5056
          %v5289 = vpop.f32.mrb[0].mxu0
          %v5290 = vadd.f32 %v5081, %v5289
          %v5291 = vpop.f32.mrb[0].mxu0
          %5292 = vmatprep.mubr.f32.mxu0 0.0
          %5293 = vmatmul.mubr.f32.gmra.mrb[0].mxu0 %v5057
          %v5294 = vpop.f32.mrb[0].mxu0
          %v5295 = vadd.f32 %v5081, %v5294
          %v5296 = vpop.f32.mrb[0].mxu0
          %5297 = vmatprep.mubr.f32.mxu0 0.0
          %5298 = vmatmul.mubr.f32.gmra.mrb[0].mxu0 %v5058
          %v5299 = vpop.f32.mrb[0].mxu0
          %v5300 = vadd.f32 %v5081, %v5299
          %v5301 = vpop.f32.mrb[0].mxu0
          %5302 = vmatprep.mubr.f32.mxu0 0.0
          %5303 = vmatmul.mubr.f32.gmra.mrb[0].mxu0 %v5059
          %v5304 = vpop.f32.mrb[0].mxu0
          %v5305 = vadd.f32 %v5081, %v5304
          %v5306 = vpop.f32.mrb[0].mxu0
          %5307 = vdwg.mxu0
          %5308 = vst [vmem:[%s602] sm:$0xff] %v5150
          %5309 = vst [vmem:[%s602 + $0x8] sm:$0xff] %v5155
          %5310 = vst [vmem:[%s602 + $0x10] sm:$0xff] %v5160
          %5311 = vst [vmem:[%s602 + $0x18] sm:$0xff] %v5165
          %5312 = vst [vmem:[%s602 + $0x20] sm:$0xff] %v5170
          %5313 = vst [vmem:[%s602 + $0x28] sm:$0xff] %v5175
          %5314 = vst [vmem:[%s602 + $0x30] sm:$0xff] %v5180
          %5315 = vst [vmem:[%s602 + $0x38] sm:$0xff] %v5185
          %5316 = vst [vmem:[%s602 + $0x40] sm:$0xff] %v5190
          %5317 = vst [vmem:[%s602 + $0x48] sm:$0xff] %v5195
          %5318 = vst [vmem:[%s602 + $0x50] sm:$0xff] %v5200
          %5319 = vst [vmem:[%s602 + $0x58] sm:$0xff] %v5205
          %5320 = vst [vmem:[%s602 + $0x60] sm:$0xff] %v5210
          %5321 = vst [vmem:[%s602 + $0x68] sm:$0xff] %v5215
          %5322 = vst [vmem:[%s602 + $0x70] sm:$0xff] %v5220
          %5323 = vst [vmem:[%s602 + $0x78] sm:$0xff] %v5225
          %5324 = vst [vmem:[%s602 + $0x80] sm:$0xff] %v5230
          %5325 = vst [vmem:[%s602 + $0x88] sm:$0xff] %v5235
          %5326 = vst [vmem:[%s602 + $0x90] sm:$0xff] %v5240
          %5327 = vst [vmem:[%s602 + $0x98] sm:$0xff] %v5245
          %5328 = vst [vmem:[%s602 + $0xa0] sm:$0xff] %v5250
          %5329 = vst [vmem:[%s602 + $0xa8] sm:$0xff] %v5255
          %5330 = vst [vmem:[%s602 + $0xb0] sm:$0xff] %v5260
          %5331 = vst [vmem:[%s602 + $0xb8] sm:$0xff] %v5265
          %5332 = vst [vmem:[%s602 + $0xc0] sm:$0xff] %v5270
          %5333 = vst [vmem:[%s602 + $0xc8] sm:$0xff] %v5275
          %5334 = vst [vmem:[%s602 + $0xd0] sm:$0xff] %v5280
          %5335 = vst [vmem:[%s602 + $0xd8] sm:$0xff] %v5285
          %5336 = vst [vmem:[%s602 + $0xe0] sm:$0xff] %v5290
          %5337 = vst [vmem:[%s602 + $0xe8] sm:$0xff] %v5295
          %5338 = vst [vmem:[%s602 + $0xf0] sm:$0xff] %v5300
          %5339 = vst [vmem:[%s602 + $0xf8] sm:$0xff] %v5305
        $region106: #{variational_gat_forward.9} parent=93 // pred_fallthru
          _
        %s5340 = smul.u32 32, %s28
        %p5341 = scmp.lt.s32.totalorder %s5340, 63
        %s5342 = scalar_select %p5341, %s5340, 63
        %s5343 = smul.addr %s5342, 8
        %s5344 = scalar_lea.vmem %s10, %s5343
        %s5345 = smul.u32 32, %s28
        %p5346 = scmp.lt.s32.totalorder %s5345, 63
        %s5347 = scalar_select %p5346, %s5345, 63
        %s5348 = smul.addr %s5347, 8
        %s5349 = scalar_lea.vmem %s11, %s5348
        %s5350 = smul.u32 32, %s28
        %p5351 = scmp.lt.s32.totalorder %s5350, 63
        %s5352 = scalar_select %p5351, %s5350, 63
        %s5353 = smul.addr %s5352, 8
        %s5354 = scalar_lea.vmem %s12, %s5353
        // Predicated region
        $region107: #{variational_gat_forward.9} parent=93 // pred_check
          %p5355 = pneg %p296
        $region108: #{variational_gat_forward.9} parent=93 // pred_check_branch
          %5357 = sbr.rel (%p5355) target = $region110
        $region109: #{variational_gat_forward.9} parent=93 // pred_region
          %s5358 = smul.u32 32, %s28
        $region110: #{variational_gat_forward.9} parent=93 // pred_fallthru
          _
        // Predicated region
        $region111: #{variational_gat_forward.9} parent=93 // pred_check
          %p5359 = pneg %p322
        $region112: #{variational_gat_forward.9} parent=93 // pred_check_branch
          %5361 = sbr.rel (%p5359) target = $region114
        $region113: #{variational_gat_forward.9} parent=93 // pred_region
          %s5362 = smul.u32 32, %s28
        $region114: #{variational_gat_forward.9} parent=93 // pred_fallthru
          _
        // Predicated region
        $region115: #{variational_gat_forward.9} parent=93 // pred_check
          %p5363 = pneg %p348
        $region116: #{variational_gat_forward.9} parent=93 // pred_check_branch
          %5365 = sbr.rel (%p5363) target = $region118
        $region117: #{variational_gat_forward.9} parent=93 // pred_region
          %s5366 = smul.u32 32, %s28
        $region118: #{variational_gat_forward.9} parent=93 // pred_fallthru
          _
      $region94: #{variational_gat_forward.9} parent=5 // pred_fallthru
        _
      %p5367 = scmp.le.s32.totalorder 2, %s19
      // Predicated region
      $region119: #{variational_gat_forward.9} parent=5 // pred_check
        %p5368 = pneg %p5367
      $region120: #{variational_gat_forward.9} parent=5 // pred_check_branch
        %5370 = sbr.rel (%p5368) target = $region122
      $region121: #{variational_gat_forward.9} parent=5 // pred_region
        %s5371 = ssub.s32 %s19, 2
        // Predicated region
        $region123: #{variational_gat_forward.9} parent=121 // pred_check
          %p5372 = pneg %p302
        $region124: #{variational_gat_forward.9} parent=121 // pred_check_branch
          %5374 = sbr.rel (%p5372) target = $region126
        $region125: #{variational_gat_forward.9} parent=121 // pred_region
          %s5375 = smul.u32 32, %s30
          %p5376 = scmp.lt.s32.totalorder %s5375, 63
          %s5377 = scalar_select %p5376, %s5375, 63
          %s5378 = smul.addr %s5377, 8
          %s5379 = scalar_lea.vmem %s10, %s5378
        $region126: #{variational_gat_forward.9} parent=121 // pred_fallthru
          _
        // Predicated region
        $region127: #{variational_gat_forward.9} parent=121 // pred_check
          %p5380 = pneg %p328
        $region128: #{variational_gat_forward.9} parent=121 // pred_check_branch
          %5382 = sbr.rel (%p5380) target = $region130
        $region129: #{variational_gat_forward.9} parent=121 // pred_region
          %s5383 = smul.u32 32, %s30
          %p5384 = scmp.lt.s32.totalorder %s5383, 63
          %s5385 = scalar_select %p5384, %s5383, 63
          %s5386 = smul.addr %s5385, 8
          %s5387 = scalar_lea.vmem %s11, %s5386
        $region130: #{variational_gat_forward.9} parent=121 // pred_fallthru
          _
        // Predicated region
        $region131: #{variational_gat_forward.9} parent=121 // pred_check
          %p5388 = pneg %p354
        $region132: #{variational_gat_forward.9} parent=121 // pred_check_branch
          %5390 = sbr.rel (%p5388) target = $region134
        $region133: #{variational_gat_forward.9} parent=121 // pred_region
          %s5391 = smul.u32 32, %s30
          %p5392 = scmp.lt.s32.totalorder %s5391, 63
          %s5393 = scalar_select %p5392, %s5391, 63
          %s5394 = smul.addr %s5393, 8
          %s5395 = scalar_lea.vmem %s12, %s5394
        $region134: #{variational_gat_forward.9} parent=121 // pred_fallthru
          _
      $region122: #{variational_gat_forward.9} parent=5 // pred_fallthru
        _
    $region6: #{variational_gat_forward.9} parent=1 // loop_footer
      %s23 = sadd.s32 1, %s19
    $region7: #{variational_gat_forward.9} parent=1 // loop_footer_branch
      %18 = sbr.rel target = $region3
    $region8: #{variational_gat_forward.9} parent=1 // loop_exit
      _

</llo_original>
